<compile_context>
chip_gen: v5e
topology: v5e:2x2
jax: 0.10.0
libtpu: 0.0.40
codegen_flags: <defaults>
</compile_context>

<pallas_src>
import functools

import jax
import jax.numpy as jnp
from jax import lax
from jax.experimental import pallas as pl
from jax.experimental.pallas import tpu as pltpu


# ---------------------------------------------------------------------------
# Fused RDB Pallas kernel
# ---------------------------------------------------------------------------

def _rdb_fused_kernel(x_ref, w3_ref, w1_ref, o_ref, fbuf, pbuf, *,
                      H, W, C0, G, L, scale, compute_dtype):
    """Fused RDB forward for one batch element.

    x_ref : (1, H, W, C0)         block input (NHWC)
    w3_ref: (L, 9*Ctot, G)        im2col 3x3 weights, zero-padded along Cin
    w1_ref: (Ctot, C0)            1x1 conv weights
    o_ref : (1, H, W, C0)         block output
    fbuf  : (H+2, W+2, Ctot) f32  zero-padded dense feature stack (VMEM scratch)
    pbuf  : (H*W, 9*Ctot)    f32  im2col patch matrix (VMEM scratch)
    """
    Ctot = C0 + L * G
    HW = H * W

    # Zero the halo ring + not-yet-written channels.  Also keeps the zero rows
    # of the padded weights multiplying exact zeros in pbuf.
    fbuf[...] = jnp.zeros((H + 2, W + 2, Ctot), jnp.float32)
    pbuf[...] = jnp.zeros((HW, 9 * Ctot), jnp.float32)

    # Residual / first dense input goes into the interior of the padded buffer.
    x = x_ref[0].astype(jnp.float32)                       # (H, W, C0)
    fbuf[1:H + 1, 1:W + 1, 0:C0] = x

    filled = 0            # channels already packed into pbuf
    cin = C0              # channels currently present in fbuf
    for i in range(L):    # dense layers (unrolled at trace time)
        # Incremental im2col: append only the channels added since the last
        # layer to each of the 9 shifted tap views.
        width = cin - filled
        for t in range(9):
            dy, dx = divmod(t, 3)
            tap = fbuf[dy:dy + H, dx:dx + W, filled:cin]   # (H, W, width)
            pbuf[:, t * Ctot + filled:t * Ctot + cin] = tap.reshape(HW, width)
        filled = cin

        # One MXU matmul per dense layer: (HW, 9*Ctot) @ (9*Ctot, G), f32 accum.
        w = w3_ref[i]                                      # (9*Ctot, G)
        y = jnp.dot(pbuf[...].astype(compute_dtype), w.astype(compute_dtype),
                    preferred_element_type=jnp.float32)    # (HW, G)
        y = jnp.maximum(y, 0.0)                            # ReLU (f32, VPU)

        # torch.cat((x, out), 1): append the new channels to the dense stack.
        fbuf[1:H + 1, 1:W + 1, cin:cin + G] = y.reshape(H, W, G)
        cin += G

    # conv_1x1 over the full dense stack, * scale, + residual input.
    feat = fbuf[1:H + 1, 1:W + 1, :].reshape(HW, Ctot)
    out = jnp.dot(feat.astype(compute_dtype), w1_ref[...].astype(compute_dtype),
                  preferred_element_type=jnp.float32)
    out = out * scale + x.reshape(HW, C0)
    o_ref[0] = out.reshape(H, W, C0).astype(o_ref.dtype)


# ---------------------------------------------------------------------------
# Wrapper
# ---------------------------------------------------------------------------

def rdb_forward(x_nchw, params, scale=1.0, compute_dtype=jnp.float32):
    """RDB forward. Input/output NCHW.  compute_dtype=jnp.bfloat16 enables
    bf16 MXU operands (keep f32 accumulation; widen test tolerance)."""
    N, C0, H, W = x_nchw.shape
    L = len(params["dense"])
    G = params["dense"][0].shape[-1]
    Ctot = C0 + L * G

    # NCHW -> NHWC (channels-last is lane-friendly on TPU).
    # In a full channels-last pipeline these transposes disappear.
    x = jnp.transpose(x_nchw, (0, 2, 3, 1))

    # Pack per-layer 3x3 HWIO weights into one (L, 9*Ctot, G) stack, zero-padded
    # along the input-channel axis so every dense layer is the same im2col matmul.
    # Row index = (dy*3 + dx)*Ctot + c, matching the pbuf column layout.
    w3_mats = []
    for w in params["dense"]:
        cin = w.shape[2]
        w_pad = jnp.zeros((3, 3, Ctot, G), w.dtype).at[:, :, :cin, :].set(w)
        w3_mats.append(w_pad.reshape(9 * Ctot, G))
    w3_all = jnp.stack(w3_mats, axis=0)                    # (L, 9*Ctot, G)
    w1 = params["conv_1x1"]                                # (Ctot, C0)

    kernel = functools.partial(_rdb_fused_kernel, H=H, W=W, C0=C0, G=G, L=L,
                               scale=float(scale), compute_dtype=compute_dtype)

    out = pl.pallas_call(
        kernel,
        out_shape=jax.ShapeDtypeStruct((N, H, W, C0), x.dtype),
        grid=(N,),
        in_specs=[
            pl.BlockSpec((1, H, W, C0), lambda n: (n, 0, 0, 0)),
            # Constant index maps: weights are fetched once and stay resident.
            pl.BlockSpec((L, 9 * Ctot, G), lambda n: (0, 0, 0)),
            pl.BlockSpec((Ctot, C0), lambda n: (0, 0)),
        ],
        out_specs=pl.BlockSpec((1, H, W, C0), lambda n: (n, 0, 0, 0)),
        scratch_shapes=[
            pltpu.VMEM((H + 2, W + 2, Ctot), jnp.float32),   # padded feature stack
            pltpu.VMEM((H * W, 9 * Ctot), jnp.float32),      # im2col patches
        ],
        compiler_params=pltpu.CompilerParams(
            dimension_semantics=("parallel",)),
    )(x, w3_all, w1)

    return jnp.transpose(out, (0, 3, 1, 2))                # back to NCHW


# ---------------------------------------------------------------------------
# Parameter init (HWIO 3x3 weights, (Ctot, C0) 1x1 weight)
# ---------------------------------------------------------------------------

def init_rdb_params(key, nChannels, nDenselayer, growthRate):
    params = {"dense": []}
    nCh = nChannels
    for _ in range(nDenselayer):
        key, sub = jax.random.split(key)
        fan_in = nCh * 9
        w = jax.random.normal(sub, (3, 3, nCh, growthRate), jnp.float32)
        params["dense"].append(w * (2.0 / fan_in) ** 0.5)
        nCh += growthRate
    key, sub = jax.random.split(key)
    w1 = jax.random.normal(sub, (nCh, nChannels), jnp.float32)
    params["conv_1x1"] = w1 * (2.0 / nCh) ** 0.5
    return params


# ---------------------------------------------------------------------------
# Pure-JAX reference for verification
# ---------------------------------------------------------------------------

def rdb_reference(x_nchw, params, scale=1.0):
    x = jnp.transpose(x_nchw, (0, 2, 3, 1))
    feat = x
    for w3 in params["dense"]:
        y = lax.conv_general_dilated(
            feat, w3, window_strides=(1, 1), padding="SAME",
            dimension_numbers=("NHWC", "HWIO", "NHWC"))
        feat = jnp.concatenate([feat, jax.nn.relu(y)], axis=-1)
    w1 = params["conv_1x1"][None, None, :, :]
    y = lax.conv_general_dilated(
        feat, w1, window_strides=(1, 1), padding="VALID",
        dimension_numbers=("NHWC", "HWIO", "NHWC"))
    out = y * scale + x
    return jnp.transpose(out, (0, 3, 1, 2))


# ---------------------------------------------------------------------------
# Main
# ---------------------------------------------------------------------------

if __name__ == "__main__":
    key = jax.random.PRNGKey(0)

    # RDB(nChannels=4, nDenselayer=3, growthRate=4, scale=1.0)
    nChannels, nDenselayer, growthRate, scale = 4, 3, 4, 1.0
    N, H, W = 2, 16, 16

    kx, kp = jax.random.split(key)
    x = jax.random.normal(kx, (N, nChannels, H, W), jnp.float32)   # NCHW
    params = init_rdb_params(kp, nChannels, nDenselayer, growthRate)

    out = jax.block_until_ready(rdb_forward(x, params, scale))
    ref = jax.block_until_ready(rdb_reference(x, params, scale))

    assert out.shape == (N, nChannels, H, W)
    assert jnp.allclose(out, ref, atol=1e-4, rtol=1e-4), "mismatch vs reference"

    print("KERNEL_OK")
</pallas_src>

<mosaic_0001>
module attributes {stable_mosaic.version = 11 : i64} {
  func.func @_rdb_fused_kernel(%arg0: i32, %arg1: memref<1x16x16x4xf32, #tpu.memory_space<vmem>>, %arg2: memref<3x144x4xf32, #tpu.memory_space<vmem>>, %arg3: memref<16x4xf32, #tpu.memory_space<vmem>>, %arg4: memref<1x16x16x4xf32, #tpu.memory_space<vmem>>, %arg5: memref<18x18x16xf32, #tpu.memory_space<vmem>>, %arg6: memref<256x144xf32, #tpu.memory_space<vmem>>) attributes {dimension_semantics = [#tpu.dimension_semantics<parallel>], iteration_bounds = array<i64: 2>, scalar_prefetch = 0 : i64, scratch_operands = 2 : i64, tpu.core_type = #tpu.core_type<tc>, window_params = [{transform_indices = @transform_0, window_bounds = array<i64: 1, 16, 16, 4>}, {pipeline_mode = #tpu.pipeline_mode<synchronous>, transform_indices = @transform_1, window_bounds = array<i64: 3, 144, 4>}, {pipeline_mode = #tpu.pipeline_mode<synchronous>, transform_indices = @transform_2, window_bounds = array<i64: 16, 4>}, {transform_indices = @transform_3, window_bounds = array<i64: 1, 16, 16, 4>}]} {
    %cst = arith.constant 0.000000e+00 : f32
    %0 = vector.broadcast %cst : f32 to vector<18x18x16xf32>
    %c0 = arith.constant 0 : index
    %c0_0 = arith.constant 0 : index
    %c0_1 = arith.constant 0 : index
    %1 = vector.load %arg5[%c0, %c0_0, %c0_1] : memref<18x18x16xf32, #tpu.memory_space<vmem>>, vector<18x18x16xf32>
    tpu.vector_store %arg5[%c0, %c0_0, %c0_1], %0 {strides = array<i32>} : memref<18x18x16xf32, #tpu.memory_space<vmem>>, vector<18x18x16xf32>,
    %cst_2 = arith.constant 0.000000e+00 : f32
    %2 = vector.broadcast %cst_2 : f32 to vector<256x144xf32>
    %c0_3 = arith.constant 0 : index
    %c0_4 = arith.constant 0 : index
    %3 = vector.load %arg6[%c0_3, %c0_4] : memref<256x144xf32, #tpu.memory_space<vmem>>, vector<256x144xf32>
    tpu.vector_store %arg6[%c0_3, %c0_4], %2 {strides = array<i32>} : memref<256x144xf32, #tpu.memory_space<vmem>>, vector<256x144xf32>,
    %c0_5 = arith.constant 0 : index
    %c0_6 = arith.constant 0 : index
    %c0_7 = arith.constant 0 : index
    %c0_8 = arith.constant 0 : index
    %4 = vector.load %arg1[%c0_5, %c0_6, %c0_7, %c0_8] : memref<1x16x16x4xf32, #tpu.memory_space<vmem>>, vector<1x16x16x4xf32>
    %5 = vector.shape_cast %4 : vector<1x16x16x4xf32> to vector<16x16x4xf32>
    %c1 = arith.constant 1 : index
    %c1_9 = arith.constant 1 : index
    %c0_10 = arith.constant 0 : index
    %6 = vector.load %arg5[%c1, %c1_9, %c0_10] : memref<18x18x16xf32, #tpu.memory_space<vmem>>, vector<16x16x4xf32>
    tpu.vector_store %arg5[%c1, %c1_9, %c0_10], %5 {strides = array<i32>} : memref<18x18x16xf32, #tpu.memory_space<vmem>>, vector<16x16x4xf32>,
    %c0_11 = arith.constant 0 : index
    %c0_12 = arith.constant 0 : index
    %c0_13 = arith.constant 0 : index
    %7 = vector.load %arg5[%c0_11, %c0_12, %c0_13] : memref<18x18x16xf32, #tpu.memory_space<vmem>>, vector<16x16x4xf32>
    %8 = vector.shape_cast %7 : vector<16x16x4xf32> to vector<256x4xf32>
    %c0_14 = arith.constant 0 : index
    %c0_15 = arith.constant 0 : index
    %9 = vector.load %arg6[%c0_14, %c0_15] : memref<256x144xf32, #tpu.memory_space<vmem>>, vector<256x4xf32>
    tpu.vector_store %arg6[%c0_14, %c0_15], %8 {strides = array<i32>} : memref<256x144xf32, #tpu.memory_space<vmem>>, vector<256x4xf32>,
    %c0_16 = arith.constant 0 : index
    %c1_17 = arith.constant 1 : index
    %c0_18 = arith.constant 0 : index
    %10 = vector.load %arg5[%c0_16, %c1_17, %c0_18] : memref<18x18x16xf32, #tpu.memory_space<vmem>>, vector<16x16x4xf32>
    %11 = vector.shape_cast %10 : vector<16x16x4xf32> to vector<256x4xf32>
    %c0_19 = arith.constant 0 : index
    %c16 = arith.constant 16 : index
    %12 = vector.load %arg6[%c0_19, %c16] : memref<256x144xf32, #tpu.memory_space<vmem>>, vector<256x4xf32>
    tpu.vector_store %arg6[%c0_19, %c16], %11 {strides = array<i32>} : memref<256x144xf32, #tpu.memory_space<vmem>>, vector<256x4xf32>,
    %c0_20 = arith.constant 0 : index
    %c2 = arith.constant 2 : index
    %c0_21 = arith.constant 0 : index
    %13 = vector.load %arg5[%c0_20, %c2, %c0_21] : memref<18x18x16xf32, #tpu.memory_space<vmem>>, vector<16x16x4xf32>
    %14 = vector.shape_cast %13 : vector<16x16x4xf32> to vector<256x4xf32>
    %c0_22 = arith.constant 0 : index
    %c32 = arith.constant 32 : index
    %15 = vector.load %arg6[%c0_22, %c32] : memref<256x144xf32, #tpu.memory_space<vmem>>, vector<256x4xf32>
    tpu.vector_store %arg6[%c0_22, %c32], %14 {strides = array<i32>} : memref<256x144xf32, #tpu.memory_space<vmem>>, vector<256x4xf32>,
    %c1_23 = arith.constant 1 : index
    %c0_24 = arith.constant 0 : index
    %c0_25 = arith.constant 0 : index
    %16 = vector.load %arg5[%c1_23, %c0_24, %c0_25] : memref<18x18x16xf32, #tpu.memory_space<vmem>>, vector<16x16x4xf32>
    %17 = vector.shape_cast %16 : vector<16x16x4xf32> to vector<256x4xf32>
    %c0_26 = arith.constant 0 : index
    %c48 = arith.constant 48 : index
    %18 = vector.load %arg6[%c0_26, %c48] : memref<256x144xf32, #tpu.memory_space<vmem>>, vector<256x4xf32>
    tpu.vector_store %arg6[%c0_26, %c48], %17 {strides = array<i32>} : memref<256x144xf32, #tpu.memory_space<vmem>>, vector<256x4xf32>,
    %c1_27 = arith.constant 1 : index
    %c1_28 = arith.constant 1 : index
    %c0_29 = arith.constant 0 : index
    %19 = vector.load %arg5[%c1_27, %c1_28, %c0_29] : memref<18x18x16xf32, #tpu.memory_space<vmem>>, vector<16x16x4xf32>
    %20 = vector.shape_cast %19 : vector<16x16x4xf32> to vector<256x4xf32>
    %c0_30 = arith.constant 0 : index
    %c64 = arith.constant 64 : index
    %21 = vector.load %arg6[%c0_30, %c64] : memref<256x144xf32, #tpu.memory_space<vmem>>, vector<256x4xf32>
    tpu.vector_store %arg6[%c0_30, %c64], %20 {strides = array<i32>} : memref<256x144xf32, #tpu.memory_space<vmem>>, vector<256x4xf32>,
    %c1_31 = arith.constant 1 : index
    %c2_32 = arith.constant 2 : index
    %c0_33 = arith.constant 0 : index
    %22 = vector.load %arg5[%c1_31, %c2_32, %c0_33] : memref<18x18x16xf32, #tpu.memory_space<vmem>>, vector<16x16x4xf32>
    %23 = vector.shape_cast %22 : vector<16x16x4xf32> to vector<256x4xf32>
    %c0_34 = arith.constant 0 : index
    %c80 = arith.constant 80 : index
    %24 = vector.load %arg6[%c0_34, %c80] : memref<256x144xf32, #tpu.memory_space<vmem>>, vector<256x4xf32>
    tpu.vector_store %arg6[%c0_34, %c80], %23 {strides = array<i32>} : memref<256x144xf32, #tpu.memory_space<vmem>>, vector<256x4xf32>,
    %c2_35 = arith.constant 2 : index
    %c0_36 = arith.constant 0 : index
    %c0_37 = arith.constant 0 : index
    %25 = vector.load %arg5[%c2_35, %c0_36, %c0_37] : memref<18x18x16xf32, #tpu.memory_space<vmem>>, vector<16x16x4xf32>
    %26 = vector.shape_cast %25 : vector<16x16x4xf32> to vector<256x4xf32>
    %c0_38 = arith.constant 0 : index
    %c96 = arith.constant 96 : index
    %27 = vector.load %arg6[%c0_38, %c96] : memref<256x144xf32, #tpu.memory_space<vmem>>, vector<256x4xf32>
    tpu.vector_store %arg6[%c0_38, %c96], %26 {strides = array<i32>} : memref<256x144xf32, #tpu.memory_space<vmem>>, vector<256x4xf32>,
    %c2_39 = arith.constant 2 : index
    %c1_40 = arith.constant 1 : index
    %c0_41 = arith.constant 0 : index
    %28 = vector.load %arg5[%c2_39, %c1_40, %c0_41] : memref<18x18x16xf32, #tpu.memory_space<vmem>>, vector<16x16x4xf32>
    %29 = vector.shape_cast %28 : vector<16x16x4xf32> to vector<256x4xf32>
    %c0_42 = arith.constant 0 : index
    %c112 = arith.constant 112 : index
    %30 = vector.load %arg6[%c0_42, %c112] : memref<256x144xf32, #tpu.memory_space<vmem>>, vector<256x4xf32>
    tpu.vector_store %arg6[%c0_42, %c112], %29 {strides = array<i32>} : memref<256x144xf32, #tpu.memory_space<vmem>>, vector<256x4xf32>,
    %c2_43 = arith.constant 2 : index
    %c2_44 = arith.constant 2 : index
    %c0_45 = arith.constant 0 : index
    %31 = vector.load %arg5[%c2_43, %c2_44, %c0_45] : memref<18x18x16xf32, #tpu.memory_space<vmem>>, vector<16x16x4xf32>
    %32 = vector.shape_cast %31 : vector<16x16x4xf32> to vector<256x4xf32>
    %c0_46 = arith.constant 0 : index
    %c128 = arith.constant 128 : index
    %33 = vector.load %arg6[%c0_46, %c128] : memref<256x144xf32, #tpu.memory_space<vmem>>, vector<256x4xf32>
    tpu.vector_store %arg6[%c0_46, %c128], %32 {strides = array<i32>} : memref<256x144xf32, #tpu.memory_space<vmem>>, vector<256x4xf32>,
    %c0_47 = arith.constant 0 : index
    %c0_48 = arith.constant 0 : index
    %c0_49 = arith.constant 0 : index
    %34 = vector.load %arg2[%c0_47, %c0_48, %c0_49] : memref<3x144x4xf32, #tpu.memory_space<vmem>>, vector<1x144x4xf32>
    %35 = vector.shape_cast %34 : vector<1x144x4xf32> to vector<144x4xf32>
    %c0_50 = arith.constant 0 : index
    %c0_51 = arith.constant 0 : index
    %36 = vector.load %arg6[%c0_50, %c0_51] : memref<256x144xf32, #tpu.memory_space<vmem>>, vector<256x144xf32>
    %cst_52 = arith.constant dense<0.000000e+00> : vector<256x4xf32>
    %37 = tpu.matmul %36, %35, %cst_52 {dimension_numbers = #tpu.dot_dimension_numbers<[1], [0], [0], [1], [0, 0, 1, 1], [], []>} : vector<256x144xf32>, vector<144x4xf32>, vector<256x4xf32> -> vector<256x4xf32>
    %cst_53 = arith.constant 0.000000e+00 : f32
    %38 = vector.broadcast %cst_53 : f32 to vector<256x4xf32>
    %39 = arith.maximumf %37, %38 : vector<256x4xf32>
    %40 = vector.shape_cast %39 : vector<256x4xf32> to vector<16x16x4xf32>
    %c1_54 = arith.constant 1 : index
    %c1_55 = arith.constant 1 : index
    %c4 = arith.constant 4 : index
    %41 = vector.load %arg5[%c1_54, %c1_55, %c4] : memref<18x18x16xf32, #tpu.memory_space<vmem>>, vector<16x16x4xf32>
    tpu.vector_store %arg5[%c1_54, %c1_55, %c4], %40 {strides = array<i32>} : memref<18x18x16xf32, #tpu.memory_space<vmem>>, vector<16x16x4xf32>,
    %c0_56 = arith.constant 0 : index
    %c0_57 = arith.constant 0 : index
    %c4_58 = arith.constant 4 : index
    %42 = vector.load %arg5[%c0_56, %c0_57, %c4_58] : memref<18x18x16xf32, #tpu.memory_space<vmem>>, vector<16x16x4xf32>
    %43 = vector.shape_cast %42 : vector<16x16x4xf32> to vector<256x4xf32>
    %c0_59 = arith.constant 0 : index
    %c4_60 = arith.constant 4 : index
    %44 = vector.load %arg6[%c0_59, %c4_60] : memref<256x144xf32, #tpu.memory_space<vmem>>, vector<256x4xf32>
    tpu.vector_store %arg6[%c0_59, %c4_60], %43 {strides = array<i32>} : memref<256x144xf32, #tpu.memory_space<vmem>>, vector<256x4xf32>,
    %c0_61 = arith.constant 0 : index
    %c1_62 = arith.constant 1 : index
    %c4_63 = arith.constant 4 : index
    %45 = vector.load %arg5[%c0_61, %c1_62, %c4_63] : memref<18x18x16xf32, #tpu.memory_space<vmem>>, vector<16x16x4xf32>
    %46 = vector.shape_cast %45 : vector<16x16x4xf32> to vector<256x4xf32>
    %c0_64 = arith.constant 0 : index
    %c20 = arith.constant 20 : index
    %47 = vector.load %arg6[%c0_64, %c20] : memref<256x144xf32, #tpu.memory_space<vmem>>, vector<256x4xf32>
    tpu.vector_store %arg6[%c0_64, %c20], %46 {strides = array<i32>} : memref<256x144xf32, #tpu.memory_space<vmem>>, vector<256x4xf32>,
    %c0_65 = arith.constant 0 : index
    %c2_66 = arith.constant 2 : index
    %c4_67 = arith.constant 4 : index
    %48 = vector.load %arg5[%c0_65, %c2_66, %c4_67] : memref<18x18x16xf32, #tpu.memory_space<vmem>>, vector<16x16x4xf32>
    %49 = vector.shape_cast %48 : vector<16x16x4xf32> to vector<256x4xf32>
    %c0_68 = arith.constant 0 : index
    %c36 = arith.constant 36 : index
    %50 = vector.load %arg6[%c0_68, %c36] : memref<256x144xf32, #tpu.memory_space<vmem>>, vector<256x4xf32>
    tpu.vector_store %arg6[%c0_68, %c36], %49 {strides = array<i32>} : memref<256x144xf32, #tpu.memory_space<vmem>>, vector<256x4xf32>,
    %c1_69 = arith.constant 1 : index
    %c0_70 = arith.constant 0 : index
    %c4_71 = arith.constant 4 : index
    %51 = vector.load %arg5[%c1_69, %c0_70, %c4_71] : memref<18x18x16xf32, #tpu.memory_space<vmem>>, vector<16x16x4xf32>
    %52 = vector.shape_cast %51 : vector<16x16x4xf32> to vector<256x4xf32>
    %c0_72 = arith.constant 0 : index
    %c52 = arith.constant 52 : index
    %53 = vector.load %arg6[%c0_72, %c52] : memref<256x144xf32, #tpu.memory_space<vmem>>, vector<256x4xf32>
    tpu.vector_store %arg6[%c0_72, %c52], %52 {strides = array<i32>} : memref<256x144xf32, #tpu.memory_space<vmem>>, vector<256x4xf32>,
    %c1_73 = arith.constant 1 : index
    %c1_74 = arith.constant 1 : index
    %c4_75 = arith.constant 4 : index
    %54 = vector.load %arg5[%c1_73, %c1_74, %c4_75] : memref<18x18x16xf32, #tpu.memory_space<vmem>>, vector<16x16x4xf32>
    %55 = vector.shape_cast %54 : vector<16x16x4xf32> to vector<256x4xf32>
    %c0_76 = arith.constant 0 : index
    %c68 = arith.constant 68 : index
    %56 = vector.load %arg6[%c0_76, %c68] : memref<256x144xf32, #tpu.memory_space<vmem>>, vector<256x4xf32>
    tpu.vector_store %arg6[%c0_76, %c68], %55 {strides = array<i32>} : memref<256x144xf32, #tpu.memory_space<vmem>>, vector<256x4xf32>,
    %c1_77 = arith.constant 1 : index
    %c2_78 = arith.constant 2 : index
    %c4_79 = arith.constant 4 : index
    %57 = vector.load %arg5[%c1_77, %c2_78, %c4_79] : memref<18x18x16xf32, #tpu.memory_space<vmem>>, vector<16x16x4xf32>
    %58 = vector.shape_cast %57 : vector<16x16x4xf32> to vector<256x4xf32>
    %c0_80 = arith.constant 0 : index
    %c84 = arith.constant 84 : index
    %59 = vector.load %arg6[%c0_80, %c84] : memref<256x144xf32, #tpu.memory_space<vmem>>, vector<256x4xf32>
    tpu.vector_store %arg6[%c0_80, %c84], %58 {strides = array<i32>} : memref<256x144xf32, #tpu.memory_space<vmem>>, vector<256x4xf32>,
    %c2_81 = arith.constant 2 : index
    %c0_82 = arith.constant 0 : index
    %c4_83 = arith.constant 4 : index
    %60 = vector.load %arg5[%c2_81, %c0_82, %c4_83] : memref<18x18x16xf32, #tpu.memory_space<vmem>>, vector<16x16x4xf32>
    %61 = vector.shape_cast %60 : vector<16x16x4xf32> to vector<256x4xf32>
    %c0_84 = arith.constant 0 : index
    %c100 = arith.constant 100 : index
    %62 = vector.load %arg6[%c0_84, %c100] : memref<256x144xf32, #tpu.memory_space<vmem>>, vector<256x4xf32>
    tpu.vector_store %arg6[%c0_84, %c100], %61 {strides = array<i32>} : memref<256x144xf32, #tpu.memory_space<vmem>>, vector<256x4xf32>,
    %c2_85 = arith.constant 2 : index
    %c1_86 = arith.constant 1 : index
    %c4_87 = arith.constant 4 : index
    %63 = vector.load %arg5[%c2_85, %c1_86, %c4_87] : memref<18x18x16xf32, #tpu.memory_space<vmem>>, vector<16x16x4xf32>
    %64 = vector.shape_cast %63 : vector<16x16x4xf32> to vector<256x4xf32>
    %c0_88 = arith.constant 0 : index
    %c116 = arith.constant 116 : index
    %65 = vector.load %arg6[%c0_88, %c116] : memref<256x144xf32, #tpu.memory_space<vmem>>, vector<256x4xf32>
    tpu.vector_store %arg6[%c0_88, %c116], %64 {strides = array<i32>} : memref<256x144xf32, #tpu.memory_space<vmem>>, vector<256x4xf32>,
    %c2_89 = arith.constant 2 : index
    %c2_90 = arith.constant 2 : index
    %c4_91 = arith.constant 4 : index
    %66 = vector.load %arg5[%c2_89, %c2_90, %c4_91] : memref<18x18x16xf32, #tpu.memory_space<vmem>>, vector<16x16x4xf32>
    %67 = vector.shape_cast %66 : vector<16x16x4xf32> to vector<256x4xf32>
    %c0_92 = arith.constant 0 : index
    %c132 = arith.constant 132 : index
    %68 = vector.load %arg6[%c0_92, %c132] : memref<256x144xf32, #tpu.memory_space<vmem>>, vector<256x4xf32>
    tpu.vector_store %arg6[%c0_92, %c132], %67 {strides = array<i32>} : memref<256x144xf32, #tpu.memory_space<vmem>>, vector<256x4xf32>,
    %c1_93 = arith.constant 1 : index
    %c0_94 = arith.constant 0 : index
    %c0_95 = arith.constant 0 : index
    %69 = vector.load %arg2[%c1_93, %c0_94, %c0_95] : memref<3x144x4xf32, #tpu.memory_space<vmem>>, vector<1x144x4xf32>
    %70 = vector.shape_cast %69 : vector<1x144x4xf32> to vector<144x4xf32>
    %c0_96 = arith.constant 0 : index
    %c0_97 = arith.constant 0 : index
    %71 = vector.load %arg6[%c0_96, %c0_97] : memref<256x144xf32, #tpu.memory_space<vmem>>, vector<256x144xf32>
    %cst_98 = arith.constant dense<0.000000e+00> : vector<256x4xf32>
    %72 = tpu.matmul %71, %70, %cst_98 {dimension_numbers = #tpu.dot_dimension_numbers<[1], [0], [0], [1], [0, 0, 1, 1], [], []>} : vector<256x144xf32>, vector<144x4xf32>, vector<256x4xf32> -> vector<256x4xf32>
    %cst_99 = arith.constant 0.000000e+00 : f32
    %73 = vector.broadcast %cst_99 : f32 to vector<256x4xf32>
    %74 = arith.maximumf %72, %73 : vector<256x4xf32>
    %75 = vector.shape_cast %74 : vector<256x4xf32> to vector<16x16x4xf32>
    %c1_100 = arith.constant 1 : index
    %c1_101 = arith.constant 1 : index
    %c8 = arith.constant 8 : index
    %76 = vector.load %arg5[%c1_100, %c1_101, %c8] : memref<18x18x16xf32, #tpu.memory_space<vmem>>, vector<16x16x4xf32>
    tpu.vector_store %arg5[%c1_100, %c1_101, %c8], %75 {strides = array<i32>} : memref<18x18x16xf32, #tpu.memory_space<vmem>>, vector<16x16x4xf32>,
    %c0_102 = arith.constant 0 : index
    %c0_103 = arith.constant 0 : index
    %c8_104 = arith.constant 8 : index
    %77 = vector.load %arg5[%c0_102, %c0_103, %c8_104] : memref<18x18x16xf32, #tpu.memory_space<vmem>>, vector<16x16x4xf32>
    %78 = vector.shape_cast %77 : vector<16x16x4xf32> to vector<256x4xf32>
    %c0_105 = arith.constant 0 : index
    %c8_106 = arith.constant 8 : index
    %79 = vector.load %arg6[%c0_105, %c8_106] : memref<256x144xf32, #tpu.memory_space<vmem>>, vector<256x4xf32>
    tpu.vector_store %arg6[%c0_105, %c8_106], %78 {strides = array<i32>} : memref<256x144xf32, #tpu.memory_space<vmem>>, vector<256x4xf32>,
    %c0_107 = arith.constant 0 : index
    %c1_108 = arith.constant 1 : index
    %c8_109 = arith.constant 8 : index
    %80 = vector.load %arg5[%c0_107, %c1_108, %c8_109] : memref<18x18x16xf32, #tpu.memory_space<vmem>>, vector<16x16x4xf32>
    %81 = vector.shape_cast %80 : vector<16x16x4xf32> to vector<256x4xf32>
    %c0_110 = arith.constant 0 : index
    %c24 = arith.constant 24 : index
    %82 = vector.load %arg6[%c0_110, %c24] : memref<256x144xf32, #tpu.memory_space<vmem>>, vector<256x4xf32>
    tpu.vector_store %arg6[%c0_110, %c24], %81 {strides = array<i32>} : memref<256x144xf32, #tpu.memory_space<vmem>>, vector<256x4xf32>,
    %c0_111 = arith.constant 0 : index
    %c2_112 = arith.constant 2 : index
    %c8_113 = arith.constant 8 : index
    %83 = vector.load %arg5[%c0_111, %c2_112, %c8_113] : memref<18x18x16xf32, #tpu.memory_space<vmem>>, vector<16x16x4xf32>
    %84 = vector.shape_cast %83 : vector<16x16x4xf32> to vector<256x4xf32>
    %c0_114 = arith.constant 0 : index
    %c40 = arith.constant 40 : index
    %85 = vector.load %arg6[%c0_114, %c40] : memref<256x144xf32, #tpu.memory_space<vmem>>, vector<256x4xf32>
    tpu.vector_store %arg6[%c0_114, %c40], %84 {strides = array<i32>} : memref<256x144xf32, #tpu.memory_space<vmem>>, vector<256x4xf32>,
    %c1_115 = arith.constant 1 : index
    %c0_116 = arith.constant 0 : index
    %c8_117 = arith.constant 8 : index
    %86 = vector.load %arg5[%c1_115, %c0_116, %c8_117] : memref<18x18x16xf32, #tpu.memory_space<vmem>>, vector<16x16x4xf32>
    %87 = vector.shape_cast %86 : vector<16x16x4xf32> to vector<256x4xf32>
    %c0_118 = arith.constant 0 : index
    %c56 = arith.constant 56 : index
    %88 = vector.load %arg6[%c0_118, %c56] : memref<256x144xf32, #tpu.memory_space<vmem>>, vector<256x4xf32>
    tpu.vector_store %arg6[%c0_118, %c56], %87 {strides = array<i32>} : memref<256x144xf32, #tpu.memory_space<vmem>>, vector<256x4xf32>,
    %c1_119 = arith.constant 1 : index
    %c1_120 = arith.constant 1 : index
    %c8_121 = arith.constant 8 : index
    %89 = vector.load %arg5[%c1_119, %c1_120, %c8_121] : memref<18x18x16xf32, #tpu.memory_space<vmem>>, vector<16x16x4xf32>
    %90 = vector.shape_cast %89 : vector<16x16x4xf32> to vector<256x4xf32>
    %c0_122 = arith.constant 0 : index
    %c72 = arith.constant 72 : index
    %91 = vector.load %arg6[%c0_122, %c72] : memref<256x144xf32, #tpu.memory_space<vmem>>, vector<256x4xf32>
    tpu.vector_store %arg6[%c0_122, %c72], %90 {strides = array<i32>} : memref<256x144xf32, #tpu.memory_space<vmem>>, vector<256x4xf32>,
    %c1_123 = arith.constant 1 : index
    %c2_124 = arith.constant 2 : index
    %c8_125 = arith.constant 8 : index
    %92 = vector.load %arg5[%c1_123, %c2_124, %c8_125] : memref<18x18x16xf32, #tpu.memory_space<vmem>>, vector<16x16x4xf32>
    %93 = vector.shape_cast %92 : vector<16x16x4xf32> to vector<256x4xf32>
    %c0_126 = arith.constant 0 : index
    %c88 = arith.constant 88 : index
    %94 = vector.load %arg6[%c0_126, %c88] : memref<256x144xf32, #tpu.memory_space<vmem>>, vector<256x4xf32>
    tpu.vector_store %arg6[%c0_126, %c88], %93 {strides = array<i32>} : memref<256x144xf32, #tpu.memory_space<vmem>>, vector<256x4xf32>,
    %c2_127 = arith.constant 2 : index
    %c0_128 = arith.constant 0 : index
    %c8_129 = arith.constant 8 : index
    %95 = vector.load %arg5[%c2_127, %c0_128, %c8_129] : memref<18x18x16xf32, #tpu.memory_space<vmem>>, vector<16x16x4xf32>
    %96 = vector.shape_cast %95 : vector<16x16x4xf32> to vector<256x4xf32>
    %c0_130 = arith.constant 0 : index
    %c104 = arith.constant 104 : index
    %97 = vector.load %arg6[%c0_130, %c104] : memref<256x144xf32, #tpu.memory_space<vmem>>, vector<256x4xf32>
    tpu.vector_store %arg6[%c0_130, %c104], %96 {strides = array<i32>} : memref<256x144xf32, #tpu.memory_space<vmem>>, vector<256x4xf32>,
    %c2_131 = arith.constant 2 : index
    %c1_132 = arith.constant 1 : index
    %c8_133 = arith.constant 8 : index
    %98 = vector.load %arg5[%c2_131, %c1_132, %c8_133] : memref<18x18x16xf32, #tpu.memory_space<vmem>>, vector<16x16x4xf32>
    %99 = vector.shape_cast %98 : vector<16x16x4xf32> to vector<256x4xf32>
    %c0_134 = arith.constant 0 : index
    %c120 = arith.constant 120 : index
    %100 = vector.load %arg6[%c0_134, %c120] : memref<256x144xf32, #tpu.memory_space<vmem>>, vector<256x4xf32>
    tpu.vector_store %arg6[%c0_134, %c120], %99 {strides = array<i32>} : memref<256x144xf32, #tpu.memory_space<vmem>>, vector<256x4xf32>,
    %c2_135 = arith.constant 2 : index
    %c2_136 = arith.constant 2 : index
    %c8_137 = arith.constant 8 : index
    %101 = vector.load %arg5[%c2_135, %c2_136, %c8_137] : memref<18x18x16xf32, #tpu.memory_space<vmem>>, vector<16x16x4xf32>
    %102 = vector.shape_cast %101 : vector<16x16x4xf32> to vector<256x4xf32>
    %c0_138 = arith.constant 0 : index
    %c136 = arith.constant 136 : index
    %103 = vector.load %arg6[%c0_138, %c136] : memref<256x144xf32, #tpu.memory_space<vmem>>, vector<256x4xf32>
    tpu.vector_store %arg6[%c0_138, %c136], %102 {strides = array<i32>} : memref<256x144xf32, #tpu.memory_space<vmem>>, vector<256x4xf32>,
    %c2_139 = arith.constant 2 : index
    %c0_140 = arith.constant 0 : index
    %c0_141 = arith.constant 0 : index
    %104 = vector.load %arg2[%c2_139, %c0_140, %c0_141] : memref<3x144x4xf32, #tpu.memory_space<vmem>>, vector<1x144x4xf32>
    %105 = vector.shape_cast %104 : vector<1x144x4xf32> to vector<144x4xf32>
    %c0_142 = arith.constant 0 : index
    %c0_143 = arith.constant 0 : index
    %106 = vector.load %arg6[%c0_142, %c0_143] : memref<256x144xf32, #tpu.memory_space<vmem>>, vector<256x144xf32>
    %cst_144 = arith.constant dense<0.000000e+00> : vector<256x4xf32>
    %107 = tpu.matmul %106, %105, %cst_144 {dimension_numbers = #tpu.dot_dimension_numbers<[1], [0], [0], [1], [0, 0, 1, 1], [], []>} : vector<256x144xf32>, vector<144x4xf32>, vector<256x4xf32> -> vector<256x4xf32>
    %cst_145 = arith.constant 0.000000e+00 : f32
    %108 = vector.broadcast %cst_145 : f32 to vector<256x4xf32>
    %109 = arith.maximumf %107, %108 : vector<256x4xf32>
    %110 = vector.shape_cast %109 : vector<256x4xf32> to vector<16x16x4xf32>
    %c1_146 = arith.constant 1 : index
    %c1_147 = arith.constant 1 : index
    %c12 = arith.constant 12 : index
    %111 = vector.load %arg5[%c1_146, %c1_147, %c12] : memref<18x18x16xf32, #tpu.memory_space<vmem>>, vector<16x16x4xf32>
    tpu.vector_store %arg5[%c1_146, %c1_147, %c12], %110 {strides = array<i32>} : memref<18x18x16xf32, #tpu.memory_space<vmem>>, vector<16x16x4xf32>,
    %c1_148 = arith.constant 1 : index
    %c1_149 = arith.constant 1 : index
    %c0_150 = arith.constant 0 : index
    %112 = vector.load %arg5[%c1_148, %c1_149, %c0_150] : memref<18x18x16xf32, #tpu.memory_space<vmem>>, vector<16x16x16xf32>
    %113 = vector.shape_cast %112 : vector<16x16x16xf32> to vector<256x16xf32>
    %c0_151 = arith.constant 0 : index
    %c0_152 = arith.constant 0 : index
    %114 = vector.load %arg3[%c0_151, %c0_152] : memref<16x4xf32, #tpu.memory_space<vmem>>, vector<16x4xf32>
    %cst_153 = arith.constant dense<0.000000e+00> : vector<256x4xf32>
    %115 = tpu.matmul %113, %114, %cst_153 {dimension_numbers = #tpu.dot_dimension_numbers<[1], [0], [0], [1], [0, 0, 1, 1], [], []>} : vector<256x16xf32>, vector<16x4xf32>, vector<256x4xf32> -> vector<256x4xf32>
    %cst_154 = arith.constant 1.000000e+00 : f32
    %116 = vector.broadcast %cst_154 : f32 to vector<256x4xf32>
    %117 = arith.mulf %115, %116 : vector<256x4xf32>
    %118 = vector.shape_cast %5 : vector<16x16x4xf32> to vector<256x4xf32>
    %119 = arith.addf %117, %118 : vector<256x4xf32>
    %120 = vector.shape_cast %119 : vector<256x4xf32> to vector<16x16x4xf32>
    %c0_155 = arith.constant 0 : index
    %c0_156 = arith.constant 0 : index
    %c0_157 = arith.constant 0 : index
    %c0_158 = arith.constant 0 : index
    %121 = vector.load %arg4[%c0_155, %c0_156, %c0_157, %c0_158] : memref<1x16x16x4xf32, #tpu.memory_space<vmem>>, vector<1x16x16x4xf32>
    %122 = vector.shape_cast %121 : vector<1x16x16x4xf32> to vector<16x16x4xf32>
    %123 = vector.shape_cast %120 : vector<16x16x4xf32> to vector<1x16x16x4xf32>
    tpu.vector_store %arg4[%c0_155, %c0_156, %c0_157, %c0_158], %123 {strides = array<i32>} : memref<1x16x16x4xf32, #tpu.memory_space<vmem>>, vector<1x16x16x4xf32>,
    return
  }
  func.func @transform_0(%arg0: i32) -> (i32, i32, i32, i32) {
    %c0_i32 = arith.constant 0 : i32
    %c0_i32_0 = arith.constant 0 : i32
    %c0_i32_1 = arith.constant 0 : i32
    %c0_i32_2 = arith.constant 0 : i32
    return %arg0, %c0_i32, %c0_i32_0, %c0_i32_1 : i32, i32, i32, i32
  }
  func.func @transform_1(%arg0: i32) -> (i32, i32, i32) {
    %c0_i32 = arith.constant 0 : i32
    %c0_i32_0 = arith.constant 0 : i32
    %c0_i32_1 = arith.constant 0 : i32
    %c0_i32_2 = arith.constant 0 : i32
    return %c0_i32, %c0_i32_0, %c0_i32_1 : i32, i32, i32
  }
  func.func @transform_2(%arg0: i32) -> (i32, i32) {
    %c0_i32 = arith.constant 0 : i32
    %c0_i32_0 = arith.constant 0 : i32
    %c0_i32_1 = arith.constant 0 : i32
    return %c0_i32, %c0_i32_0 : i32, i32
  }
  func.func @transform_3(%arg0: i32) -> (i32, i32, i32, i32) {
    %c0_i32 = arith.constant 0 : i32
    %c0_i32_0 = arith.constant 0 : i32
    %c0_i32_1 = arith.constant 0 : i32
    %c0_i32_2 = arith.constant 0 : i32
    return %arg0, %c0_i32, %c0_i32_0, %c0_i32_1 : i32, i32, i32, i32
  }
}

</mosaic_0001>

<llo_original>
// kernel: tpu_custom_call.1
$region0: #{tpu_custom_call.1}
  #allocation0 [shape = 'u32[]', space=smem, size = 0x4, offset = 0x4, fixed_abs, tag = 'smem constant byte address 0x4 - core index']
  #allocation1 [shape = 'u32[72,128]{1,0:T(1,128)}', space=vmem, size = 0x9000, scoped, tag = 'internal scratch']
  #allocation2 [shape = 'f32[18,18,16]{2,1,0:T(8,128)}', space=vmem, size = 0x36000, scoped, tag = 'scratch operand']
  #allocation3 [shape = 'f32[256,144]{1,0:T(8,128)}', space=vmem, size = 0x40000, scoped, tag = 'scratch operand']
  %s0 = inlined_call_operand.vmem [shape: f32[2,16,16,4], index: 0, kind: input, shape index: {}]
  %s1 = inlined_call_operand.vmem [shape: f32[3,144,4], index: 1, kind: input, shape index: {}]
  %s2 = inlined_call_operand.vmem [shape: f32[16,4], index: 2, kind: input, shape index: {}]
  %s3 = inlined_call_operand.vmem [shape: f32[2,16,16,4], index: 3, kind: output, shape index: {}]
  %s4 = sld [smem:[#allocation0]]
  $region45: #{tpu_custom_call.1} parent=0
    _
  %s6 = ssub.s32 1, %s4
  %s7 = scalar_select 0, %s6, %s4
  loop: start=0, step=1, limit=4
  $region2: #{tpu_custom_call.1} parent=0 // loop_pre_header
    _
  $region3: #{tpu_custom_call.1} parent=0 // loop_header
    %s9 = sphi 0, %s13
    %p10 = scmp.ge.s32.totalorder %s9, 4
    %s19 = sphi 0, %s21
    %s22 = sphi 0, %s19
    %s23 = sphi 0, %s22
    %s39 = sphi 0, %s23
    %s43 = sphi 0, %s43
    %s45 = sphi 0, %s43
    %s46 = sphi 0, %s45
    %s60 = sphi 0, %s46
    %s64 = sphi 0, %s64
    %s66 = sphi 0, %s64
    %s67 = sphi 0, %s66
    %s81 = sphi 0, %s67
    %s87 = sphi 0, %s89
    %s90 = sphi 0, %s87
    %s91 = sphi 0, %s90
    %s107 = sphi 0, %s91
  $region4: #{tpu_custom_call.1} parent=0 // loop_header_branch
    %12 = sbr.rel (%p10) target = $region8
  $region5: #{tpu_custom_call.1} parent=0 // loop_body
    %s14 = ssub.s32 %s9, 1
    %s15 = ssub.s32 %s9, 2
    %s16 = sadd.s32 %s9, 1
    %s17 = ssub.s32 %s9, %s16
    %p18 = scmp.eq.s32.totalorder %s17, 0
    %s20 = sadd.s32 %s19, 1
    %s21 = scalar_select %p18, %s19, %s20
    %p24 = pneg %p18
    %p25 = scmp.eq.s32.totalorder %s9, 1
    %p26 = por %p24, %p25
    %p27 = scmp.ne.s32.totalorder %s19, %s22
    %p28 = scmp.eq.s32.totalorder %s9, 0
    %p29 = por %p27, %p28
    %p30 = scmp.ne.s32.totalorder %s19, %s22
    %p31 = scmp.eq.s32.totalorder %s14, 1
    %p32 = por %p30, %p31
    %p33 = scmp.ne.s32.totalorder %s22, %s23
    %p34 = scmp.eq.s32.totalorder %s14, 0
    %p35 = por %p33, %p34
    %p36 = scmp.ne.s32.totalorder %s22, %s23
    %p37 = scmp.eq.s32.totalorder %s15, 1
    %p38 = por %p36, %p37
    %p40 = scmp.ne.s32.totalorder %s23, %s39
    %p41 = scmp.eq.s32.totalorder %s15, 0
    %p42 = por %p40, %p41
    %s44 = sadd.s32 %s43, 1
    %p47 = scmp.eq.s32.totalorder %s9, 1
    %p48 = scmp.ne.s32.totalorder %s43, %s45
    %p49 = scmp.eq.s32.totalorder %s9, 0
    %p50 = por %p48, %p49
    %p51 = scmp.ne.s32.totalorder %s43, %s45
    %p52 = scmp.eq.s32.totalorder %s14, 1
    %p53 = por %p51, %p52
    %p54 = scmp.ne.s32.totalorder %s45, %s46
    %p55 = scmp.eq.s32.totalorder %s14, 0
    %p56 = por %p54, %p55
    %p57 = scmp.ne.s32.totalorder %s45, %s46
    %p58 = scmp.eq.s32.totalorder %s15, 1
    %p59 = por %p57, %p58
    %p61 = scmp.ne.s32.totalorder %s46, %s60
    %p62 = scmp.eq.s32.totalorder %s15, 0
    %p63 = por %p61, %p62
    %s65 = sadd.s32 %s64, 1
    %p68 = scmp.eq.s32.totalorder %s9, 1
    %p69 = scmp.ne.s32.totalorder %s64, %s66
    %p70 = scmp.eq.s32.totalorder %s9, 0
    %p71 = por %p69, %p70
    %p72 = scmp.ne.s32.totalorder %s64, %s66
    %p73 = scmp.eq.s32.totalorder %s14, 1
    %p74 = por %p72, %p73
    %p75 = scmp.ne.s32.totalorder %s66, %s67
    %p76 = scmp.eq.s32.totalorder %s14, 0
    %p77 = por %p75, %p76
    %p78 = scmp.ne.s32.totalorder %s66, %s67
    %p79 = scmp.eq.s32.totalorder %s15, 1
    %p80 = por %p78, %p79
    %p82 = scmp.ne.s32.totalorder %s67, %s81
    %p83 = scmp.eq.s32.totalorder %s15, 0
    %p84 = por %p82, %p83
    %s85 = ssub.s32 %s9, %s16
    %p86 = scmp.eq.s32.totalorder %s85, 0
    %s88 = sadd.s32 %s87, 1
    %s89 = scalar_select %p86, %s87, %s88
    %p92 = pneg %p86
    %p93 = scmp.eq.s32.totalorder %s9, 1
    %p94 = por %p92, %p93
    %p95 = scmp.ne.s32.totalorder %s87, %s90
    %p96 = scmp.eq.s32.totalorder %s9, 0
    %p97 = por %p95, %p96
    %p98 = scmp.ne.s32.totalorder %s87, %s90
    %p99 = scmp.eq.s32.totalorder %s14, 1
    %p100 = por %p98, %p99
    %p101 = scmp.ne.s32.totalorder %s90, %s91
    %p102 = scmp.eq.s32.totalorder %s14, 0
    %p103 = por %p101, %p102
    %p104 = scmp.ne.s32.totalorder %s90, %s91
    %p105 = scmp.eq.s32.totalorder %s15, 1
    %p106 = por %p104, %p105
    %p108 = scmp.ne.s32.totalorder %s91, %s107
    %p109 = scmp.eq.s32.totalorder %s15, 0
    %p110 = por %p108, %p109
    %p111 = scmp.le.s32.totalorder 1, %s9
    %p112 = scmp.lt.s32.totalorder %s9, 3
    %p113 = pnand %p111, %p112
    %p114 = pneg %p113
    // Predicated region
    $region9: #{tpu_custom_call.1} parent=5 // pred_check
      _
    $region10: #{tpu_custom_call.1} parent=5 // pred_check_branch
      %116 = sbr.rel (%p113) target = $region12
    $region11: #{tpu_custom_call.1} parent=5 // pred_region
      %s117 = ssub.s32 %s9, 1
      // Predicated region
      $region13: #{tpu_custom_call.1} parent=11 // pred_check
        %p118 = pneg %p56
      $region14: #{tpu_custom_call.1} parent=11 // pred_check_branch
        %120 = sbr.rel (%p118) target = $region16
      $region15: #{tpu_custom_call.1} parent=11 // pred_region
        _
      $region16: #{tpu_custom_call.1} parent=11 // pred_fallthru
        _
      // Predicated region
      $region17: #{tpu_custom_call.1} parent=11 // pred_check
        %p121 = pneg %p77
      $region18: #{tpu_custom_call.1} parent=11 // pred_check_branch
        %123 = sbr.rel (%p121) target = $region20
      $region19: #{tpu_custom_call.1} parent=11 // pred_region
        _
      $region20: #{tpu_custom_call.1} parent=11 // pred_fallthru
        _
    $region12: #{tpu_custom_call.1} parent=5 // pred_fallthru
      _
    %p124 = scmp.lt.s32.totalorder %s9, 2
    // Predicated region
    $region21: #{tpu_custom_call.1} parent=5 // pred_check
      %p125 = pneg %p124
    $region22: #{tpu_custom_call.1} parent=5 // pred_check_branch
      %127 = sbr.rel (%p125) target = $region24
    $region23: #{tpu_custom_call.1} parent=5 // pred_region
      // Predicated region
      $region25: #{tpu_custom_call.1} parent=23 // pred_check
        %p128 = pneg %p29
      $region26: #{tpu_custom_call.1} parent=23 // pred_check_branch
        %130 = sbr.rel (%p128) target = $region28
      $region27: #{tpu_custom_call.1} parent=23 // pred_region
        %p131 = scmp.lt.s32.totalorder %s9, 1
        %s132 = scalar_select %p131, %s9, 1
        %s133 = smul.addr %s132, 32
        %s134 = smul.addr %s133, 8
        %s135 = scalar_lea.vmem %s0, %s134
      $region28: #{tpu_custom_call.1} parent=23 // pred_fallthru
        _
    $region24: #{tpu_custom_call.1} parent=5 // pred_fallthru
      _
    %p136 = scmp.le.s32.totalorder 1, %s9
    %p137 = scmp.lt.s32.totalorder %s9, 3
    %p138 = pnand %p136, %p137
    %p139 = pneg %p138
    // Predicated region
    $region29: #{tpu_custom_call.1} parent=5 // pred_check
      _
    $region30: #{tpu_custom_call.1} parent=5 // pred_check_branch
      %141 = sbr.rel (%p138) target = $region32
    $region31: #{tpu_custom_call.1} parent=5 // pred_region
      %s142 = ssub.s32 %s9, 1
      %p143 = scmp.lt.s32.totalorder %s14, 1
      %s144 = scalar_select %p143, %s14, 1
      %s145 = smul.addr %s144, 32
      %s146 = smul.addr %s145, 8
      %s147 = scalar_lea.vmem %s0, %s146
      %p148 = pneg %p35
      %p149 = pneg %p32
      %p150 = pneg %p56
      %p151 = pneg %p53
      %p152 = pneg %p77
      %p153 = pneg %p74
      %p154 = pneg %p103
      %p155 = pneg %p100
      %p156 = scmp.lt.s32.totalorder %s14, 1
      %s157 = scalar_select %p156, %s14, 1
      %s158 = smul.addr %s157, 32
      %s159 = smul.addr %s158, 8
      %s160 = scalar_lea.vmem %s3, %s159
      %p161 = scmp.lt.s32.totalorder %s14, 1
      %s162 = scalar_select %p161, %s14, 1
      %s163 = smul.addr %s162, 32
      %s164 = smul.addr %s163, 8
      %s165 = scalar_lea.vmem %s0, %s164
      %p166 = scmp.lt.s32.totalorder %s14, 1
      %s167 = scalar_select %p166, %s14, 1
      %s168 = smul.addr %s167, 32
      %s169 = smul.addr %s168, 8
      %s170 = scalar_lea.vmem %s3, %s169
      %vm171 = vcmask 130048
      %172 = vst.msk [vmem:[#allocation2] sm:$0xff] %vm171, 0.0
      %173 = vst.msk [vmem:[#allocation2 + $0x8] sm:$0xff] %vm171, 0.0
      %vm174 = vcmask 123904
      %175 = vst.msk [vmem:[#allocation2 + $0x10] sm:$0x3] %vm174, 0.0
      %176 = vst.msk [vmem:[#allocation2 + $0x18] sm:$0xff] %vm171, 0.0
      %177 = vst.msk [vmem:[#allocation2 + $0x20] sm:$0xff] %vm171, 0.0
      %178 = vst.msk [vmem:[#allocation2 + $0x28] sm:$0x3] %vm174, 0.0
      %179 = vst.msk [vmem:[#allocation2 + $0x30] sm:$0xff] %vm171, 0.0
      %180 = vst.msk [vmem:[#allocation2 + $0x38] sm:$0xff] %vm171, 0.0
      %181 = vst.msk [vmem:[#allocation2 + $0x40] sm:$0x3] %vm174, 0.0
      %182 = vst.msk [vmem:[#allocation2 + $0x48] sm:$0xff] %vm171, 0.0
      %183 = vst.msk [vmem:[#allocation2 + $0x50] sm:$0xff] %vm171, 0.0
      %184 = vst.msk [vmem:[#allocation2 + $0x58] sm:$0x3] %vm174, 0.0
      %185 = vst.msk [vmem:[#allocation2 + $0x60] sm:$0xff] %vm171, 0.0
      %186 = vst.msk [vmem:[#allocation2 + $0x68] sm:$0xff] %vm171, 0.0
      %187 = vst.msk [vmem:[#allocation2 + $0x70] sm:$0x3] %vm174, 0.0
      %188 = vst.msk [vmem:[#allocation2 + $0x78] sm:$0xff] %vm171, 0.0
      %189 = vst.msk [vmem:[#allocation2 + $0x80] sm:$0xff] %vm171, 0.0
      %190 = vst.msk [vmem:[#allocation2 + $0x88] sm:$0x3] %vm174, 0.0
      %191 = vst.msk [vmem:[#allocation2 + $0x90] sm:$0xff] %vm171, 0.0
      %192 = vst.msk [vmem:[#allocation2 + $0x98] sm:$0xff] %vm171, 0.0
      %193 = vst.msk [vmem:[#allocation2 + $0xa0] sm:$0x3] %vm174, 0.0
      %194 = vst.msk [vmem:[#allocation2 + $0xa8] sm:$0xff] %vm171, 0.0
      %195 = vst.msk [vmem:[#allocation2 + $0xb0] sm:$0xff] %vm171, 0.0
      %196 = vst.msk [vmem:[#allocation2 + $0xb8] sm:$0x3] %vm174, 0.0
      %197 = vst.msk [vmem:[#allocation2 + $0xc0] sm:$0xff] %vm171, 0.0
      %198 = vst.msk [vmem:[#allocation2 + $0xc8] sm:$0xff] %vm171, 0.0
      %199 = vst.msk [vmem:[#allocation2 + $0xd0] sm:$0x3] %vm174, 0.0
      %200 = vst.msk [vmem:[#allocation2 + $0xd8] sm:$0xff] %vm171, 0.0
      %201 = vst.msk [vmem:[#allocation2 + $0xe0] sm:$0xff] %vm171, 0.0
      %202 = vst.msk [vmem:[#allocation2 + $0xe8] sm:$0x3] %vm174, 0.0
      %203 = vst.msk [vmem:[#allocation2 + $0xf0] sm:$0xff] %vm171, 0.0
      %204 = vst.msk [vmem:[#allocation2 + $0xf8] sm:$0xff] %vm171, 0.0
      %205 = vst.msk [vmem:[#allocation2 + $0x100] sm:$0x3] %vm174, 0.0
      %206 = vst.msk [vmem:[#allocation2 + $0x108] sm:$0xff] %vm171, 0.0
      %207 = vst.msk [vmem:[#allocation2 + $0x110] sm:$0xff] %vm171, 0.0
      %208 = vst.msk [vmem:[#allocation2 + $0x118] sm:$0x3] %vm174, 0.0
      %209 = vst.msk [vmem:[#allocation2 + $0x120] sm:$0xff] %vm171, 0.0
      %210 = vst.msk [vmem:[#allocation2 + $0x128] sm:$0xff] %vm171, 0.0
      %211 = vst.msk [vmem:[#allocation2 + $0x130] sm:$0x3] %vm174, 0.0
      %212 = vst.msk [vmem:[#allocation2 + $0x138] sm:$0xff] %vm171, 0.0
      %213 = vst.msk [vmem:[#allocation2 + $0x140] sm:$0xff] %vm171, 0.0
      %214 = vst.msk [vmem:[#allocation2 + $0x148] sm:$0x3] %vm174, 0.0
      %215 = vst.msk [vmem:[#allocation2 + $0x150] sm:$0xff] %vm171, 0.0
      %216 = vst.msk [vmem:[#allocation2 + $0x158] sm:$0xff] %vm171, 0.0
      %217 = vst.msk [vmem:[#allocation2 + $0x160] sm:$0x3] %vm174, 0.0
      %218 = vst.msk [vmem:[#allocation2 + $0x168] sm:$0xff] %vm171, 0.0
      %219 = vst.msk [vmem:[#allocation2 + $0x170] sm:$0xff] %vm171, 0.0
      %220 = vst.msk [vmem:[#allocation2 + $0x178] sm:$0x3] %vm174, 0.0
      %221 = vst.msk [vmem:[#allocation2 + $0x180] sm:$0xff] %vm171, 0.0
      %222 = vst.msk [vmem:[#allocation2 + $0x188] sm:$0xff] %vm171, 0.0
      %223 = vst.msk [vmem:[#allocation2 + $0x190] sm:$0x3] %vm174, 0.0
      %224 = vst.msk [vmem:[#allocation2 + $0x198] sm:$0xff] %vm171, 0.0
      %225 = vst.msk [vmem:[#allocation2 + $0x1a0] sm:$0xff] %vm171, 0.0
      %226 = vst.msk [vmem:[#allocation2 + $0x1a8] sm:$0x3] %vm174, 0.0
      %227 = vst [vmem:[#allocation3] sm:$0xff] 0.0
      %228 = vst.msk [vmem:[#allocation3 + $0x8] sm:$0xff] %vm171, 0.0
      %229 = vst [vmem:[#allocation3 + $0x10] sm:$0xff] 0.0
      %230 = vst.msk [vmem:[#allocation3 + $0x18] sm:$0xff] %vm171, 0.0
      %231 = vst [vmem:[#allocation3 + $0x20] sm:$0xff] 0.0
      %232 = vst.msk [vmem:[#allocation3 + $0x28] sm:$0xff] %vm171, 0.0
      %233 = vst [vmem:[#allocation3 + $0x30] sm:$0xff] 0.0
      %234 = vst.msk [vmem:[#allocation3 + $0x38] sm:$0xff] %vm171, 0.0
      %235 = vst [vmem:[#allocation3 + $0x40] sm:$0xff] 0.0
      %236 = vst.msk [vmem:[#allocation3 + $0x48] sm:$0xff] %vm171, 0.0
      %237 = vst [vmem:[#allocation3 + $0x50] sm:$0xff] 0.0
      %238 = vst.msk [vmem:[#allocation3 + $0x58] sm:$0xff] %vm171, 0.0
      %239 = vst [vmem:[#allocation3 + $0x60] sm:$0xff] 0.0
      %240 = vst.msk [vmem:[#allocation3 + $0x68] sm:$0xff] %vm171, 0.0
      %241 = vst [vmem:[#allocation3 + $0x70] sm:$0xff] 0.0
      %242 = vst.msk [vmem:[#allocation3 + $0x78] sm:$0xff] %vm171, 0.0
      %243 = vst [vmem:[#allocation3 + $0x80] sm:$0xff] 0.0
      %244 = vst.msk [vmem:[#allocation3 + $0x88] sm:$0xff] %vm171, 0.0
      %245 = vst [vmem:[#allocation3 + $0x90] sm:$0xff] 0.0
      %246 = vst.msk [vmem:[#allocation3 + $0x98] sm:$0xff] %vm171, 0.0
      %247 = vst [vmem:[#allocation3 + $0xa0] sm:$0xff] 0.0
      %248 = vst.msk [vmem:[#allocation3 + $0xa8] sm:$0xff] %vm171, 0.0
      %249 = vst [vmem:[#allocation3 + $0xb0] sm:$0xff] 0.0
      %250 = vst.msk [vmem:[#allocation3 + $0xb8] sm:$0xff] %vm171, 0.0
      %251 = vst [vmem:[#allocation3 + $0xc0] sm:$0xff] 0.0
      %252 = vst.msk [vmem:[#allocation3 + $0xc8] sm:$0xff] %vm171, 0.0
      %253 = vst [vmem:[#allocation3 + $0xd0] sm:$0xff] 0.0
      %254 = vst.msk [vmem:[#allocation3 + $0xd8] sm:$0xff] %vm171, 0.0
      %255 = vst [vmem:[#allocation3 + $0xe0] sm:$0xff] 0.0
      %256 = vst.msk [vmem:[#allocation3 + $0xe8] sm:$0xff] %vm171, 0.0
      %257 = vst [vmem:[#allocation3 + $0xf0] sm:$0xff] 0.0
      %258 = vst.msk [vmem:[#allocation3 + $0xf8] sm:$0xff] %vm171, 0.0
      %259 = vst [vmem:[#allocation3 + $0x100] sm:$0xff] 0.0
      %260 = vst.msk [vmem:[#allocation3 + $0x108] sm:$0xff] %vm171, 0.0
      %261 = vst [vmem:[#allocation3 + $0x110] sm:$0xff] 0.0
      %262 = vst.msk [vmem:[#allocation3 + $0x118] sm:$0xff] %vm171, 0.0
      %263 = vst [vmem:[#allocation3 + $0x120] sm:$0xff] 0.0
      %264 = vst.msk [vmem:[#allocation3 + $0x128] sm:$0xff] %vm171, 0.0
      %265 = vst [vmem:[#allocation3 + $0x130] sm:$0xff] 0.0
      %266 = vst.msk [vmem:[#allocation3 + $0x138] sm:$0xff] %vm171, 0.0
      %267 = vst [vmem:[#allocation3 + $0x140] sm:$0xff] 0.0
      %268 = vst.msk [vmem:[#allocation3 + $0x148] sm:$0xff] %vm171, 0.0
      %269 = vst [vmem:[#allocation3 + $0x150] sm:$0xff] 0.0
      %270 = vst.msk [vmem:[#allocation3 + $0x158] sm:$0xff] %vm171, 0.0
      %271 = vst [vmem:[#allocation3 + $0x160] sm:$0xff] 0.0
      %272 = vst.msk [vmem:[#allocation3 + $0x168] sm:$0xff] %vm171, 0.0
      %273 = vst [vmem:[#allocation3 + $0x170] sm:$0xff] 0.0
      %274 = vst.msk [vmem:[#allocation3 + $0x178] sm:$0xff] %vm171, 0.0
      %275 = vst [vmem:[#allocation3 + $0x180] sm:$0xff] 0.0
      %276 = vst.msk [vmem:[#allocation3 + $0x188] sm:$0xff] %vm171, 0.0
      %277 = vst [vmem:[#allocation3 + $0x190] sm:$0xff] 0.0
      %278 = vst.msk [vmem:[#allocation3 + $0x198] sm:$0xff] %vm171, 0.0
      %279 = vst [vmem:[#allocation3 + $0x1a0] sm:$0xff] 0.0
      %280 = vst.msk [vmem:[#allocation3 + $0x1a8] sm:$0xff] %vm171, 0.0
      %281 = vst [vmem:[#allocation3 + $0x1b0] sm:$0xff] 0.0
      %282 = vst.msk [vmem:[#allocation3 + $0x1b8] sm:$0xff] %vm171, 0.0
      %283 = vst [vmem:[#allocation3 + $0x1c0] sm:$0xff] 0.0
      %284 = vst.msk [vmem:[#allocation3 + $0x1c8] sm:$0xff] %vm171, 0.0
      %285 = vst [vmem:[#allocation3 + $0x1d0] sm:$0xff] 0.0
      %286 = vst.msk [vmem:[#allocation3 + $0x1d8] sm:$0xff] %vm171, 0.0
      %287 = vst [vmem:[#allocation3 + $0x1e0] sm:$0xff] 0.0
      %288 = vst.msk [vmem:[#allocation3 + $0x1e8] sm:$0xff] %vm171, 0.0
      %289 = vst [vmem:[#allocation3 + $0x1f0] sm:$0xff] 0.0
      %290 = vst.msk [vmem:[#allocation3 + $0x1f8] sm:$0xff] %vm171, 0.0
      %v291 = vld [vmem:[%s165] sm:$0xff]
      %v292 = vld [vmem:[%s165 + $0x8] sm:$0xff]
      %v293 = vld [vmem:[%s165 + $0x10] sm:$0xff]
      %v294 = vld [vmem:[%s165 + $0x18] sm:$0xff]
      %v295 = vld [vmem:[%s165 + $0x20] sm:$0xff]
      %v296 = vld [vmem:[%s165 + $0x28] sm:$0xff]
      %v297 = vld [vmem:[%s165 + $0x30] sm:$0xff]
      %v298 = vld [vmem:[%s165 + $0x38] sm:$0xff]
      %v299 = vld [vmem:[%s165 + $0x40] sm:$0xff]
      %v300 = vld [vmem:[%s165 + $0x48] sm:$0xff]
      %v301 = vld [vmem:[%s165 + $0x50] sm:$0xff]
      %v302 = vld [vmem:[%s165 + $0x58] sm:$0xff]
      %v303 = vld [vmem:[%s165 + $0x60] sm:$0xff]
      %v304 = vld [vmem:[%s165 + $0x68] sm:$0xff]
      %v305 = vld [vmem:[%s165 + $0x70] sm:$0xff]
      %v306 = vld [vmem:[%s165 + $0x78] sm:$0xff]
      %v307 = vld [vmem:[%s165 + $0x80] sm:$0xff]
      %v308 = vld [vmem:[%s165 + $0x88] sm:$0xff]
      %v309 = vld [vmem:[%s165 + $0x90] sm:$0xff]
      %v310 = vld [vmem:[%s165 + $0x98] sm:$0xff]
      %v311 = vld [vmem:[%s165 + $0xa0] sm:$0xff]
      %v312 = vld [vmem:[%s165 + $0xa8] sm:$0xff]
      %v313 = vld [vmem:[%s165 + $0xb0] sm:$0xff]
      %v314 = vld [vmem:[%s165 + $0xb8] sm:$0xff]
      %v315 = vld [vmem:[%s165 + $0xc0] sm:$0xff]
      %v316 = vld [vmem:[%s165 + $0xc8] sm:$0xff]
      %v317 = vld [vmem:[%s165 + $0xd0] sm:$0xff]
      %v318 = vld [vmem:[%s165 + $0xd8] sm:$0xff]
      %v319 = vld [vmem:[%s165 + $0xe0] sm:$0xff]
      %v320 = vld [vmem:[%s165 + $0xe8] sm:$0xff]
      %v321 = vld [vmem:[%s165 + $0xf0] sm:$0xff]
      %v322 = vld [vmem:[%s165 + $0xf8] sm:$0xff]
      %s323 = scalar_lea.vmem [#allocation2], 24
      %vm324 = vcmask 31744
      %325 = vst.msk [vmem:[%s323 + $0x1] sm:$0xff] %vm324, %v291
      %326 = vst.msk [vmem:[%s323 + $0x9] sm:$0xff] %vm324, %v292
      %327 = vst.msk [vmem:[%s323 + $0x19] sm:$0xff] %vm324, %v293
      %328 = vst.msk [vmem:[%s323 + $0x21] sm:$0xff] %vm324, %v294
      %329 = vst.msk [vmem:[%s323 + $0x31] sm:$0xff] %vm324, %v295
      %330 = vst.msk [vmem:[%s323 + $0x39] sm:$0xff] %vm324, %v296
      %331 = vst.msk [vmem:[%s323 + $0x49] sm:$0xff] %vm324, %v297
      %332 = vst.msk [vmem:[%s323 + $0x51] sm:$0xff] %vm324, %v298
      %333 = vst.msk [vmem:[%s323 + $0x61] sm:$0xff] %vm324, %v299
      %334 = vst.msk [vmem:[%s323 + $0x69] sm:$0xff] %vm324, %v300
      %335 = vst.msk [vmem:[%s323 + $0x79] sm:$0xff] %vm324, %v301
      %336 = vst.msk [vmem:[%s323 + $0x81] sm:$0xff] %vm324, %v302
      %337 = vst.msk [vmem:[%s323 + $0x91] sm:$0xff] %vm324, %v303
      %338 = vst.msk [vmem:[%s323 + $0x99] sm:$0xff] %vm324, %v304
      %339 = vst.msk [vmem:[%s323 + $0xa9] sm:$0xff] %vm324, %v305
      %340 = vst.msk [vmem:[%s323 + $0xb1] sm:$0xff] %vm324, %v306
      %341 = vst.msk [vmem:[%s323 + $0xc1] sm:$0xff] %vm324, %v307
      %342 = vst.msk [vmem:[%s323 + $0xc9] sm:$0xff] %vm324, %v308
      %343 = vst.msk [vmem:[%s323 + $0xd9] sm:$0xff] %vm324, %v309
      %344 = vst.msk [vmem:[%s323 + $0xe1] sm:$0xff] %vm324, %v310
      %345 = vst.msk [vmem:[%s323 + $0xf1] sm:$0xff] %vm324, %v311
      %346 = vst.msk [vmem:[%s323 + $0xf9] sm:$0xff] %vm324, %v312
      %347 = vst.msk [vmem:[%s323 + $0x109] sm:$0xff] %vm324, %v313
      %348 = vst.msk [vmem:[%s323 + $0x111] sm:$0xff] %vm324, %v314
      %349 = vst.msk [vmem:[%s323 + $0x121] sm:$0xff] %vm324, %v315
      %350 = vst.msk [vmem:[%s323 + $0x129] sm:$0xff] %vm324, %v316
      %351 = vst.msk [vmem:[%s323 + $0x139] sm:$0xff] %vm324, %v317
      %352 = vst.msk [vmem:[%s323 + $0x141] sm:$0xff] %vm324, %v318
      %353 = vst.msk [vmem:[%s323 + $0x151] sm:$0xff] %vm324, %v319
      %354 = vst.msk [vmem:[%s323 + $0x159] sm:$0xff] %vm324, %v320
      %355 = vst.msk [vmem:[%s323 + $0x169] sm:$0xff] %vm324, %v321
      %356 = vst.msk [vmem:[%s323 + $0x171] sm:$0xff] %vm324, %v322
      %v357 = vld [vmem:[#allocation2] sm:$0xff]
      %v358 = vld [vmem:[#allocation2 + $0x8] sm:$0xff]
      %v359 = vld [vmem:[#allocation2 + $0x18] sm:$0xff]
      %v360 = vld [vmem:[#allocation2 + $0x20] sm:$0xff]
      %v361 = vld [vmem:[#allocation2 + $0x30] sm:$0xff]
      %v362 = vld [vmem:[#allocation2 + $0x38] sm:$0xff]
      %v363 = vld [vmem:[#allocation2 + $0x48] sm:$0xff]
      %v364 = vld [vmem:[#allocation2 + $0x50] sm:$0xff]
      %v365 = vld [vmem:[#allocation2 + $0x60] sm:$0xff]
      %v366 = vld [vmem:[#allocation2 + $0x68] sm:$0xff]
      %v367 = vld [vmem:[#allocation2 + $0x78] sm:$0xff]
      %v368 = vld [vmem:[#allocation2 + $0x80] sm:$0xff]
      %v369 = vld [vmem:[#allocation2 + $0x90] sm:$0xff]
      %v370 = vld [vmem:[#allocation2 + $0x98] sm:$0xff]
      %v371 = vld [vmem:[#allocation2 + $0xa8] sm:$0xff]
      %v372 = vld [vmem:[#allocation2 + $0xb0] sm:$0xff]
      %v373 = vld [vmem:[#allocation2 + $0xc0] sm:$0xff]
      %v374 = vld [vmem:[#allocation2 + $0xc8] sm:$0xff]
      %v375 = vld [vmem:[#allocation2 + $0xd8] sm:$0xff]
      %v376 = vld [vmem:[#allocation2 + $0xe0] sm:$0xff]
      %v377 = vld [vmem:[#allocation2 + $0xf0] sm:$0xff]
      %v378 = vld [vmem:[#allocation2 + $0xf8] sm:$0xff]
      %v379 = vld [vmem:[#allocation2 + $0x108] sm:$0xff]
      %v380 = vld [vmem:[#allocation2 + $0x110] sm:$0xff]
      %v381 = vld [vmem:[#allocation2 + $0x120] sm:$0xff]
      %v382 = vld [vmem:[#allocation2 + $0x128] sm:$0xff]
      %v383 = vld [vmem:[#allocation2 + $0x138] sm:$0xff]
      %v384 = vld [vmem:[#allocation2 + $0x140] sm:$0xff]
      %v385 = vld [vmem:[#allocation2 + $0x150] sm:$0xff]
      %v386 = vld [vmem:[#allocation2 + $0x158] sm:$0xff]
      %v387 = vld [vmem:[#allocation2 + $0x168] sm:$0xff]
      %v388 = vld [vmem:[#allocation2 + $0x170] sm:$0xff]
      %389 = vst.msk [vmem:[#allocation3] sm:$0xff] %vm324, %v357
      %390 = vst.msk [vmem:[#allocation3 + $0x10] sm:$0xff] %vm324, %v358
      %391 = vst.msk [vmem:[#allocation3 + $0x20] sm:$0xff] %vm324, %v359
      %392 = vst.msk [vmem:[#allocation3 + $0x30] sm:$0xff] %vm324, %v360
      %393 = vst.msk [vmem:[#allocation3 + $0x40] sm:$0xff] %vm324, %v361
      %394 = vst.msk [vmem:[#allocation3 + $0x50] sm:$0xff] %vm324, %v362
      %395 = vst.msk [vmem:[#allocation3 + $0x60] sm:$0xff] %vm324, %v363
      %396 = vst.msk [vmem:[#allocation3 + $0x70] sm:$0xff] %vm324, %v364
      %397 = vst.msk [vmem:[#allocation3 + $0x80] sm:$0xff] %vm324, %v365
      %398 = vst.msk [vmem:[#allocation3 + $0x90] sm:$0xff] %vm324, %v366
      %399 = vst.msk [vmem:[#allocation3 + $0xa0] sm:$0xff] %vm324, %v367
      %400 = vst.msk [vmem:[#allocation3 + $0xb0] sm:$0xff] %vm324, %v368
      %401 = vst.msk [vmem:[#allocation3 + $0xc0] sm:$0xff] %vm324, %v369
      %402 = vst.msk [vmem:[#allocation3 + $0xd0] sm:$0xff] %vm324, %v370
      %403 = vst.msk [vmem:[#allocation3 + $0xe0] sm:$0xff] %vm324, %v371
      %404 = vst.msk [vmem:[#allocation3 + $0xf0] sm:$0xff] %vm324, %v372
      %405 = vst.msk [vmem:[#allocation3 + $0x100] sm:$0xff] %vm324, %v373
      %406 = vst.msk [vmem:[#allocation3 + $0x110] sm:$0xff] %vm324, %v374
      %407 = vst.msk [vmem:[#allocation3 + $0x120] sm:$0xff] %vm324, %v375
      %408 = vst.msk [vmem:[#allocation3 + $0x130] sm:$0xff] %vm324, %v376
      %409 = vst.msk [vmem:[#allocation3 + $0x140] sm:$0xff] %vm324, %v377
      %410 = vst.msk [vmem:[#allocation3 + $0x150] sm:$0xff] %vm324, %v378
      %411 = vst.msk [vmem:[#allocation3 + $0x160] sm:$0xff] %vm324, %v379
      %412 = vst.msk [vmem:[#allocation3 + $0x170] sm:$0xff] %vm324, %v380
      %413 = vst.msk [vmem:[#allocation3 + $0x180] sm:$0xff] %vm324, %v381
      %414 = vst.msk [vmem:[#allocation3 + $0x190] sm:$0xff] %vm324, %v382
      %415 = vst.msk [vmem:[#allocation3 + $0x1a0] sm:$0xff] %vm324, %v383
      %416 = vst.msk [vmem:[#allocation3 + $0x1b0] sm:$0xff] %vm324, %v384
      %417 = vst.msk [vmem:[#allocation3 + $0x1c0] sm:$0xff] %vm324, %v385
      %418 = vst.msk [vmem:[#allocation3 + $0x1d0] sm:$0xff] %vm324, %v386
      %419 = vst.msk [vmem:[#allocation3 + $0x1e0] sm:$0xff] %vm324, %v387
      %420 = vst.msk [vmem:[#allocation3 + $0x1f0] sm:$0xff] %vm324, %v388
      %v421 = vld [vmem:[#allocation2 + $0x1] sm:$0xff]
      %v422 = vld [vmem:[#allocation2 + $0x9] sm:$0xff]
      %v423 = vld [vmem:[#allocation2 + $0x19] sm:$0xff]
      %v424 = vld [vmem:[#allocation2 + $0x21] sm:$0xff]
      %v425 = vld [vmem:[#allocation2 + $0x31] sm:$0xff]
      %v426 = vld [vmem:[#allocation2 + $0x39] sm:$0xff]
      %v427 = vld [vmem:[#allocation2 + $0x49] sm:$0xff]
      %v428 = vld [vmem:[#allocation2 + $0x51] sm:$0xff]
      %v429 = vld [vmem:[#allocation2 + $0x61] sm:$0xff]
      %v430 = vld [vmem:[#allocation2 + $0x69] sm:$0xff]
      %v431 = vld [vmem:[#allocation2 + $0x79] sm:$0xff]
      %v432 = vld [vmem:[#allocation2 + $0x81] sm:$0xff]
      %v433 = vld [vmem:[#allocation2 + $0x91] sm:$0xff]
      %v434 = vld [vmem:[#allocation2 + $0x99] sm:$0xff]
      %v435 = vld [vmem:[#allocation2 + $0xa9] sm:$0xff]
      %v436 = vld [vmem:[#allocation2 + $0xb1] sm:$0xff]
      %v437 = vld [vmem:[#allocation2 + $0xc1] sm:$0xff]
      %v438 = vld [vmem:[#allocation2 + $0xc9] sm:$0xff]
      %v439 = vld [vmem:[#allocation2 + $0xd9] sm:$0xff]
      %v440 = vld [vmem:[#allocation2 + $0xe1] sm:$0xff]
      %v441 = vld [vmem:[#allocation2 + $0xf1] sm:$0xff]
      %v442 = vld [vmem:[#allocation2 + $0xf9] sm:$0xff]
      %v443 = vld [vmem:[#allocation2 + $0x109] sm:$0xff]
      %v444 = vld [vmem:[#allocation2 + $0x111] sm:$0xff]
      %v445 = vld [vmem:[#allocation2 + $0x121] sm:$0xff]
      %v446 = vld [vmem:[#allocation2 + $0x129] sm:$0xff]
      %v447 = vld [vmem:[#allocation2 + $0x139] sm:$0xff]
      %v448 = vld [vmem:[#allocation2 + $0x141] sm:$0xff]
      %v449 = vld [vmem:[#allocation2 + $0x151] sm:$0xff]
      %v450 = vld [vmem:[#allocation2 + $0x159] sm:$0xff]
      %v451 = vld [vmem:[#allocation2 + $0x169] sm:$0xff]
      %v452 = vld [vmem:[#allocation2 + $0x171] sm:$0xff]
      %485 = vrot.lane.b32.xlu0 %v421, 16
      %v486 = vpop.permute.xlu0 %485
      %487 = vrot.lane.b32.xlu0 %v422, 16
      %v488 = vpop.permute.xlu0 %487
      %489 = vrot.lane.b32.xlu0 %v423, 16
      %v490 = vpop.permute.xlu0 %489
      %491 = vrot.lane.b32.xlu0 %v424, 16
      %v492 = vpop.permute.xlu0 %491
      %493 = vrot.lane.b32.xlu0 %v425, 16
      %v494 = vpop.permute.xlu0 %493
      %495 = vrot.lane.b32.xlu0 %v426, 16
      %v496 = vpop.permute.xlu0 %495
      %497 = vrot.lane.b32.xlu0 %v427, 16
      %v498 = vpop.permute.xlu0 %497
      %499 = vrot.lane.b32.xlu0 %v428, 16
      %v500 = vpop.permute.xlu0 %499
      %501 = vrot.lane.b32.xlu0 %v429, 16
      %v502 = vpop.permute.xlu0 %501
      %503 = vrot.lane.b32.xlu0 %v430, 16
      %v504 = vpop.permute.xlu0 %503
      %505 = vrot.lane.b32.xlu0 %v431, 16
      %v506 = vpop.permute.xlu0 %505
      %507 = vrot.lane.b32.xlu0 %v432, 16
      %v508 = vpop.permute.xlu0 %507
      %509 = vrot.lane.b32.xlu0 %v433, 16
      %v510 = vpop.permute.xlu0 %509
      %511 = vrot.lane.b32.xlu0 %v434, 16
      %v512 = vpop.permute.xlu0 %511
      %513 = vrot.lane.b32.xlu0 %v435, 16
      %v514 = vpop.permute.xlu0 %513
      %515 = vrot.lane.b32.xlu0 %v436, 16
      %v516 = vpop.permute.xlu0 %515
      %517 = vrot.lane.b32.xlu0 %v437, 16
      %v518 = vpop.permute.xlu0 %517
      %519 = vrot.lane.b32.xlu0 %v438, 16
      %v520 = vpop.permute.xlu0 %519
      %521 = vrot.lane.b32.xlu0 %v439, 16
      %v522 = vpop.permute.xlu0 %521
      %523 = vrot.lane.b32.xlu0 %v440, 16
      %v524 = vpop.permute.xlu0 %523
      %525 = vrot.lane.b32.xlu0 %v441, 16
      %v526 = vpop.permute.xlu0 %525
      %527 = vrot.lane.b32.xlu0 %v442, 16
      %v528 = vpop.permute.xlu0 %527
      %529 = vrot.lane.b32.xlu0 %v443, 16
      %v530 = vpop.permute.xlu0 %529
      %531 = vrot.lane.b32.xlu0 %v444, 16
      %v532 = vpop.permute.xlu0 %531
      %533 = vrot.lane.b32.xlu0 %v445, 16
      %v534 = vpop.permute.xlu0 %533
      %535 = vrot.lane.b32.xlu0 %v446, 16
      %v536 = vpop.permute.xlu0 %535
      %537 = vrot.lane.b32.xlu0 %v447, 16
      %v538 = vpop.permute.xlu0 %537
      %539 = vrot.lane.b32.xlu0 %v448, 16
      %v540 = vpop.permute.xlu0 %539
      %541 = vrot.lane.b32.xlu0 %v449, 16
      %v542 = vpop.permute.xlu0 %541
      %543 = vrot.lane.b32.xlu0 %v450, 16
      %v544 = vpop.permute.xlu0 %543
      %545 = vrot.lane.b32.xlu0 %v451, 16
      %v546 = vpop.permute.xlu0 %545
      %547 = vrot.lane.b32.xlu0 %v452, 16
      %v548 = vpop.permute.xlu0 %547
      %vm581 = vcmask 162944
      %582 = vst.msk [vmem:[#allocation3] sm:$0xff] %vm581, %v486
      %583 = vst.msk [vmem:[#allocation3 + $0x10] sm:$0xff] %vm581, %v488
      %584 = vst.msk [vmem:[#allocation3 + $0x20] sm:$0xff] %vm581, %v490
      %585 = vst.msk [vmem:[#allocation3 + $0x30] sm:$0xff] %vm581, %v492
      %586 = vst.msk [vmem:[#allocation3 + $0x40] sm:$0xff] %vm581, %v494
      %587 = vst.msk [vmem:[#allocation3 + $0x50] sm:$0xff] %vm581, %v496
      %588 = vst.msk [vmem:[#allocation3 + $0x60] sm:$0xff] %vm581, %v498
      %589 = vst.msk [vmem:[#allocation3 + $0x70] sm:$0xff] %vm581, %v500
      %590 = vst.msk [vmem:[#allocation3 + $0x80] sm:$0xff] %vm581, %v502
      %591 = vst.msk [vmem:[#allocation3 + $0x90] sm:$0xff] %vm581, %v504
      %592 = vst.msk [vmem:[#allocation3 + $0xa0] sm:$0xff] %vm581, %v506
      %593 = vst.msk [vmem:[#allocation3 + $0xb0] sm:$0xff] %vm581, %v508
      %594 = vst.msk [vmem:[#allocation3 + $0xc0] sm:$0xff] %vm581, %v510
      %595 = vst.msk [vmem:[#allocation3 + $0xd0] sm:$0xff] %vm581, %v512
      %596 = vst.msk [vmem:[#allocation3 + $0xe0] sm:$0xff] %vm581, %v514
      %597 = vst.msk [vmem:[#allocation3 + $0xf0] sm:$0xff] %vm581, %v516
      %598 = vst.msk [vmem:[#allocation3 + $0x100] sm:$0xff] %vm581, %v518
      %599 = vst.msk [vmem:[#allocation3 + $0x110] sm:$0xff] %vm581, %v520
      %600 = vst.msk [vmem:[#allocation3 + $0x120] sm:$0xff] %vm581, %v522
      %601 = vst.msk [vmem:[#allocation3 + $0x130] sm:$0xff] %vm581, %v524
      %602 = vst.msk [vmem:[#allocation3 + $0x140] sm:$0xff] %vm581, %v526
      %603 = vst.msk [vmem:[#allocation3 + $0x150] sm:$0xff] %vm581, %v528
      %604 = vst.msk [vmem:[#allocation3 + $0x160] sm:$0xff] %vm581, %v530
      %605 = vst.msk [vmem:[#allocation3 + $0x170] sm:$0xff] %vm581, %v532
      %606 = vst.msk [vmem:[#allocation3 + $0x180] sm:$0xff] %vm581, %v534
      %607 = vst.msk [vmem:[#allocation3 + $0x190] sm:$0xff] %vm581, %v536
      %608 = vst.msk [vmem:[#allocation3 + $0x1a0] sm:$0xff] %vm581, %v538
      %609 = vst.msk [vmem:[#allocation3 + $0x1b0] sm:$0xff] %vm581, %v540
      %610 = vst.msk [vmem:[#allocation3 + $0x1c0] sm:$0xff] %vm581, %v542
      %611 = vst.msk [vmem:[#allocation3 + $0x1d0] sm:$0xff] %vm581, %v544
      %612 = vst.msk [vmem:[#allocation3 + $0x1e0] sm:$0xff] %vm581, %v546
      %613 = vst.msk [vmem:[#allocation3 + $0x1f0] sm:$0xff] %vm581, %v548
      %v614 = vld [vmem:[#allocation2 + $0x2] sm:$0xff]
      %v615 = vld [vmem:[#allocation2 + $0xa] sm:$0xff]
      %v616 = vld [vmem:[#allocation2 + $0x1a] sm:$0xff]
      %v617 = vld [vmem:[#allocation2 + $0x22] sm:$0xff]
      %v618 = vld [vmem:[#allocation2 + $0x32] sm:$0xff]
      %v619 = vld [vmem:[#allocation2 + $0x3a] sm:$0xff]
      %v620 = vld [vmem:[#allocation2 + $0x4a] sm:$0xff]
      %v621 = vld [vmem:[#allocation2 + $0x52] sm:$0xff]
      %v622 = vld [vmem:[#allocation2 + $0x62] sm:$0xff]
      %v623 = vld [vmem:[#allocation2 + $0x6a] sm:$0xff]
      %v624 = vld [vmem:[#allocation2 + $0x7a] sm:$0xff]
      %v625 = vld [vmem:[#allocation2 + $0x82] sm:$0xff]
      %v626 = vld [vmem:[#allocation2 + $0x92] sm:$0xff]
      %v627 = vld [vmem:[#allocation2 + $0x9a] sm:$0xff]
      %v628 = vld [vmem:[#allocation2 + $0xaa] sm:$0xff]
      %v629 = vld [vmem:[#allocation2 + $0xb2] sm:$0xff]
      %v630 = vld [vmem:[#allocation2 + $0xc2] sm:$0xff]
      %v631 = vld [vmem:[#allocation2 + $0xca] sm:$0xff]
      %v632 = vld [vmem:[#allocation2 + $0xda] sm:$0xff]
      %v633 = vld [vmem:[#allocation2 + $0xe2] sm:$0xff]
      %v634 = vld [vmem:[#allocation2 + $0xf2] sm:$0xff]
      %v635 = vld [vmem:[#allocation2 + $0xfa] sm:$0xff]
      %v636 = vld [vmem:[#allocation2 + $0x10a] sm:$0xff]
      %v637 = vld [vmem:[#allocation2 + $0x112] sm:$0xff]
      %v638 = vld [vmem:[#allocation2 + $0x122] sm:$0xff]
      %v639 = vld [vmem:[#allocation2 + $0x12a] sm:$0xff]
      %v640 = vld [vmem:[#allocation2 + $0x13a] sm:$0xff]
      %v641 = vld [vmem:[#allocation2 + $0x142] sm:$0xff]
      %v642 = vld [vmem:[#allocation2 + $0x152] sm:$0xff]
      %v643 = vld [vmem:[#allocation2 + $0x15a] sm:$0xff]
      %v644 = vld [vmem:[#allocation2 + $0x16a] sm:$0xff]
      %v645 = vld [vmem:[#allocation2 + $0x172] sm:$0xff]
      %678 = vrot.lane.b32.xlu0 %v614, 32
      %v679 = vpop.permute.xlu0 %678
      %680 = vrot.lane.b32.xlu0 %v615, 32
      %v681 = vpop.permute.xlu0 %680
      %682 = vrot.lane.b32.xlu0 %v616, 32
      %v683 = vpop.permute.xlu0 %682
      %684 = vrot.lane.b32.xlu0 %v617, 32
      %v685 = vpop.permute.xlu0 %684
      %686 = vrot.lane.b32.xlu0 %v618, 32
      %v687 = vpop.permute.xlu0 %686
      %688 = vrot.lane.b32.xlu0 %v619, 32
      %v689 = vpop.permute.xlu0 %688
      %690 = vrot.lane.b32.xlu0 %v620, 32
      %v691 = vpop.permute.xlu0 %690
      %692 = vrot.lane.b32.xlu0 %v621, 32
      %v693 = vpop.permute.xlu0 %692
      %694 = vrot.lane.b32.xlu0 %v622, 32
      %v695 = vpop.permute.xlu0 %694
      %696 = vrot.lane.b32.xlu0 %v623, 32
      %v697 = vpop.permute.xlu0 %696
      %698 = vrot.lane.b32.xlu0 %v624, 32
      %v699 = vpop.permute.xlu0 %698
      %700 = vrot.lane.b32.xlu0 %v625, 32
      %v701 = vpop.permute.xlu0 %700
      %702 = vrot.lane.b32.xlu0 %v626, 32
      %v703 = vpop.permute.xlu0 %702
      %704 = vrot.lane.b32.xlu0 %v627, 32
      %v705 = vpop.permute.xlu0 %704
      %706 = vrot.lane.b32.xlu0 %v628, 32
      %v707 = vpop.permute.xlu0 %706
      %708 = vrot.lane.b32.xlu0 %v629, 32
      %v709 = vpop.permute.xlu0 %708
      %710 = vrot.lane.b32.xlu0 %v630, 32
      %v711 = vpop.permute.xlu0 %710
      %712 = vrot.lane.b32.xlu0 %v631, 32
      %v713 = vpop.permute.xlu0 %712
      %714 = vrot.lane.b32.xlu0 %v632, 32
      %v715 = vpop.permute.xlu0 %714
      %716 = vrot.lane.b32.xlu0 %v633, 32
      %v717 = vpop.permute.xlu0 %716
      %718 = vrot.lane.b32.xlu0 %v634, 32
      %v719 = vpop.permute.xlu0 %718
      %720 = vrot.lane.b32.xlu0 %v635, 32
      %v721 = vpop.permute.xlu0 %720
      %722 = vrot.lane.b32.xlu0 %v636, 32
      %v723 = vpop.permute.xlu0 %722
      %724 = vrot.lane.b32.xlu0 %v637, 32
      %v725 = vpop.permute.xlu0 %724
      %726 = vrot.lane.b32.xlu0 %v638, 32
      %v727 = vpop.permute.xlu0 %726
      %728 = vrot.lane.b32.xlu0 %v639, 32
      %v729 = vpop.permute.xlu0 %728
      %730 = vrot.lane.b32.xlu0 %v640, 32
      %v731 = vpop.permute.xlu0 %730
      %732 = vrot.lane.b32.xlu0 %v641, 32
      %v733 = vpop.permute.xlu0 %732
      %734 = vrot.lane.b32.xlu0 %v642, 32
      %v735 = vpop.permute.xlu0 %734
      %736 = vrot.lane.b32.xlu0 %v643, 32
      %v737 = vpop.permute.xlu0 %736
      %738 = vrot.lane.b32.xlu0 %v644, 32
      %v739 = vpop.permute.xlu0 %738
      %740 = vrot.lane.b32.xlu0 %v645, 32
      %v741 = vpop.permute.xlu0 %740
      %vm774 = vcmask 294144
      %775 = vst.msk [vmem:[#allocation3] sm:$0xff] %vm774, %v679
      %776 = vst.msk [vmem:[#allocation3 + $0x10] sm:$0xff] %vm774, %v681
      %777 = vst.msk [vmem:[#allocation3 + $0x20] sm:$0xff] %vm774, %v683
      %778 = vst.msk [vmem:[#allocation3 + $0x30] sm:$0xff] %vm774, %v685
      %779 = vst.msk [vmem:[#allocation3 + $0x40] sm:$0xff] %vm774, %v687
      %780 = vst.msk [vmem:[#allocation3 + $0x50] sm:$0xff] %vm774, %v689
      %781 = vst.msk [vmem:[#allocation3 + $0x60] sm:$0xff] %vm774, %v691
      %782 = vst.msk [vmem:[#allocation3 + $0x70] sm:$0xff] %vm774, %v693
      %783 = vst.msk [vmem:[#allocation3 + $0x80] sm:$0xff] %vm774, %v695
      %784 = vst.msk [vmem:[#allocation3 + $0x90] sm:$0xff] %vm774, %v697
      %785 = vst.msk [vmem:[#allocation3 + $0xa0] sm:$0xff] %vm774, %v699
      %786 = vst.msk [vmem:[#allocation3 + $0xb0] sm:$0xff] %vm774, %v701
      %787 = vst.msk [vmem:[#allocation3 + $0xc0] sm:$0xff] %vm774, %v703
      %788 = vst.msk [vmem:[#allocation3 + $0xd0] sm:$0xff] %vm774, %v705
      %789 = vst.msk [vmem:[#allocation3 + $0xe0] sm:$0xff] %vm774, %v707
      %790 = vst.msk [vmem:[#allocation3 + $0xf0] sm:$0xff] %vm774, %v709
      %791 = vst.msk [vmem:[#allocation3 + $0x100] sm:$0xff] %vm774, %v711
      %792 = vst.msk [vmem:[#allocation3 + $0x110] sm:$0xff] %vm774, %v713
      %793 = vst.msk [vmem:[#allocation3 + $0x120] sm:$0xff] %vm774, %v715
      %794 = vst.msk [vmem:[#allocation3 + $0x130] sm:$0xff] %vm774, %v717
      %795 = vst.msk [vmem:[#allocation3 + $0x140] sm:$0xff] %vm774, %v719
      %796 = vst.msk [vmem:[#allocation3 + $0x150] sm:$0xff] %vm774, %v721
      %797 = vst.msk [vmem:[#allocation3 + $0x160] sm:$0xff] %vm774, %v723
      %798 = vst.msk [vmem:[#allocation3 + $0x170] sm:$0xff] %vm774, %v725
      %799 = vst.msk [vmem:[#allocation3 + $0x180] sm:$0xff] %vm774, %v727
      %800 = vst.msk [vmem:[#allocation3 + $0x190] sm:$0xff] %vm774, %v729
      %801 = vst.msk [vmem:[#allocation3 + $0x1a0] sm:$0xff] %vm774, %v731
      %802 = vst.msk [vmem:[#allocation3 + $0x1b0] sm:$0xff] %vm774, %v733
      %803 = vst.msk [vmem:[#allocation3 + $0x1c0] sm:$0xff] %vm774, %v735
      %804 = vst.msk [vmem:[#allocation3 + $0x1d0] sm:$0xff] %vm774, %v737
      %805 = vst.msk [vmem:[#allocation3 + $0x1e0] sm:$0xff] %vm774, %v739
      %806 = vst.msk [vmem:[#allocation3 + $0x1f0] sm:$0xff] %vm774, %v741
      %v807 = vld [vmem:[%s323] sm:$0xff]
      %v808 = vld [vmem:[%s323 + $0x8] sm:$0xff]
      %v809 = vld [vmem:[%s323 + $0x18] sm:$0xff]
      %v810 = vld [vmem:[%s323 + $0x20] sm:$0xff]
      %v811 = vld [vmem:[%s323 + $0x30] sm:$0xff]
      %v812 = vld [vmem:[%s323 + $0x38] sm:$0xff]
      %v813 = vld [vmem:[%s323 + $0x48] sm:$0xff]
      %v814 = vld [vmem:[%s323 + $0x50] sm:$0xff]
      %v815 = vld [vmem:[%s323 + $0x60] sm:$0xff]
      %v816 = vld [vmem:[%s323 + $0x68] sm:$0xff]
      %v817 = vld [vmem:[%s323 + $0x78] sm:$0xff]
      %v818 = vld [vmem:[%s323 + $0x80] sm:$0xff]
      %v819 = vld [vmem:[%s323 + $0x90] sm:$0xff]
      %v820 = vld [vmem:[%s323 + $0x98] sm:$0xff]
      %v821 = vld [vmem:[%s323 + $0xa8] sm:$0xff]
      %v822 = vld [vmem:[%s323 + $0xb0] sm:$0xff]
      %v823 = vld [vmem:[%s323 + $0xc0] sm:$0xff]
      %v824 = vld [vmem:[%s323 + $0xc8] sm:$0xff]
      %v825 = vld [vmem:[%s323 + $0xd8] sm:$0xff]
      %v826 = vld [vmem:[%s323 + $0xe0] sm:$0xff]
      %v827 = vld [vmem:[%s323 + $0xf0] sm:$0xff]
      %v828 = vld [vmem:[%s323 + $0xf8] sm:$0xff]
      %v829 = vld [vmem:[%s323 + $0x108] sm:$0xff]
      %v830 = vld [vmem:[%s323 + $0x110] sm:$0xff]
      %v831 = vld [vmem:[%s323 + $0x120] sm:$0xff]
      %v832 = vld [vmem:[%s323 + $0x128] sm:$0xff]
      %v833 = vld [vmem:[%s323 + $0x138] sm:$0xff]
      %v834 = vld [vmem:[%s323 + $0x140] sm:$0xff]
      %v835 = vld [vmem:[%s323 + $0x150] sm:$0xff]
      %v836 = vld [vmem:[%s323 + $0x158] sm:$0xff]
      %v837 = vld [vmem:[%s323 + $0x168] sm:$0xff]
      %v838 = vld [vmem:[%s323 + $0x170] sm:$0xff]
      %871 = vrot.lane.b32.xlu0 %v807, 48
      %v872 = vpop.permute.xlu0 %871
      %873 = vrot.lane.b32.xlu0 %v808, 48
      %v874 = vpop.permute.xlu0 %873
      %875 = vrot.lane.b32.xlu0 %v809, 48
      %v876 = vpop.permute.xlu0 %875
      %877 = vrot.lane.b32.xlu0 %v810, 48
      %v878 = vpop.permute.xlu0 %877
      %879 = vrot.lane.b32.xlu0 %v811, 48
      %v880 = vpop.permute.xlu0 %879
      %881 = vrot.lane.b32.xlu0 %v812, 48
      %v882 = vpop.permute.xlu0 %881
      %883 = vrot.lane.b32.xlu0 %v813, 48
      %v884 = vpop.permute.xlu0 %883
      %885 = vrot.lane.b32.xlu0 %v814, 48
      %v886 = vpop.permute.xlu0 %885
      %887 = vrot.lane.b32.xlu0 %v815, 48
      %v888 = vpop.permute.xlu0 %887
      %889 = vrot.lane.b32.xlu0 %v816, 48
      %v890 = vpop.permute.xlu0 %889
      %891 = vrot.lane.b32.xlu0 %v817, 48
      %v892 = vpop.permute.xlu0 %891
      %893 = vrot.lane.b32.xlu0 %v818, 48
      %v894 = vpop.permute.xlu0 %893
      %895 = vrot.lane.b32.xlu0 %v819, 48
      %v896 = vpop.permute.xlu0 %895
      %897 = vrot.lane.b32.xlu0 %v820, 48
      %v898 = vpop.permute.xlu0 %897
      %899 = vrot.lane.b32.xlu0 %v821, 48
      %v900 = vpop.permute.xlu0 %899
      %901 = vrot.lane.b32.xlu0 %v822, 48
      %v902 = vpop.permute.xlu0 %901
      %903 = vrot.lane.b32.xlu0 %v823, 48
      %v904 = vpop.permute.xlu0 %903
      %905 = vrot.lane.b32.xlu0 %v824, 48
      %v906 = vpop.permute.xlu0 %905
      %907 = vrot.lane.b32.xlu0 %v825, 48
      %v908 = vpop.permute.xlu0 %907
      %909 = vrot.lane.b32.xlu0 %v826, 48
      %v910 = vpop.permute.xlu0 %909
      %911 = vrot.lane.b32.xlu0 %v827, 48
      %v912 = vpop.permute.xlu0 %911
      %913 = vrot.lane.b32.xlu0 %v828, 48
      %v914 = vpop.permute.xlu0 %913
      %915 = vrot.lane.b32.xlu0 %v829, 48
      %v916 = vpop.permute.xlu0 %915
      %917 = vrot.lane.b32.xlu0 %v830, 48
      %v918 = vpop.permute.xlu0 %917
      %919 = vrot.lane.b32.xlu0 %v831, 48
      %v920 = vpop.permute.xlu0 %919
      %921 = vrot.lane.b32.xlu0 %v832, 48
      %v922 = vpop.permute.xlu0 %921
      %923 = vrot.lane.b32.xlu0 %v833, 48
      %v924 = vpop.permute.xlu0 %923
      %925 = vrot.lane.b32.xlu0 %v834, 48
      %v926 = vpop.permute.xlu0 %925
      %927 = vrot.lane.b32.xlu0 %v835, 48
      %v928 = vpop.permute.xlu0 %927
      %929 = vrot.lane.b32.xlu0 %v836, 48
      %v930 = vpop.permute.xlu0 %929
      %931 = vrot.lane.b32.xlu0 %v837, 48
      %v932 = vpop.permute.xlu0 %931
      %933 = vrot.lane.b32.xlu0 %v838, 48
      %v934 = vpop.permute.xlu0 %933
      %vm967 = vcmask 425344
      %968 = vst.msk [vmem:[#allocation3] sm:$0xff] %vm967, %v872
      %969 = vst.msk [vmem:[#allocation3 + $0x10] sm:$0xff] %vm967, %v874
      %970 = vst.msk [vmem:[#allocation3 + $0x20] sm:$0xff] %vm967, %v876
      %971 = vst.msk [vmem:[#allocation3 + $0x30] sm:$0xff] %vm967, %v878
      %972 = vst.msk [vmem:[#allocation3 + $0x40] sm:$0xff] %vm967, %v880
      %973 = vst.msk [vmem:[#allocation3 + $0x50] sm:$0xff] %vm967, %v882
      %974 = vst.msk [vmem:[#allocation3 + $0x60] sm:$0xff] %vm967, %v884
      %975 = vst.msk [vmem:[#allocation3 + $0x70] sm:$0xff] %vm967, %v886
      %976 = vst.msk [vmem:[#allocation3 + $0x80] sm:$0xff] %vm967, %v888
      %977 = vst.msk [vmem:[#allocation3 + $0x90] sm:$0xff] %vm967, %v890
      %978 = vst.msk [vmem:[#allocation3 + $0xa0] sm:$0xff] %vm967, %v892
      %979 = vst.msk [vmem:[#allocation3 + $0xb0] sm:$0xff] %vm967, %v894
      %980 = vst.msk [vmem:[#allocation3 + $0xc0] sm:$0xff] %vm967, %v896
      %981 = vst.msk [vmem:[#allocation3 + $0xd0] sm:$0xff] %vm967, %v898
      %982 = vst.msk [vmem:[#allocation3 + $0xe0] sm:$0xff] %vm967, %v900
      %983 = vst.msk [vmem:[#allocation3 + $0xf0] sm:$0xff] %vm967, %v902
      %984 = vst.msk [vmem:[#allocation3 + $0x100] sm:$0xff] %vm967, %v904
      %985 = vst.msk [vmem:[#allocation3 + $0x110] sm:$0xff] %vm967, %v906
      %986 = vst.msk [vmem:[#allocation3 + $0x120] sm:$0xff] %vm967, %v908
      %987 = vst.msk [vmem:[#allocation3 + $0x130] sm:$0xff] %vm967, %v910
      %988 = vst.msk [vmem:[#allocation3 + $0x140] sm:$0xff] %vm967, %v912
      %989 = vst.msk [vmem:[#allocation3 + $0x150] sm:$0xff] %vm967, %v914
      %990 = vst.msk [vmem:[#allocation3 + $0x160] sm:$0xff] %vm967, %v916
      %991 = vst.msk [vmem:[#allocation3 + $0x170] sm:$0xff] %vm967, %v918
      %992 = vst.msk [vmem:[#allocation3 + $0x180] sm:$0xff] %vm967, %v920
      %993 = vst.msk [vmem:[#allocation3 + $0x190] sm:$0xff] %vm967, %v922
      %994 = vst.msk [vmem:[#allocation3 + $0x1a0] sm:$0xff] %vm967, %v924
      %995 = vst.msk [vmem:[#allocation3 + $0x1b0] sm:$0xff] %vm967, %v926
      %996 = vst.msk [vmem:[#allocation3 + $0x1c0] sm:$0xff] %vm967, %v928
      %997 = vst.msk [vmem:[#allocation3 + $0x1d0] sm:$0xff] %vm967, %v930
      %998 = vst.msk [vmem:[#allocation3 + $0x1e0] sm:$0xff] %vm967, %v932
      %999 = vst.msk [vmem:[#allocation3 + $0x1f0] sm:$0xff] %vm967, %v934
      %v1000 = vld [vmem:[%s323 + $0x1] sm:$0xff]
      %v1001 = vld [vmem:[%s323 + $0x9] sm:$0xff]
      %v1002 = vld [vmem:[%s323 + $0x19] sm:$0xff]
      %v1003 = vld [vmem:[%s323 + $0x21] sm:$0xff]
      %v1004 = vld [vmem:[%s323 + $0x31] sm:$0xff]
      %v1005 = vld [vmem:[%s323 + $0x39] sm:$0xff]
      %v1006 = vld [vmem:[%s323 + $0x49] sm:$0xff]
      %v1007 = vld [vmem:[%s323 + $0x51] sm:$0xff]
      %v1008 = vld [vmem:[%s323 + $0x61] sm:$0xff]
      %v1009 = vld [vmem:[%s323 + $0x69] sm:$0xff]
      %v1010 = vld [vmem:[%s323 + $0x79] sm:$0xff]
      %v1011 = vld [vmem:[%s323 + $0x81] sm:$0xff]
      %v1012 = vld [vmem:[%s323 + $0x91] sm:$0xff]
      %v1013 = vld [vmem:[%s323 + $0x99] sm:$0xff]
      %v1014 = vld [vmem:[%s323 + $0xa9] sm:$0xff]
      %v1015 = vld [vmem:[%s323 + $0xb1] sm:$0xff]
      %v1016 = vld [vmem:[%s323 + $0xc1] sm:$0xff]
      %v1017 = vld [vmem:[%s323 + $0xc9] sm:$0xff]
      %v1018 = vld [vmem:[%s323 + $0xd9] sm:$0xff]
      %v1019 = vld [vmem:[%s323 + $0xe1] sm:$0xff]
      %v1020 = vld [vmem:[%s323 + $0xf1] sm:$0xff]
      %v1021 = vld [vmem:[%s323 + $0xf9] sm:$0xff]
      %v1022 = vld [vmem:[%s323 + $0x109] sm:$0xff]
      %v1023 = vld [vmem:[%s323 + $0x111] sm:$0xff]
      %v1024 = vld [vmem:[%s323 + $0x121] sm:$0xff]
      %v1025 = vld [vmem:[%s323 + $0x129] sm:$0xff]
      %v1026 = vld [vmem:[%s323 + $0x139] sm:$0xff]
      %v1027 = vld [vmem:[%s323 + $0x141] sm:$0xff]
      %v1028 = vld [vmem:[%s323 + $0x151] sm:$0xff]
      %v1029 = vld [vmem:[%s323 + $0x159] sm:$0xff]
      %v1030 = vld [vmem:[%s323 + $0x169] sm:$0xff]
      %v1031 = vld [vmem:[%s323 + $0x171] sm:$0xff]
      %1064 = vrot.lane.b32.xlu0 %v1000, 64
      %v1065 = vpop.permute.xlu0 %1064
      %1066 = vrot.lane.b32.xlu0 %v1001, 64
      %v1067 = vpop.permute.xlu0 %1066
      %1068 = vrot.lane.b32.xlu0 %v1002, 64
      %v1069 = vpop.permute.xlu0 %1068
      %1070 = vrot.lane.b32.xlu0 %v1003, 64
      %v1071 = vpop.permute.xlu0 %1070
      %1072 = vrot.lane.b32.xlu0 %v1004, 64
      %v1073 = vpop.permute.xlu0 %1072
      %1074 = vrot.lane.b32.xlu0 %v1005, 64
      %v1075 = vpop.permute.xlu0 %1074
      %1076 = vrot.lane.b32.xlu0 %v1006, 64
      %v1077 = vpop.permute.xlu0 %1076
      %1078 = vrot.lane.b32.xlu0 %v1007, 64
      %v1079 = vpop.permute.xlu0 %1078
      %1080 = vrot.lane.b32.xlu0 %v1008, 64
      %v1081 = vpop.permute.xlu0 %1080
      %1082 = vrot.lane.b32.xlu0 %v1009, 64
      %v1083 = vpop.permute.xlu0 %1082
      %1084 = vrot.lane.b32.xlu0 %v1010, 64
      %v1085 = vpop.permute.xlu0 %1084
      %1086 = vrot.lane.b32.xlu0 %v1011, 64
      %v1087 = vpop.permute.xlu0 %1086
      %1088 = vrot.lane.b32.xlu0 %v1012, 64
      %v1089 = vpop.permute.xlu0 %1088
      %1090 = vrot.lane.b32.xlu0 %v1013, 64
      %v1091 = vpop.permute.xlu0 %1090
      %1092 = vrot.lane.b32.xlu0 %v1014, 64
      %v1093 = vpop.permute.xlu0 %1092
      %1094 = vrot.lane.b32.xlu0 %v1015, 64
      %v1095 = vpop.permute.xlu0 %1094
      %1096 = vrot.lane.b32.xlu0 %v1016, 64
      %v1097 = vpop.permute.xlu0 %1096
      %1098 = vrot.lane.b32.xlu0 %v1017, 64
      %v1099 = vpop.permute.xlu0 %1098
      %1100 = vrot.lane.b32.xlu0 %v1018, 64
      %v1101 = vpop.permute.xlu0 %1100
      %1102 = vrot.lane.b32.xlu0 %v1019, 64
      %v1103 = vpop.permute.xlu0 %1102
      %1104 = vrot.lane.b32.xlu0 %v1020, 64
      %v1105 = vpop.permute.xlu0 %1104
      %1106 = vrot.lane.b32.xlu0 %v1021, 64
      %v1107 = vpop.permute.xlu0 %1106
      %1108 = vrot.lane.b32.xlu0 %v1022, 64
      %v1109 = vpop.permute.xlu0 %1108
      %1110 = vrot.lane.b32.xlu0 %v1023, 64
      %v1111 = vpop.permute.xlu0 %1110
      %1112 = vrot.lane.b32.xlu0 %v1024, 64
      %v1113 = vpop.permute.xlu0 %1112
      %1114 = vrot.lane.b32.xlu0 %v1025, 64
      %v1115 = vpop.permute.xlu0 %1114
      %1116 = vrot.lane.b32.xlu0 %v1026, 64
      %v1117 = vpop.permute.xlu0 %1116
      %1118 = vrot.lane.b32.xlu0 %v1027, 64
      %v1119 = vpop.permute.xlu0 %1118
      %1120 = vrot.lane.b32.xlu0 %v1028, 64
      %v1121 = vpop.permute.xlu0 %1120
      %1122 = vrot.lane.b32.xlu0 %v1029, 64
      %v1123 = vpop.permute.xlu0 %1122
      %1124 = vrot.lane.b32.xlu0 %v1030, 64
      %v1125 = vpop.permute.xlu0 %1124
      %1126 = vrot.lane.b32.xlu0 %v1031, 64
      %v1127 = vpop.permute.xlu0 %1126
      %vm1160 = vcmask 556544
      %1161 = vst.msk [vmem:[#allocation3] sm:$0xff] %vm1160, %v1065
      %1162 = vst.msk [vmem:[#allocation3 + $0x10] sm:$0xff] %vm1160, %v1067
      %1163 = vst.msk [vmem:[#allocation3 + $0x20] sm:$0xff] %vm1160, %v1069
      %1164 = vst.msk [vmem:[#allocation3 + $0x30] sm:$0xff] %vm1160, %v1071
      %1165 = vst.msk [vmem:[#allocation3 + $0x40] sm:$0xff] %vm1160, %v1073
      %1166 = vst.msk [vmem:[#allocation3 + $0x50] sm:$0xff] %vm1160, %v1075
      %1167 = vst.msk [vmem:[#allocation3 + $0x60] sm:$0xff] %vm1160, %v1077
      %1168 = vst.msk [vmem:[#allocation3 + $0x70] sm:$0xff] %vm1160, %v1079
      %1169 = vst.msk [vmem:[#allocation3 + $0x80] sm:$0xff] %vm1160, %v1081
      %1170 = vst.msk [vmem:[#allocation3 + $0x90] sm:$0xff] %vm1160, %v1083
      %1171 = vst.msk [vmem:[#allocation3 + $0xa0] sm:$0xff] %vm1160, %v1085
      %1172 = vst.msk [vmem:[#allocation3 + $0xb0] sm:$0xff] %vm1160, %v1087
      %1173 = vst.msk [vmem:[#allocation3 + $0xc0] sm:$0xff] %vm1160, %v1089
      %1174 = vst.msk [vmem:[#allocation3 + $0xd0] sm:$0xff] %vm1160, %v1091
      %1175 = vst.msk [vmem:[#allocation3 + $0xe0] sm:$0xff] %vm1160, %v1093
      %1176 = vst.msk [vmem:[#allocation3 + $0xf0] sm:$0xff] %vm1160, %v1095
      %1177 = vst.msk [vmem:[#allocation3 + $0x100] sm:$0xff] %vm1160, %v1097
      %1178 = vst.msk [vmem:[#allocation3 + $0x110] sm:$0xff] %vm1160, %v1099
      %1179 = vst.msk [vmem:[#allocation3 + $0x120] sm:$0xff] %vm1160, %v1101
      %1180 = vst.msk [vmem:[#allocation3 + $0x130] sm:$0xff] %vm1160, %v1103
      %1181 = vst.msk [vmem:[#allocation3 + $0x140] sm:$0xff] %vm1160, %v1105
      %1182 = vst.msk [vmem:[#allocation3 + $0x150] sm:$0xff] %vm1160, %v1107
      %1183 = vst.msk [vmem:[#allocation3 + $0x160] sm:$0xff] %vm1160, %v1109
      %1184 = vst.msk [vmem:[#allocation3 + $0x170] sm:$0xff] %vm1160, %v1111
      %1185 = vst.msk [vmem:[#allocation3 + $0x180] sm:$0xff] %vm1160, %v1113
      %1186 = vst.msk [vmem:[#allocation3 + $0x190] sm:$0xff] %vm1160, %v1115
      %1187 = vst.msk [vmem:[#allocation3 + $0x1a0] sm:$0xff] %vm1160, %v1117
      %1188 = vst.msk [vmem:[#allocation3 + $0x1b0] sm:$0xff] %vm1160, %v1119
      %1189 = vst.msk [vmem:[#allocation3 + $0x1c0] sm:$0xff] %vm1160, %v1121
      %1190 = vst.msk [vmem:[#allocation3 + $0x1d0] sm:$0xff] %vm1160, %v1123
      %1191 = vst.msk [vmem:[#allocation3 + $0x1e0] sm:$0xff] %vm1160, %v1125
      %1192 = vst.msk [vmem:[#allocation3 + $0x1f0] sm:$0xff] %vm1160, %v1127
      %v1193 = vld [vmem:[%s323 + $0x2] sm:$0xff]
      %v1194 = vld [vmem:[%s323 + $0xa] sm:$0xff]
      %v1195 = vld [vmem:[%s323 + $0x1a] sm:$0xff]
      %v1196 = vld [vmem:[%s323 + $0x22] sm:$0xff]
      %v1197 = vld [vmem:[%s323 + $0x32] sm:$0xff]
      %v1198 = vld [vmem:[%s323 + $0x3a] sm:$0xff]
      %v1199 = vld [vmem:[%s323 + $0x4a] sm:$0xff]
      %v1200 = vld [vmem:[%s323 + $0x52] sm:$0xff]
      %v1201 = vld [vmem:[%s323 + $0x62] sm:$0xff]
      %v1202 = vld [vmem:[%s323 + $0x6a] sm:$0xff]
      %v1203 = vld [vmem:[%s323 + $0x7a] sm:$0xff]
      %v1204 = vld [vmem:[%s323 + $0x82] sm:$0xff]
      %v1205 = vld [vmem:[%s323 + $0x92] sm:$0xff]
      %v1206 = vld [vmem:[%s323 + $0x9a] sm:$0xff]
      %v1207 = vld [vmem:[%s323 + $0xaa] sm:$0xff]
      %v1208 = vld [vmem:[%s323 + $0xb2] sm:$0xff]
      %v1209 = vld [vmem:[%s323 + $0xc2] sm:$0xff]
      %v1210 = vld [vmem:[%s323 + $0xca] sm:$0xff]
      %v1211 = vld [vmem:[%s323 + $0xda] sm:$0xff]
      %v1212 = vld [vmem:[%s323 + $0xe2] sm:$0xff]
      %v1213 = vld [vmem:[%s323 + $0xf2] sm:$0xff]
      %v1214 = vld [vmem:[%s323 + $0xfa] sm:$0xff]
      %v1215 = vld [vmem:[%s323 + $0x10a] sm:$0xff]
      %v1216 = vld [vmem:[%s323 + $0x112] sm:$0xff]
      %v1217 = vld [vmem:[%s323 + $0x122] sm:$0xff]
      %v1218 = vld [vmem:[%s323 + $0x12a] sm:$0xff]
      %v1219 = vld [vmem:[%s323 + $0x13a] sm:$0xff]
      %v1220 = vld [vmem:[%s323 + $0x142] sm:$0xff]
      %v1221 = vld [vmem:[%s323 + $0x152] sm:$0xff]
      %v1222 = vld [vmem:[%s323 + $0x15a] sm:$0xff]
      %v1223 = vld [vmem:[%s323 + $0x16a] sm:$0xff]
      %v1224 = vld [vmem:[%s323 + $0x172] sm:$0xff]
      %1257 = vrot.lane.b32.xlu0 %v1193, 80
      %v1258 = vpop.permute.xlu0 %1257
      %1259 = vrot.lane.b32.xlu0 %v1194, 80
      %v1260 = vpop.permute.xlu0 %1259
      %1261 = vrot.lane.b32.xlu0 %v1195, 80
      %v1262 = vpop.permute.xlu0 %1261
      %1263 = vrot.lane.b32.xlu0 %v1196, 80
      %v1264 = vpop.permute.xlu0 %1263
      %1265 = vrot.lane.b32.xlu0 %v1197, 80
      %v1266 = vpop.permute.xlu0 %1265
      %1267 = vrot.lane.b32.xlu0 %v1198, 80
      %v1268 = vpop.permute.xlu0 %1267
      %1269 = vrot.lane.b32.xlu0 %v1199, 80
      %v1270 = vpop.permute.xlu0 %1269
      %1271 = vrot.lane.b32.xlu0 %v1200, 80
      %v1272 = vpop.permute.xlu0 %1271
      %1273 = vrot.lane.b32.xlu0 %v1201, 80
      %v1274 = vpop.permute.xlu0 %1273
      %1275 = vrot.lane.b32.xlu0 %v1202, 80
      %v1276 = vpop.permute.xlu0 %1275
      %1277 = vrot.lane.b32.xlu0 %v1203, 80
      %v1278 = vpop.permute.xlu0 %1277
      %1279 = vrot.lane.b32.xlu0 %v1204, 80
      %v1280 = vpop.permute.xlu0 %1279
      %1281 = vrot.lane.b32.xlu0 %v1205, 80
      %v1282 = vpop.permute.xlu0 %1281
      %1283 = vrot.lane.b32.xlu0 %v1206, 80
      %v1284 = vpop.permute.xlu0 %1283
      %1285 = vrot.lane.b32.xlu0 %v1207, 80
      %v1286 = vpop.permute.xlu0 %1285
      %1287 = vrot.lane.b32.xlu0 %v1208, 80
      %v1288 = vpop.permute.xlu0 %1287
      %1289 = vrot.lane.b32.xlu0 %v1209, 80
      %v1290 = vpop.permute.xlu0 %1289
      %1291 = vrot.lane.b32.xlu0 %v1210, 80
      %v1292 = vpop.permute.xlu0 %1291
      %1293 = vrot.lane.b32.xlu0 %v1211, 80
      %v1294 = vpop.permute.xlu0 %1293
      %1295 = vrot.lane.b32.xlu0 %v1212, 80
      %v1296 = vpop.permute.xlu0 %1295
      %1297 = vrot.lane.b32.xlu0 %v1213, 80
      %v1298 = vpop.permute.xlu0 %1297
      %1299 = vrot.lane.b32.xlu0 %v1214, 80
      %v1300 = vpop.permute.xlu0 %1299
      %1301 = vrot.lane.b32.xlu0 %v1215, 80
      %v1302 = vpop.permute.xlu0 %1301
      %1303 = vrot.lane.b32.xlu0 %v1216, 80
      %v1304 = vpop.permute.xlu0 %1303
      %1305 = vrot.lane.b32.xlu0 %v1217, 80
      %v1306 = vpop.permute.xlu0 %1305
      %1307 = vrot.lane.b32.xlu0 %v1218, 80
      %v1308 = vpop.permute.xlu0 %1307
      %1309 = vrot.lane.b32.xlu0 %v1219, 80
      %v1310 = vpop.permute.xlu0 %1309
      %1311 = vrot.lane.b32.xlu0 %v1220, 80
      %v1312 = vpop.permute.xlu0 %1311
      %1313 = vrot.lane.b32.xlu0 %v1221, 80
      %v1314 = vpop.permute.xlu0 %1313
      %1315 = vrot.lane.b32.xlu0 %v1222, 80
      %v1316 = vpop.permute.xlu0 %1315
      %1317 = vrot.lane.b32.xlu0 %v1223, 80
      %v1318 = vpop.permute.xlu0 %1317
      %1319 = vrot.lane.b32.xlu0 %v1224, 80
      %v1320 = vpop.permute.xlu0 %1319
      %vm1353 = vcmask 687744
      %1354 = vst.msk [vmem:[#allocation3] sm:$0xff] %vm1353, %v1258
      %1355 = vst.msk [vmem:[#allocation3 + $0x10] sm:$0xff] %vm1353, %v1260
      %1356 = vst.msk [vmem:[#allocation3 + $0x20] sm:$0xff] %vm1353, %v1262
      %1357 = vst.msk [vmem:[#allocation3 + $0x30] sm:$0xff] %vm1353, %v1264
      %1358 = vst.msk [vmem:[#allocation3 + $0x40] sm:$0xff] %vm1353, %v1266
      %1359 = vst.msk [vmem:[#allocation3 + $0x50] sm:$0xff] %vm1353, %v1268
      %1360 = vst.msk [vmem:[#allocation3 + $0x60] sm:$0xff] %vm1353, %v1270
      %1361 = vst.msk [vmem:[#allocation3 + $0x70] sm:$0xff] %vm1353, %v1272
      %1362 = vst.msk [vmem:[#allocation3 + $0x80] sm:$0xff] %vm1353, %v1274
      %1363 = vst.msk [vmem:[#allocation3 + $0x90] sm:$0xff] %vm1353, %v1276
      %1364 = vst.msk [vmem:[#allocation3 + $0xa0] sm:$0xff] %vm1353, %v1278
      %1365 = vst.msk [vmem:[#allocation3 + $0xb0] sm:$0xff] %vm1353, %v1280
      %1366 = vst.msk [vmem:[#allocation3 + $0xc0] sm:$0xff] %vm1353, %v1282
      %1367 = vst.msk [vmem:[#allocation3 + $0xd0] sm:$0xff] %vm1353, %v1284
      %1368 = vst.msk [vmem:[#allocation3 + $0xe0] sm:$0xff] %vm1353, %v1286
      %1369 = vst.msk [vmem:[#allocation3 + $0xf0] sm:$0xff] %vm1353, %v1288
      %1370 = vst.msk [vmem:[#allocation3 + $0x100] sm:$0xff] %vm1353, %v1290
      %1371 = vst.msk [vmem:[#allocation3 + $0x110] sm:$0xff] %vm1353, %v1292
      %1372 = vst.msk [vmem:[#allocation3 + $0x120] sm:$0xff] %vm1353, %v1294
      %1373 = vst.msk [vmem:[#allocation3 + $0x130] sm:$0xff] %vm1353, %v1296
      %1374 = vst.msk [vmem:[#allocation3 + $0x140] sm:$0xff] %vm1353, %v1298
      %1375 = vst.msk [vmem:[#allocation3 + $0x150] sm:$0xff] %vm1353, %v1300
      %1376 = vst.msk [vmem:[#allocation3 + $0x160] sm:$0xff] %vm1353, %v1302
      %1377 = vst.msk [vmem:[#allocation3 + $0x170] sm:$0xff] %vm1353, %v1304
      %1378 = vst.msk [vmem:[#allocation3 + $0x180] sm:$0xff] %vm1353, %v1306
      %1379 = vst.msk [vmem:[#allocation3 + $0x190] sm:$0xff] %vm1353, %v1308
      %1380 = vst.msk [vmem:[#allocation3 + $0x1a0] sm:$0xff] %vm1353, %v1310
      %1381 = vst.msk [vmem:[#allocation3 + $0x1b0] sm:$0xff] %vm1353, %v1312
      %1382 = vst.msk [vmem:[#allocation3 + $0x1c0] sm:$0xff] %vm1353, %v1314
      %1383 = vst.msk [vmem:[#allocation3 + $0x1d0] sm:$0xff] %vm1353, %v1316
      %1384 = vst.msk [vmem:[#allocation3 + $0x1e0] sm:$0xff] %vm1353, %v1318
      %1385 = vst.msk [vmem:[#allocation3 + $0x1f0] sm:$0xff] %vm1353, %v1320
      %s1386 = scalar_lea.vmem [#allocation2], 48
      %v1387 = vld [vmem:[%s1386] sm:$0xff]
      %v1388 = vld [vmem:[%s1386 + $0x8] sm:$0xff]
      %v1389 = vld [vmem:[%s1386 + $0x18] sm:$0xff]
      %v1390 = vld [vmem:[%s1386 + $0x20] sm:$0xff]
      %v1391 = vld [vmem:[%s1386 + $0x30] sm:$0xff]
      %v1392 = vld [vmem:[%s1386 + $0x38] sm:$0xff]
      %v1393 = vld [vmem:[%s1386 + $0x48] sm:$0xff]
      %v1394 = vld [vmem:[%s1386 + $0x50] sm:$0xff]
      %v1395 = vld [vmem:[%s1386 + $0x60] sm:$0xff]
      %v1396 = vld [vmem:[%s1386 + $0x68] sm:$0xff]
      %v1397 = vld [vmem:[%s1386 + $0x78] sm:$0xff]
      %v1398 = vld [vmem:[%s1386 + $0x80] sm:$0xff]
      %v1399 = vld [vmem:[%s1386 + $0x90] sm:$0xff]
      %v1400 = vld [vmem:[%s1386 + $0x98] sm:$0xff]
      %v1401 = vld [vmem:[%s1386 + $0xa8] sm:$0xff]
      %v1402 = vld [vmem:[%s1386 + $0xb0] sm:$0xff]
      %v1403 = vld [vmem:[%s1386 + $0xc0] sm:$0xff]
      %v1404 = vld [vmem:[%s1386 + $0xc8] sm:$0xff]
      %v1405 = vld [vmem:[%s1386 + $0xd8] sm:$0xff]
      %v1406 = vld [vmem:[%s1386 + $0xe0] sm:$0xff]
      %v1407 = vld [vmem:[%s1386 + $0xf0] sm:$0xff]
      %v1408 = vld [vmem:[%s1386 + $0xf8] sm:$0xff]
      %v1409 = vld [vmem:[%s1386 + $0x108] sm:$0xff]
      %v1410 = vld [vmem:[%s1386 + $0x110] sm:$0xff]
      %v1411 = vld [vmem:[%s1386 + $0x120] sm:$0xff]
      %v1412 = vld [vmem:[%s1386 + $0x128] sm:$0xff]
      %v1413 = vld [vmem:[%s1386 + $0x138] sm:$0xff]
      %v1414 = vld [vmem:[%s1386 + $0x140] sm:$0xff]
      %v1415 = vld [vmem:[%s1386 + $0x150] sm:$0xff]
      %v1416 = vld [vmem:[%s1386 + $0x158] sm:$0xff]
      %v1417 = vld [vmem:[%s1386 + $0x168] sm:$0xff]
      %v1418 = vld [vmem:[%s1386 + $0x170] sm:$0xff]
      %1451 = vrot.lane.b32.xlu0 %v1387, 96
      %v1452 = vpop.permute.xlu0 %1451
      %1453 = vrot.lane.b32.xlu0 %v1388, 96
      %v1454 = vpop.permute.xlu0 %1453
      %1455 = vrot.lane.b32.xlu0 %v1389, 96
      %v1456 = vpop.permute.xlu0 %1455
      %1457 = vrot.lane.b32.xlu0 %v1390, 96
      %v1458 = vpop.permute.xlu0 %1457
      %1459 = vrot.lane.b32.xlu0 %v1391, 96
      %v1460 = vpop.permute.xlu0 %1459
      %1461 = vrot.lane.b32.xlu0 %v1392, 96
      %v1462 = vpop.permute.xlu0 %1461
      %1463 = vrot.lane.b32.xlu0 %v1393, 96
      %v1464 = vpop.permute.xlu0 %1463
      %1465 = vrot.lane.b32.xlu0 %v1394, 96
      %v1466 = vpop.permute.xlu0 %1465
      %1467 = vrot.lane.b32.xlu0 %v1395, 96
      %v1468 = vpop.permute.xlu0 %1467
      %1469 = vrot.lane.b32.xlu0 %v1396, 96
      %v1470 = vpop.permute.xlu0 %1469
      %1471 = vrot.lane.b32.xlu0 %v1397, 96
      %v1472 = vpop.permute.xlu0 %1471
      %1473 = vrot.lane.b32.xlu0 %v1398, 96
      %v1474 = vpop.permute.xlu0 %1473
      %1475 = vrot.lane.b32.xlu0 %v1399, 96
      %v1476 = vpop.permute.xlu0 %1475
      %1477 = vrot.lane.b32.xlu0 %v1400, 96
      %v1478 = vpop.permute.xlu0 %1477
      %1479 = vrot.lane.b32.xlu0 %v1401, 96
      %v1480 = vpop.permute.xlu0 %1479
      %1481 = vrot.lane.b32.xlu0 %v1402, 96
      %v1482 = vpop.permute.xlu0 %1481
      %1483 = vrot.lane.b32.xlu0 %v1403, 96
      %v1484 = vpop.permute.xlu0 %1483
      %1485 = vrot.lane.b32.xlu0 %v1404, 96
      %v1486 = vpop.permute.xlu0 %1485
      %1487 = vrot.lane.b32.xlu0 %v1405, 96
      %v1488 = vpop.permute.xlu0 %1487
      %1489 = vrot.lane.b32.xlu0 %v1406, 96
      %v1490 = vpop.permute.xlu0 %1489
      %1491 = vrot.lane.b32.xlu0 %v1407, 96
      %v1492 = vpop.permute.xlu0 %1491
      %1493 = vrot.lane.b32.xlu0 %v1408, 96
      %v1494 = vpop.permute.xlu0 %1493
      %1495 = vrot.lane.b32.xlu0 %v1409, 96
      %v1496 = vpop.permute.xlu0 %1495
      %1497 = vrot.lane.b32.xlu0 %v1410, 96
      %v1498 = vpop.permute.xlu0 %1497
      %1499 = vrot.lane.b32.xlu0 %v1411, 96
      %v1500 = vpop.permute.xlu0 %1499
      %1501 = vrot.lane.b32.xlu0 %v1412, 96
      %v1502 = vpop.permute.xlu0 %1501
      %1503 = vrot.lane.b32.xlu0 %v1413, 96
      %v1504 = vpop.permute.xlu0 %1503
      %1505 = vrot.lane.b32.xlu0 %v1414, 96
      %v1506 = vpop.permute.xlu0 %1505
      %1507 = vrot.lane.b32.xlu0 %v1415, 96
      %v1508 = vpop.permute.xlu0 %1507
      %1509 = vrot.lane.b32.xlu0 %v1416, 96
      %v1510 = vpop.permute.xlu0 %1509
      %1511 = vrot.lane.b32.xlu0 %v1417, 96
      %v1512 = vpop.permute.xlu0 %1511
      %1513 = vrot.lane.b32.xlu0 %v1418, 96
      %v1514 = vpop.permute.xlu0 %1513
      %vm1547 = vcmask 818944
      %1548 = vst.msk [vmem:[#allocation3] sm:$0xff] %vm1547, %v1452
      %1549 = vst.msk [vmem:[#allocation3 + $0x10] sm:$0xff] %vm1547, %v1454
      %1550 = vst.msk [vmem:[#allocation3 + $0x20] sm:$0xff] %vm1547, %v1456
      %1551 = vst.msk [vmem:[#allocation3 + $0x30] sm:$0xff] %vm1547, %v1458
      %1552 = vst.msk [vmem:[#allocation3 + $0x40] sm:$0xff] %vm1547, %v1460
      %1553 = vst.msk [vmem:[#allocation3 + $0x50] sm:$0xff] %vm1547, %v1462
      %1554 = vst.msk [vmem:[#allocation3 + $0x60] sm:$0xff] %vm1547, %v1464
      %1555 = vst.msk [vmem:[#allocation3 + $0x70] sm:$0xff] %vm1547, %v1466
      %1556 = vst.msk [vmem:[#allocation3 + $0x80] sm:$0xff] %vm1547, %v1468
      %1557 = vst.msk [vmem:[#allocation3 + $0x90] sm:$0xff] %vm1547, %v1470
      %1558 = vst.msk [vmem:[#allocation3 + $0xa0] sm:$0xff] %vm1547, %v1472
      %1559 = vst.msk [vmem:[#allocation3 + $0xb0] sm:$0xff] %vm1547, %v1474
      %1560 = vst.msk [vmem:[#allocation3 + $0xc0] sm:$0xff] %vm1547, %v1476
      %1561 = vst.msk [vmem:[#allocation3 + $0xd0] sm:$0xff] %vm1547, %v1478
      %1562 = vst.msk [vmem:[#allocation3 + $0xe0] sm:$0xff] %vm1547, %v1480
      %1563 = vst.msk [vmem:[#allocation3 + $0xf0] sm:$0xff] %vm1547, %v1482
      %1564 = vst.msk [vmem:[#allocation3 + $0x100] sm:$0xff] %vm1547, %v1484
      %1565 = vst.msk [vmem:[#allocation3 + $0x110] sm:$0xff] %vm1547, %v1486
      %1566 = vst.msk [vmem:[#allocation3 + $0x120] sm:$0xff] %vm1547, %v1488
      %1567 = vst.msk [vmem:[#allocation3 + $0x130] sm:$0xff] %vm1547, %v1490
      %1568 = vst.msk [vmem:[#allocation3 + $0x140] sm:$0xff] %vm1547, %v1492
      %1569 = vst.msk [vmem:[#allocation3 + $0x150] sm:$0xff] %vm1547, %v1494
      %1570 = vst.msk [vmem:[#allocation3 + $0x160] sm:$0xff] %vm1547, %v1496
      %1571 = vst.msk [vmem:[#allocation3 + $0x170] sm:$0xff] %vm1547, %v1498
      %1572 = vst.msk [vmem:[#allocation3 + $0x180] sm:$0xff] %vm1547, %v1500
      %1573 = vst.msk [vmem:[#allocation3 + $0x190] sm:$0xff] %vm1547, %v1502
      %1574 = vst.msk [vmem:[#allocation3 + $0x1a0] sm:$0xff] %vm1547, %v1504
      %1575 = vst.msk [vmem:[#allocation3 + $0x1b0] sm:$0xff] %vm1547, %v1506
      %1576 = vst.msk [vmem:[#allocation3 + $0x1c0] sm:$0xff] %vm1547, %v1508
      %1577 = vst.msk [vmem:[#allocation3 + $0x1d0] sm:$0xff] %vm1547, %v1510
      %1578 = vst.msk [vmem:[#allocation3 + $0x1e0] sm:$0xff] %vm1547, %v1512
      %1579 = vst.msk [vmem:[#allocation3 + $0x1f0] sm:$0xff] %vm1547, %v1514
      %v1580 = vld [vmem:[%s1386 + $0x1] sm:$0xff]
      %v1581 = vld [vmem:[%s1386 + $0x9] sm:$0xff]
      %v1582 = vld [vmem:[%s1386 + $0x19] sm:$0xff]
      %v1583 = vld [vmem:[%s1386 + $0x21] sm:$0xff]
      %v1584 = vld [vmem:[%s1386 + $0x31] sm:$0xff]
      %v1585 = vld [vmem:[%s1386 + $0x39] sm:$0xff]
      %v1586 = vld [vmem:[%s1386 + $0x49] sm:$0xff]
      %v1587 = vld [vmem:[%s1386 + $0x51] sm:$0xff]
      %v1588 = vld [vmem:[%s1386 + $0x61] sm:$0xff]
      %v1589 = vld [vmem:[%s1386 + $0x69] sm:$0xff]
      %v1590 = vld [vmem:[%s1386 + $0x79] sm:$0xff]
      %v1591 = vld [vmem:[%s1386 + $0x81] sm:$0xff]
      %v1592 = vld [vmem:[%s1386 + $0x91] sm:$0xff]
      %v1593 = vld [vmem:[%s1386 + $0x99] sm:$0xff]
      %v1594 = vld [vmem:[%s1386 + $0xa9] sm:$0xff]
      %v1595 = vld [vmem:[%s1386 + $0xb1] sm:$0xff]
      %v1596 = vld [vmem:[%s1386 + $0xc1] sm:$0xff]
      %v1597 = vld [vmem:[%s1386 + $0xc9] sm:$0xff]
      %v1598 = vld [vmem:[%s1386 + $0xd9] sm:$0xff]
      %v1599 = vld [vmem:[%s1386 + $0xe1] sm:$0xff]
      %v1600 = vld [vmem:[%s1386 + $0xf1] sm:$0xff]
      %v1601 = vld [vmem:[%s1386 + $0xf9] sm:$0xff]
      %v1602 = vld [vmem:[%s1386 + $0x109] sm:$0xff]
      %v1603 = vld [vmem:[%s1386 + $0x111] sm:$0xff]
      %v1604 = vld [vmem:[%s1386 + $0x121] sm:$0xff]
      %v1605 = vld [vmem:[%s1386 + $0x129] sm:$0xff]
      %v1606 = vld [vmem:[%s1386 + $0x139] sm:$0xff]
      %v1607 = vld [vmem:[%s1386 + $0x141] sm:$0xff]
      %v1608 = vld [vmem:[%s1386 + $0x151] sm:$0xff]
      %v1609 = vld [vmem:[%s1386 + $0x159] sm:$0xff]
      %v1610 = vld [vmem:[%s1386 + $0x169] sm:$0xff]
      %v1611 = vld [vmem:[%s1386 + $0x171] sm:$0xff]
      %1644 = vrot.lane.b32.xlu0 %v1580, 112
      %v1645 = vpop.permute.xlu0 %1644
      %1646 = vrot.lane.b32.xlu0 %v1581, 112
      %v1647 = vpop.permute.xlu0 %1646
      %1648 = vrot.lane.b32.xlu0 %v1582, 112
      %v1649 = vpop.permute.xlu0 %1648
      %1650 = vrot.lane.b32.xlu0 %v1583, 112
      %v1651 = vpop.permute.xlu0 %1650
      %1652 = vrot.lane.b32.xlu0 %v1584, 112
      %v1653 = vpop.permute.xlu0 %1652
      %1654 = vrot.lane.b32.xlu0 %v1585, 112
      %v1655 = vpop.permute.xlu0 %1654
      %1656 = vrot.lane.b32.xlu0 %v1586, 112
      %v1657 = vpop.permute.xlu0 %1656
      %1658 = vrot.lane.b32.xlu0 %v1587, 112
      %v1659 = vpop.permute.xlu0 %1658
      %1660 = vrot.lane.b32.xlu0 %v1588, 112
      %v1661 = vpop.permute.xlu0 %1660
      %1662 = vrot.lane.b32.xlu0 %v1589, 112
      %v1663 = vpop.permute.xlu0 %1662
      %1664 = vrot.lane.b32.xlu0 %v1590, 112
      %v1665 = vpop.permute.xlu0 %1664
      %1666 = vrot.lane.b32.xlu0 %v1591, 112
      %v1667 = vpop.permute.xlu0 %1666
      %1668 = vrot.lane.b32.xlu0 %v1592, 112
      %v1669 = vpop.permute.xlu0 %1668
      %1670 = vrot.lane.b32.xlu0 %v1593, 112
      %v1671 = vpop.permute.xlu0 %1670
      %1672 = vrot.lane.b32.xlu0 %v1594, 112
      %v1673 = vpop.permute.xlu0 %1672
      %1674 = vrot.lane.b32.xlu0 %v1595, 112
      %v1675 = vpop.permute.xlu0 %1674
      %1676 = vrot.lane.b32.xlu0 %v1596, 112
      %v1677 = vpop.permute.xlu0 %1676
      %1678 = vrot.lane.b32.xlu0 %v1597, 112
      %v1679 = vpop.permute.xlu0 %1678
      %1680 = vrot.lane.b32.xlu0 %v1598, 112
      %v1681 = vpop.permute.xlu0 %1680
      %1682 = vrot.lane.b32.xlu0 %v1599, 112
      %v1683 = vpop.permute.xlu0 %1682
      %1684 = vrot.lane.b32.xlu0 %v1600, 112
      %v1685 = vpop.permute.xlu0 %1684
      %1686 = vrot.lane.b32.xlu0 %v1601, 112
      %v1687 = vpop.permute.xlu0 %1686
      %1688 = vrot.lane.b32.xlu0 %v1602, 112
      %v1689 = vpop.permute.xlu0 %1688
      %1690 = vrot.lane.b32.xlu0 %v1603, 112
      %v1691 = vpop.permute.xlu0 %1690
      %1692 = vrot.lane.b32.xlu0 %v1604, 112
      %v1693 = vpop.permute.xlu0 %1692
      %1694 = vrot.lane.b32.xlu0 %v1605, 112
      %v1695 = vpop.permute.xlu0 %1694
      %1696 = vrot.lane.b32.xlu0 %v1606, 112
      %v1697 = vpop.permute.xlu0 %1696
      %1698 = vrot.lane.b32.xlu0 %v1607, 112
      %v1699 = vpop.permute.xlu0 %1698
      %1700 = vrot.lane.b32.xlu0 %v1608, 112
      %v1701 = vpop.permute.xlu0 %1700
      %1702 = vrot.lane.b32.xlu0 %v1609, 112
      %v1703 = vpop.permute.xlu0 %1702
      %1704 = vrot.lane.b32.xlu0 %v1610, 112
      %v1705 = vpop.permute.xlu0 %1704
      %1706 = vrot.lane.b32.xlu0 %v1611, 112
      %v1707 = vpop.permute.xlu0 %1706
      %vm1740 = vcmask 950144
      %1741 = vst.msk [vmem:[#allocation3] sm:$0xff] %vm1740, %v1645
      %1742 = vst.msk [vmem:[#allocation3 + $0x10] sm:$0xff] %vm1740, %v1647
      %1743 = vst.msk [vmem:[#allocation3 + $0x20] sm:$0xff] %vm1740, %v1649
      %1744 = vst.msk [vmem:[#allocation3 + $0x30] sm:$0xff] %vm1740, %v1651
      %1745 = vst.msk [vmem:[#allocation3 + $0x40] sm:$0xff] %vm1740, %v1653
      %1746 = vst.msk [vmem:[#allocation3 + $0x50] sm:$0xff] %vm1740, %v1655
      %1747 = vst.msk [vmem:[#allocation3 + $0x60] sm:$0xff] %vm1740, %v1657
      %1748 = vst.msk [vmem:[#allocation3 + $0x70] sm:$0xff] %vm1740, %v1659
      %1749 = vst.msk [vmem:[#allocation3 + $0x80] sm:$0xff] %vm1740, %v1661
      %1750 = vst.msk [vmem:[#allocation3 + $0x90] sm:$0xff] %vm1740, %v1663
      %1751 = vst.msk [vmem:[#allocation3 + $0xa0] sm:$0xff] %vm1740, %v1665
      %1752 = vst.msk [vmem:[#allocation3 + $0xb0] sm:$0xff] %vm1740, %v1667
      %1753 = vst.msk [vmem:[#allocation3 + $0xc0] sm:$0xff] %vm1740, %v1669
      %1754 = vst.msk [vmem:[#allocation3 + $0xd0] sm:$0xff] %vm1740, %v1671
      %1755 = vst.msk [vmem:[#allocation3 + $0xe0] sm:$0xff] %vm1740, %v1673
      %1756 = vst.msk [vmem:[#allocation3 + $0xf0] sm:$0xff] %vm1740, %v1675
      %1757 = vst.msk [vmem:[#allocation3 + $0x100] sm:$0xff] %vm1740, %v1677
      %1758 = vst.msk [vmem:[#allocation3 + $0x110] sm:$0xff] %vm1740, %v1679
      %1759 = vst.msk [vmem:[#allocation3 + $0x120] sm:$0xff] %vm1740, %v1681
      %1760 = vst.msk [vmem:[#allocation3 + $0x130] sm:$0xff] %vm1740, %v1683
      %1761 = vst.msk [vmem:[#allocation3 + $0x140] sm:$0xff] %vm1740, %v1685
      %1762 = vst.msk [vmem:[#allocation3 + $0x150] sm:$0xff] %vm1740, %v1687
      %1763 = vst.msk [vmem:[#allocation3 + $0x160] sm:$0xff] %vm1740, %v1689
      %1764 = vst.msk [vmem:[#allocation3 + $0x170] sm:$0xff] %vm1740, %v1691
      %1765 = vst.msk [vmem:[#allocation3 + $0x180] sm:$0xff] %vm1740, %v1693
      %1766 = vst.msk [vmem:[#allocation3 + $0x190] sm:$0xff] %vm1740, %v1695
      %1767 = vst.msk [vmem:[#allocation3 + $0x1a0] sm:$0xff] %vm1740, %v1697
      %1768 = vst.msk [vmem:[#allocation3 + $0x1b0] sm:$0xff] %vm1740, %v1699
      %1769 = vst.msk [vmem:[#allocation3 + $0x1c0] sm:$0xff] %vm1740, %v1701
      %1770 = vst.msk [vmem:[#allocation3 + $0x1d0] sm:$0xff] %vm1740, %v1703
      %1771 = vst.msk [vmem:[#allocation3 + $0x1e0] sm:$0xff] %vm1740, %v1705
      %1772 = vst.msk [vmem:[#allocation3 + $0x1f0] sm:$0xff] %vm1740, %v1707
      %v1773 = vld [vmem:[%s1386 + $0x2] sm:$0xff]
      %v1774 = vld [vmem:[%s1386 + $0xa] sm:$0xff]
      %v1775 = vld [vmem:[%s1386 + $0x1a] sm:$0xff]
      %v1776 = vld [vmem:[%s1386 + $0x22] sm:$0xff]
      %v1777 = vld [vmem:[%s1386 + $0x32] sm:$0xff]
      %v1778 = vld [vmem:[%s1386 + $0x3a] sm:$0xff]
      %v1779 = vld [vmem:[%s1386 + $0x4a] sm:$0xff]
      %v1780 = vld [vmem:[%s1386 + $0x52] sm:$0xff]
      %v1781 = vld [vmem:[%s1386 + $0x62] sm:$0xff]
      %v1782 = vld [vmem:[%s1386 + $0x6a] sm:$0xff]
      %v1783 = vld [vmem:[%s1386 + $0x7a] sm:$0xff]
      %v1784 = vld [vmem:[%s1386 + $0x82] sm:$0xff]
      %v1785 = vld [vmem:[%s1386 + $0x92] sm:$0xff]
      %v1786 = vld [vmem:[%s1386 + $0x9a] sm:$0xff]
      %v1787 = vld [vmem:[%s1386 + $0xaa] sm:$0xff]
      %v1788 = vld [vmem:[%s1386 + $0xb2] sm:$0xff]
      %v1789 = vld [vmem:[%s1386 + $0xc2] sm:$0xff]
      %v1790 = vld [vmem:[%s1386 + $0xca] sm:$0xff]
      %v1791 = vld [vmem:[%s1386 + $0xda] sm:$0xff]
      %v1792 = vld [vmem:[%s1386 + $0xe2] sm:$0xff]
      %v1793 = vld [vmem:[%s1386 + $0xf2] sm:$0xff]
      %v1794 = vld [vmem:[%s1386 + $0xfa] sm:$0xff]
      %v1795 = vld [vmem:[%s1386 + $0x10a] sm:$0xff]
      %v1796 = vld [vmem:[%s1386 + $0x112] sm:$0xff]
      %v1797 = vld [vmem:[%s1386 + $0x122] sm:$0xff]
      %v1798 = vld [vmem:[%s1386 + $0x12a] sm:$0xff]
      %v1799 = vld [vmem:[%s1386 + $0x13a] sm:$0xff]
      %v1800 = vld [vmem:[%s1386 + $0x142] sm:$0xff]
      %v1801 = vld [vmem:[%s1386 + $0x152] sm:$0xff]
      %v1802 = vld [vmem:[%s1386 + $0x15a] sm:$0xff]
      %v1803 = vld [vmem:[%s1386 + $0x16a] sm:$0xff]
      %v1804 = vld [vmem:[%s1386 + $0x172] sm:$0xff]
      %1805 = vst.msk [vmem:[#allocation3 + $0x8] sm:$0xff] %vm324, %v1773
      %1806 = vst.msk [vmem:[#allocation3 + $0x18] sm:$0xff] %vm324, %v1774
      %1807 = vst.msk [vmem:[#allocation3 + $0x28] sm:$0xff] %vm324, %v1775
      %1808 = vst.msk [vmem:[#allocation3 + $0x38] sm:$0xff] %vm324, %v1776
      %1809 = vst.msk [vmem:[#allocation3 + $0x48] sm:$0xff] %vm324, %v1777
      %1810 = vst.msk [vmem:[#allocation3 + $0x58] sm:$0xff] %vm324, %v1778
      %1811 = vst.msk [vmem:[#allocation3 + $0x68] sm:$0xff] %vm324, %v1779
      %1812 = vst.msk [vmem:[#allocation3 + $0x78] sm:$0xff] %vm324, %v1780
      %1813 = vst.msk [vmem:[#allocation3 + $0x88] sm:$0xff] %vm324, %v1781
      %1814 = vst.msk [vmem:[#allocation3 + $0x98] sm:$0xff] %vm324, %v1782
      %1815 = vst.msk [vmem:[#allocation3 + $0xa8] sm:$0xff] %vm324, %v1783
      %1816 = vst.msk [vmem:[#allocation3 + $0xb8] sm:$0xff] %vm324, %v1784
      %1817 = vst.msk [vmem:[#allocation3 + $0xc8] sm:$0xff] %vm324, %v1785
      %1818 = vst.msk [vmem:[#allocation3 + $0xd8] sm:$0xff] %vm324, %v1786
      %1819 = vst.msk [vmem:[#allocation3 + $0xe8] sm:$0xff] %vm324, %v1787
      %1820 = vst.msk [vmem:[#allocation3 + $0xf8] sm:$0xff] %vm324, %v1788
      %1821 = vst.msk [vmem:[#allocation3 + $0x108] sm:$0xff] %vm324, %v1789
      %1822 = vst.msk [vmem:[#allocation3 + $0x118] sm:$0xff] %vm324, %v1790
      %1823 = vst.msk [vmem:[#allocation3 + $0x128] sm:$0xff] %vm324, %v1791
      %1824 = vst.msk [vmem:[#allocation3 + $0x138] sm:$0xff] %vm324, %v1792
      %1825 = vst.msk [vmem:[#allocation3 + $0x148] sm:$0xff] %vm324, %v1793
      %1826 = vst.msk [vmem:[#allocation3 + $0x158] sm:$0xff] %vm324, %v1794
      %1827 = vst.msk [vmem:[#allocation3 + $0x168] sm:$0xff] %vm324, %v1795
      %1828 = vst.msk [vmem:[#allocation3 + $0x178] sm:$0xff] %vm324, %v1796
      %1829 = vst.msk [vmem:[#allocation3 + $0x188] sm:$0xff] %vm324, %v1797
      %1830 = vst.msk [vmem:[#allocation3 + $0x198] sm:$0xff] %vm324, %v1798
      %1831 = vst.msk [vmem:[#allocation3 + $0x1a8] sm:$0xff] %vm324, %v1799
      %1832 = vst.msk [vmem:[#allocation3 + $0x1b8] sm:$0xff] %vm324, %v1800
      %1833 = vst.msk [vmem:[#allocation3 + $0x1c8] sm:$0xff] %vm324, %v1801
      %1834 = vst.msk [vmem:[#allocation3 + $0x1d8] sm:$0xff] %vm324, %v1802
      %1835 = vst.msk [vmem:[#allocation3 + $0x1e8] sm:$0xff] %vm324, %v1803
      %1836 = vst.msk [vmem:[#allocation3 + $0x1f8] sm:$0xff] %vm324, %v1804
      %v1837 = vld [vmem:[%s1] sm:$0xff]
      %v1838 = vld [vmem:[%s1 + $0x8] sm:$0xff]
      %v1839 = vld [vmem:[%s1 + $0x10] sm:$0xff]
      %v1840 = vld [vmem:[%s1 + $0x18] sm:$0xff]
      %v1841 = vld [vmem:[%s1 + $0x20] sm:$0xff]
      %v1842 = vld [vmem:[%s1 + $0x28] sm:$0xff]
      %v1843 = vld [vmem:[%s1 + $0x30] sm:$0xff]
      %v1844 = vld [vmem:[%s1 + $0x38] sm:$0xff]
      %v1845 = vld [vmem:[%s1 + $0x40] sm:$0xff]
      %v1846 = vld [vmem:[%s1 + $0x48] sm:$0xff]
      %v1847 = vld [vmem:[%s1 + $0x50] sm:$0xff]
      %v1848 = vld [vmem:[%s1 + $0x58] sm:$0xff]
      %v1849 = vld [vmem:[%s1 + $0x60] sm:$0xff]
      %v1850 = vld [vmem:[%s1 + $0x68] sm:$0xff]
      %v1851 = vld [vmem:[%s1 + $0x70] sm:$0xff]
      %v1852 = vld [vmem:[%s1 + $0x78] sm:$0xff]
      %v1853 = vld [vmem:[%s1 + $0x80] sm:$0xff]
      %v1854 = vld [vmem:[%s1 + $0x88] sm:$0xff]
      %v1855 = vld [vmem:[#allocation3] sm:$0xff]
      %v1856 = vld [vmem:[#allocation3 + $0x8] sm:$0xff]
      %v1857 = vld [vmem:[#allocation3 + $0x10] sm:$0xff]
      %v1858 = vld [vmem:[#allocation3 + $0x18] sm:$0xff]
      %v1859 = vld [vmem:[#allocation3 + $0x20] sm:$0xff]
      %v1860 = vld [vmem:[#allocation3 + $0x28] sm:$0xff]
      %v1861 = vld [vmem:[#allocation3 + $0x30] sm:$0xff]
      %v1862 = vld [vmem:[#allocation3 + $0x38] sm:$0xff]
      %v1863 = vld [vmem:[#allocation3 + $0x40] sm:$0xff]
      %v1864 = vld [vmem:[#allocation3 + $0x48] sm:$0xff]
      %v1865 = vld [vmem:[#allocation3 + $0x50] sm:$0xff]
      %v1866 = vld [vmem:[#allocation3 + $0x58] sm:$0xff]
      %v1867 = vld [vmem:[#allocation3 + $0x60] sm:$0xff]
      %v1868 = vld [vmem:[#allocation3 + $0x68] sm:$0xff]
      %v1869 = vld [vmem:[#allocation3 + $0x70] sm:$0xff]
      %v1870 = vld [vmem:[#allocation3 + $0x78] sm:$0xff]
      %v1871 = vld [vmem:[#allocation3 + $0x80] sm:$0xff]
      %v1872 = vld [vmem:[#allocation3 + $0x88] sm:$0xff]
      %v1873 = vld [vmem:[#allocation3 + $0x90] sm:$0xff]
      %v1874 = vld [vmem:[#allocation3 + $0x98] sm:$0xff]
      %v1875 = vld [vmem:[#allocation3 + $0xa0] sm:$0xff]
      %v1876 = vld [vmem:[#allocation3 + $0xa8] sm:$0xff]
      %v1877 = vld [vmem:[#allocation3 + $0xb0] sm:$0xff]
      %v1878 = vld [vmem:[#allocation3 + $0xb8] sm:$0xff]
      %v1879 = vld [vmem:[#allocation3 + $0xc0] sm:$0xff]
      %v1880 = vld [vmem:[#allocation3 + $0xc8] sm:$0xff]
      %v1881 = vld [vmem:[#allocation3 + $0xd0] sm:$0xff]
      %v1882 = vld [vmem:[#allocation3 + $0xd8] sm:$0xff]
      %v1883 = vld [vmem:[#allocation3 + $0xe0] sm:$0xff]
      %v1884 = vld [vmem:[#allocation3 + $0xe8] sm:$0xff]
      %v1885 = vld [vmem:[#allocation3 + $0xf0] sm:$0xff]
      %v1886 = vld [vmem:[#allocation3 + $0xf8] sm:$0xff]
      %v1887 = vld [vmem:[#allocation3 + $0x100] sm:$0xff]
      %v1888 = vld [vmem:[#allocation3 + $0x108] sm:$0xff]
      %v1889 = vld [vmem:[#allocation3 + $0x110] sm:$0xff]
      %v1890 = vld [vmem:[#allocation3 + $0x118] sm:$0xff]
      %v1891 = vld [vmem:[#allocation3 + $0x120] sm:$0xff]
      %v1892 = vld [vmem:[#allocation3 + $0x128] sm:$0xff]
      %v1893 = vld [vmem:[#allocation3 + $0x130] sm:$0xff]
      %v1894 = vld [vmem:[#allocation3 + $0x138] sm:$0xff]
      %v1895 = vld [vmem:[#allocation3 + $0x140] sm:$0xff]
      %v1896 = vld [vmem:[#allocation3 + $0x148] sm:$0xff]
      %v1897 = vld [vmem:[#allocation3 + $0x150] sm:$0xff]
      %v1898 = vld [vmem:[#allocation3 + $0x158] sm:$0xff]
      %v1899 = vld [vmem:[#allocation3 + $0x160] sm:$0xff]
      %v1900 = vld [vmem:[#allocation3 + $0x168] sm:$0xff]
      %v1901 = vld [vmem:[#allocation3 + $0x170] sm:$0xff]
      %v1902 = vld [vmem:[#allocation3 + $0x178] sm:$0xff]
      %v1903 = vld [vmem:[#allocation3 + $0x180] sm:$0xff]
      %v1904 = vld [vmem:[#allocation3 + $0x188] sm:$0xff]
      %v1905 = vld [vmem:[#allocation3 + $0x190] sm:$0xff]
      %v1906 = vld [vmem:[#allocation3 + $0x198] sm:$0xff]
      %v1907 = vld [vmem:[#allocation3 + $0x1a0] sm:$0xff]
      %v1908 = vld [vmem:[#allocation3 + $0x1a8] sm:$0xff]
      %v1909 = vld [vmem:[#allocation3 + $0x1b0] sm:$0xff]
      %v1910 = vld [vmem:[#allocation3 + $0x1b8] sm:$0xff]
      %v1911 = vld [vmem:[#allocation3 + $0x1c0] sm:$0xff]
      %v1912 = vld [vmem:[#allocation3 + $0x1c8] sm:$0xff]
      %v1913 = vld [vmem:[#allocation3 + $0x1d0] sm:$0xff]
      %v1914 = vld [vmem:[#allocation3 + $0x1d8] sm:$0xff]
      %v1915 = vld [vmem:[#allocation3 + $0x1e0] sm:$0xff]
      %v1916 = vld [vmem:[#allocation3 + $0x1e8] sm:$0xff]
      %v1917 = vld [vmem:[#allocation3 + $0x1f0] sm:$0xff]
      %v1918 = vld [vmem:[#allocation3 + $0x1f8] sm:$0xff]
      %v1920 = vsel %vm171, %v1856, 0
      %v1923 = vsel %vm171, %v1858, 0
      %v1926 = vsel %vm171, %v1860, 0
      %v1929 = vsel %vm171, %v1862, 0
      %v1932 = vsel %vm171, %v1864, 0
      %v1935 = vsel %vm171, %v1866, 0
      %v1938 = vsel %vm171, %v1868, 0
      %v1941 = vsel %vm171, %v1870, 0
      %v1944 = vsel %vm171, %v1872, 0
      %v1947 = vsel %vm171, %v1874, 0
      %v1950 = vsel %vm171, %v1876, 0
      %v1953 = vsel %vm171, %v1878, 0
      %v1956 = vsel %vm171, %v1880, 0
      %v1959 = vsel %vm171, %v1882, 0
      %v1962 = vsel %vm171, %v1884, 0
      %v1965 = vsel %vm171, %v1886, 0
      %v1968 = vsel %vm171, %v1888, 0
      %v1971 = vsel %vm171, %v1890, 0
      %v1974 = vsel %vm171, %v1892, 0
      %v1977 = vsel %vm171, %v1894, 0
      %v1980 = vsel %vm171, %v1896, 0
      %v1983 = vsel %vm171, %v1898, 0
      %v1986 = vsel %vm171, %v1900, 0
      %v1989 = vsel %vm171, %v1902, 0
      %v1992 = vsel %vm171, %v1904, 0
      %v1995 = vsel %vm171, %v1906, 0
      %v1998 = vsel %vm171, %v1908, 0
      %v2001 = vsel %vm171, %v1910, 0
      %v2004 = vsel %vm171, %v1912, 0
      %v2007 = vsel %vm171, %v1914, 0
      %v2010 = vsel %vm171, %v1916, 0
      %v2013 = vsel %vm171, %v1918, 0
      %2015 = vmatpush.msra.mxu0 %v1852
      %2016 = vmatpush.msra.mxu0 %v1851
      %2017 = vmatpush.msra.mxu0 %v1850
      %2018 = vmatpush.msra.mxu0 %v1849
      %2019 = vmatpush.msra.mxu0 %v1848
      %2020 = vmatpush.msra.mxu0 %v1847
      %2021 = vmatpush.msra.mxu0 %v1846
      %2022 = vmatpush.msra.mxu0 %v1845
      %2023 = vmatpush.msra.mxu0 %v1844
      %2024 = vmatpush.msra.mxu0 %v1843
      %2025 = vmatpush.msra.mxu0 %v1842
      %2026 = vmatpush.msra.mxu0 %v1841
      %2027 = vmatpush.msra.mxu0 %v1840
      %2028 = vmatpush.msra.mxu0 %v1839
      %2029 = vmatpush.msra.mxu0 %v1838
      %2030 = vmatpush.msra.mxu0 %v1837
      %2031 = vmatmul.f32.gmra.mxu0 %v1855
      %v2032 = vpop.f32.mrf.mxu0
      %v2033 = vadd.f32 0.0, %v2032
      %2034 = vmatmul.f32.gmra.mxu0 %v1857
      %v2035 = vpop.f32.mrf.mxu0
      %v2036 = vadd.f32 0.0, %v2035
      %2037 = vmatmul.f32.gmra.mxu0 %v1859
      %v2038 = vpop.f32.mrf.mxu0
      %v2039 = vadd.f32 0.0, %v2038
      %2040 = vmatmul.f32.gmra.mxu0 %v1861
      %v2041 = vpop.f32.mrf.mxu0
      %v2042 = vadd.f32 0.0, %v2041
      %2043 = vmatmul.f32.gmra.mxu0 %v1863
      %v2044 = vpop.f32.mrf.mxu0
      %v2045 = vadd.f32 0.0, %v2044
      %2046 = vmatmul.f32.gmra.mxu0 %v1865
      %v2047 = vpop.f32.mrf.mxu0
      %v2048 = vadd.f32 0.0, %v2047
      %2049 = vmatmul.f32.gmra.mxu0 %v1867
      %v2050 = vpop.f32.mrf.mxu0
      %v2051 = vadd.f32 0.0, %v2050
      %2052 = vmatmul.f32.gmra.mxu0 %v1869
      %v2053 = vpop.f32.mrf.mxu0
      %v2054 = vadd.f32 0.0, %v2053
      %2055 = vmatmul.f32.gmra.mxu0 %v1871
      %v2056 = vpop.f32.mrf.mxu0
      %v2057 = vadd.f32 0.0, %v2056
      %2058 = vmatmul.f32.gmra.mxu0 %v1873
      %v2059 = vpop.f32.mrf.mxu0
      %v2060 = vadd.f32 0.0, %v2059
      %2061 = vmatmul.f32.gmra.mxu0 %v1875
      %v2062 = vpop.f32.mrf.mxu0
      %v2063 = vadd.f32 0.0, %v2062
      %2064 = vmatmul.f32.gmra.mxu0 %v1877
      %v2065 = vpop.f32.mrf.mxu0
      %v2066 = vadd.f32 0.0, %v2065
      %2067 = vmatmul.f32.gmra.mxu0 %v1879
      %v2068 = vpop.f32.mrf.mxu0
      %v2069 = vadd.f32 0.0, %v2068
      %2070 = vmatmul.f32.gmra.mxu0 %v1881
      %v2071 = vpop.f32.mrf.mxu0
      %v2072 = vadd.f32 0.0, %v2071
      %2073 = vmatmul.f32.gmra.mxu0 %v1883
      %v2074 = vpop.f32.mrf.mxu0
      %v2075 = vadd.f32 0.0, %v2074
      %2076 = vmatmul.f32.gmra.mxu0 %v1885
      %v2077 = vpop.f32.mrf.mxu0
      %v2078 = vadd.f32 0.0, %v2077
      %2079 = vmatmul.f32.gmra.mxu0 %v1887
      %v2080 = vpop.f32.mrf.mxu0
      %v2081 = vadd.f32 0.0, %v2080
      %2082 = vmatmul.f32.gmra.mxu0 %v1889
      %v2083 = vpop.f32.mrf.mxu0
      %v2084 = vadd.f32 0.0, %v2083
      %2085 = vmatmul.f32.gmra.mxu0 %v1891
      %v2086 = vpop.f32.mrf.mxu0
      %v2087 = vadd.f32 0.0, %v2086
      %2088 = vmatmul.f32.gmra.mxu0 %v1893
      %v2089 = vpop.f32.mrf.mxu0
      %v2090 = vadd.f32 0.0, %v2089
      %2091 = vmatmul.f32.gmra.mxu0 %v1895
      %v2092 = vpop.f32.mrf.mxu0
      %v2093 = vadd.f32 0.0, %v2092
      %2094 = vmatmul.f32.gmra.mxu0 %v1897
      %v2095 = vpop.f32.mrf.mxu0
      %v2096 = vadd.f32 0.0, %v2095
      %2097 = vmatmul.f32.gmra.mxu0 %v1899
      %v2098 = vpop.f32.mrf.mxu0
      %v2099 = vadd.f32 0.0, %v2098
      %2100 = vmatmul.f32.gmra.mxu0 %v1901
      %v2101 = vpop.f32.mrf.mxu0
      %v2102 = vadd.f32 0.0, %v2101
      %2103 = vmatmul.f32.gmra.mxu0 %v1903
      %v2104 = vpop.f32.mrf.mxu0
      %v2105 = vadd.f32 0.0, %v2104
      %2106 = vmatmul.f32.gmra.mxu0 %v1905
      %v2107 = vpop.f32.mrf.mxu0
      %v2108 = vadd.f32 0.0, %v2107
      %2109 = vmatmul.f32.gmra.mxu0 %v1907
      %v2110 = vpop.f32.mrf.mxu0
      %v2111 = vadd.f32 0.0, %v2110
      %2112 = vmatmul.f32.gmra.mxu0 %v1909
      %v2113 = vpop.f32.mrf.mxu0
      %v2114 = vadd.f32 0.0, %v2113
      %2115 = vmatmul.f32.gmra.mxu0 %v1911
      %v2116 = vpop.f32.mrf.mxu0
      %v2117 = vadd.f32 0.0, %v2116
      %2118 = vmatmul.f32.gmra.mxu0 %v1913
      %v2119 = vpop.f32.mrf.mxu0
      %v2120 = vadd.f32 0.0, %v2119
      %2121 = vmatmul.f32.gmra.mxu0 %v1915
      %v2122 = vpop.f32.mrf.mxu0
      %v2123 = vadd.f32 0.0, %v2122
      %2124 = vmatmul.f32.gmra.mxu0 %v1917
      %v2125 = vpop.f32.mrf.mxu0
      %v2126 = vadd.f32 0.0, %v2125
      %2127 = vdwg.mxu0
      %2128 = vmatpush.msra.mxu0 0.0
      %2129 = vmatpush.msra.mxu0 0.0
      %2130 = vmatpush.msra.mxu0 0.0
      %2131 = vmatpush.msra.mxu0 0.0
      %2132 = vmatpush.msra.mxu0 0.0
      %2133 = vmatpush.msra.mxu0 0.0
      %2134 = vmatpush.msra.mxu0 0.0
      %2135 = vmatpush.msra.mxu0 0.0
      %2136 = vmatpush.msra.mxu0 0.0
      %2137 = vmatpush.msra.mxu0 0.0
      %2138 = vmatpush.msra.mxu0 0.0
      %2139 = vmatpush.msra.mxu0 0.0
      %2140 = vmatpush.msra.mxu0 0.0
      %2141 = vmatpush.msra.mxu0 0.0
      %2142 = vmatpush.msra.mxu0 %v1854
      %2143 = vmatpush.msra.mxu0 %v1853
      %2144 = vmatmul.f32.gmra.mxu0 %v1920
      %v2145 = vpop.f32.mrf.mxu0
      %v2146 = vadd.f32 %v2033, %v2145
      %2147 = vmatmul.f32.gmra.mxu0 %v1923
      %v2148 = vpop.f32.mrf.mxu0
      %v2149 = vadd.f32 %v2036, %v2148
      %2150 = vmatmul.f32.gmra.mxu0 %v1926
      %v2151 = vpop.f32.mrf.mxu0
      %v2152 = vadd.f32 %v2039, %v2151
      %2153 = vmatmul.f32.gmra.mxu0 %v1929
      %v2154 = vpop.f32.mrf.mxu0
      %v2155 = vadd.f32 %v2042, %v2154
      %2156 = vmatmul.f32.gmra.mxu0 %v1932
      %v2157 = vpop.f32.mrf.mxu0
      %v2158 = vadd.f32 %v2045, %v2157
      %2159 = vmatmul.f32.gmra.mxu0 %v1935
      %v2160 = vpop.f32.mrf.mxu0
      %v2161 = vadd.f32 %v2048, %v2160
      %2162 = vmatmul.f32.gmra.mxu0 %v1938
      %v2163 = vpop.f32.mrf.mxu0
      %v2164 = vadd.f32 %v2051, %v2163
      %2165 = vmatmul.f32.gmra.mxu0 %v1941
      %v2166 = vpop.f32.mrf.mxu0
      %v2167 = vadd.f32 %v2054, %v2166
      %2168 = vmatmul.f32.gmra.mxu0 %v1944
      %v2169 = vpop.f32.mrf.mxu0
      %v2170 = vadd.f32 %v2057, %v2169
      %2171 = vmatmul.f32.gmra.mxu0 %v1947
      %v2172 = vpop.f32.mrf.mxu0
      %v2173 = vadd.f32 %v2060, %v2172
      %2174 = vmatmul.f32.gmra.mxu0 %v1950
      %v2175 = vpop.f32.mrf.mxu0
      %v2176 = vadd.f32 %v2063, %v2175
      %2177 = vmatmul.f32.gmra.mxu0 %v1953
      %v2178 = vpop.f32.mrf.mxu0
      %v2179 = vadd.f32 %v2066, %v2178
      %2180 = vmatmul.f32.gmra.mxu0 %v1956
      %v2181 = vpop.f32.mrf.mxu0
      %v2182 = vadd.f32 %v2069, %v2181
      %2183 = vmatmul.f32.gmra.mxu0 %v1959
      %v2184 = vpop.f32.mrf.mxu0
      %v2185 = vadd.f32 %v2072, %v2184
      %2186 = vmatmul.f32.gmra.mxu0 %v1962
      %v2187 = vpop.f32.mrf.mxu0
      %v2188 = vadd.f32 %v2075, %v2187
      %2189 = vmatmul.f32.gmra.mxu0 %v1965
      %v2190 = vpop.f32.mrf.mxu0
      %v2191 = vadd.f32 %v2078, %v2190
      %2192 = vmatmul.f32.gmra.mxu0 %v1968
      %v2193 = vpop.f32.mrf.mxu0
      %v2194 = vadd.f32 %v2081, %v2193
      %2195 = vmatmul.f32.gmra.mxu0 %v1971
      %v2196 = vpop.f32.mrf.mxu0
      %v2197 = vadd.f32 %v2084, %v2196
      %2198 = vmatmul.f32.gmra.mxu0 %v1974
      %v2199 = vpop.f32.mrf.mxu0
      %v2200 = vadd.f32 %v2087, %v2199
      %2201 = vmatmul.f32.gmra.mxu0 %v1977
      %v2202 = vpop.f32.mrf.mxu0
      %v2203 = vadd.f32 %v2090, %v2202
      %2204 = vmatmul.f32.gmra.mxu0 %v1980
      %v2205 = vpop.f32.mrf.mxu0
      %v2206 = vadd.f32 %v2093, %v2205
      %2207 = vmatmul.f32.gmra.mxu0 %v1983
      %v2208 = vpop.f32.mrf.mxu0
      %v2209 = vadd.f32 %v2096, %v2208
      %2210 = vmatmul.f32.gmra.mxu0 %v1986
      %v2211 = vpop.f32.mrf.mxu0
      %v2212 = vadd.f32 %v2099, %v2211
      %2213 = vmatmul.f32.gmra.mxu0 %v1989
      %v2214 = vpop.f32.mrf.mxu0
      %v2215 = vadd.f32 %v2102, %v2214
      %2216 = vmatmul.f32.gmra.mxu0 %v1992
      %v2217 = vpop.f32.mrf.mxu0
      %v2218 = vadd.f32 %v2105, %v2217
      %2219 = vmatmul.f32.gmra.mxu0 %v1995
      %v2220 = vpop.f32.mrf.mxu0
      %v2221 = vadd.f32 %v2108, %v2220
      %2222 = vmatmul.f32.gmra.mxu0 %v1998
      %v2223 = vpop.f32.mrf.mxu0
      %v2224 = vadd.f32 %v2111, %v2223
      %2225 = vmatmul.f32.gmra.mxu0 %v2001
      %v2226 = vpop.f32.mrf.mxu0
      %v2227 = vadd.f32 %v2114, %v2226
      %2228 = vmatmul.f32.gmra.mxu0 %v2004
      %v2229 = vpop.f32.mrf.mxu0
      %v2230 = vadd.f32 %v2117, %v2229
      %2231 = vmatmul.f32.gmra.mxu0 %v2007
      %v2232 = vpop.f32.mrf.mxu0
      %v2233 = vadd.f32 %v2120, %v2232
      %2234 = vmatmul.f32.gmra.mxu0 %v2010
      %v2235 = vpop.f32.mrf.mxu0
      %v2236 = vadd.f32 %v2123, %v2235
      %2237 = vmatmul.f32.gmra.mxu0 %v2013
      %v2238 = vpop.f32.mrf.mxu0
      %v2239 = vadd.f32 %v2126, %v2238
      %2240 = vdwg.mxu0
      %v2241 = vmax.f32 %v2146, 0.0
      %v2242 = vmax.f32 %v2149, 0.0
      %v2243 = vmax.f32 %v2152, 0.0
      %v2244 = vmax.f32 %v2155, 0.0
      %v2245 = vmax.f32 %v2158, 0.0
      %v2246 = vmax.f32 %v2161, 0.0
      %v2247 = vmax.f32 %v2164, 0.0
      %v2248 = vmax.f32 %v2167, 0.0
      %v2249 = vmax.f32 %v2170, 0.0
      %v2250 = vmax.f32 %v2173, 0.0
      %v2251 = vmax.f32 %v2176, 0.0
      %v2252 = vmax.f32 %v2179, 0.0
      %v2253 = vmax.f32 %v2182, 0.0
      %v2254 = vmax.f32 %v2185, 0.0
      %v2255 = vmax.f32 %v2188, 0.0
      %v2256 = vmax.f32 %v2191, 0.0
      %v2257 = vmax.f32 %v2194, 0.0
      %v2258 = vmax.f32 %v2197, 0.0
      %v2259 = vmax.f32 %v2200, 0.0
      %v2260 = vmax.f32 %v2203, 0.0
      %v2261 = vmax.f32 %v2206, 0.0
      %v2262 = vmax.f32 %v2209, 0.0
      %v2263 = vmax.f32 %v2212, 0.0
      %v2264 = vmax.f32 %v2215, 0.0
      %v2265 = vmax.f32 %v2218, 0.0
      %v2266 = vmax.f32 %v2221, 0.0
      %v2267 = vmax.f32 %v2224, 0.0
      %v2268 = vmax.f32 %v2227, 0.0
      %v2269 = vmax.f32 %v2230, 0.0
      %v2270 = vmax.f32 %v2233, 0.0
      %v2271 = vmax.f32 %v2236, 0.0
      %v2272 = vmax.f32 %v2239, 0.0
      %2305 = vrot.lane.b32.xlu0 %v2241, 4
      %v2306 = vpop.permute.xlu0 %2305
      %2307 = vrot.lane.b32.xlu0 %v2242, 4
      %v2308 = vpop.permute.xlu0 %2307
      %2309 = vrot.lane.b32.xlu0 %v2243, 4
      %v2310 = vpop.permute.xlu0 %2309
      %2311 = vrot.lane.b32.xlu0 %v2244, 4
      %v2312 = vpop.permute.xlu0 %2311
      %2313 = vrot.lane.b32.xlu0 %v2245, 4
      %v2314 = vpop.permute.xlu0 %2313
      %2315 = vrot.lane.b32.xlu0 %v2246, 4
      %v2316 = vpop.permute.xlu0 %2315
      %2317 = vrot.lane.b32.xlu0 %v2247, 4
      %v2318 = vpop.permute.xlu0 %2317
      %2319 = vrot.lane.b32.xlu0 %v2248, 4
      %v2320 = vpop.permute.xlu0 %2319
      %2321 = vrot.lane.b32.xlu0 %v2249, 4
      %v2322 = vpop.permute.xlu0 %2321
      %2323 = vrot.lane.b32.xlu0 %v2250, 4
      %v2324 = vpop.permute.xlu0 %2323
      %2325 = vrot.lane.b32.xlu0 %v2251, 4
      %v2326 = vpop.permute.xlu0 %2325
      %2327 = vrot.lane.b32.xlu0 %v2252, 4
      %v2328 = vpop.permute.xlu0 %2327
      %2329 = vrot.lane.b32.xlu0 %v2253, 4
      %v2330 = vpop.permute.xlu0 %2329
      %2331 = vrot.lane.b32.xlu0 %v2254, 4
      %v2332 = vpop.permute.xlu0 %2331
      %2333 = vrot.lane.b32.xlu0 %v2255, 4
      %v2334 = vpop.permute.xlu0 %2333
      %2335 = vrot.lane.b32.xlu0 %v2256, 4
      %v2336 = vpop.permute.xlu0 %2335
      %2337 = vrot.lane.b32.xlu0 %v2257, 4
      %v2338 = vpop.permute.xlu0 %2337
      %2339 = vrot.lane.b32.xlu0 %v2258, 4
      %v2340 = vpop.permute.xlu0 %2339
      %2341 = vrot.lane.b32.xlu0 %v2259, 4
      %v2342 = vpop.permute.xlu0 %2341
      %2343 = vrot.lane.b32.xlu0 %v2260, 4
      %v2344 = vpop.permute.xlu0 %2343
      %2345 = vrot.lane.b32.xlu0 %v2261, 4
      %v2346 = vpop.permute.xlu0 %2345
      %2347 = vrot.lane.b32.xlu0 %v2262, 4
      %v2348 = vpop.permute.xlu0 %2347
      %2349 = vrot.lane.b32.xlu0 %v2263, 4
      %v2350 = vpop.permute.xlu0 %2349
      %2351 = vrot.lane.b32.xlu0 %v2264, 4
      %v2352 = vpop.permute.xlu0 %2351
      %2353 = vrot.lane.b32.xlu0 %v2265, 4
      %v2354 = vpop.permute.xlu0 %2353
      %2355 = vrot.lane.b32.xlu0 %v2266, 4
      %v2356 = vpop.permute.xlu0 %2355
      %2357 = vrot.lane.b32.xlu0 %v2267, 4
      %v2358 = vpop.permute.xlu0 %2357
      %2359 = vrot.lane.b32.xlu0 %v2268, 4
      %v2360 = vpop.permute.xlu0 %2359
      %2361 = vrot.lane.b32.xlu0 %v2269, 4
      %v2362 = vpop.permute.xlu0 %2361
      %2363 = vrot.lane.b32.xlu0 %v2270, 4
      %v2364 = vpop.permute.xlu0 %2363
      %2365 = vrot.lane.b32.xlu0 %v2271, 4
      %v2366 = vpop.permute.xlu0 %2365
      %2367 = vrot.lane.b32.xlu0 %v2272, 4
      %v2368 = vpop.permute.xlu0 %2367
      %vm2401 = vcmask 64544
      %2402 = vst.msk [vmem:[%s323 + $0x1] sm:$0xff] %vm2401, %v2306
      %2403 = vst.msk [vmem:[%s323 + $0x9] sm:$0xff] %vm2401, %v2308
      %2404 = vst.msk [vmem:[%s323 + $0x19] sm:$0xff] %vm2401, %v2310
      %2405 = vst.msk [vmem:[%s323 + $0x21] sm:$0xff] %vm2401, %v2312
      %2406 = vst.msk [vmem:[%s323 + $0x31] sm:$0xff] %vm2401, %v2314
      %2407 = vst.msk [vmem:[%s323 + $0x39] sm:$0xff] %vm2401, %v2316
      %2408 = vst.msk [vmem:[%s323 + $0x49] sm:$0xff] %vm2401, %v2318
      %2409 = vst.msk [vmem:[%s323 + $0x51] sm:$0xff] %vm2401, %v2320
      %2410 = vst.msk [vmem:[%s323 + $0x61] sm:$0xff] %vm2401, %v2322
      %2411 = vst.msk [vmem:[%s323 + $0x69] sm:$0xff] %vm2401, %v2324
      %2412 = vst.msk [vmem:[%s323 + $0x79] sm:$0xff] %vm2401, %v2326
      %2413 = vst.msk [vmem:[%s323 + $0x81] sm:$0xff] %vm2401, %v2328
      %2414 = vst.msk [vmem:[%s323 + $0x91] sm:$0xff] %vm2401, %v2330
      %2415 = vst.msk [vmem:[%s323 + $0x99] sm:$0xff] %vm2401, %v2332
      %2416 = vst.msk [vmem:[%s323 + $0xa9] sm:$0xff] %vm2401, %v2334
      %2417 = vst.msk [vmem:[%s323 + $0xb1] sm:$0xff] %vm2401, %v2336
      %2418 = vst.msk [vmem:[%s323 + $0xc1] sm:$0xff] %vm2401, %v2338
      %2419 = vst.msk [vmem:[%s323 + $0xc9] sm:$0xff] %vm2401, %v2340
      %2420 = vst.msk [vmem:[%s323 + $0xd9] sm:$0xff] %vm2401, %v2342
      %2421 = vst.msk [vmem:[%s323 + $0xe1] sm:$0xff] %vm2401, %v2344
      %2422 = vst.msk [vmem:[%s323 + $0xf1] sm:$0xff] %vm2401, %v2346
      %2423 = vst.msk [vmem:[%s323 + $0xf9] sm:$0xff] %vm2401, %v2348
      %2424 = vst.msk [vmem:[%s323 + $0x109] sm:$0xff] %vm2401, %v2350
      %2425 = vst.msk [vmem:[%s323 + $0x111] sm:$0xff] %vm2401, %v2352
      %2426 = vst.msk [vmem:[%s323 + $0x121] sm:$0xff] %vm2401, %v2354
      %2427 = vst.msk [vmem:[%s323 + $0x129] sm:$0xff] %vm2401, %v2356
      %2428 = vst.msk [vmem:[%s323 + $0x139] sm:$0xff] %vm2401, %v2358
      %2429 = vst.msk [vmem:[%s323 + $0x141] sm:$0xff] %vm2401, %v2360
      %2430 = vst.msk [vmem:[%s323 + $0x151] sm:$0xff] %vm2401, %v2362
      %2431 = vst.msk [vmem:[%s323 + $0x159] sm:$0xff] %vm2401, %v2364
      %2432 = vst.msk [vmem:[%s323 + $0x169] sm:$0xff] %vm2401, %v2366
      %2433 = vst.msk [vmem:[%s323 + $0x171] sm:$0xff] %vm2401, %v2368
      %v2434 = vld [vmem:[#allocation2] sm:$0xff]
      %v2435 = vld [vmem:[#allocation2 + $0x8] sm:$0xff]
      %v2436 = vld [vmem:[#allocation2 + $0x18] sm:$0xff]
      %v2437 = vld [vmem:[#allocation2 + $0x20] sm:$0xff]
      %v2438 = vld [vmem:[#allocation2 + $0x30] sm:$0xff]
      %v2439 = vld [vmem:[#allocation2 + $0x38] sm:$0xff]
      %v2440 = vld [vmem:[#allocation2 + $0x48] sm:$0xff]
      %v2441 = vld [vmem:[#allocation2 + $0x50] sm:$0xff]
      %v2442 = vld [vmem:[#allocation2 + $0x60] sm:$0xff]
      %v2443 = vld [vmem:[#allocation2 + $0x68] sm:$0xff]
      %v2444 = vld [vmem:[#allocation2 + $0x78] sm:$0xff]
      %v2445 = vld [vmem:[#allocation2 + $0x80] sm:$0xff]
      %v2446 = vld [vmem:[#allocation2 + $0x90] sm:$0xff]
      %v2447 = vld [vmem:[#allocation2 + $0x98] sm:$0xff]
      %v2448 = vld [vmem:[#allocation2 + $0xa8] sm:$0xff]
      %v2449 = vld [vmem:[#allocation2 + $0xb0] sm:$0xff]
      %v2450 = vld [vmem:[#allocation2 + $0xc0] sm:$0xff]
      %v2451 = vld [vmem:[#allocation2 + $0xc8] sm:$0xff]
      %v2452 = vld [vmem:[#allocation2 + $0xd8] sm:$0xff]
      %v2453 = vld [vmem:[#allocation2 + $0xe0] sm:$0xff]
      %v2454 = vld [vmem:[#allocation2 + $0xf0] sm:$0xff]
      %v2455 = vld [vmem:[#allocation2 + $0xf8] sm:$0xff]
      %v2456 = vld [vmem:[#allocation2 + $0x108] sm:$0xff]
      %v2457 = vld [vmem:[#allocation2 + $0x110] sm:$0xff]
      %v2458 = vld [vmem:[#allocation2 + $0x120] sm:$0xff]
      %v2459 = vld [vmem:[#allocation2 + $0x128] sm:$0xff]
      %v2460 = vld [vmem:[#allocation2 + $0x138] sm:$0xff]
      %v2461 = vld [vmem:[#allocation2 + $0x140] sm:$0xff]
      %v2462 = vld [vmem:[#allocation2 + $0x150] sm:$0xff]
      %v2463 = vld [vmem:[#allocation2 + $0x158] sm:$0xff]
      %v2464 = vld [vmem:[#allocation2 + $0x168] sm:$0xff]
      %v2465 = vld [vmem:[#allocation2 + $0x170] sm:$0xff]
      %2466 = vst.msk [vmem:[#allocation3] sm:$0xff] %vm2401, %v2434
      %2467 = vst.msk [vmem:[#allocation3 + $0x10] sm:$0xff] %vm2401, %v2435
      %2468 = vst.msk [vmem:[#allocation3 + $0x20] sm:$0xff] %vm2401, %v2436
      %2469 = vst.msk [vmem:[#allocation3 + $0x30] sm:$0xff] %vm2401, %v2437
      %2470 = vst.msk [vmem:[#allocation3 + $0x40] sm:$0xff] %vm2401, %v2438
      %2471 = vst.msk [vmem:[#allocation3 + $0x50] sm:$0xff] %vm2401, %v2439
      %2472 = vst.msk [vmem:[#allocation3 + $0x60] sm:$0xff] %vm2401, %v2440
      %2473 = vst.msk [vmem:[#allocation3 + $0x70] sm:$0xff] %vm2401, %v2441
      %2474 = vst.msk [vmem:[#allocation3 + $0x80] sm:$0xff] %vm2401, %v2442
      %2475 = vst.msk [vmem:[#allocation3 + $0x90] sm:$0xff] %vm2401, %v2443
      %2476 = vst.msk [vmem:[#allocation3 + $0xa0] sm:$0xff] %vm2401, %v2444
      %2477 = vst.msk [vmem:[#allocation3 + $0xb0] sm:$0xff] %vm2401, %v2445
      %2478 = vst.msk [vmem:[#allocation3 + $0xc0] sm:$0xff] %vm2401, %v2446
      %2479 = vst.msk [vmem:[#allocation3 + $0xd0] sm:$0xff] %vm2401, %v2447
      %2480 = vst.msk [vmem:[#allocation3 + $0xe0] sm:$0xff] %vm2401, %v2448
      %2481 = vst.msk [vmem:[#allocation3 + $0xf0] sm:$0xff] %vm2401, %v2449
      %2482 = vst.msk [vmem:[#allocation3 + $0x100] sm:$0xff] %vm2401, %v2450
      %2483 = vst.msk [vmem:[#allocation3 + $0x110] sm:$0xff] %vm2401, %v2451
      %2484 = vst.msk [vmem:[#allocation3 + $0x120] sm:$0xff] %vm2401, %v2452
      %2485 = vst.msk [vmem:[#allocation3 + $0x130] sm:$0xff] %vm2401, %v2453
      %2486 = vst.msk [vmem:[#allocation3 + $0x140] sm:$0xff] %vm2401, %v2454
      %2487 = vst.msk [vmem:[#allocation3 + $0x150] sm:$0xff] %vm2401, %v2455
      %2488 = vst.msk [vmem:[#allocation3 + $0x160] sm:$0xff] %vm2401, %v2456
      %2489 = vst.msk [vmem:[#allocation3 + $0x170] sm:$0xff] %vm2401, %v2457
      %2490 = vst.msk [vmem:[#allocation3 + $0x180] sm:$0xff] %vm2401, %v2458
      %2491 = vst.msk [vmem:[#allocation3 + $0x190] sm:$0xff] %vm2401, %v2459
      %2492 = vst.msk [vmem:[#allocation3 + $0x1a0] sm:$0xff] %vm2401, %v2460
      %2493 = vst.msk [vmem:[#allocation3 + $0x1b0] sm:$0xff] %vm2401, %v2461
      %2494 = vst.msk [vmem:[#allocation3 + $0x1c0] sm:$0xff] %vm2401, %v2462
      %2495 = vst.msk [vmem:[#allocation3 + $0x1d0] sm:$0xff] %vm2401, %v2463
      %2496 = vst.msk [vmem:[#allocation3 + $0x1e0] sm:$0xff] %vm2401, %v2464
      %2497 = vst.msk [vmem:[#allocation3 + $0x1f0] sm:$0xff] %vm2401, %v2465
      %v2498 = vld [vmem:[#allocation2 + $0x1] sm:$0xff]
      %v2499 = vld [vmem:[#allocation2 + $0x9] sm:$0xff]
      %v2500 = vld [vmem:[#allocation2 + $0x19] sm:$0xff]
      %v2501 = vld [vmem:[#allocation2 + $0x21] sm:$0xff]
      %v2502 = vld [vmem:[#allocation2 + $0x31] sm:$0xff]
      %v2503 = vld [vmem:[#allocation2 + $0x39] sm:$0xff]
      %v2504 = vld [vmem:[#allocation2 + $0x49] sm:$0xff]
      %v2505 = vld [vmem:[#allocation2 + $0x51] sm:$0xff]
      %v2506 = vld [vmem:[#allocation2 + $0x61] sm:$0xff]
      %v2507 = vld [vmem:[#allocation2 + $0x69] sm:$0xff]
      %v2508 = vld [vmem:[#allocation2 + $0x79] sm:$0xff]
      %v2509 = vld [vmem:[#allocation2 + $0x81] sm:$0xff]
      %v2510 = vld [vmem:[#allocation2 + $0x91] sm:$0xff]
      %v2511 = vld [vmem:[#allocation2 + $0x99] sm:$0xff]
      %v2512 = vld [vmem:[#allocation2 + $0xa9] sm:$0xff]
      %v2513 = vld [vmem:[#allocation2 + $0xb1] sm:$0xff]
      %v2514 = vld [vmem:[#allocation2 + $0xc1] sm:$0xff]
      %v2515 = vld [vmem:[#allocation2 + $0xc9] sm:$0xff]
      %v2516 = vld [vmem:[#allocation2 + $0xd9] sm:$0xff]
      %v2517 = vld [vmem:[#allocation2 + $0xe1] sm:$0xff]
      %v2518 = vld [vmem:[#allocation2 + $0xf1] sm:$0xff]
      %v2519 = vld [vmem:[#allocation2 + $0xf9] sm:$0xff]
      %v2520 = vld [vmem:[#allocation2 + $0x109] sm:$0xff]
      %v2521 = vld [vmem:[#allocation2 + $0x111] sm:$0xff]
      %v2522 = vld [vmem:[#allocation2 + $0x121] sm:$0xff]
      %v2523 = vld [vmem:[#allocation2 + $0x129] sm:$0xff]
      %v2524 = vld [vmem:[#allocation2 + $0x139] sm:$0xff]
      %v2525 = vld [vmem:[#allocation2 + $0x141] sm:$0xff]
      %v2526 = vld [vmem:[#allocation2 + $0x151] sm:$0xff]
      %v2527 = vld [vmem:[#allocation2 + $0x159] sm:$0xff]
      %v2528 = vld [vmem:[#allocation2 + $0x169] sm:$0xff]
      %v2529 = vld [vmem:[#allocation2 + $0x171] sm:$0xff]
      %2562 = vrot.lane.b32.xlu0 %v2498, 16
      %v2563 = vpop.permute.xlu0 %2562
      %2564 = vrot.lane.b32.xlu0 %v2499, 16
      %v2565 = vpop.permute.xlu0 %2564
      %2566 = vrot.lane.b32.xlu0 %v2500, 16
      %v2567 = vpop.permute.xlu0 %2566
      %2568 = vrot.lane.b32.xlu0 %v2501, 16
      %v2569 = vpop.permute.xlu0 %2568
      %2570 = vrot.lane.b32.xlu0 %v2502, 16
      %v2571 = vpop.permute.xlu0 %2570
      %2572 = vrot.lane.b32.xlu0 %v2503, 16
      %v2573 = vpop.permute.xlu0 %2572
      %2574 = vrot.lane.b32.xlu0 %v2504, 16
      %v2575 = vpop.permute.xlu0 %2574
      %2576 = vrot.lane.b32.xlu0 %v2505, 16
      %v2577 = vpop.permute.xlu0 %2576
      %2578 = vrot.lane.b32.xlu0 %v2506, 16
      %v2579 = vpop.permute.xlu0 %2578
      %2580 = vrot.lane.b32.xlu0 %v2507, 16
      %v2581 = vpop.permute.xlu0 %2580
      %2582 = vrot.lane.b32.xlu0 %v2508, 16
      %v2583 = vpop.permute.xlu0 %2582
      %2584 = vrot.lane.b32.xlu0 %v2509, 16
      %v2585 = vpop.permute.xlu0 %2584
      %2586 = vrot.lane.b32.xlu0 %v2510, 16
      %v2587 = vpop.permute.xlu0 %2586
      %2588 = vrot.lane.b32.xlu0 %v2511, 16
      %v2589 = vpop.permute.xlu0 %2588
      %2590 = vrot.lane.b32.xlu0 %v2512, 16
      %v2591 = vpop.permute.xlu0 %2590
      %2592 = vrot.lane.b32.xlu0 %v2513, 16
      %v2593 = vpop.permute.xlu0 %2592
      %2594 = vrot.lane.b32.xlu0 %v2514, 16
      %v2595 = vpop.permute.xlu0 %2594
      %2596 = vrot.lane.b32.xlu0 %v2515, 16
      %v2597 = vpop.permute.xlu0 %2596
      %2598 = vrot.lane.b32.xlu0 %v2516, 16
      %v2599 = vpop.permute.xlu0 %2598
      %2600 = vrot.lane.b32.xlu0 %v2517, 16
      %v2601 = vpop.permute.xlu0 %2600
      %2602 = vrot.lane.b32.xlu0 %v2518, 16
      %v2603 = vpop.permute.xlu0 %2602
      %2604 = vrot.lane.b32.xlu0 %v2519, 16
      %v2605 = vpop.permute.xlu0 %2604
      %2606 = vrot.lane.b32.xlu0 %v2520, 16
      %v2607 = vpop.permute.xlu0 %2606
      %2608 = vrot.lane.b32.xlu0 %v2521, 16
      %v2609 = vpop.permute.xlu0 %2608
      %2610 = vrot.lane.b32.xlu0 %v2522, 16
      %v2611 = vpop.permute.xlu0 %2610
      %2612 = vrot.lane.b32.xlu0 %v2523, 16
      %v2613 = vpop.permute.xlu0 %2612
      %2614 = vrot.lane.b32.xlu0 %v2524, 16
      %v2615 = vpop.permute.xlu0 %2614
      %2616 = vrot.lane.b32.xlu0 %v2525, 16
      %v2617 = vpop.permute.xlu0 %2616
      %2618 = vrot.lane.b32.xlu0 %v2526, 16
      %v2619 = vpop.permute.xlu0 %2618
      %2620 = vrot.lane.b32.xlu0 %v2527, 16
      %v2621 = vpop.permute.xlu0 %2620
      %2622 = vrot.lane.b32.xlu0 %v2528, 16
      %v2623 = vpop.permute.xlu0 %2622
      %2624 = vrot.lane.b32.xlu0 %v2529, 16
      %v2625 = vpop.permute.xlu0 %2624
      %vm2658 = vcmask 195744
      %2659 = vst.msk [vmem:[#allocation3] sm:$0xff] %vm2658, %v2563
      %2660 = vst.msk [vmem:[#allocation3 + $0x10] sm:$0xff] %vm2658, %v2565
      %2661 = vst.msk [vmem:[#allocation3 + $0x20] sm:$0xff] %vm2658, %v2567
      %2662 = vst.msk [vmem:[#allocation3 + $0x30] sm:$0xff] %vm2658, %v2569
      %2663 = vst.msk [vmem:[#allocation3 + $0x40] sm:$0xff] %vm2658, %v2571
      %2664 = vst.msk [vmem:[#allocation3 + $0x50] sm:$0xff] %vm2658, %v2573
      %2665 = vst.msk [vmem:[#allocation3 + $0x60] sm:$0xff] %vm2658, %v2575
      %2666 = vst.msk [vmem:[#allocation3 + $0x70] sm:$0xff] %vm2658, %v2577
      %2667 = vst.msk [vmem:[#allocation3 + $0x80] sm:$0xff] %vm2658, %v2579
      %2668 = vst.msk [vmem:[#allocation3 + $0x90] sm:$0xff] %vm2658, %v2581
      %2669 = vst.msk [vmem:[#allocation3 + $0xa0] sm:$0xff] %vm2658, %v2583
      %2670 = vst.msk [vmem:[#allocation3 + $0xb0] sm:$0xff] %vm2658, %v2585
      %2671 = vst.msk [vmem:[#allocation3 + $0xc0] sm:$0xff] %vm2658, %v2587
      %2672 = vst.msk [vmem:[#allocation3 + $0xd0] sm:$0xff] %vm2658, %v2589
      %2673 = vst.msk [vmem:[#allocation3 + $0xe0] sm:$0xff] %vm2658, %v2591
      %2674 = vst.msk [vmem:[#allocation3 + $0xf0] sm:$0xff] %vm2658, %v2593
      %2675 = vst.msk [vmem:[#allocation3 + $0x100] sm:$0xff] %vm2658, %v2595
      %2676 = vst.msk [vmem:[#allocation3 + $0x110] sm:$0xff] %vm2658, %v2597
      %2677 = vst.msk [vmem:[#allocation3 + $0x120] sm:$0xff] %vm2658, %v2599
      %2678 = vst.msk [vmem:[#allocation3 + $0x130] sm:$0xff] %vm2658, %v2601
      %2679 = vst.msk [vmem:[#allocation3 + $0x140] sm:$0xff] %vm2658, %v2603
      %2680 = vst.msk [vmem:[#allocation3 + $0x150] sm:$0xff] %vm2658, %v2605
      %2681 = vst.msk [vmem:[#allocation3 + $0x160] sm:$0xff] %vm2658, %v2607
      %2682 = vst.msk [vmem:[#allocation3 + $0x170] sm:$0xff] %vm2658, %v2609
      %2683 = vst.msk [vmem:[#allocation3 + $0x180] sm:$0xff] %vm2658, %v2611
      %2684 = vst.msk [vmem:[#allocation3 + $0x190] sm:$0xff] %vm2658, %v2613
      %2685 = vst.msk [vmem:[#allocation3 + $0x1a0] sm:$0xff] %vm2658, %v2615
      %2686 = vst.msk [vmem:[#allocation3 + $0x1b0] sm:$0xff] %vm2658, %v2617
      %2687 = vst.msk [vmem:[#allocation3 + $0x1c0] sm:$0xff] %vm2658, %v2619
      %2688 = vst.msk [vmem:[#allocation3 + $0x1d0] sm:$0xff] %vm2658, %v2621
      %2689 = vst.msk [vmem:[#allocation3 + $0x1e0] sm:$0xff] %vm2658, %v2623
      %2690 = vst.msk [vmem:[#allocation3 + $0x1f0] sm:$0xff] %vm2658, %v2625
      %v2691 = vld [vmem:[#allocation2 + $0x2] sm:$0xff]
      %v2692 = vld [vmem:[#allocation2 + $0xa] sm:$0xff]
      %v2693 = vld [vmem:[#allocation2 + $0x1a] sm:$0xff]
      %v2694 = vld [vmem:[#allocation2 + $0x22] sm:$0xff]
      %v2695 = vld [vmem:[#allocation2 + $0x32] sm:$0xff]
      %v2696 = vld [vmem:[#allocation2 + $0x3a] sm:$0xff]
      %v2697 = vld [vmem:[#allocation2 + $0x4a] sm:$0xff]
      %v2698 = vld [vmem:[#allocation2 + $0x52] sm:$0xff]
      %v2699 = vld [vmem:[#allocation2 + $0x62] sm:$0xff]
      %v2700 = vld [vmem:[#allocation2 + $0x6a] sm:$0xff]
      %v2701 = vld [vmem:[#allocation2 + $0x7a] sm:$0xff]
      %v2702 = vld [vmem:[#allocation2 + $0x82] sm:$0xff]
      %v2703 = vld [vmem:[#allocation2 + $0x92] sm:$0xff]
      %v2704 = vld [vmem:[#allocation2 + $0x9a] sm:$0xff]
      %v2705 = vld [vmem:[#allocation2 + $0xaa] sm:$0xff]
      %v2706 = vld [vmem:[#allocation2 + $0xb2] sm:$0xff]
      %v2707 = vld [vmem:[#allocation2 + $0xc2] sm:$0xff]
      %v2708 = vld [vmem:[#allocation2 + $0xca] sm:$0xff]
      %v2709 = vld [vmem:[#allocation2 + $0xda] sm:$0xff]
      %v2710 = vld [vmem:[#allocation2 + $0xe2] sm:$0xff]
      %v2711 = vld [vmem:[#allocation2 + $0xf2] sm:$0xff]
      %v2712 = vld [vmem:[#allocation2 + $0xfa] sm:$0xff]
      %v2713 = vld [vmem:[#allocation2 + $0x10a] sm:$0xff]
      %v2714 = vld [vmem:[#allocation2 + $0x112] sm:$0xff]
      %v2715 = vld [vmem:[#allocation2 + $0x122] sm:$0xff]
      %v2716 = vld [vmem:[#allocation2 + $0x12a] sm:$0xff]
      %v2717 = vld [vmem:[#allocation2 + $0x13a] sm:$0xff]
      %v2718 = vld [vmem:[#allocation2 + $0x142] sm:$0xff]
      %v2719 = vld [vmem:[#allocation2 + $0x152] sm:$0xff]
      %v2720 = vld [vmem:[#allocation2 + $0x15a] sm:$0xff]
      %v2721 = vld [vmem:[#allocation2 + $0x16a] sm:$0xff]
      %v2722 = vld [vmem:[#allocation2 + $0x172] sm:$0xff]
      %2755 = vrot.lane.b32.xlu0 %v2691, 32
      %v2756 = vpop.permute.xlu0 %2755
      %2757 = vrot.lane.b32.xlu0 %v2692, 32
      %v2758 = vpop.permute.xlu0 %2757
      %2759 = vrot.lane.b32.xlu0 %v2693, 32
      %v2760 = vpop.permute.xlu0 %2759
      %2761 = vrot.lane.b32.xlu0 %v2694, 32
      %v2762 = vpop.permute.xlu0 %2761
      %2763 = vrot.lane.b32.xlu0 %v2695, 32
      %v2764 = vpop.permute.xlu0 %2763
      %2765 = vrot.lane.b32.xlu0 %v2696, 32
      %v2766 = vpop.permute.xlu0 %2765
      %2767 = vrot.lane.b32.xlu0 %v2697, 32
      %v2768 = vpop.permute.xlu0 %2767
      %2769 = vrot.lane.b32.xlu0 %v2698, 32
      %v2770 = vpop.permute.xlu0 %2769
      %2771 = vrot.lane.b32.xlu0 %v2699, 32
      %v2772 = vpop.permute.xlu0 %2771
      %2773 = vrot.lane.b32.xlu0 %v2700, 32
      %v2774 = vpop.permute.xlu0 %2773
      %2775 = vrot.lane.b32.xlu0 %v2701, 32
      %v2776 = vpop.permute.xlu0 %2775
      %2777 = vrot.lane.b32.xlu0 %v2702, 32
      %v2778 = vpop.permute.xlu0 %2777
      %2779 = vrot.lane.b32.xlu0 %v2703, 32
      %v2780 = vpop.permute.xlu0 %2779
      %2781 = vrot.lane.b32.xlu0 %v2704, 32
      %v2782 = vpop.permute.xlu0 %2781
      %2783 = vrot.lane.b32.xlu0 %v2705, 32
      %v2784 = vpop.permute.xlu0 %2783
      %2785 = vrot.lane.b32.xlu0 %v2706, 32
      %v2786 = vpop.permute.xlu0 %2785
      %2787 = vrot.lane.b32.xlu0 %v2707, 32
      %v2788 = vpop.permute.xlu0 %2787
      %2789 = vrot.lane.b32.xlu0 %v2708, 32
      %v2790 = vpop.permute.xlu0 %2789
      %2791 = vrot.lane.b32.xlu0 %v2709, 32
      %v2792 = vpop.permute.xlu0 %2791
      %2793 = vrot.lane.b32.xlu0 %v2710, 32
      %v2794 = vpop.permute.xlu0 %2793
      %2795 = vrot.lane.b32.xlu0 %v2711, 32
      %v2796 = vpop.permute.xlu0 %2795
      %2797 = vrot.lane.b32.xlu0 %v2712, 32
      %v2798 = vpop.permute.xlu0 %2797
      %2799 = vrot.lane.b32.xlu0 %v2713, 32
      %v2800 = vpop.permute.xlu0 %2799
      %2801 = vrot.lane.b32.xlu0 %v2714, 32
      %v2802 = vpop.permute.xlu0 %2801
      %2803 = vrot.lane.b32.xlu0 %v2715, 32
      %v2804 = vpop.permute.xlu0 %2803
      %2805 = vrot.lane.b32.xlu0 %v2716, 32
      %v2806 = vpop.permute.xlu0 %2805
      %2807 = vrot.lane.b32.xlu0 %v2717, 32
      %v2808 = vpop.permute.xlu0 %2807
      %2809 = vrot.lane.b32.xlu0 %v2718, 32
      %v2810 = vpop.permute.xlu0 %2809
      %2811 = vrot.lane.b32.xlu0 %v2719, 32
      %v2812 = vpop.permute.xlu0 %2811
      %2813 = vrot.lane.b32.xlu0 %v2720, 32
      %v2814 = vpop.permute.xlu0 %2813
      %2815 = vrot.lane.b32.xlu0 %v2721, 32
      %v2816 = vpop.permute.xlu0 %2815
      %2817 = vrot.lane.b32.xlu0 %v2722, 32
      %v2818 = vpop.permute.xlu0 %2817
      %vm2851 = vcmask 326944
      %2852 = vst.msk [vmem:[#allocation3] sm:$0xff] %vm2851, %v2756
      %2853 = vst.msk [vmem:[#allocation3 + $0x10] sm:$0xff] %vm2851, %v2758
      %2854 = vst.msk [vmem:[#allocation3 + $0x20] sm:$0xff] %vm2851, %v2760
      %2855 = vst.msk [vmem:[#allocation3 + $0x30] sm:$0xff] %vm2851, %v2762
      %2856 = vst.msk [vmem:[#allocation3 + $0x40] sm:$0xff] %vm2851, %v2764
      %2857 = vst.msk [vmem:[#allocation3 + $0x50] sm:$0xff] %vm2851, %v2766
      %2858 = vst.msk [vmem:[#allocation3 + $0x60] sm:$0xff] %vm2851, %v2768
      %2859 = vst.msk [vmem:[#allocation3 + $0x70] sm:$0xff] %vm2851, %v2770
      %2860 = vst.msk [vmem:[#allocation3 + $0x80] sm:$0xff] %vm2851, %v2772
      %2861 = vst.msk [vmem:[#allocation3 + $0x90] sm:$0xff] %vm2851, %v2774
      %2862 = vst.msk [vmem:[#allocation3 + $0xa0] sm:$0xff] %vm2851, %v2776
      %2863 = vst.msk [vmem:[#allocation3 + $0xb0] sm:$0xff] %vm2851, %v2778
      %2864 = vst.msk [vmem:[#allocation3 + $0xc0] sm:$0xff] %vm2851, %v2780
      %2865 = vst.msk [vmem:[#allocation3 + $0xd0] sm:$0xff] %vm2851, %v2782
      %2866 = vst.msk [vmem:[#allocation3 + $0xe0] sm:$0xff] %vm2851, %v2784
      %2867 = vst.msk [vmem:[#allocation3 + $0xf0] sm:$0xff] %vm2851, %v2786
      %2868 = vst.msk [vmem:[#allocation3 + $0x100] sm:$0xff] %vm2851, %v2788
      %2869 = vst.msk [vmem:[#allocation3 + $0x110] sm:$0xff] %vm2851, %v2790
      %2870 = vst.msk [vmem:[#allocation3 + $0x120] sm:$0xff] %vm2851, %v2792
      %2871 = vst.msk [vmem:[#allocation3 + $0x130] sm:$0xff] %vm2851, %v2794
      %2872 = vst.msk [vmem:[#allocation3 + $0x140] sm:$0xff] %vm2851, %v2796
      %2873 = vst.msk [vmem:[#allocation3 + $0x150] sm:$0xff] %vm2851, %v2798
      %2874 = vst.msk [vmem:[#allocation3 + $0x160] sm:$0xff] %vm2851, %v2800
      %2875 = vst.msk [vmem:[#allocation3 + $0x170] sm:$0xff] %vm2851, %v2802
      %2876 = vst.msk [vmem:[#allocation3 + $0x180] sm:$0xff] %vm2851, %v2804
      %2877 = vst.msk [vmem:[#allocation3 + $0x190] sm:$0xff] %vm2851, %v2806
      %2878 = vst.msk [vmem:[#allocation3 + $0x1a0] sm:$0xff] %vm2851, %v2808
      %2879 = vst.msk [vmem:[#allocation3 + $0x1b0] sm:$0xff] %vm2851, %v2810
      %2880 = vst.msk [vmem:[#allocation3 + $0x1c0] sm:$0xff] %vm2851, %v2812
      %2881 = vst.msk [vmem:[#allocation3 + $0x1d0] sm:$0xff] %vm2851, %v2814
      %2882 = vst.msk [vmem:[#allocation3 + $0x1e0] sm:$0xff] %vm2851, %v2816
      %2883 = vst.msk [vmem:[#allocation3 + $0x1f0] sm:$0xff] %vm2851, %v2818
      %v2884 = vld [vmem:[%s323] sm:$0xff]
      %v2885 = vld [vmem:[%s323 + $0x8] sm:$0xff]
      %v2886 = vld [vmem:[%s323 + $0x18] sm:$0xff]
      %v2887 = vld [vmem:[%s323 + $0x20] sm:$0xff]
      %v2888 = vld [vmem:[%s323 + $0x30] sm:$0xff]
      %v2889 = vld [vmem:[%s323 + $0x38] sm:$0xff]
      %v2890 = vld [vmem:[%s323 + $0x48] sm:$0xff]
      %v2891 = vld [vmem:[%s323 + $0x50] sm:$0xff]
      %v2892 = vld [vmem:[%s323 + $0x60] sm:$0xff]
      %v2893 = vld [vmem:[%s323 + $0x68] sm:$0xff]
      %v2894 = vld [vmem:[%s323 + $0x78] sm:$0xff]
      %v2895 = vld [vmem:[%s323 + $0x80] sm:$0xff]
      %v2896 = vld [vmem:[%s323 + $0x90] sm:$0xff]
      %v2897 = vld [vmem:[%s323 + $0x98] sm:$0xff]
      %v2898 = vld [vmem:[%s323 + $0xa8] sm:$0xff]
      %v2899 = vld [vmem:[%s323 + $0xb0] sm:$0xff]
      %v2900 = vld [vmem:[%s323 + $0xc0] sm:$0xff]
      %v2901 = vld [vmem:[%s323 + $0xc8] sm:$0xff]
      %v2902 = vld [vmem:[%s323 + $0xd8] sm:$0xff]
      %v2903 = vld [vmem:[%s323 + $0xe0] sm:$0xff]
      %v2904 = vld [vmem:[%s323 + $0xf0] sm:$0xff]
      %v2905 = vld [vmem:[%s323 + $0xf8] sm:$0xff]
      %v2906 = vld [vmem:[%s323 + $0x108] sm:$0xff]
      %v2907 = vld [vmem:[%s323 + $0x110] sm:$0xff]
      %v2908 = vld [vmem:[%s323 + $0x120] sm:$0xff]
      %v2909 = vld [vmem:[%s323 + $0x128] sm:$0xff]
      %v2910 = vld [vmem:[%s323 + $0x138] sm:$0xff]
      %v2911 = vld [vmem:[%s323 + $0x140] sm:$0xff]
      %v2912 = vld [vmem:[%s323 + $0x150] sm:$0xff]
      %v2913 = vld [vmem:[%s323 + $0x158] sm:$0xff]
      %v2914 = vld [vmem:[%s323 + $0x168] sm:$0xff]
      %v2915 = vld [vmem:[%s323 + $0x170] sm:$0xff]
      %2948 = vrot.lane.b32.xlu0 %v2884, 48
      %v2949 = vpop.permute.xlu0 %2948
      %2950 = vrot.lane.b32.xlu0 %v2885, 48
      %v2951 = vpop.permute.xlu0 %2950
      %2952 = vrot.lane.b32.xlu0 %v2886, 48
      %v2953 = vpop.permute.xlu0 %2952
      %2954 = vrot.lane.b32.xlu0 %v2887, 48
      %v2955 = vpop.permute.xlu0 %2954
      %2956 = vrot.lane.b32.xlu0 %v2888, 48
      %v2957 = vpop.permute.xlu0 %2956
      %2958 = vrot.lane.b32.xlu0 %v2889, 48
      %v2959 = vpop.permute.xlu0 %2958
      %2960 = vrot.lane.b32.xlu0 %v2890, 48
      %v2961 = vpop.permute.xlu0 %2960
      %2962 = vrot.lane.b32.xlu0 %v2891, 48
      %v2963 = vpop.permute.xlu0 %2962
      %2964 = vrot.lane.b32.xlu0 %v2892, 48
      %v2965 = vpop.permute.xlu0 %2964
      %2966 = vrot.lane.b32.xlu0 %v2893, 48
      %v2967 = vpop.permute.xlu0 %2966
      %2968 = vrot.lane.b32.xlu0 %v2894, 48
      %v2969 = vpop.permute.xlu0 %2968
      %2970 = vrot.lane.b32.xlu0 %v2895, 48
      %v2971 = vpop.permute.xlu0 %2970
      %2972 = vrot.lane.b32.xlu0 %v2896, 48
      %v2973 = vpop.permute.xlu0 %2972
      %2974 = vrot.lane.b32.xlu0 %v2897, 48
      %v2975 = vpop.permute.xlu0 %2974
      %2976 = vrot.lane.b32.xlu0 %v2898, 48
      %v2977 = vpop.permute.xlu0 %2976
      %2978 = vrot.lane.b32.xlu0 %v2899, 48
      %v2979 = vpop.permute.xlu0 %2978
      %2980 = vrot.lane.b32.xlu0 %v2900, 48
      %v2981 = vpop.permute.xlu0 %2980
      %2982 = vrot.lane.b32.xlu0 %v2901, 48
      %v2983 = vpop.permute.xlu0 %2982
      %2984 = vrot.lane.b32.xlu0 %v2902, 48
      %v2985 = vpop.permute.xlu0 %2984
      %2986 = vrot.lane.b32.xlu0 %v2903, 48
      %v2987 = vpop.permute.xlu0 %2986
      %2988 = vrot.lane.b32.xlu0 %v2904, 48
      %v2989 = vpop.permute.xlu0 %2988
      %2990 = vrot.lane.b32.xlu0 %v2905, 48
      %v2991 = vpop.permute.xlu0 %2990
      %2992 = vrot.lane.b32.xlu0 %v2906, 48
      %v2993 = vpop.permute.xlu0 %2992
      %2994 = vrot.lane.b32.xlu0 %v2907, 48
      %v2995 = vpop.permute.xlu0 %2994
      %2996 = vrot.lane.b32.xlu0 %v2908, 48
      %v2997 = vpop.permute.xlu0 %2996
      %2998 = vrot.lane.b32.xlu0 %v2909, 48
      %v2999 = vpop.permute.xlu0 %2998
      %3000 = vrot.lane.b32.xlu0 %v2910, 48
      %v3001 = vpop.permute.xlu0 %3000
      %3002 = vrot.lane.b32.xlu0 %v2911, 48
      %v3003 = vpop.permute.xlu0 %3002
      %3004 = vrot.lane.b32.xlu0 %v2912, 48
      %v3005 = vpop.permute.xlu0 %3004
      %3006 = vrot.lane.b32.xlu0 %v2913, 48
      %v3007 = vpop.permute.xlu0 %3006
      %3008 = vrot.lane.b32.xlu0 %v2914, 48
      %v3009 = vpop.permute.xlu0 %3008
      %3010 = vrot.lane.b32.xlu0 %v2915, 48
      %v3011 = vpop.permute.xlu0 %3010
      %vm3044 = vcmask 458144
      %3045 = vst.msk [vmem:[#allocation3] sm:$0xff] %vm3044, %v2949
      %3046 = vst.msk [vmem:[#allocation3 + $0x10] sm:$0xff] %vm3044, %v2951
      %3047 = vst.msk [vmem:[#allocation3 + $0x20] sm:$0xff] %vm3044, %v2953
      %3048 = vst.msk [vmem:[#allocation3 + $0x30] sm:$0xff] %vm3044, %v2955
      %3049 = vst.msk [vmem:[#allocation3 + $0x40] sm:$0xff] %vm3044, %v2957
      %3050 = vst.msk [vmem:[#allocation3 + $0x50] sm:$0xff] %vm3044, %v2959
      %3051 = vst.msk [vmem:[#allocation3 + $0x60] sm:$0xff] %vm3044, %v2961
      %3052 = vst.msk [vmem:[#allocation3 + $0x70] sm:$0xff] %vm3044, %v2963
      %3053 = vst.msk [vmem:[#allocation3 + $0x80] sm:$0xff] %vm3044, %v2965
      %3054 = vst.msk [vmem:[#allocation3 + $0x90] sm:$0xff] %vm3044, %v2967
      %3055 = vst.msk [vmem:[#allocation3 + $0xa0] sm:$0xff] %vm3044, %v2969
      %3056 = vst.msk [vmem:[#allocation3 + $0xb0] sm:$0xff] %vm3044, %v2971
      %3057 = vst.msk [vmem:[#allocation3 + $0xc0] sm:$0xff] %vm3044, %v2973
      %3058 = vst.msk [vmem:[#allocation3 + $0xd0] sm:$0xff] %vm3044, %v2975
      %3059 = vst.msk [vmem:[#allocation3 + $0xe0] sm:$0xff] %vm3044, %v2977
      %3060 = vst.msk [vmem:[#allocation3 + $0xf0] sm:$0xff] %vm3044, %v2979
      %3061 = vst.msk [vmem:[#allocation3 + $0x100] sm:$0xff] %vm3044, %v2981
      %3062 = vst.msk [vmem:[#allocation3 + $0x110] sm:$0xff] %vm3044, %v2983
      %3063 = vst.msk [vmem:[#allocation3 + $0x120] sm:$0xff] %vm3044, %v2985
      %3064 = vst.msk [vmem:[#allocation3 + $0x130] sm:$0xff] %vm3044, %v2987
      %3065 = vst.msk [vmem:[#allocation3 + $0x140] sm:$0xff] %vm3044, %v2989
      %3066 = vst.msk [vmem:[#allocation3 + $0x150] sm:$0xff] %vm3044, %v2991
      %3067 = vst.msk [vmem:[#allocation3 + $0x160] sm:$0xff] %vm3044, %v2993
      %3068 = vst.msk [vmem:[#allocation3 + $0x170] sm:$0xff] %vm3044, %v2995
      %3069 = vst.msk [vmem:[#allocation3 + $0x180] sm:$0xff] %vm3044, %v2997
      %3070 = vst.msk [vmem:[#allocation3 + $0x190] sm:$0xff] %vm3044, %v2999
      %3071 = vst.msk [vmem:[#allocation3 + $0x1a0] sm:$0xff] %vm3044, %v3001
      %3072 = vst.msk [vmem:[#allocation3 + $0x1b0] sm:$0xff] %vm3044, %v3003
      %3073 = vst.msk [vmem:[#allocation3 + $0x1c0] sm:$0xff] %vm3044, %v3005
      %3074 = vst.msk [vmem:[#allocation3 + $0x1d0] sm:$0xff] %vm3044, %v3007
      %3075 = vst.msk [vmem:[#allocation3 + $0x1e0] sm:$0xff] %vm3044, %v3009
      %3076 = vst.msk [vmem:[#allocation3 + $0x1f0] sm:$0xff] %vm3044, %v3011
      %v3077 = vld [vmem:[%s323 + $0x1] sm:$0xff]
      %v3078 = vld [vmem:[%s323 + $0x9] sm:$0xff]
      %v3079 = vld [vmem:[%s323 + $0x19] sm:$0xff]
      %v3080 = vld [vmem:[%s323 + $0x21] sm:$0xff]
      %v3081 = vld [vmem:[%s323 + $0x31] sm:$0xff]
      %v3082 = vld [vmem:[%s323 + $0x39] sm:$0xff]
      %v3083 = vld [vmem:[%s323 + $0x49] sm:$0xff]
      %v3084 = vld [vmem:[%s323 + $0x51] sm:$0xff]
      %v3085 = vld [vmem:[%s323 + $0x61] sm:$0xff]
      %v3086 = vld [vmem:[%s323 + $0x69] sm:$0xff]
      %v3087 = vld [vmem:[%s323 + $0x79] sm:$0xff]
      %v3088 = vld [vmem:[%s323 + $0x81] sm:$0xff]
      %v3089 = vld [vmem:[%s323 + $0x91] sm:$0xff]
      %v3090 = vld [vmem:[%s323 + $0x99] sm:$0xff]
      %v3091 = vld [vmem:[%s323 + $0xa9] sm:$0xff]
      %v3092 = vld [vmem:[%s323 + $0xb1] sm:$0xff]
      %v3093 = vld [vmem:[%s323 + $0xc1] sm:$0xff]
      %v3094 = vld [vmem:[%s323 + $0xc9] sm:$0xff]
      %v3095 = vld [vmem:[%s323 + $0xd9] sm:$0xff]
      %v3096 = vld [vmem:[%s323 + $0xe1] sm:$0xff]
      %v3097 = vld [vmem:[%s323 + $0xf1] sm:$0xff]
      %v3098 = vld [vmem:[%s323 + $0xf9] sm:$0xff]
      %v3099 = vld [vmem:[%s323 + $0x109] sm:$0xff]
      %v3100 = vld [vmem:[%s323 + $0x111] sm:$0xff]
      %v3101 = vld [vmem:[%s323 + $0x121] sm:$0xff]
      %v3102 = vld [vmem:[%s323 + $0x129] sm:$0xff]
      %v3103 = vld [vmem:[%s323 + $0x139] sm:$0xff]
      %v3104 = vld [vmem:[%s323 + $0x141] sm:$0xff]
      %v3105 = vld [vmem:[%s323 + $0x151] sm:$0xff]
      %v3106 = vld [vmem:[%s323 + $0x159] sm:$0xff]
      %v3107 = vld [vmem:[%s323 + $0x169] sm:$0xff]
      %v3108 = vld [vmem:[%s323 + $0x171] sm:$0xff]
      %3141 = vrot.lane.b32.xlu0 %v3077, 64
      %v3142 = vpop.permute.xlu0 %3141
      %3143 = vrot.lane.b32.xlu0 %v3078, 64
      %v3144 = vpop.permute.xlu0 %3143
      %3145 = vrot.lane.b32.xlu0 %v3079, 64
      %v3146 = vpop.permute.xlu0 %3145
      %3147 = vrot.lane.b32.xlu0 %v3080, 64
      %v3148 = vpop.permute.xlu0 %3147
      %3149 = vrot.lane.b32.xlu0 %v3081, 64
      %v3150 = vpop.permute.xlu0 %3149
      %3151 = vrot.lane.b32.xlu0 %v3082, 64
      %v3152 = vpop.permute.xlu0 %3151
      %3153 = vrot.lane.b32.xlu0 %v3083, 64
      %v3154 = vpop.permute.xlu0 %3153
      %3155 = vrot.lane.b32.xlu0 %v3084, 64
      %v3156 = vpop.permute.xlu0 %3155
      %3157 = vrot.lane.b32.xlu0 %v3085, 64
      %v3158 = vpop.permute.xlu0 %3157
      %3159 = vrot.lane.b32.xlu0 %v3086, 64
      %v3160 = vpop.permute.xlu0 %3159
      %3161 = vrot.lane.b32.xlu0 %v3087, 64
      %v3162 = vpop.permute.xlu0 %3161
      %3163 = vrot.lane.b32.xlu0 %v3088, 64
      %v3164 = vpop.permute.xlu0 %3163
      %3165 = vrot.lane.b32.xlu0 %v3089, 64
      %v3166 = vpop.permute.xlu0 %3165
      %3167 = vrot.lane.b32.xlu0 %v3090, 64
      %v3168 = vpop.permute.xlu0 %3167
      %3169 = vrot.lane.b32.xlu0 %v3091, 64
      %v3170 = vpop.permute.xlu0 %3169
      %3171 = vrot.lane.b32.xlu0 %v3092, 64
      %v3172 = vpop.permute.xlu0 %3171
      %3173 = vrot.lane.b32.xlu0 %v3093, 64
      %v3174 = vpop.permute.xlu0 %3173
      %3175 = vrot.lane.b32.xlu0 %v3094, 64
      %v3176 = vpop.permute.xlu0 %3175
      %3177 = vrot.lane.b32.xlu0 %v3095, 64
      %v3178 = vpop.permute.xlu0 %3177
      %3179 = vrot.lane.b32.xlu0 %v3096, 64
      %v3180 = vpop.permute.xlu0 %3179
      %3181 = vrot.lane.b32.xlu0 %v3097, 64
      %v3182 = vpop.permute.xlu0 %3181
      %3183 = vrot.lane.b32.xlu0 %v3098, 64
      %v3184 = vpop.permute.xlu0 %3183
      %3185 = vrot.lane.b32.xlu0 %v3099, 64
      %v3186 = vpop.permute.xlu0 %3185
      %3187 = vrot.lane.b32.xlu0 %v3100, 64
      %v3188 = vpop.permute.xlu0 %3187
      %3189 = vrot.lane.b32.xlu0 %v3101, 64
      %v3190 = vpop.permute.xlu0 %3189
      %3191 = vrot.lane.b32.xlu0 %v3102, 64
      %v3192 = vpop.permute.xlu0 %3191
      %3193 = vrot.lane.b32.xlu0 %v3103, 64
      %v3194 = vpop.permute.xlu0 %3193
      %3195 = vrot.lane.b32.xlu0 %v3104, 64
      %v3196 = vpop.permute.xlu0 %3195
      %3197 = vrot.lane.b32.xlu0 %v3105, 64
      %v3198 = vpop.permute.xlu0 %3197
      %3199 = vrot.lane.b32.xlu0 %v3106, 64
      %v3200 = vpop.permute.xlu0 %3199
      %3201 = vrot.lane.b32.xlu0 %v3107, 64
      %v3202 = vpop.permute.xlu0 %3201
      %3203 = vrot.lane.b32.xlu0 %v3108, 64
      %v3204 = vpop.permute.xlu0 %3203
      %vm3237 = vcmask 589344
      %3238 = vst.msk [vmem:[#allocation3] sm:$0xff] %vm3237, %v3142
      %3239 = vst.msk [vmem:[#allocation3 + $0x10] sm:$0xff] %vm3237, %v3144
      %3240 = vst.msk [vmem:[#allocation3 + $0x20] sm:$0xff] %vm3237, %v3146
      %3241 = vst.msk [vmem:[#allocation3 + $0x30] sm:$0xff] %vm3237, %v3148
      %3242 = vst.msk [vmem:[#allocation3 + $0x40] sm:$0xff] %vm3237, %v3150
      %3243 = vst.msk [vmem:[#allocation3 + $0x50] sm:$0xff] %vm3237, %v3152
      %3244 = vst.msk [vmem:[#allocation3 + $0x60] sm:$0xff] %vm3237, %v3154
      %3245 = vst.msk [vmem:[#allocation3 + $0x70] sm:$0xff] %vm3237, %v3156
      %3246 = vst.msk [vmem:[#allocation3 + $0x80] sm:$0xff] %vm3237, %v3158
      %3247 = vst.msk [vmem:[#allocation3 + $0x90] sm:$0xff] %vm3237, %v3160
      %3248 = vst.msk [vmem:[#allocation3 + $0xa0] sm:$0xff] %vm3237, %v3162
      %3249 = vst.msk [vmem:[#allocation3 + $0xb0] sm:$0xff] %vm3237, %v3164
      %3250 = vst.msk [vmem:[#allocation3 + $0xc0] sm:$0xff] %vm3237, %v3166
      %3251 = vst.msk [vmem:[#allocation3 + $0xd0] sm:$0xff] %vm3237, %v3168
      %3252 = vst.msk [vmem:[#allocation3 + $0xe0] sm:$0xff] %vm3237, %v3170
      %3253 = vst.msk [vmem:[#allocation3 + $0xf0] sm:$0xff] %vm3237, %v3172
      %3254 = vst.msk [vmem:[#allocation3 + $0x100] sm:$0xff] %vm3237, %v3174
      %3255 = vst.msk [vmem:[#allocation3 + $0x110] sm:$0xff] %vm3237, %v3176
      %3256 = vst.msk [vmem:[#allocation3 + $0x120] sm:$0xff] %vm3237, %v3178
      %3257 = vst.msk [vmem:[#allocation3 + $0x130] sm:$0xff] %vm3237, %v3180
      %3258 = vst.msk [vmem:[#allocation3 + $0x140] sm:$0xff] %vm3237, %v3182
      %3259 = vst.msk [vmem:[#allocation3 + $0x150] sm:$0xff] %vm3237, %v3184
      %3260 = vst.msk [vmem:[#allocation3 + $0x160] sm:$0xff] %vm3237, %v3186
      %3261 = vst.msk [vmem:[#allocation3 + $0x170] sm:$0xff] %vm3237, %v3188
      %3262 = vst.msk [vmem:[#allocation3 + $0x180] sm:$0xff] %vm3237, %v3190
      %3263 = vst.msk [vmem:[#allocation3 + $0x190] sm:$0xff] %vm3237, %v3192
      %3264 = vst.msk [vmem:[#allocation3 + $0x1a0] sm:$0xff] %vm3237, %v3194
      %3265 = vst.msk [vmem:[#allocation3 + $0x1b0] sm:$0xff] %vm3237, %v3196
      %3266 = vst.msk [vmem:[#allocation3 + $0x1c0] sm:$0xff] %vm3237, %v3198
      %3267 = vst.msk [vmem:[#allocation3 + $0x1d0] sm:$0xff] %vm3237, %v3200
      %3268 = vst.msk [vmem:[#allocation3 + $0x1e0] sm:$0xff] %vm3237, %v3202
      %3269 = vst.msk [vmem:[#allocation3 + $0x1f0] sm:$0xff] %vm3237, %v3204
      %v3270 = vld [vmem:[%s323 + $0x2] sm:$0xff]
      %v3271 = vld [vmem:[%s323 + $0xa] sm:$0xff]
      %v3272 = vld [vmem:[%s323 + $0x1a] sm:$0xff]
      %v3273 = vld [vmem:[%s323 + $0x22] sm:$0xff]
      %v3274 = vld [vmem:[%s323 + $0x32] sm:$0xff]
      %v3275 = vld [vmem:[%s323 + $0x3a] sm:$0xff]
      %v3276 = vld [vmem:[%s323 + $0x4a] sm:$0xff]
      %v3277 = vld [vmem:[%s323 + $0x52] sm:$0xff]
      %v3278 = vld [vmem:[%s323 + $0x62] sm:$0xff]
      %v3279 = vld [vmem:[%s323 + $0x6a] sm:$0xff]
      %v3280 = vld [vmem:[%s323 + $0x7a] sm:$0xff]
      %v3281 = vld [vmem:[%s323 + $0x82] sm:$0xff]
      %v3282 = vld [vmem:[%s323 + $0x92] sm:$0xff]
      %v3283 = vld [vmem:[%s323 + $0x9a] sm:$0xff]
      %v3284 = vld [vmem:[%s323 + $0xaa] sm:$0xff]
      %v3285 = vld [vmem:[%s323 + $0xb2] sm:$0xff]
      %v3286 = vld [vmem:[%s323 + $0xc2] sm:$0xff]
      %v3287 = vld [vmem:[%s323 + $0xca] sm:$0xff]
      %v3288 = vld [vmem:[%s323 + $0xda] sm:$0xff]
      %v3289 = vld [vmem:[%s323 + $0xe2] sm:$0xff]
      %v3290 = vld [vmem:[%s323 + $0xf2] sm:$0xff]
      %v3291 = vld [vmem:[%s323 + $0xfa] sm:$0xff]
      %v3292 = vld [vmem:[%s323 + $0x10a] sm:$0xff]
      %v3293 = vld [vmem:[%s323 + $0x112] sm:$0xff]
      %v3294 = vld [vmem:[%s323 + $0x122] sm:$0xff]
      %v3295 = vld [vmem:[%s323 + $0x12a] sm:$0xff]
      %v3296 = vld [vmem:[%s323 + $0x13a] sm:$0xff]
      %v3297 = vld [vmem:[%s323 + $0x142] sm:$0xff]
      %v3298 = vld [vmem:[%s323 + $0x152] sm:$0xff]
      %v3299 = vld [vmem:[%s323 + $0x15a] sm:$0xff]
      %v3300 = vld [vmem:[%s323 + $0x16a] sm:$0xff]
      %v3301 = vld [vmem:[%s323 + $0x172] sm:$0xff]
      %3334 = vrot.lane.b32.xlu0 %v3270, 80
      %v3335 = vpop.permute.xlu0 %3334
      %3336 = vrot.lane.b32.xlu0 %v3271, 80
      %v3337 = vpop.permute.xlu0 %3336
      %3338 = vrot.lane.b32.xlu0 %v3272, 80
      %v3339 = vpop.permute.xlu0 %3338
      %3340 = vrot.lane.b32.xlu0 %v3273, 80
      %v3341 = vpop.permute.xlu0 %3340
      %3342 = vrot.lane.b32.xlu0 %v3274, 80
      %v3343 = vpop.permute.xlu0 %3342
      %3344 = vrot.lane.b32.xlu0 %v3275, 80
      %v3345 = vpop.permute.xlu0 %3344
      %3346 = vrot.lane.b32.xlu0 %v3276, 80
      %v3347 = vpop.permute.xlu0 %3346
      %3348 = vrot.lane.b32.xlu0 %v3277, 80
      %v3349 = vpop.permute.xlu0 %3348
      %3350 = vrot.lane.b32.xlu0 %v3278, 80
      %v3351 = vpop.permute.xlu0 %3350
      %3352 = vrot.lane.b32.xlu0 %v3279, 80
      %v3353 = vpop.permute.xlu0 %3352
      %3354 = vrot.lane.b32.xlu0 %v3280, 80
      %v3355 = vpop.permute.xlu0 %3354
      %3356 = vrot.lane.b32.xlu0 %v3281, 80
      %v3357 = vpop.permute.xlu0 %3356
      %3358 = vrot.lane.b32.xlu0 %v3282, 80
      %v3359 = vpop.permute.xlu0 %3358
      %3360 = vrot.lane.b32.xlu0 %v3283, 80
      %v3361 = vpop.permute.xlu0 %3360
      %3362 = vrot.lane.b32.xlu0 %v3284, 80
      %v3363 = vpop.permute.xlu0 %3362
      %3364 = vrot.lane.b32.xlu0 %v3285, 80
      %v3365 = vpop.permute.xlu0 %3364
      %3366 = vrot.lane.b32.xlu0 %v3286, 80
      %v3367 = vpop.permute.xlu0 %3366
      %3368 = vrot.lane.b32.xlu0 %v3287, 80
      %v3369 = vpop.permute.xlu0 %3368
      %3370 = vrot.lane.b32.xlu0 %v3288, 80
      %v3371 = vpop.permute.xlu0 %3370
      %3372 = vrot.lane.b32.xlu0 %v3289, 80
      %v3373 = vpop.permute.xlu0 %3372
      %3374 = vrot.lane.b32.xlu0 %v3290, 80
      %v3375 = vpop.permute.xlu0 %3374
      %3376 = vrot.lane.b32.xlu0 %v3291, 80
      %v3377 = vpop.permute.xlu0 %3376
      %3378 = vrot.lane.b32.xlu0 %v3292, 80
      %v3379 = vpop.permute.xlu0 %3378
      %3380 = vrot.lane.b32.xlu0 %v3293, 80
      %v3381 = vpop.permute.xlu0 %3380
      %3382 = vrot.lane.b32.xlu0 %v3294, 80
      %v3383 = vpop.permute.xlu0 %3382
      %3384 = vrot.lane.b32.xlu0 %v3295, 80
      %v3385 = vpop.permute.xlu0 %3384
      %3386 = vrot.lane.b32.xlu0 %v3296, 80
      %v3387 = vpop.permute.xlu0 %3386
      %3388 = vrot.lane.b32.xlu0 %v3297, 80
      %v3389 = vpop.permute.xlu0 %3388
      %3390 = vrot.lane.b32.xlu0 %v3298, 80
      %v3391 = vpop.permute.xlu0 %3390
      %3392 = vrot.lane.b32.xlu0 %v3299, 80
      %v3393 = vpop.permute.xlu0 %3392
      %3394 = vrot.lane.b32.xlu0 %v3300, 80
      %v3395 = vpop.permute.xlu0 %3394
      %3396 = vrot.lane.b32.xlu0 %v3301, 80
      %v3397 = vpop.permute.xlu0 %3396
      %vm3430 = vcmask 720544
      %3431 = vst.msk [vmem:[#allocation3] sm:$0xff] %vm3430, %v3335
      %3432 = vst.msk [vmem:[#allocation3 + $0x10] sm:$0xff] %vm3430, %v3337
      %3433 = vst.msk [vmem:[#allocation3 + $0x20] sm:$0xff] %vm3430, %v3339
      %3434 = vst.msk [vmem:[#allocation3 + $0x30] sm:$0xff] %vm3430, %v3341
      %3435 = vst.msk [vmem:[#allocation3 + $0x40] sm:$0xff] %vm3430, %v3343
      %3436 = vst.msk [vmem:[#allocation3 + $0x50] sm:$0xff] %vm3430, %v3345
      %3437 = vst.msk [vmem:[#allocation3 + $0x60] sm:$0xff] %vm3430, %v3347
      %3438 = vst.msk [vmem:[#allocation3 + $0x70] sm:$0xff] %vm3430, %v3349
      %3439 = vst.msk [vmem:[#allocation3 + $0x80] sm:$0xff] %vm3430, %v3351
      %3440 = vst.msk [vmem:[#allocation3 + $0x90] sm:$0xff] %vm3430, %v3353
      %3441 = vst.msk [vmem:[#allocation3 + $0xa0] sm:$0xff] %vm3430, %v3355
      %3442 = vst.msk [vmem:[#allocation3 + $0xb0] sm:$0xff] %vm3430, %v3357
      %3443 = vst.msk [vmem:[#allocation3 + $0xc0] sm:$0xff] %vm3430, %v3359
      %3444 = vst.msk [vmem:[#allocation3 + $0xd0] sm:$0xff] %vm3430, %v3361
      %3445 = vst.msk [vmem:[#allocation3 + $0xe0] sm:$0xff] %vm3430, %v3363
      %3446 = vst.msk [vmem:[#allocation3 + $0xf0] sm:$0xff] %vm3430, %v3365
      %3447 = vst.msk [vmem:[#allocation3 + $0x100] sm:$0xff] %vm3430, %v3367
      %3448 = vst.msk [vmem:[#allocation3 + $0x110] sm:$0xff] %vm3430, %v3369
      %3449 = vst.msk [vmem:[#allocation3 + $0x120] sm:$0xff] %vm3430, %v3371
      %3450 = vst.msk [vmem:[#allocation3 + $0x130] sm:$0xff] %vm3430, %v3373
      %3451 = vst.msk [vmem:[#allocation3 + $0x140] sm:$0xff] %vm3430, %v3375
      %3452 = vst.msk [vmem:[#allocation3 + $0x150] sm:$0xff] %vm3430, %v3377
      %3453 = vst.msk [vmem:[#allocation3 + $0x160] sm:$0xff] %vm3430, %v3379
      %3454 = vst.msk [vmem:[#allocation3 + $0x170] sm:$0xff] %vm3430, %v3381
      %3455 = vst.msk [vmem:[#allocation3 + $0x180] sm:$0xff] %vm3430, %v3383
      %3456 = vst.msk [vmem:[#allocation3 + $0x190] sm:$0xff] %vm3430, %v3385
      %3457 = vst.msk [vmem:[#allocation3 + $0x1a0] sm:$0xff] %vm3430, %v3387
      %3458 = vst.msk [vmem:[#allocation3 + $0x1b0] sm:$0xff] %vm3430, %v3389
      %3459 = vst.msk [vmem:[#allocation3 + $0x1c0] sm:$0xff] %vm3430, %v3391
      %3460 = vst.msk [vmem:[#allocation3 + $0x1d0] sm:$0xff] %vm3430, %v3393
      %3461 = vst.msk [vmem:[#allocation3 + $0x1e0] sm:$0xff] %vm3430, %v3395
      %3462 = vst.msk [vmem:[#allocation3 + $0x1f0] sm:$0xff] %vm3430, %v3397
      %v3463 = vld [vmem:[%s1386] sm:$0xff]
      %v3464 = vld [vmem:[%s1386 + $0x8] sm:$0xff]
      %v3465 = vld [vmem:[%s1386 + $0x18] sm:$0xff]
      %v3466 = vld [vmem:[%s1386 + $0x20] sm:$0xff]
      %v3467 = vld [vmem:[%s1386 + $0x30] sm:$0xff]
      %v3468 = vld [vmem:[%s1386 + $0x38] sm:$0xff]
      %v3469 = vld [vmem:[%s1386 + $0x48] sm:$0xff]
      %v3470 = vld [vmem:[%s1386 + $0x50] sm:$0xff]
      %v3471 = vld [vmem:[%s1386 + $0x60] sm:$0xff]
      %v3472 = vld [vmem:[%s1386 + $0x68] sm:$0xff]
      %v3473 = vld [vmem:[%s1386 + $0x78] sm:$0xff]
      %v3474 = vld [vmem:[%s1386 + $0x80] sm:$0xff]
      %v3475 = vld [vmem:[%s1386 + $0x90] sm:$0xff]
      %v3476 = vld [vmem:[%s1386 + $0x98] sm:$0xff]
      %v3477 = vld [vmem:[%s1386 + $0xa8] sm:$0xff]
      %v3478 = vld [vmem:[%s1386 + $0xb0] sm:$0xff]
      %v3479 = vld [vmem:[%s1386 + $0xc0] sm:$0xff]
      %v3480 = vld [vmem:[%s1386 + $0xc8] sm:$0xff]
      %v3481 = vld [vmem:[%s1386 + $0xd8] sm:$0xff]
      %v3482 = vld [vmem:[%s1386 + $0xe0] sm:$0xff]
      %v3483 = vld [vmem:[%s1386 + $0xf0] sm:$0xff]
      %v3484 = vld [vmem:[%s1386 + $0xf8] sm:$0xff]
      %v3485 = vld [vmem:[%s1386 + $0x108] sm:$0xff]
      %v3486 = vld [vmem:[%s1386 + $0x110] sm:$0xff]
      %v3487 = vld [vmem:[%s1386 + $0x120] sm:$0xff]
      %v3488 = vld [vmem:[%s1386 + $0x128] sm:$0xff]
      %v3489 = vld [vmem:[%s1386 + $0x138] sm:$0xff]
      %v3490 = vld [vmem:[%s1386 + $0x140] sm:$0xff]
      %v3491 = vld [vmem:[%s1386 + $0x150] sm:$0xff]
      %v3492 = vld [vmem:[%s1386 + $0x158] sm:$0xff]
      %v3493 = vld [vmem:[%s1386 + $0x168] sm:$0xff]
      %v3494 = vld [vmem:[%s1386 + $0x170] sm:$0xff]
      %3527 = vrot.lane.b32.xlu0 %v3463, 96
      %v3528 = vpop.permute.xlu0 %3527
      %3529 = vrot.lane.b32.xlu0 %v3464, 96
      %v3530 = vpop.permute.xlu0 %3529
      %3531 = vrot.lane.b32.xlu0 %v3465, 96
      %v3532 = vpop.permute.xlu0 %3531
      %3533 = vrot.lane.b32.xlu0 %v3466, 96
      %v3534 = vpop.permute.xlu0 %3533
      %3535 = vrot.lane.b32.xlu0 %v3467, 96
      %v3536 = vpop.permute.xlu0 %3535
      %3537 = vrot.lane.b32.xlu0 %v3468, 96
      %v3538 = vpop.permute.xlu0 %3537
      %3539 = vrot.lane.b32.xlu0 %v3469, 96
      %v3540 = vpop.permute.xlu0 %3539
      %3541 = vrot.lane.b32.xlu0 %v3470, 96
      %v3542 = vpop.permute.xlu0 %3541
      %3543 = vrot.lane.b32.xlu0 %v3471, 96
      %v3544 = vpop.permute.xlu0 %3543
      %3545 = vrot.lane.b32.xlu0 %v3472, 96
      %v3546 = vpop.permute.xlu0 %3545
      %3547 = vrot.lane.b32.xlu0 %v3473, 96
      %v3548 = vpop.permute.xlu0 %3547
      %3549 = vrot.lane.b32.xlu0 %v3474, 96
      %v3550 = vpop.permute.xlu0 %3549
      %3551 = vrot.lane.b32.xlu0 %v3475, 96
      %v3552 = vpop.permute.xlu0 %3551
      %3553 = vrot.lane.b32.xlu0 %v3476, 96
      %v3554 = vpop.permute.xlu0 %3553
      %3555 = vrot.lane.b32.xlu0 %v3477, 96
      %v3556 = vpop.permute.xlu0 %3555
      %3557 = vrot.lane.b32.xlu0 %v3478, 96
      %v3558 = vpop.permute.xlu0 %3557
      %3559 = vrot.lane.b32.xlu0 %v3479, 96
      %v3560 = vpop.permute.xlu0 %3559
      %3561 = vrot.lane.b32.xlu0 %v3480, 96
      %v3562 = vpop.permute.xlu0 %3561
      %3563 = vrot.lane.b32.xlu0 %v3481, 96
      %v3564 = vpop.permute.xlu0 %3563
      %3565 = vrot.lane.b32.xlu0 %v3482, 96
      %v3566 = vpop.permute.xlu0 %3565
      %3567 = vrot.lane.b32.xlu0 %v3483, 96
      %v3568 = vpop.permute.xlu0 %3567
      %3569 = vrot.lane.b32.xlu0 %v3484, 96
      %v3570 = vpop.permute.xlu0 %3569
      %3571 = vrot.lane.b32.xlu0 %v3485, 96
      %v3572 = vpop.permute.xlu0 %3571
      %3573 = vrot.lane.b32.xlu0 %v3486, 96
      %v3574 = vpop.permute.xlu0 %3573
      %3575 = vrot.lane.b32.xlu0 %v3487, 96
      %v3576 = vpop.permute.xlu0 %3575
      %3577 = vrot.lane.b32.xlu0 %v3488, 96
      %v3578 = vpop.permute.xlu0 %3577
      %3579 = vrot.lane.b32.xlu0 %v3489, 96
      %v3580 = vpop.permute.xlu0 %3579
      %3581 = vrot.lane.b32.xlu0 %v3490, 96
      %v3582 = vpop.permute.xlu0 %3581
      %3583 = vrot.lane.b32.xlu0 %v3491, 96
      %v3584 = vpop.permute.xlu0 %3583
      %3585 = vrot.lane.b32.xlu0 %v3492, 96
      %v3586 = vpop.permute.xlu0 %3585
      %3587 = vrot.lane.b32.xlu0 %v3493, 96
      %v3588 = vpop.permute.xlu0 %3587
      %3589 = vrot.lane.b32.xlu0 %v3494, 96
      %v3590 = vpop.permute.xlu0 %3589
      %vm3623 = vcmask 851744
      %3624 = vst.msk [vmem:[#allocation3] sm:$0xff] %vm3623, %v3528
      %3625 = vst.msk [vmem:[#allocation3 + $0x10] sm:$0xff] %vm3623, %v3530
      %3626 = vst.msk [vmem:[#allocation3 + $0x20] sm:$0xff] %vm3623, %v3532
      %3627 = vst.msk [vmem:[#allocation3 + $0x30] sm:$0xff] %vm3623, %v3534
      %3628 = vst.msk [vmem:[#allocation3 + $0x40] sm:$0xff] %vm3623, %v3536
      %3629 = vst.msk [vmem:[#allocation3 + $0x50] sm:$0xff] %vm3623, %v3538
      %3630 = vst.msk [vmem:[#allocation3 + $0x60] sm:$0xff] %vm3623, %v3540
      %3631 = vst.msk [vmem:[#allocation3 + $0x70] sm:$0xff] %vm3623, %v3542
      %3632 = vst.msk [vmem:[#allocation3 + $0x80] sm:$0xff] %vm3623, %v3544
      %3633 = vst.msk [vmem:[#allocation3 + $0x90] sm:$0xff] %vm3623, %v3546
      %3634 = vst.msk [vmem:[#allocation3 + $0xa0] sm:$0xff] %vm3623, %v3548
      %3635 = vst.msk [vmem:[#allocation3 + $0xb0] sm:$0xff] %vm3623, %v3550
      %3636 = vst.msk [vmem:[#allocation3 + $0xc0] sm:$0xff] %vm3623, %v3552
      %3637 = vst.msk [vmem:[#allocation3 + $0xd0] sm:$0xff] %vm3623, %v3554
      %3638 = vst.msk [vmem:[#allocation3 + $0xe0] sm:$0xff] %vm3623, %v3556
      %3639 = vst.msk [vmem:[#allocation3 + $0xf0] sm:$0xff] %vm3623, %v3558
      %3640 = vst.msk [vmem:[#allocation3 + $0x100] sm:$0xff] %vm3623, %v3560
      %3641 = vst.msk [vmem:[#allocation3 + $0x110] sm:$0xff] %vm3623, %v3562
      %3642 = vst.msk [vmem:[#allocation3 + $0x120] sm:$0xff] %vm3623, %v3564
      %3643 = vst.msk [vmem:[#allocation3 + $0x130] sm:$0xff] %vm3623, %v3566
      %3644 = vst.msk [vmem:[#allocation3 + $0x140] sm:$0xff] %vm3623, %v3568
      %3645 = vst.msk [vmem:[#allocation3 + $0x150] sm:$0xff] %vm3623, %v3570
      %3646 = vst.msk [vmem:[#allocation3 + $0x160] sm:$0xff] %vm3623, %v3572
      %3647 = vst.msk [vmem:[#allocation3 + $0x170] sm:$0xff] %vm3623, %v3574
      %3648 = vst.msk [vmem:[#allocation3 + $0x180] sm:$0xff] %vm3623, %v3576
      %3649 = vst.msk [vmem:[#allocation3 + $0x190] sm:$0xff] %vm3623, %v3578
      %3650 = vst.msk [vmem:[#allocation3 + $0x1a0] sm:$0xff] %vm3623, %v3580
      %3651 = vst.msk [vmem:[#allocation3 + $0x1b0] sm:$0xff] %vm3623, %v3582
      %3652 = vst.msk [vmem:[#allocation3 + $0x1c0] sm:$0xff] %vm3623, %v3584
      %3653 = vst.msk [vmem:[#allocation3 + $0x1d0] sm:$0xff] %vm3623, %v3586
      %3654 = vst.msk [vmem:[#allocation3 + $0x1e0] sm:$0xff] %vm3623, %v3588
      %3655 = vst.msk [vmem:[#allocation3 + $0x1f0] sm:$0xff] %vm3623, %v3590
      %v3656 = vld [vmem:[%s1386 + $0x1] sm:$0xff]
      %v3657 = vld [vmem:[%s1386 + $0x9] sm:$0xff]
      %v3658 = vld [vmem:[%s1386 + $0x19] sm:$0xff]
      %v3659 = vld [vmem:[%s1386 + $0x21] sm:$0xff]
      %v3660 = vld [vmem:[%s1386 + $0x31] sm:$0xff]
      %v3661 = vld [vmem:[%s1386 + $0x39] sm:$0xff]
      %v3662 = vld [vmem:[%s1386 + $0x49] sm:$0xff]
      %v3663 = vld [vmem:[%s1386 + $0x51] sm:$0xff]
      %v3664 = vld [vmem:[%s1386 + $0x61] sm:$0xff]
      %v3665 = vld [vmem:[%s1386 + $0x69] sm:$0xff]
      %v3666 = vld [vmem:[%s1386 + $0x79] sm:$0xff]
      %v3667 = vld [vmem:[%s1386 + $0x81] sm:$0xff]
      %v3668 = vld [vmem:[%s1386 + $0x91] sm:$0xff]
      %v3669 = vld [vmem:[%s1386 + $0x99] sm:$0xff]
      %v3670 = vld [vmem:[%s1386 + $0xa9] sm:$0xff]
      %v3671 = vld [vmem:[%s1386 + $0xb1] sm:$0xff]
      %v3672 = vld [vmem:[%s1386 + $0xc1] sm:$0xff]
      %v3673 = vld [vmem:[%s1386 + $0xc9] sm:$0xff]
      %v3674 = vld [vmem:[%s1386 + $0xd9] sm:$0xff]
      %v3675 = vld [vmem:[%s1386 + $0xe1] sm:$0xff]
      %v3676 = vld [vmem:[%s1386 + $0xf1] sm:$0xff]
      %v3677 = vld [vmem:[%s1386 + $0xf9] sm:$0xff]
      %v3678 = vld [vmem:[%s1386 + $0x109] sm:$0xff]
      %v3679 = vld [vmem:[%s1386 + $0x111] sm:$0xff]
      %v3680 = vld [vmem:[%s1386 + $0x121] sm:$0xff]
      %v3681 = vld [vmem:[%s1386 + $0x129] sm:$0xff]
      %v3682 = vld [vmem:[%s1386 + $0x139] sm:$0xff]
      %v3683 = vld [vmem:[%s1386 + $0x141] sm:$0xff]
      %v3684 = vld [vmem:[%s1386 + $0x151] sm:$0xff]
      %v3685 = vld [vmem:[%s1386 + $0x159] sm:$0xff]
      %v3686 = vld [vmem:[%s1386 + $0x169] sm:$0xff]
      %v3687 = vld [vmem:[%s1386 + $0x171] sm:$0xff]
      %3720 = vrot.lane.b32.xlu0 %v3656, 112
      %v3721 = vpop.permute.xlu0 %3720
      %3722 = vrot.lane.b32.xlu0 %v3657, 112
      %v3723 = vpop.permute.xlu0 %3722
      %3724 = vrot.lane.b32.xlu0 %v3658, 112
      %v3725 = vpop.permute.xlu0 %3724
      %3726 = vrot.lane.b32.xlu0 %v3659, 112
      %v3727 = vpop.permute.xlu0 %3726
      %3728 = vrot.lane.b32.xlu0 %v3660, 112
      %v3729 = vpop.permute.xlu0 %3728
      %3730 = vrot.lane.b32.xlu0 %v3661, 112
      %v3731 = vpop.permute.xlu0 %3730
      %3732 = vrot.lane.b32.xlu0 %v3662, 112
      %v3733 = vpop.permute.xlu0 %3732
      %3734 = vrot.lane.b32.xlu0 %v3663, 112
      %v3735 = vpop.permute.xlu0 %3734
      %3736 = vrot.lane.b32.xlu0 %v3664, 112
      %v3737 = vpop.permute.xlu0 %3736
      %3738 = vrot.lane.b32.xlu0 %v3665, 112
      %v3739 = vpop.permute.xlu0 %3738
      %3740 = vrot.lane.b32.xlu0 %v3666, 112
      %v3741 = vpop.permute.xlu0 %3740
      %3742 = vrot.lane.b32.xlu0 %v3667, 112
      %v3743 = vpop.permute.xlu0 %3742
      %3744 = vrot.lane.b32.xlu0 %v3668, 112
      %v3745 = vpop.permute.xlu0 %3744
      %3746 = vrot.lane.b32.xlu0 %v3669, 112
      %v3747 = vpop.permute.xlu0 %3746
      %3748 = vrot.lane.b32.xlu0 %v3670, 112
      %v3749 = vpop.permute.xlu0 %3748
      %3750 = vrot.lane.b32.xlu0 %v3671, 112
      %v3751 = vpop.permute.xlu0 %3750
      %3752 = vrot.lane.b32.xlu0 %v3672, 112
      %v3753 = vpop.permute.xlu0 %3752
      %3754 = vrot.lane.b32.xlu0 %v3673, 112
      %v3755 = vpop.permute.xlu0 %3754
      %3756 = vrot.lane.b32.xlu0 %v3674, 112
      %v3757 = vpop.permute.xlu0 %3756
      %3758 = vrot.lane.b32.xlu0 %v3675, 112
      %v3759 = vpop.permute.xlu0 %3758
      %3760 = vrot.lane.b32.xlu0 %v3676, 112
      %v3761 = vpop.permute.xlu0 %3760
      %3762 = vrot.lane.b32.xlu0 %v3677, 112
      %v3763 = vpop.permute.xlu0 %3762
      %3764 = vrot.lane.b32.xlu0 %v3678, 112
      %v3765 = vpop.permute.xlu0 %3764
      %3766 = vrot.lane.b32.xlu0 %v3679, 112
      %v3767 = vpop.permute.xlu0 %3766
      %3768 = vrot.lane.b32.xlu0 %v3680, 112
      %v3769 = vpop.permute.xlu0 %3768
      %3770 = vrot.lane.b32.xlu0 %v3681, 112
      %v3771 = vpop.permute.xlu0 %3770
      %3772 = vrot.lane.b32.xlu0 %v3682, 112
      %v3773 = vpop.permute.xlu0 %3772
      %3774 = vrot.lane.b32.xlu0 %v3683, 112
      %v3775 = vpop.permute.xlu0 %3774
      %3776 = vrot.lane.b32.xlu0 %v3684, 112
      %v3777 = vpop.permute.xlu0 %3776
      %3778 = vrot.lane.b32.xlu0 %v3685, 112
      %v3779 = vpop.permute.xlu0 %3778
      %3780 = vrot.lane.b32.xlu0 %v3686, 112
      %v3781 = vpop.permute.xlu0 %3780
      %3782 = vrot.lane.b32.xlu0 %v3687, 112
      %v3783 = vpop.permute.xlu0 %3782
      %vm3816 = vcmask 982944
      %3817 = vst.msk [vmem:[#allocation3] sm:$0xff] %vm3816, %v3721
      %3818 = vst.msk [vmem:[#allocation3 + $0x10] sm:$0xff] %vm3816, %v3723
      %3819 = vst.msk [vmem:[#allocation3 + $0x20] sm:$0xff] %vm3816, %v3725
      %3820 = vst.msk [vmem:[#allocation3 + $0x30] sm:$0xff] %vm3816, %v3727
      %3821 = vst.msk [vmem:[#allocation3 + $0x40] sm:$0xff] %vm3816, %v3729
      %3822 = vst.msk [vmem:[#allocation3 + $0x50] sm:$0xff] %vm3816, %v3731
      %3823 = vst.msk [vmem:[#allocation3 + $0x60] sm:$0xff] %vm3816, %v3733
      %3824 = vst.msk [vmem:[#allocation3 + $0x70] sm:$0xff] %vm3816, %v3735
      %3825 = vst.msk [vmem:[#allocation3 + $0x80] sm:$0xff] %vm3816, %v3737
      %3826 = vst.msk [vmem:[#allocation3 + $0x90] sm:$0xff] %vm3816, %v3739
      %3827 = vst.msk [vmem:[#allocation3 + $0xa0] sm:$0xff] %vm3816, %v3741
      %3828 = vst.msk [vmem:[#allocation3 + $0xb0] sm:$0xff] %vm3816, %v3743
      %3829 = vst.msk [vmem:[#allocation3 + $0xc0] sm:$0xff] %vm3816, %v3745
      %3830 = vst.msk [vmem:[#allocation3 + $0xd0] sm:$0xff] %vm3816, %v3747
      %3831 = vst.msk [vmem:[#allocation3 + $0xe0] sm:$0xff] %vm3816, %v3749
      %3832 = vst.msk [vmem:[#allocation3 + $0xf0] sm:$0xff] %vm3816, %v3751
      %3833 = vst.msk [vmem:[#allocation3 + $0x100] sm:$0xff] %vm3816, %v3753
      %3834 = vst.msk [vmem:[#allocation3 + $0x110] sm:$0xff] %vm3816, %v3755
      %3835 = vst.msk [vmem:[#allocation3 + $0x120] sm:$0xff] %vm3816, %v3757
      %3836 = vst.msk [vmem:[#allocation3 + $0x130] sm:$0xff] %vm3816, %v3759
      %3837 = vst.msk [vmem:[#allocation3 + $0x140] sm:$0xff] %vm3816, %v3761
      %3838 = vst.msk [vmem:[#allocation3 + $0x150] sm:$0xff] %vm3816, %v3763
      %3839 = vst.msk [vmem:[#allocation3 + $0x160] sm:$0xff] %vm3816, %v3765
      %3840 = vst.msk [vmem:[#allocation3 + $0x170] sm:$0xff] %vm3816, %v3767
      %3841 = vst.msk [vmem:[#allocation3 + $0x180] sm:$0xff] %vm3816, %v3769
      %3842 = vst.msk [vmem:[#allocation3 + $0x190] sm:$0xff] %vm3816, %v3771
      %3843 = vst.msk [vmem:[#allocation3 + $0x1a0] sm:$0xff] %vm3816, %v3773
      %3844 = vst.msk [vmem:[#allocation3 + $0x1b0] sm:$0xff] %vm3816, %v3775
      %3845 = vst.msk [vmem:[#allocation3 + $0x1c0] sm:$0xff] %vm3816, %v3777
      %3846 = vst.msk [vmem:[#allocation3 + $0x1d0] sm:$0xff] %vm3816, %v3779
      %3847 = vst.msk [vmem:[#allocation3 + $0x1e0] sm:$0xff] %vm3816, %v3781
      %3848 = vst.msk [vmem:[#allocation3 + $0x1f0] sm:$0xff] %vm3816, %v3783
      %v3849 = vld [vmem:[%s1386 + $0x2] sm:$0xff]
      %v3850 = vld [vmem:[%s1386 + $0xa] sm:$0xff]
      %v3851 = vld [vmem:[%s1386 + $0x1a] sm:$0xff]
      %v3852 = vld [vmem:[%s1386 + $0x22] sm:$0xff]
      %v3853 = vld [vmem:[%s1386 + $0x32] sm:$0xff]
      %v3854 = vld [vmem:[%s1386 + $0x3a] sm:$0xff]
      %v3855 = vld [vmem:[%s1386 + $0x4a] sm:$0xff]
      %v3856 = vld [vmem:[%s1386 + $0x52] sm:$0xff]
      %v3857 = vld [vmem:[%s1386 + $0x62] sm:$0xff]
      %v3858 = vld [vmem:[%s1386 + $0x6a] sm:$0xff]
      %v3859 = vld [vmem:[%s1386 + $0x7a] sm:$0xff]
      %v3860 = vld [vmem:[%s1386 + $0x82] sm:$0xff]
      %v3861 = vld [vmem:[%s1386 + $0x92] sm:$0xff]
      %v3862 = vld [vmem:[%s1386 + $0x9a] sm:$0xff]
      %v3863 = vld [vmem:[%s1386 + $0xaa] sm:$0xff]
      %v3864 = vld [vmem:[%s1386 + $0xb2] sm:$0xff]
      %v3865 = vld [vmem:[%s1386 + $0xc2] sm:$0xff]
      %v3866 = vld [vmem:[%s1386 + $0xca] sm:$0xff]
      %v3867 = vld [vmem:[%s1386 + $0xda] sm:$0xff]
      %v3868 = vld [vmem:[%s1386 + $0xe2] sm:$0xff]
      %v3869 = vld [vmem:[%s1386 + $0xf2] sm:$0xff]
      %v3870 = vld [vmem:[%s1386 + $0xfa] sm:$0xff]
      %v3871 = vld [vmem:[%s1386 + $0x10a] sm:$0xff]
      %v3872 = vld [vmem:[%s1386 + $0x112] sm:$0xff]
      %v3873 = vld [vmem:[%s1386 + $0x122] sm:$0xff]
      %v3874 = vld [vmem:[%s1386 + $0x12a] sm:$0xff]
      %v3875 = vld [vmem:[%s1386 + $0x13a] sm:$0xff]
      %v3876 = vld [vmem:[%s1386 + $0x142] sm:$0xff]
      %v3877 = vld [vmem:[%s1386 + $0x152] sm:$0xff]
      %v3878 = vld [vmem:[%s1386 + $0x15a] sm:$0xff]
      %v3879 = vld [vmem:[%s1386 + $0x16a] sm:$0xff]
      %v3880 = vld [vmem:[%s1386 + $0x172] sm:$0xff]
      %3881 = vst.msk [vmem:[#allocation3 + $0x8] sm:$0xff] %vm2401, %v3849
      %3882 = vst.msk [vmem:[#allocation3 + $0x18] sm:$0xff] %vm2401, %v3850
      %3883 = vst.msk [vmem:[#allocation3 + $0x28] sm:$0xff] %vm2401, %v3851
      %3884 = vst.msk [vmem:[#allocation3 + $0x38] sm:$0xff] %vm2401, %v3852
      %3885 = vst.msk [vmem:[#allocation3 + $0x48] sm:$0xff] %vm2401, %v3853
      %3886 = vst.msk [vmem:[#allocation3 + $0x58] sm:$0xff] %vm2401, %v3854
      %3887 = vst.msk [vmem:[#allocation3 + $0x68] sm:$0xff] %vm2401, %v3855
      %3888 = vst.msk [vmem:[#allocation3 + $0x78] sm:$0xff] %vm2401, %v3856
      %3889 = vst.msk [vmem:[#allocation3 + $0x88] sm:$0xff] %vm2401, %v3857
      %3890 = vst.msk [vmem:[#allocation3 + $0x98] sm:$0xff] %vm2401, %v3858
      %3891 = vst.msk [vmem:[#allocation3 + $0xa8] sm:$0xff] %vm2401, %v3859
      %3892 = vst.msk [vmem:[#allocation3 + $0xb8] sm:$0xff] %vm2401, %v3860
      %3893 = vst.msk [vmem:[#allocation3 + $0xc8] sm:$0xff] %vm2401, %v3861
      %3894 = vst.msk [vmem:[#allocation3 + $0xd8] sm:$0xff] %vm2401, %v3862
      %3895 = vst.msk [vmem:[#allocation3 + $0xe8] sm:$0xff] %vm2401, %v3863
      %3896 = vst.msk [vmem:[#allocation3 + $0xf8] sm:$0xff] %vm2401, %v3864
      %3897 = vst.msk [vmem:[#allocation3 + $0x108] sm:$0xff] %vm2401, %v3865
      %3898 = vst.msk [vmem:[#allocation3 + $0x118] sm:$0xff] %vm2401, %v3866
      %3899 = vst.msk [vmem:[#allocation3 + $0x128] sm:$0xff] %vm2401, %v3867
      %3900 = vst.msk [vmem:[#allocation3 + $0x138] sm:$0xff] %vm2401, %v3868
      %3901 = vst.msk [vmem:[#allocation3 + $0x148] sm:$0xff] %vm2401, %v3869
      %3902 = vst.msk [vmem:[#allocation3 + $0x158] sm:$0xff] %vm2401, %v3870
      %3903 = vst.msk [vmem:[#allocation3 + $0x168] sm:$0xff] %vm2401, %v3871
      %3904 = vst.msk [vmem:[#allocation3 + $0x178] sm:$0xff] %vm2401, %v3872
      %3905 = vst.msk [vmem:[#allocation3 + $0x188] sm:$0xff] %vm2401, %v3873
      %3906 = vst.msk [vmem:[#allocation3 + $0x198] sm:$0xff] %vm2401, %v3874
      %3907 = vst.msk [vmem:[#allocation3 + $0x1a8] sm:$0xff] %vm2401, %v3875
      %3908 = vst.msk [vmem:[#allocation3 + $0x1b8] sm:$0xff] %vm2401, %v3876
      %3909 = vst.msk [vmem:[#allocation3 + $0x1c8] sm:$0xff] %vm2401, %v3877
      %3910 = vst.msk [vmem:[#allocation3 + $0x1d8] sm:$0xff] %vm2401, %v3878
      %3911 = vst.msk [vmem:[#allocation3 + $0x1e8] sm:$0xff] %vm2401, %v3879
      %3912 = vst.msk [vmem:[#allocation3 + $0x1f8] sm:$0xff] %vm2401, %v3880
      %s3913 = scalar_lea.vmem %s1, 144
      %v3914 = vld [vmem:[%s3913] sm:$0xff]
      %v3915 = vld [vmem:[%s3913 + $0x8] sm:$0xff]
      %v3916 = vld [vmem:[%s3913 + $0x10] sm:$0xff]
      %v3917 = vld [vmem:[%s3913 + $0x18] sm:$0xff]
      %v3918 = vld [vmem:[%s3913 + $0x20] sm:$0xff]
      %v3919 = vld [vmem:[%s3913 + $0x28] sm:$0xff]
      %v3920 = vld [vmem:[%s3913 + $0x30] sm:$0xff]
      %v3921 = vld [vmem:[%s3913 + $0x38] sm:$0xff]
      %v3922 = vld [vmem:[%s3913 + $0x40] sm:$0xff]
      %v3923 = vld [vmem:[%s3913 + $0x48] sm:$0xff]
      %v3924 = vld [vmem:[%s3913 + $0x50] sm:$0xff]
      %v3925 = vld [vmem:[%s3913 + $0x58] sm:$0xff]
      %v3926 = vld [vmem:[%s3913 + $0x60] sm:$0xff]
      %v3927 = vld [vmem:[%s3913 + $0x68] sm:$0xff]
      %v3928 = vld [vmem:[%s3913 + $0x70] sm:$0xff]
      %v3929 = vld [vmem:[%s3913 + $0x78] sm:$0xff]
      %v3930 = vld [vmem:[%s3913 + $0x80] sm:$0xff]
      %v3931 = vld [vmem:[%s3913 + $0x88] sm:$0xff]
      %v3932 = vld [vmem:[#allocation3] sm:$0xff]
      %v3933 = vld [vmem:[#allocation3 + $0x8] sm:$0xff]
      %v3934 = vld [vmem:[#allocation3 + $0x10] sm:$0xff]
      %v3935 = vld [vmem:[#allocation3 + $0x18] sm:$0xff]
      %v3936 = vld [vmem:[#allocation3 + $0x20] sm:$0xff]
      %v3937 = vld [vmem:[#allocation3 + $0x28] sm:$0xff]
      %v3938 = vld [vmem:[#allocation3 + $0x30] sm:$0xff]
      %v3939 = vld [vmem:[#allocation3 + $0x38] sm:$0xff]
      %v3940 = vld [vmem:[#allocation3 + $0x40] sm:$0xff]
      %v3941 = vld [vmem:[#allocation3 + $0x48] sm:$0xff]
      %v3942 = vld [vmem:[#allocation3 + $0x50] sm:$0xff]
      %v3943 = vld [vmem:[#allocation3 + $0x58] sm:$0xff]
      %v3944 = vld [vmem:[#allocation3 + $0x60] sm:$0xff]
      %v3945 = vld [vmem:[#allocation3 + $0x68] sm:$0xff]
      %v3946 = vld [vmem:[#allocation3 + $0x70] sm:$0xff]
      %v3947 = vld [vmem:[#allocation3 + $0x78] sm:$0xff]
      %v3948 = vld [vmem:[#allocation3 + $0x80] sm:$0xff]
      %v3949 = vld [vmem:[#allocation3 + $0x88] sm:$0xff]
      %v3950 = vld [vmem:[#allocation3 + $0x90] sm:$0xff]
      %v3951 = vld [vmem:[#allocation3 + $0x98] sm:$0xff]
      %v3952 = vld [vmem:[#allocation3 + $0xa0] sm:$0xff]
      %v3953 = vld [vmem:[#allocation3 + $0xa8] sm:$0xff]
      %v3954 = vld [vmem:[#allocation3 + $0xb0] sm:$0xff]
      %v3955 = vld [vmem:[#allocation3 + $0xb8] sm:$0xff]
      %v3956 = vld [vmem:[#allocation3 + $0xc0] sm:$0xff]
      %v3957 = vld [vmem:[#allocation3 + $0xc8] sm:$0xff]
      %v3958 = vld [vmem:[#allocation3 + $0xd0] sm:$0xff]
      %v3959 = vld [vmem:[#allocation3 + $0xd8] sm:$0xff]
      %v3960 = vld [vmem:[#allocation3 + $0xe0] sm:$0xff]
      %v3961 = vld [vmem:[#allocation3 + $0xe8] sm:$0xff]
      %v3962 = vld [vmem:[#allocation3 + $0xf0] sm:$0xff]
      %v3963 = vld [vmem:[#allocation3 + $0xf8] sm:$0xff]
      %v3964 = vld [vmem:[#allocation3 + $0x100] sm:$0xff]
      %v3965 = vld [vmem:[#allocation3 + $0x108] sm:$0xff]
      %v3966 = vld [vmem:[#allocation3 + $0x110] sm:$0xff]
      %v3967 = vld [vmem:[#allocation3 + $0x118] sm:$0xff]
      %v3968 = vld [vmem:[#allocation3 + $0x120] sm:$0xff]
      %v3969 = vld [vmem:[#allocation3 + $0x128] sm:$0xff]
      %v3970 = vld [vmem:[#allocation3 + $0x130] sm:$0xff]
      %v3971 = vld [vmem:[#allocation3 + $0x138] sm:$0xff]
      %v3972 = vld [vmem:[#allocation3 + $0x140] sm:$0xff]
      %v3973 = vld [vmem:[#allocation3 + $0x148] sm:$0xff]
      %v3974 = vld [vmem:[#allocation3 + $0x150] sm:$0xff]
      %v3975 = vld [vmem:[#allocation3 + $0x158] sm:$0xff]
      %v3976 = vld [vmem:[#allocation3 + $0x160] sm:$0xff]
      %v3977 = vld [vmem:[#allocation3 + $0x168] sm:$0xff]
      %v3978 = vld [vmem:[#allocation3 + $0x170] sm:$0xff]
      %v3979 = vld [vmem:[#allocation3 + $0x178] sm:$0xff]
      %v3980 = vld [vmem:[#allocation3 + $0x180] sm:$0xff]
      %v3981 = vld [vmem:[#allocation3 + $0x188] sm:$0xff]
      %v3982 = vld [vmem:[#allocation3 + $0x190] sm:$0xff]
      %v3983 = vld [vmem:[#allocation3 + $0x198] sm:$0xff]
      %v3984 = vld [vmem:[#allocation3 + $0x1a0] sm:$0xff]
      %v3985 = vld [vmem:[#allocation3 + $0x1a8] sm:$0xff]
      %v3986 = vld [vmem:[#allocation3 + $0x1b0] sm:$0xff]
      %v3987 = vld [vmem:[#allocation3 + $0x1b8] sm:$0xff]
      %v3988 = vld [vmem:[#allocation3 + $0x1c0] sm:$0xff]
      %v3989 = vld [vmem:[#allocation3 + $0x1c8] sm:$0xff]
      %v3990 = vld [vmem:[#allocation3 + $0x1d0] sm:$0xff]
      %v3991 = vld [vmem:[#allocation3 + $0x1d8] sm:$0xff]
      %v3992 = vld [vmem:[#allocation3 + $0x1e0] sm:$0xff]
      %v3993 = vld [vmem:[#allocation3 + $0x1e8] sm:$0xff]
      %v3994 = vld [vmem:[#allocation3 + $0x1f0] sm:$0xff]
      %v3995 = vld [vmem:[#allocation3 + $0x1f8] sm:$0xff]
      %v3997 = vsel %vm171, %v3933, 0
      %v4000 = vsel %vm171, %v3935, 0
      %v4003 = vsel %vm171, %v3937, 0
      %v4006 = vsel %vm171, %v3939, 0
      %v4009 = vsel %vm171, %v3941, 0
      %v4012 = vsel %vm171, %v3943, 0
      %v4015 = vsel %vm171, %v3945, 0
      %v4018 = vsel %vm171, %v3947, 0
      %v4021 = vsel %vm171, %v3949, 0
      %v4024 = vsel %vm171, %v3951, 0
      %v4027 = vsel %vm171, %v3953, 0
      %v4030 = vsel %vm171, %v3955, 0
      %v4033 = vsel %vm171, %v3957, 0
      %v4036 = vsel %vm171, %v3959, 0
      %v4039 = vsel %vm171, %v3961, 0
      %v4042 = vsel %vm171, %v3963, 0
      %v4045 = vsel %vm171, %v3965, 0
      %v4048 = vsel %vm171, %v3967, 0
      %v4051 = vsel %vm171, %v3969, 0
      %v4054 = vsel %vm171, %v3971, 0
      %v4057 = vsel %vm171, %v3973, 0
      %v4060 = vsel %vm171, %v3975, 0
      %v4063 = vsel %vm171, %v3977, 0
      %v4066 = vsel %vm171, %v3979, 0
      %v4069 = vsel %vm171, %v3981, 0
      %v4072 = vsel %vm171, %v3983, 0
      %v4075 = vsel %vm171, %v3985, 0
      %v4078 = vsel %vm171, %v3987, 0
      %v4081 = vsel %vm171, %v3989, 0
      %v4084 = vsel %vm171, %v3991, 0
      %v4087 = vsel %vm171, %v3993, 0
      %v4090 = vsel %vm171, %v3995, 0
      %4092 = vmatpush.msra.mxu0 %v3929
      %4093 = vmatpush.msra.mxu0 %v3928
      %4094 = vmatpush.msra.mxu0 %v3927
      %4095 = vmatpush.msra.mxu0 %v3926
      %4096 = vmatpush.msra.mxu0 %v3925
      %4097 = vmatpush.msra.mxu0 %v3924
      %4098 = vmatpush.msra.mxu0 %v3923
      %4099 = vmatpush.msra.mxu0 %v3922
      %4100 = vmatpush.msra.mxu0 %v3921
      %4101 = vmatpush.msra.mxu0 %v3920
      %4102 = vmatpush.msra.mxu0 %v3919
      %4103 = vmatpush.msra.mxu0 %v3918
      %4104 = vmatpush.msra.mxu0 %v3917
      %4105 = vmatpush.msra.mxu0 %v3916
      %4106 = vmatpush.msra.mxu0 %v3915
      %4107 = vmatpush.msra.mxu0 %v3914
      %4108 = vmatmul.f32.gmra.mxu0 %v3932
      %v4109 = vpop.f32.mrf.mxu0
      %v4110 = vadd.f32 0.0, %v4109
      %4111 = vmatmul.f32.gmra.mxu0 %v3934
      %v4112 = vpop.f32.mrf.mxu0
      %v4113 = vadd.f32 0.0, %v4112
      %4114 = vmatmul.f32.gmra.mxu0 %v3936
      %v4115 = vpop.f32.mrf.mxu0
      %v4116 = vadd.f32 0.0, %v4115
      %4117 = vmatmul.f32.gmra.mxu0 %v3938
      %v4118 = vpop.f32.mrf.mxu0
      %v4119 = vadd.f32 0.0, %v4118
      %4120 = vmatmul.f32.gmra.mxu0 %v3940
      %v4121 = vpop.f32.mrf.mxu0
      %v4122 = vadd.f32 0.0, %v4121
      %4123 = vmatmul.f32.gmra.mxu0 %v3942
      %v4124 = vpop.f32.mrf.mxu0
      %v4125 = vadd.f32 0.0, %v4124
      %4126 = vmatmul.f32.gmra.mxu0 %v3944
      %v4127 = vpop.f32.mrf.mxu0
      %v4128 = vadd.f32 0.0, %v4127
      %4129 = vmatmul.f32.gmra.mxu0 %v3946
      %v4130 = vpop.f32.mrf.mxu0
      %v4131 = vadd.f32 0.0, %v4130
      %4132 = vmatmul.f32.gmra.mxu0 %v3948
      %v4133 = vpop.f32.mrf.mxu0
      %v4134 = vadd.f32 0.0, %v4133
      %4135 = vmatmul.f32.gmra.mxu0 %v3950
      %v4136 = vpop.f32.mrf.mxu0
      %v4137 = vadd.f32 0.0, %v4136
      %4138 = vmatmul.f32.gmra.mxu0 %v3952
      %v4139 = vpop.f32.mrf.mxu0
      %v4140 = vadd.f32 0.0, %v4139
      %4141 = vmatmul.f32.gmra.mxu0 %v3954
      %v4142 = vpop.f32.mrf.mxu0
      %v4143 = vadd.f32 0.0, %v4142
      %4144 = vmatmul.f32.gmra.mxu0 %v3956
      %v4145 = vpop.f32.mrf.mxu0
      %v4146 = vadd.f32 0.0, %v4145
      %4147 = vmatmul.f32.gmra.mxu0 %v3958
      %v4148 = vpop.f32.mrf.mxu0
      %v4149 = vadd.f32 0.0, %v4148
      %4150 = vmatmul.f32.gmra.mxu0 %v3960
      %v4151 = vpop.f32.mrf.mxu0
      %v4152 = vadd.f32 0.0, %v4151
      %4153 = vmatmul.f32.gmra.mxu0 %v3962
      %v4154 = vpop.f32.mrf.mxu0
      %v4155 = vadd.f32 0.0, %v4154
      %4156 = vmatmul.f32.gmra.mxu0 %v3964
      %v4157 = vpop.f32.mrf.mxu0
      %v4158 = vadd.f32 0.0, %v4157
      %4159 = vmatmul.f32.gmra.mxu0 %v3966
      %v4160 = vpop.f32.mrf.mxu0
      %v4161 = vadd.f32 0.0, %v4160
      %4162 = vmatmul.f32.gmra.mxu0 %v3968
      %v4163 = vpop.f32.mrf.mxu0
      %v4164 = vadd.f32 0.0, %v4163
      %4165 = vmatmul.f32.gmra.mxu0 %v3970
      %v4166 = vpop.f32.mrf.mxu0
      %v4167 = vadd.f32 0.0, %v4166
      %4168 = vmatmul.f32.gmra.mxu0 %v3972
      %v4169 = vpop.f32.mrf.mxu0
      %v4170 = vadd.f32 0.0, %v4169
      %4171 = vmatmul.f32.gmra.mxu0 %v3974
      %v4172 = vpop.f32.mrf.mxu0
      %v4173 = vadd.f32 0.0, %v4172
      %4174 = vmatmul.f32.gmra.mxu0 %v3976
      %v4175 = vpop.f32.mrf.mxu0
      %v4176 = vadd.f32 0.0, %v4175
      %4177 = vmatmul.f32.gmra.mxu0 %v3978
      %v4178 = vpop.f32.mrf.mxu0
      %v4179 = vadd.f32 0.0, %v4178
      %4180 = vmatmul.f32.gmra.mxu0 %v3980
      %v4181 = vpop.f32.mrf.mxu0
      %v4182 = vadd.f32 0.0, %v4181
      %4183 = vmatmul.f32.gmra.mxu0 %v3982
      %v4184 = vpop.f32.mrf.mxu0
      %v4185 = vadd.f32 0.0, %v4184
      %4186 = vmatmul.f32.gmra.mxu0 %v3984
      %v4187 = vpop.f32.mrf.mxu0
      %v4188 = vadd.f32 0.0, %v4187
      %4189 = vmatmul.f32.gmra.mxu0 %v3986
      %v4190 = vpop.f32.mrf.mxu0
      %v4191 = vadd.f32 0.0, %v4190
      %4192 = vmatmul.f32.gmra.mxu0 %v3988
      %v4193 = vpop.f32.mrf.mxu0
      %v4194 = vadd.f32 0.0, %v4193
      %4195 = vmatmul.f32.gmra.mxu0 %v3990
      %v4196 = vpop.f32.mrf.mxu0
      %v4197 = vadd.f32 0.0, %v4196
      %4198 = vmatmul.f32.gmra.mxu0 %v3992
      %v4199 = vpop.f32.mrf.mxu0
      %v4200 = vadd.f32 0.0, %v4199
      %4201 = vmatmul.f32.gmra.mxu0 %v3994
      %v4202 = vpop.f32.mrf.mxu0
      %v4203 = vadd.f32 0.0, %v4202
      %4204 = vdwg.mxu0
      %4205 = vmatpush.msra.mxu0 0.0
      %4206 = vmatpush.msra.mxu0 0.0
      %4207 = vmatpush.msra.mxu0 0.0
      %4208 = vmatpush.msra.mxu0 0.0
      %4209 = vmatpush.msra.mxu0 0.0
      %4210 = vmatpush.msra.mxu0 0.0
      %4211 = vmatpush.msra.mxu0 0.0
      %4212 = vmatpush.msra.mxu0 0.0
      %4213 = vmatpush.msra.mxu0 0.0
      %4214 = vmatpush.msra.mxu0 0.0
      %4215 = vmatpush.msra.mxu0 0.0
      %4216 = vmatpush.msra.mxu0 0.0
      %4217 = vmatpush.msra.mxu0 0.0
      %4218 = vmatpush.msra.mxu0 0.0
      %4219 = vmatpush.msra.mxu0 %v3931
      %4220 = vmatpush.msra.mxu0 %v3930
      %4221 = vmatmul.f32.gmra.mxu0 %v3997
      %v4222 = vpop.f32.mrf.mxu0
      %v4223 = vadd.f32 %v4110, %v4222
      %4224 = vmatmul.f32.gmra.mxu0 %v4000
      %v4225 = vpop.f32.mrf.mxu0
      %v4226 = vadd.f32 %v4113, %v4225
      %4227 = vmatmul.f32.gmra.mxu0 %v4003
      %v4228 = vpop.f32.mrf.mxu0
      %v4229 = vadd.f32 %v4116, %v4228
      %4230 = vmatmul.f32.gmra.mxu0 %v4006
      %v4231 = vpop.f32.mrf.mxu0
      %v4232 = vadd.f32 %v4119, %v4231
      %4233 = vmatmul.f32.gmra.mxu0 %v4009
      %v4234 = vpop.f32.mrf.mxu0
      %v4235 = vadd.f32 %v4122, %v4234
      %4236 = vmatmul.f32.gmra.mxu0 %v4012
      %v4237 = vpop.f32.mrf.mxu0
      %v4238 = vadd.f32 %v4125, %v4237
      %4239 = vmatmul.f32.gmra.mxu0 %v4015
      %v4240 = vpop.f32.mrf.mxu0
      %v4241 = vadd.f32 %v4128, %v4240
      %4242 = vmatmul.f32.gmra.mxu0 %v4018
      %v4243 = vpop.f32.mrf.mxu0
      %v4244 = vadd.f32 %v4131, %v4243
      %4245 = vmatmul.f32.gmra.mxu0 %v4021
      %v4246 = vpop.f32.mrf.mxu0
      %v4247 = vadd.f32 %v4134, %v4246
      %4248 = vmatmul.f32.gmra.mxu0 %v4024
      %v4249 = vpop.f32.mrf.mxu0
      %v4250 = vadd.f32 %v4137, %v4249
      %4251 = vmatmul.f32.gmra.mxu0 %v4027
      %v4252 = vpop.f32.mrf.mxu0
      %v4253 = vadd.f32 %v4140, %v4252
      %4254 = vmatmul.f32.gmra.mxu0 %v4030
      %v4255 = vpop.f32.mrf.mxu0
      %v4256 = vadd.f32 %v4143, %v4255
      %4257 = vmatmul.f32.gmra.mxu0 %v4033
      %v4258 = vpop.f32.mrf.mxu0
      %v4259 = vadd.f32 %v4146, %v4258
      %4260 = vmatmul.f32.gmra.mxu0 %v4036
      %v4261 = vpop.f32.mrf.mxu0
      %v4262 = vadd.f32 %v4149, %v4261
      %4263 = vmatmul.f32.gmra.mxu0 %v4039
      %v4264 = vpop.f32.mrf.mxu0
      %v4265 = vadd.f32 %v4152, %v4264
      %4266 = vmatmul.f32.gmra.mxu0 %v4042
      %v4267 = vpop.f32.mrf.mxu0
      %v4268 = vadd.f32 %v4155, %v4267
      %4269 = vmatmul.f32.gmra.mxu0 %v4045
      %v4270 = vpop.f32.mrf.mxu0
      %v4271 = vadd.f32 %v4158, %v4270
      %4272 = vmatmul.f32.gmra.mxu0 %v4048
      %v4273 = vpop.f32.mrf.mxu0
      %v4274 = vadd.f32 %v4161, %v4273
      %4275 = vmatmul.f32.gmra.mxu0 %v4051
      %v4276 = vpop.f32.mrf.mxu0
      %v4277 = vadd.f32 %v4164, %v4276
      %4278 = vmatmul.f32.gmra.mxu0 %v4054
      %v4279 = vpop.f32.mrf.mxu0
      %v4280 = vadd.f32 %v4167, %v4279
      %4281 = vmatmul.f32.gmra.mxu0 %v4057
      %v4282 = vpop.f32.mrf.mxu0
      %v4283 = vadd.f32 %v4170, %v4282
      %4284 = vmatmul.f32.gmra.mxu0 %v4060
      %v4285 = vpop.f32.mrf.mxu0
      %v4286 = vadd.f32 %v4173, %v4285
      %4287 = vmatmul.f32.gmra.mxu0 %v4063
      %v4288 = vpop.f32.mrf.mxu0
      %v4289 = vadd.f32 %v4176, %v4288
      %4290 = vmatmul.f32.gmra.mxu0 %v4066
      %v4291 = vpop.f32.mrf.mxu0
      %v4292 = vadd.f32 %v4179, %v4291
      %4293 = vmatmul.f32.gmra.mxu0 %v4069
      %v4294 = vpop.f32.mrf.mxu0
      %v4295 = vadd.f32 %v4182, %v4294
      %4296 = vmatmul.f32.gmra.mxu0 %v4072
      %v4297 = vpop.f32.mrf.mxu0
      %v4298 = vadd.f32 %v4185, %v4297
      %4299 = vmatmul.f32.gmra.mxu0 %v4075
      %v4300 = vpop.f32.mrf.mxu0
      %v4301 = vadd.f32 %v4188, %v4300
      %4302 = vmatmul.f32.gmra.mxu0 %v4078
      %v4303 = vpop.f32.mrf.mxu0
      %v4304 = vadd.f32 %v4191, %v4303
      %4305 = vmatmul.f32.gmra.mxu0 %v4081
      %v4306 = vpop.f32.mrf.mxu0
      %v4307 = vadd.f32 %v4194, %v4306
      %4308 = vmatmul.f32.gmra.mxu0 %v4084
      %v4309 = vpop.f32.mrf.mxu0
      %v4310 = vadd.f32 %v4197, %v4309
      %4311 = vmatmul.f32.gmra.mxu0 %v4087
      %v4312 = vpop.f32.mrf.mxu0
      %v4313 = vadd.f32 %v4200, %v4312
      %4314 = vmatmul.f32.gmra.mxu0 %v4090
      %v4315 = vpop.f32.mrf.mxu0
      %v4316 = vadd.f32 %v4203, %v4315
      %4317 = vdwg.mxu0
      %v4318 = vmax.f32 %v4223, 0.0
      %v4319 = vmax.f32 %v4226, 0.0
      %v4320 = vmax.f32 %v4229, 0.0
      %v4321 = vmax.f32 %v4232, 0.0
      %v4322 = vmax.f32 %v4235, 0.0
      %v4323 = vmax.f32 %v4238, 0.0
      %v4324 = vmax.f32 %v4241, 0.0
      %v4325 = vmax.f32 %v4244, 0.0
      %v4326 = vmax.f32 %v4247, 0.0
      %v4327 = vmax.f32 %v4250, 0.0
      %v4328 = vmax.f32 %v4253, 0.0
      %v4329 = vmax.f32 %v4256, 0.0
      %v4330 = vmax.f32 %v4259, 0.0
      %v4331 = vmax.f32 %v4262, 0.0
      %v4332 = vmax.f32 %v4265, 0.0
      %v4333 = vmax.f32 %v4268, 0.0
      %v4334 = vmax.f32 %v4271, 0.0
      %v4335 = vmax.f32 %v4274, 0.0
      %v4336 = vmax.f32 %v4277, 0.0
      %v4337 = vmax.f32 %v4280, 0.0
      %v4338 = vmax.f32 %v4283, 0.0
      %v4339 = vmax.f32 %v4286, 0.0
      %v4340 = vmax.f32 %v4289, 0.0
      %v4341 = vmax.f32 %v4292, 0.0
      %v4342 = vmax.f32 %v4295, 0.0
      %v4343 = vmax.f32 %v4298, 0.0
      %v4344 = vmax.f32 %v4301, 0.0
      %v4345 = vmax.f32 %v4304, 0.0
      %v4346 = vmax.f32 %v4307, 0.0
      %v4347 = vmax.f32 %v4310, 0.0
      %v4348 = vmax.f32 %v4313, 0.0
      %v4349 = vmax.f32 %v4316, 0.0
      %4382 = vrot.lane.b32.xlu0 %v4318, 8
      %v4383 = vpop.permute.xlu0 %4382
      %4384 = vrot.lane.b32.xlu0 %v4319, 8
      %v4385 = vpop.permute.xlu0 %4384
      %4386 = vrot.lane.b32.xlu0 %v4320, 8
      %v4387 = vpop.permute.xlu0 %4386
      %4388 = vrot.lane.b32.xlu0 %v4321, 8
      %v4389 = vpop.permute.xlu0 %4388
      %4390 = vrot.lane.b32.xlu0 %v4322, 8
      %v4391 = vpop.permute.xlu0 %4390
      %4392 = vrot.lane.b32.xlu0 %v4323, 8
      %v4393 = vpop.permute.xlu0 %4392
      %4394 = vrot.lane.b32.xlu0 %v4324, 8
      %v4395 = vpop.permute.xlu0 %4394
      %4396 = vrot.lane.b32.xlu0 %v4325, 8
      %v4397 = vpop.permute.xlu0 %4396
      %4398 = vrot.lane.b32.xlu0 %v4326, 8
      %v4399 = vpop.permute.xlu0 %4398
      %4400 = vrot.lane.b32.xlu0 %v4327, 8
      %v4401 = vpop.permute.xlu0 %4400
      %4402 = vrot.lane.b32.xlu0 %v4328, 8
      %v4403 = vpop.permute.xlu0 %4402
      %4404 = vrot.lane.b32.xlu0 %v4329, 8
      %v4405 = vpop.permute.xlu0 %4404
      %4406 = vrot.lane.b32.xlu0 %v4330, 8
      %v4407 = vpop.permute.xlu0 %4406
      %4408 = vrot.lane.b32.xlu0 %v4331, 8
      %v4409 = vpop.permute.xlu0 %4408
      %4410 = vrot.lane.b32.xlu0 %v4332, 8
      %v4411 = vpop.permute.xlu0 %4410
      %4412 = vrot.lane.b32.xlu0 %v4333, 8
      %v4413 = vpop.permute.xlu0 %4412
      %4414 = vrot.lane.b32.xlu0 %v4334, 8
      %v4415 = vpop.permute.xlu0 %4414
      %4416 = vrot.lane.b32.xlu0 %v4335, 8
      %v4417 = vpop.permute.xlu0 %4416
      %4418 = vrot.lane.b32.xlu0 %v4336, 8
      %v4419 = vpop.permute.xlu0 %4418
      %4420 = vrot.lane.b32.xlu0 %v4337, 8
      %v4421 = vpop.permute.xlu0 %4420
      %4422 = vrot.lane.b32.xlu0 %v4338, 8
      %v4423 = vpop.permute.xlu0 %4422
      %4424 = vrot.lane.b32.xlu0 %v4339, 8
      %v4425 = vpop.permute.xlu0 %4424
      %4426 = vrot.lane.b32.xlu0 %v4340, 8
      %v4427 = vpop.permute.xlu0 %4426
      %4428 = vrot.lane.b32.xlu0 %v4341, 8
      %v4429 = vpop.permute.xlu0 %4428
      %4430 = vrot.lane.b32.xlu0 %v4342, 8
      %v4431 = vpop.permute.xlu0 %4430
      %4432 = vrot.lane.b32.xlu0 %v4343, 8
      %v4433 = vpop.permute.xlu0 %4432
      %4434 = vrot.lane.b32.xlu0 %v4344, 8
      %v4435 = vpop.permute.xlu0 %4434
      %4436 = vrot.lane.b32.xlu0 %v4345, 8
      %v4437 = vpop.permute.xlu0 %4436
      %4438 = vrot.lane.b32.xlu0 %v4346, 8
      %v4439 = vpop.permute.xlu0 %4438
      %4440 = vrot.lane.b32.xlu0 %v4347, 8
      %v4441 = vpop.permute.xlu0 %4440
      %4442 = vrot.lane.b32.xlu0 %v4348, 8
      %v4443 = vpop.permute.xlu0 %4442
      %4444 = vrot.lane.b32.xlu0 %v4349, 8
      %v4445 = vpop.permute.xlu0 %4444
      %vm4478 = vcmask 97344
      %4479 = vst.msk [vmem:[%s323 + $0x1] sm:$0xff] %vm4478, %v4383
      %4480 = vst.msk [vmem:[%s323 + $0x9] sm:$0xff] %vm4478, %v4385
      %4481 = vst.msk [vmem:[%s323 + $0x19] sm:$0xff] %vm4478, %v4387
      %4482 = vst.msk [vmem:[%s323 + $0x21] sm:$0xff] %vm4478, %v4389
      %4483 = vst.msk [vmem:[%s323 + $0x31] sm:$0xff] %vm4478, %v4391
      %4484 = vst.msk [vmem:[%s323 + $0x39] sm:$0xff] %vm4478, %v4393
      %4485 = vst.msk [vmem:[%s323 + $0x49] sm:$0xff] %vm4478, %v4395
      %4486 = vst.msk [vmem:[%s323 + $0x51] sm:$0xff] %vm4478, %v4397
      %4487 = vst.msk [vmem:[%s323 + $0x61] sm:$0xff] %vm4478, %v4399
      %4488 = vst.msk [vmem:[%s323 + $0x69] sm:$0xff] %vm4478, %v4401
      %4489 = vst.msk [vmem:[%s323 + $0x79] sm:$0xff] %vm4478, %v4403
      %4490 = vst.msk [vmem:[%s323 + $0x81] sm:$0xff] %vm4478, %v4405
      %4491 = vst.msk [vmem:[%s323 + $0x91] sm:$0xff] %vm4478, %v4407
      %4492 = vst.msk [vmem:[%s323 + $0x99] sm:$0xff] %vm4478, %v4409
      %4493 = vst.msk [vmem:[%s323 + $0xa9] sm:$0xff] %vm4478, %v4411
      %4494 = vst.msk [vmem:[%s323 + $0xb1] sm:$0xff] %vm4478, %v4413
      %4495 = vst.msk [vmem:[%s323 + $0xc1] sm:$0xff] %vm4478, %v4415
      %4496 = vst.msk [vmem:[%s323 + $0xc9] sm:$0xff] %vm4478, %v4417
      %4497 = vst.msk [vmem:[%s323 + $0xd9] sm:$0xff] %vm4478, %v4419
      %4498 = vst.msk [vmem:[%s323 + $0xe1] sm:$0xff] %vm4478, %v4421
      %4499 = vst.msk [vmem:[%s323 + $0xf1] sm:$0xff] %vm4478, %v4423
      %4500 = vst.msk [vmem:[%s323 + $0xf9] sm:$0xff] %vm4478, %v4425
      %4501 = vst.msk [vmem:[%s323 + $0x109] sm:$0xff] %vm4478, %v4427
      %4502 = vst.msk [vmem:[%s323 + $0x111] sm:$0xff] %vm4478, %v4429
      %4503 = vst.msk [vmem:[%s323 + $0x121] sm:$0xff] %vm4478, %v4431
      %4504 = vst.msk [vmem:[%s323 + $0x129] sm:$0xff] %vm4478, %v4433
      %4505 = vst.msk [vmem:[%s323 + $0x139] sm:$0xff] %vm4478, %v4435
      %4506 = vst.msk [vmem:[%s323 + $0x141] sm:$0xff] %vm4478, %v4437
      %4507 = vst.msk [vmem:[%s323 + $0x151] sm:$0xff] %vm4478, %v4439
      %4508 = vst.msk [vmem:[%s323 + $0x159] sm:$0xff] %vm4478, %v4441
      %4509 = vst.msk [vmem:[%s323 + $0x169] sm:$0xff] %vm4478, %v4443
      %4510 = vst.msk [vmem:[%s323 + $0x171] sm:$0xff] %vm4478, %v4445
      %v4511 = vld [vmem:[#allocation2] sm:$0xff]
      %v4512 = vld [vmem:[#allocation2 + $0x8] sm:$0xff]
      %v4513 = vld [vmem:[#allocation2 + $0x18] sm:$0xff]
      %v4514 = vld [vmem:[#allocation2 + $0x20] sm:$0xff]
      %v4515 = vld [vmem:[#allocation2 + $0x30] sm:$0xff]
      %v4516 = vld [vmem:[#allocation2 + $0x38] sm:$0xff]
      %v4517 = vld [vmem:[#allocation2 + $0x48] sm:$0xff]
      %v4518 = vld [vmem:[#allocation2 + $0x50] sm:$0xff]
      %v4519 = vld [vmem:[#allocation2 + $0x60] sm:$0xff]
      %v4520 = vld [vmem:[#allocation2 + $0x68] sm:$0xff]
      %v4521 = vld [vmem:[#allocation2 + $0x78] sm:$0xff]
      %v4522 = vld [vmem:[#allocation2 + $0x80] sm:$0xff]
      %v4523 = vld [vmem:[#allocation2 + $0x90] sm:$0xff]
      %v4524 = vld [vmem:[#allocation2 + $0x98] sm:$0xff]
      %v4525 = vld [vmem:[#allocation2 + $0xa8] sm:$0xff]
      %v4526 = vld [vmem:[#allocation2 + $0xb0] sm:$0xff]
      %v4527 = vld [vmem:[#allocation2 + $0xc0] sm:$0xff]
      %v4528 = vld [vmem:[#allocation2 + $0xc8] sm:$0xff]
      %v4529 = vld [vmem:[#allocation2 + $0xd8] sm:$0xff]
      %v4530 = vld [vmem:[#allocation2 + $0xe0] sm:$0xff]
      %v4531 = vld [vmem:[#allocation2 + $0xf0] sm:$0xff]
      %v4532 = vld [vmem:[#allocation2 + $0xf8] sm:$0xff]
      %v4533 = vld [vmem:[#allocation2 + $0x108] sm:$0xff]
      %v4534 = vld [vmem:[#allocation2 + $0x110] sm:$0xff]
      %v4535 = vld [vmem:[#allocation2 + $0x120] sm:$0xff]
      %v4536 = vld [vmem:[#allocation2 + $0x128] sm:$0xff]
      %v4537 = vld [vmem:[#allocation2 + $0x138] sm:$0xff]
      %v4538 = vld [vmem:[#allocation2 + $0x140] sm:$0xff]
      %v4539 = vld [vmem:[#allocation2 + $0x150] sm:$0xff]
      %v4540 = vld [vmem:[#allocation2 + $0x158] sm:$0xff]
      %v4541 = vld [vmem:[#allocation2 + $0x168] sm:$0xff]
      %v4542 = vld [vmem:[#allocation2 + $0x170] sm:$0xff]
      %4543 = vst.msk [vmem:[#allocation3] sm:$0xff] %vm4478, %v4511
      %4544 = vst.msk [vmem:[#allocation3 + $0x10] sm:$0xff] %vm4478, %v4512
      %4545 = vst.msk [vmem:[#allocation3 + $0x20] sm:$0xff] %vm4478, %v4513
      %4546 = vst.msk [vmem:[#allocation3 + $0x30] sm:$0xff] %vm4478, %v4514
      %4547 = vst.msk [vmem:[#allocation3 + $0x40] sm:$0xff] %vm4478, %v4515
      %4548 = vst.msk [vmem:[#allocation3 + $0x50] sm:$0xff] %vm4478, %v4516
      %4549 = vst.msk [vmem:[#allocation3 + $0x60] sm:$0xff] %vm4478, %v4517
      %4550 = vst.msk [vmem:[#allocation3 + $0x70] sm:$0xff] %vm4478, %v4518
      %4551 = vst.msk [vmem:[#allocation3 + $0x80] sm:$0xff] %vm4478, %v4519
      %4552 = vst.msk [vmem:[#allocation3 + $0x90] sm:$0xff] %vm4478, %v4520
      %4553 = vst.msk [vmem:[#allocation3 + $0xa0] sm:$0xff] %vm4478, %v4521
      %4554 = vst.msk [vmem:[#allocation3 + $0xb0] sm:$0xff] %vm4478, %v4522
      %4555 = vst.msk [vmem:[#allocation3 + $0xc0] sm:$0xff] %vm4478, %v4523
      %4556 = vst.msk [vmem:[#allocation3 + $0xd0] sm:$0xff] %vm4478, %v4524
      %4557 = vst.msk [vmem:[#allocation3 + $0xe0] sm:$0xff] %vm4478, %v4525
      %4558 = vst.msk [vmem:[#allocation3 + $0xf0] sm:$0xff] %vm4478, %v4526
      %4559 = vst.msk [vmem:[#allocation3 + $0x100] sm:$0xff] %vm4478, %v4527
      %4560 = vst.msk [vmem:[#allocation3 + $0x110] sm:$0xff] %vm4478, %v4528
      %4561 = vst.msk [vmem:[#allocation3 + $0x120] sm:$0xff] %vm4478, %v4529
      %4562 = vst.msk [vmem:[#allocation3 + $0x130] sm:$0xff] %vm4478, %v4530
      %4563 = vst.msk [vmem:[#allocation3 + $0x140] sm:$0xff] %vm4478, %v4531
      %4564 = vst.msk [vmem:[#allocation3 + $0x150] sm:$0xff] %vm4478, %v4532
      %4565 = vst.msk [vmem:[#allocation3 + $0x160] sm:$0xff] %vm4478, %v4533
      %4566 = vst.msk [vmem:[#allocation3 + $0x170] sm:$0xff] %vm4478, %v4534
      %4567 = vst.msk [vmem:[#allocation3 + $0x180] sm:$0xff] %vm4478, %v4535
      %4568 = vst.msk [vmem:[#allocation3 + $0x190] sm:$0xff] %vm4478, %v4536
      %4569 = vst.msk [vmem:[#allocation3 + $0x1a0] sm:$0xff] %vm4478, %v4537
      %4570 = vst.msk [vmem:[#allocation3 + $0x1b0] sm:$0xff] %vm4478, %v4538
      %4571 = vst.msk [vmem:[#allocation3 + $0x1c0] sm:$0xff] %vm4478, %v4539
      %4572 = vst.msk [vmem:[#allocation3 + $0x1d0] sm:$0xff] %vm4478, %v4540
      %4573 = vst.msk [vmem:[#allocation3 + $0x1e0] sm:$0xff] %vm4478, %v4541
      %4574 = vst.msk [vmem:[#allocation3 + $0x1f0] sm:$0xff] %vm4478, %v4542
      %v4575 = vld [vmem:[#allocation2 + $0x1] sm:$0xff]
      %v4576 = vld [vmem:[#allocation2 + $0x9] sm:$0xff]
      %v4577 = vld [vmem:[#allocation2 + $0x19] sm:$0xff]
      %v4578 = vld [vmem:[#allocation2 + $0x21] sm:$0xff]
      %v4579 = vld [vmem:[#allocation2 + $0x31] sm:$0xff]
      %v4580 = vld [vmem:[#allocation2 + $0x39] sm:$0xff]
      %v4581 = vld [vmem:[#allocation2 + $0x49] sm:$0xff]
      %v4582 = vld [vmem:[#allocation2 + $0x51] sm:$0xff]
      %v4583 = vld [vmem:[#allocation2 + $0x61] sm:$0xff]
      %v4584 = vld [vmem:[#allocation2 + $0x69] sm:$0xff]
      %v4585 = vld [vmem:[#allocation2 + $0x79] sm:$0xff]
      %v4586 = vld [vmem:[#allocation2 + $0x81] sm:$0xff]
      %v4587 = vld [vmem:[#allocation2 + $0x91] sm:$0xff]
      %v4588 = vld [vmem:[#allocation2 + $0x99] sm:$0xff]
      %v4589 = vld [vmem:[#allocation2 + $0xa9] sm:$0xff]
      %v4590 = vld [vmem:[#allocation2 + $0xb1] sm:$0xff]
      %v4591 = vld [vmem:[#allocation2 + $0xc1] sm:$0xff]
      %v4592 = vld [vmem:[#allocation2 + $0xc9] sm:$0xff]
      %v4593 = vld [vmem:[#allocation2 + $0xd9] sm:$0xff]
      %v4594 = vld [vmem:[#allocation2 + $0xe1] sm:$0xff]
      %v4595 = vld [vmem:[#allocation2 + $0xf1] sm:$0xff]
      %v4596 = vld [vmem:[#allocation2 + $0xf9] sm:$0xff]
      %v4597 = vld [vmem:[#allocation2 + $0x109] sm:$0xff]
      %v4598 = vld [vmem:[#allocation2 + $0x111] sm:$0xff]
      %v4599 = vld [vmem:[#allocation2 + $0x121] sm:$0xff]
      %v4600 = vld [vmem:[#allocation2 + $0x129] sm:$0xff]
      %v4601 = vld [vmem:[#allocation2 + $0x139] sm:$0xff]
      %v4602 = vld [vmem:[#allocation2 + $0x141] sm:$0xff]
      %v4603 = vld [vmem:[#allocation2 + $0x151] sm:$0xff]
      %v4604 = vld [vmem:[#allocation2 + $0x159] sm:$0xff]
      %v4605 = vld [vmem:[#allocation2 + $0x169] sm:$0xff]
      %v4606 = vld [vmem:[#allocation2 + $0x171] sm:$0xff]
      %4639 = vrot.lane.b32.xlu0 %v4575, 16
      %v4640 = vpop.permute.xlu0 %4639
      %4641 = vrot.lane.b32.xlu0 %v4576, 16
      %v4642 = vpop.permute.xlu0 %4641
      %4643 = vrot.lane.b32.xlu0 %v4577, 16
      %v4644 = vpop.permute.xlu0 %4643
      %4645 = vrot.lane.b32.xlu0 %v4578, 16
      %v4646 = vpop.permute.xlu0 %4645
      %4647 = vrot.lane.b32.xlu0 %v4579, 16
      %v4648 = vpop.permute.xlu0 %4647
      %4649 = vrot.lane.b32.xlu0 %v4580, 16
      %v4650 = vpop.permute.xlu0 %4649
      %4651 = vrot.lane.b32.xlu0 %v4581, 16
      %v4652 = vpop.permute.xlu0 %4651
      %4653 = vrot.lane.b32.xlu0 %v4582, 16
      %v4654 = vpop.permute.xlu0 %4653
      %4655 = vrot.lane.b32.xlu0 %v4583, 16
      %v4656 = vpop.permute.xlu0 %4655
      %4657 = vrot.lane.b32.xlu0 %v4584, 16
      %v4658 = vpop.permute.xlu0 %4657
      %4659 = vrot.lane.b32.xlu0 %v4585, 16
      %v4660 = vpop.permute.xlu0 %4659
      %4661 = vrot.lane.b32.xlu0 %v4586, 16
      %v4662 = vpop.permute.xlu0 %4661
      %4663 = vrot.lane.b32.xlu0 %v4587, 16
      %v4664 = vpop.permute.xlu0 %4663
      %4665 = vrot.lane.b32.xlu0 %v4588, 16
      %v4666 = vpop.permute.xlu0 %4665
      %4667 = vrot.lane.b32.xlu0 %v4589, 16
      %v4668 = vpop.permute.xlu0 %4667
      %4669 = vrot.lane.b32.xlu0 %v4590, 16
      %v4670 = vpop.permute.xlu0 %4669
      %4671 = vrot.lane.b32.xlu0 %v4591, 16
      %v4672 = vpop.permute.xlu0 %4671
      %4673 = vrot.lane.b32.xlu0 %v4592, 16
      %v4674 = vpop.permute.xlu0 %4673
      %4675 = vrot.lane.b32.xlu0 %v4593, 16
      %v4676 = vpop.permute.xlu0 %4675
      %4677 = vrot.lane.b32.xlu0 %v4594, 16
      %v4678 = vpop.permute.xlu0 %4677
      %4679 = vrot.lane.b32.xlu0 %v4595, 16
      %v4680 = vpop.permute.xlu0 %4679
      %4681 = vrot.lane.b32.xlu0 %v4596, 16
      %v4682 = vpop.permute.xlu0 %4681
      %4683 = vrot.lane.b32.xlu0 %v4597, 16
      %v4684 = vpop.permute.xlu0 %4683
      %4685 = vrot.lane.b32.xlu0 %v4598, 16
      %v4686 = vpop.permute.xlu0 %4685
      %4687 = vrot.lane.b32.xlu0 %v4599, 16
      %v4688 = vpop.permute.xlu0 %4687
      %4689 = vrot.lane.b32.xlu0 %v4600, 16
      %v4690 = vpop.permute.xlu0 %4689
      %4691 = vrot.lane.b32.xlu0 %v4601, 16
      %v4692 = vpop.permute.xlu0 %4691
      %4693 = vrot.lane.b32.xlu0 %v4602, 16
      %v4694 = vpop.permute.xlu0 %4693
      %4695 = vrot.lane.b32.xlu0 %v4603, 16
      %v4696 = vpop.permute.xlu0 %4695
      %4697 = vrot.lane.b32.xlu0 %v4604, 16
      %v4698 = vpop.permute.xlu0 %4697
      %4699 = vrot.lane.b32.xlu0 %v4605, 16
      %v4700 = vpop.permute.xlu0 %4699
      %4701 = vrot.lane.b32.xlu0 %v4606, 16
      %v4702 = vpop.permute.xlu0 %4701
      %vm4735 = vcmask 228544
      %4736 = vst.msk [vmem:[#allocation3] sm:$0xff] %vm4735, %v4640
      %4737 = vst.msk [vmem:[#allocation3 + $0x10] sm:$0xff] %vm4735, %v4642
      %4738 = vst.msk [vmem:[#allocation3 + $0x20] sm:$0xff] %vm4735, %v4644
      %4739 = vst.msk [vmem:[#allocation3 + $0x30] sm:$0xff] %vm4735, %v4646
      %4740 = vst.msk [vmem:[#allocation3 + $0x40] sm:$0xff] %vm4735, %v4648
      %4741 = vst.msk [vmem:[#allocation3 + $0x50] sm:$0xff] %vm4735, %v4650
      %4742 = vst.msk [vmem:[#allocation3 + $0x60] sm:$0xff] %vm4735, %v4652
      %4743 = vst.msk [vmem:[#allocation3 + $0x70] sm:$0xff] %vm4735, %v4654
      %4744 = vst.msk [vmem:[#allocation3 + $0x80] sm:$0xff] %vm4735, %v4656
      %4745 = vst.msk [vmem:[#allocation3 + $0x90] sm:$0xff] %vm4735, %v4658
      %4746 = vst.msk [vmem:[#allocation3 + $0xa0] sm:$0xff] %vm4735, %v4660
      %4747 = vst.msk [vmem:[#allocation3 + $0xb0] sm:$0xff] %vm4735, %v4662
      %4748 = vst.msk [vmem:[#allocation3 + $0xc0] sm:$0xff] %vm4735, %v4664
      %4749 = vst.msk [vmem:[#allocation3 + $0xd0] sm:$0xff] %vm4735, %v4666
      %4750 = vst.msk [vmem:[#allocation3 + $0xe0] sm:$0xff] %vm4735, %v4668
      %4751 = vst.msk [vmem:[#allocation3 + $0xf0] sm:$0xff] %vm4735, %v4670
      %4752 = vst.msk [vmem:[#allocation3 + $0x100] sm:$0xff] %vm4735, %v4672
      %4753 = vst.msk [vmem:[#allocation3 + $0x110] sm:$0xff] %vm4735, %v4674
      %4754 = vst.msk [vmem:[#allocation3 + $0x120] sm:$0xff] %vm4735, %v4676
      %4755 = vst.msk [vmem:[#allocation3 + $0x130] sm:$0xff] %vm4735, %v4678
      %4756 = vst.msk [vmem:[#allocation3 + $0x140] sm:$0xff] %vm4735, %v4680
      %4757 = vst.msk [vmem:[#allocation3 + $0x150] sm:$0xff] %vm4735, %v4682
      %4758 = vst.msk [vmem:[#allocation3 + $0x160] sm:$0xff] %vm4735, %v4684
      %4759 = vst.msk [vmem:[#allocation3 + $0x170] sm:$0xff] %vm4735, %v4686
      %4760 = vst.msk [vmem:[#allocation3 + $0x180] sm:$0xff] %vm4735, %v4688
      %4761 = vst.msk [vmem:[#allocation3 + $0x190] sm:$0xff] %vm4735, %v4690
      %4762 = vst.msk [vmem:[#allocation3 + $0x1a0] sm:$0xff] %vm4735, %v4692
      %4763 = vst.msk [vmem:[#allocation3 + $0x1b0] sm:$0xff] %vm4735, %v4694
      %4764 = vst.msk [vmem:[#allocation3 + $0x1c0] sm:$0xff] %vm4735, %v4696
      %4765 = vst.msk [vmem:[#allocation3 + $0x1d0] sm:$0xff] %vm4735, %v4698
      %4766 = vst.msk [vmem:[#allocation3 + $0x1e0] sm:$0xff] %vm4735, %v4700
      %4767 = vst.msk [vmem:[#allocation3 + $0x1f0] sm:$0xff] %vm4735, %v4702
      %v4768 = vld [vmem:[#allocation2 + $0x2] sm:$0xff]
      %v4769 = vld [vmem:[#allocation2 + $0xa] sm:$0xff]
      %v4770 = vld [vmem:[#allocation2 + $0x1a] sm:$0xff]
      %v4771 = vld [vmem:[#allocation2 + $0x22] sm:$0xff]
      %v4772 = vld [vmem:[#allocation2 + $0x32] sm:$0xff]
      %v4773 = vld [vmem:[#allocation2 + $0x3a] sm:$0xff]
      %v4774 = vld [vmem:[#allocation2 + $0x4a] sm:$0xff]
      %v4775 = vld [vmem:[#allocation2 + $0x52] sm:$0xff]
      %v4776 = vld [vmem:[#allocation2 + $0x62] sm:$0xff]
      %v4777 = vld [vmem:[#allocation2 + $0x6a] sm:$0xff]
      %v4778 = vld [vmem:[#allocation2 + $0x7a] sm:$0xff]
      %v4779 = vld [vmem:[#allocation2 + $0x82] sm:$0xff]
      %v4780 = vld [vmem:[#allocation2 + $0x92] sm:$0xff]
      %v4781 = vld [vmem:[#allocation2 + $0x9a] sm:$0xff]
      %v4782 = vld [vmem:[#allocation2 + $0xaa] sm:$0xff]
      %v4783 = vld [vmem:[#allocation2 + $0xb2] sm:$0xff]
      %v4784 = vld [vmem:[#allocation2 + $0xc2] sm:$0xff]
      %v4785 = vld [vmem:[#allocation2 + $0xca] sm:$0xff]
      %v4786 = vld [vmem:[#allocation2 + $0xda] sm:$0xff]
      %v4787 = vld [vmem:[#allocation2 + $0xe2] sm:$0xff]
      %v4788 = vld [vmem:[#allocation2 + $0xf2] sm:$0xff]
      %v4789 = vld [vmem:[#allocation2 + $0xfa] sm:$0xff]
      %v4790 = vld [vmem:[#allocation2 + $0x10a] sm:$0xff]
      %v4791 = vld [vmem:[#allocation2 + $0x112] sm:$0xff]
      %v4792 = vld [vmem:[#allocation2 + $0x122] sm:$0xff]
      %v4793 = vld [vmem:[#allocation2 + $0x12a] sm:$0xff]
      %v4794 = vld [vmem:[#allocation2 + $0x13a] sm:$0xff]
      %v4795 = vld [vmem:[#allocation2 + $0x142] sm:$0xff]
      %v4796 = vld [vmem:[#allocation2 + $0x152] sm:$0xff]
      %v4797 = vld [vmem:[#allocation2 + $0x15a] sm:$0xff]
      %v4798 = vld [vmem:[#allocation2 + $0x16a] sm:$0xff]
      %v4799 = vld [vmem:[#allocation2 + $0x172] sm:$0xff]
      %4832 = vrot.lane.b32.xlu0 %v4768, 32
      %v4833 = vpop.permute.xlu0 %4832
      %4834 = vrot.lane.b32.xlu0 %v4769, 32
      %v4835 = vpop.permute.xlu0 %4834
      %4836 = vrot.lane.b32.xlu0 %v4770, 32
      %v4837 = vpop.permute.xlu0 %4836
      %4838 = vrot.lane.b32.xlu0 %v4771, 32
      %v4839 = vpop.permute.xlu0 %4838
      %4840 = vrot.lane.b32.xlu0 %v4772, 32
      %v4841 = vpop.permute.xlu0 %4840
      %4842 = vrot.lane.b32.xlu0 %v4773, 32
      %v4843 = vpop.permute.xlu0 %4842
      %4844 = vrot.lane.b32.xlu0 %v4774, 32
      %v4845 = vpop.permute.xlu0 %4844
      %4846 = vrot.lane.b32.xlu0 %v4775, 32
      %v4847 = vpop.permute.xlu0 %4846
      %4848 = vrot.lane.b32.xlu0 %v4776, 32
      %v4849 = vpop.permute.xlu0 %4848
      %4850 = vrot.lane.b32.xlu0 %v4777, 32
      %v4851 = vpop.permute.xlu0 %4850
      %4852 = vrot.lane.b32.xlu0 %v4778, 32
      %v4853 = vpop.permute.xlu0 %4852
      %4854 = vrot.lane.b32.xlu0 %v4779, 32
      %v4855 = vpop.permute.xlu0 %4854
      %4856 = vrot.lane.b32.xlu0 %v4780, 32
      %v4857 = vpop.permute.xlu0 %4856
      %4858 = vrot.lane.b32.xlu0 %v4781, 32
      %v4859 = vpop.permute.xlu0 %4858
      %4860 = vrot.lane.b32.xlu0 %v4782, 32
      %v4861 = vpop.permute.xlu0 %4860
      %4862 = vrot.lane.b32.xlu0 %v4783, 32
      %v4863 = vpop.permute.xlu0 %4862
      %4864 = vrot.lane.b32.xlu0 %v4784, 32
      %v4865 = vpop.permute.xlu0 %4864
      %4866 = vrot.lane.b32.xlu0 %v4785, 32
      %v4867 = vpop.permute.xlu0 %4866
      %4868 = vrot.lane.b32.xlu0 %v4786, 32
      %v4869 = vpop.permute.xlu0 %4868
      %4870 = vrot.lane.b32.xlu0 %v4787, 32
      %v4871 = vpop.permute.xlu0 %4870
      %4872 = vrot.lane.b32.xlu0 %v4788, 32
      %v4873 = vpop.permute.xlu0 %4872
      %4874 = vrot.lane.b32.xlu0 %v4789, 32
      %v4875 = vpop.permute.xlu0 %4874
      %4876 = vrot.lane.b32.xlu0 %v4790, 32
      %v4877 = vpop.permute.xlu0 %4876
      %4878 = vrot.lane.b32.xlu0 %v4791, 32
      %v4879 = vpop.permute.xlu0 %4878
      %4880 = vrot.lane.b32.xlu0 %v4792, 32
      %v4881 = vpop.permute.xlu0 %4880
      %4882 = vrot.lane.b32.xlu0 %v4793, 32
      %v4883 = vpop.permute.xlu0 %4882
      %4884 = vrot.lane.b32.xlu0 %v4794, 32
      %v4885 = vpop.permute.xlu0 %4884
      %4886 = vrot.lane.b32.xlu0 %v4795, 32
      %v4887 = vpop.permute.xlu0 %4886
      %4888 = vrot.lane.b32.xlu0 %v4796, 32
      %v4889 = vpop.permute.xlu0 %4888
      %4890 = vrot.lane.b32.xlu0 %v4797, 32
      %v4891 = vpop.permute.xlu0 %4890
      %4892 = vrot.lane.b32.xlu0 %v4798, 32
      %v4893 = vpop.permute.xlu0 %4892
      %4894 = vrot.lane.b32.xlu0 %v4799, 32
      %v4895 = vpop.permute.xlu0 %4894
      %vm4928 = vcmask 359744
      %4929 = vst.msk [vmem:[#allocation3] sm:$0xff] %vm4928, %v4833
      %4930 = vst.msk [vmem:[#allocation3 + $0x10] sm:$0xff] %vm4928, %v4835
      %4931 = vst.msk [vmem:[#allocation3 + $0x20] sm:$0xff] %vm4928, %v4837
      %4932 = vst.msk [vmem:[#allocation3 + $0x30] sm:$0xff] %vm4928, %v4839
      %4933 = vst.msk [vmem:[#allocation3 + $0x40] sm:$0xff] %vm4928, %v4841
      %4934 = vst.msk [vmem:[#allocation3 + $0x50] sm:$0xff] %vm4928, %v4843
      %4935 = vst.msk [vmem:[#allocation3 + $0x60] sm:$0xff] %vm4928, %v4845
      %4936 = vst.msk [vmem:[#allocation3 + $0x70] sm:$0xff] %vm4928, %v4847
      %4937 = vst.msk [vmem:[#allocation3 + $0x80] sm:$0xff] %vm4928, %v4849
      %4938 = vst.msk [vmem:[#allocation3 + $0x90] sm:$0xff] %vm4928, %v4851
      %4939 = vst.msk [vmem:[#allocation3 + $0xa0] sm:$0xff] %vm4928, %v4853
      %4940 = vst.msk [vmem:[#allocation3 + $0xb0] sm:$0xff] %vm4928, %v4855
      %4941 = vst.msk [vmem:[#allocation3 + $0xc0] sm:$0xff] %vm4928, %v4857
      %4942 = vst.msk [vmem:[#allocation3 + $0xd0] sm:$0xff] %vm4928, %v4859
      %4943 = vst.msk [vmem:[#allocation3 + $0xe0] sm:$0xff] %vm4928, %v4861
      %4944 = vst.msk [vmem:[#allocation3 + $0xf0] sm:$0xff] %vm4928, %v4863
      %4945 = vst.msk [vmem:[#allocation3 + $0x100] sm:$0xff] %vm4928, %v4865
      %4946 = vst.msk [vmem:[#allocation3 + $0x110] sm:$0xff] %vm4928, %v4867
      %4947 = vst.msk [vmem:[#allocation3 + $0x120] sm:$0xff] %vm4928, %v4869
      %4948 = vst.msk [vmem:[#allocation3 + $0x130] sm:$0xff] %vm4928, %v4871
      %4949 = vst.msk [vmem:[#allocation3 + $0x140] sm:$0xff] %vm4928, %v4873
      %4950 = vst.msk [vmem:[#allocation3 + $0x150] sm:$0xff] %vm4928, %v4875
      %4951 = vst.msk [vmem:[#allocation3 + $0x160] sm:$0xff] %vm4928, %v4877
      %4952 = vst.msk [vmem:[#allocation3 + $0x170] sm:$0xff] %vm4928, %v4879
      %4953 = vst.msk [vmem:[#allocation3 + $0x180] sm:$0xff] %vm4928, %v4881
      %4954 = vst.msk [vmem:[#allocation3 + $0x190] sm:$0xff] %vm4928, %v4883
      %4955 = vst.msk [vmem:[#allocation3 + $0x1a0] sm:$0xff] %vm4928, %v4885
      %4956 = vst.msk [vmem:[#allocation3 + $0x1b0] sm:$0xff] %vm4928, %v4887
      %4957 = vst.msk [vmem:[#allocation3 + $0x1c0] sm:$0xff] %vm4928, %v4889
      %4958 = vst.msk [vmem:[#allocation3 + $0x1d0] sm:$0xff] %vm4928, %v4891
      %4959 = vst.msk [vmem:[#allocation3 + $0x1e0] sm:$0xff] %vm4928, %v4893
      %4960 = vst.msk [vmem:[#allocation3 + $0x1f0] sm:$0xff] %vm4928, %v4895
      %v4961 = vld [vmem:[%s323] sm:$0xff]
      %v4962 = vld [vmem:[%s323 + $0x8] sm:$0xff]
      %v4963 = vld [vmem:[%s323 + $0x18] sm:$0xff]
      %v4964 = vld [vmem:[%s323 + $0x20] sm:$0xff]
      %v4965 = vld [vmem:[%s323 + $0x30] sm:$0xff]
      %v4966 = vld [vmem:[%s323 + $0x38] sm:$0xff]
      %v4967 = vld [vmem:[%s323 + $0x48] sm:$0xff]
      %v4968 = vld [vmem:[%s323 + $0x50] sm:$0xff]
      %v4969 = vld [vmem:[%s323 + $0x60] sm:$0xff]
      %v4970 = vld [vmem:[%s323 + $0x68] sm:$0xff]
      %v4971 = vld [vmem:[%s323 + $0x78] sm:$0xff]
      %v4972 = vld [vmem:[%s323 + $0x80] sm:$0xff]
      %v4973 = vld [vmem:[%s323 + $0x90] sm:$0xff]
      %v4974 = vld [vmem:[%s323 + $0x98] sm:$0xff]
      %v4975 = vld [vmem:[%s323 + $0xa8] sm:$0xff]
      %v4976 = vld [vmem:[%s323 + $0xb0] sm:$0xff]
      %v4977 = vld [vmem:[%s323 + $0xc0] sm:$0xff]
      %v4978 = vld [vmem:[%s323 + $0xc8] sm:$0xff]
      %v4979 = vld [vmem:[%s323 + $0xd8] sm:$0xff]
      %v4980 = vld [vmem:[%s323 + $0xe0] sm:$0xff]
      %v4981 = vld [vmem:[%s323 + $0xf0] sm:$0xff]
      %v4982 = vld [vmem:[%s323 + $0xf8] sm:$0xff]
      %v4983 = vld [vmem:[%s323 + $0x108] sm:$0xff]
      %v4984 = vld [vmem:[%s323 + $0x110] sm:$0xff]
      %v4985 = vld [vmem:[%s323 + $0x120] sm:$0xff]
      %v4986 = vld [vmem:[%s323 + $0x128] sm:$0xff]
      %v4987 = vld [vmem:[%s323 + $0x138] sm:$0xff]
      %v4988 = vld [vmem:[%s323 + $0x140] sm:$0xff]
      %v4989 = vld [vmem:[%s323 + $0x150] sm:$0xff]
      %v4990 = vld [vmem:[%s323 + $0x158] sm:$0xff]
      %v4991 = vld [vmem:[%s323 + $0x168] sm:$0xff]
      %v4992 = vld [vmem:[%s323 + $0x170] sm:$0xff]
      %5025 = vrot.lane.b32.xlu0 %v4961, 48
      %v5026 = vpop.permute.xlu0 %5025
      %5027 = vrot.lane.b32.xlu0 %v4962, 48
      %v5028 = vpop.permute.xlu0 %5027
      %5029 = vrot.lane.b32.xlu0 %v4963, 48
      %v5030 = vpop.permute.xlu0 %5029
      %5031 = vrot.lane.b32.xlu0 %v4964, 48
      %v5032 = vpop.permute.xlu0 %5031
      %5033 = vrot.lane.b32.xlu0 %v4965, 48
      %v5034 = vpop.permute.xlu0 %5033
      %5035 = vrot.lane.b32.xlu0 %v4966, 48
      %v5036 = vpop.permute.xlu0 %5035
      %5037 = vrot.lane.b32.xlu0 %v4967, 48
      %v5038 = vpop.permute.xlu0 %5037
      %5039 = vrot.lane.b32.xlu0 %v4968, 48
      %v5040 = vpop.permute.xlu0 %5039
      %5041 = vrot.lane.b32.xlu0 %v4969, 48
      %v5042 = vpop.permute.xlu0 %5041
      %5043 = vrot.lane.b32.xlu0 %v4970, 48
      %v5044 = vpop.permute.xlu0 %5043
      %5045 = vrot.lane.b32.xlu0 %v4971, 48
      %v5046 = vpop.permute.xlu0 %5045
      %5047 = vrot.lane.b32.xlu0 %v4972, 48
      %v5048 = vpop.permute.xlu0 %5047
      %5049 = vrot.lane.b32.xlu0 %v4973, 48
      %v5050 = vpop.permute.xlu0 %5049
      %5051 = vrot.lane.b32.xlu0 %v4974, 48
      %v5052 = vpop.permute.xlu0 %5051
      %5053 = vrot.lane.b32.xlu0 %v4975, 48
      %v5054 = vpop.permute.xlu0 %5053
      %5055 = vrot.lane.b32.xlu0 %v4976, 48
      %v5056 = vpop.permute.xlu0 %5055
      %5057 = vrot.lane.b32.xlu0 %v4977, 48
      %v5058 = vpop.permute.xlu0 %5057
      %5059 = vrot.lane.b32.xlu0 %v4978, 48
      %v5060 = vpop.permute.xlu0 %5059
      %5061 = vrot.lane.b32.xlu0 %v4979, 48
      %v5062 = vpop.permute.xlu0 %5061
      %5063 = vrot.lane.b32.xlu0 %v4980, 48
      %v5064 = vpop.permute.xlu0 %5063
      %5065 = vrot.lane.b32.xlu0 %v4981, 48
      %v5066 = vpop.permute.xlu0 %5065
      %5067 = vrot.lane.b32.xlu0 %v4982, 48
      %v5068 = vpop.permute.xlu0 %5067
      %5069 = vrot.lane.b32.xlu0 %v4983, 48
      %v5070 = vpop.permute.xlu0 %5069
      %5071 = vrot.lane.b32.xlu0 %v4984, 48
      %v5072 = vpop.permute.xlu0 %5071
      %5073 = vrot.lane.b32.xlu0 %v4985, 48
      %v5074 = vpop.permute.xlu0 %5073
      %5075 = vrot.lane.b32.xlu0 %v4986, 48
      %v5076 = vpop.permute.xlu0 %5075
      %5077 = vrot.lane.b32.xlu0 %v4987, 48
      %v5078 = vpop.permute.xlu0 %5077
      %5079 = vrot.lane.b32.xlu0 %v4988, 48
      %v5080 = vpop.permute.xlu0 %5079
      %5081 = vrot.lane.b32.xlu0 %v4989, 48
      %v5082 = vpop.permute.xlu0 %5081
      %5083 = vrot.lane.b32.xlu0 %v4990, 48
      %v5084 = vpop.permute.xlu0 %5083
      %5085 = vrot.lane.b32.xlu0 %v4991, 48
      %v5086 = vpop.permute.xlu0 %5085
      %5087 = vrot.lane.b32.xlu0 %v4992, 48
      %v5088 = vpop.permute.xlu0 %5087
      %vm5121 = vcmask 490944
      %5122 = vst.msk [vmem:[#allocation3] sm:$0xff] %vm5121, %v5026
      %5123 = vst.msk [vmem:[#allocation3 + $0x10] sm:$0xff] %vm5121, %v5028
      %5124 = vst.msk [vmem:[#allocation3 + $0x20] sm:$0xff] %vm5121, %v5030
      %5125 = vst.msk [vmem:[#allocation3 + $0x30] sm:$0xff] %vm5121, %v5032
      %5126 = vst.msk [vmem:[#allocation3 + $0x40] sm:$0xff] %vm5121, %v5034
      %5127 = vst.msk [vmem:[#allocation3 + $0x50] sm:$0xff] %vm5121, %v5036
      %5128 = vst.msk [vmem:[#allocation3 + $0x60] sm:$0xff] %vm5121, %v5038
      %5129 = vst.msk [vmem:[#allocation3 + $0x70] sm:$0xff] %vm5121, %v5040
      %5130 = vst.msk [vmem:[#allocation3 + $0x80] sm:$0xff] %vm5121, %v5042
      %5131 = vst.msk [vmem:[#allocation3 + $0x90] sm:$0xff] %vm5121, %v5044
      %5132 = vst.msk [vmem:[#allocation3 + $0xa0] sm:$0xff] %vm5121, %v5046
      %5133 = vst.msk [vmem:[#allocation3 + $0xb0] sm:$0xff] %vm5121, %v5048
      %5134 = vst.msk [vmem:[#allocation3 + $0xc0] sm:$0xff] %vm5121, %v5050
      %5135 = vst.msk [vmem:[#allocation3 + $0xd0] sm:$0xff] %vm5121, %v5052
      %5136 = vst.msk [vmem:[#allocation3 + $0xe0] sm:$0xff] %vm5121, %v5054
      %5137 = vst.msk [vmem:[#allocation3 + $0xf0] sm:$0xff] %vm5121, %v5056
      %5138 = vst.msk [vmem:[#allocation3 + $0x100] sm:$0xff] %vm5121, %v5058
      %5139 = vst.msk [vmem:[#allocation3 + $0x110] sm:$0xff] %vm5121, %v5060
      %5140 = vst.msk [vmem:[#allocation3 + $0x120] sm:$0xff] %vm5121, %v5062
      %5141 = vst.msk [vmem:[#allocation3 + $0x130] sm:$0xff] %vm5121, %v5064
      %5142 = vst.msk [vmem:[#allocation3 + $0x140] sm:$0xff] %vm5121, %v5066
      %5143 = vst.msk [vmem:[#allocation3 + $0x150] sm:$0xff] %vm5121, %v5068
      %5144 = vst.msk [vmem:[#allocation3 + $0x160] sm:$0xff] %vm5121, %v5070
      %5145 = vst.msk [vmem:[#allocation3 + $0x170] sm:$0xff] %vm5121, %v5072
      %5146 = vst.msk [vmem:[#allocation3 + $0x180] sm:$0xff] %vm5121, %v5074
      %5147 = vst.msk [vmem:[#allocation3 + $0x190] sm:$0xff] %vm5121, %v5076
      %5148 = vst.msk [vmem:[#allocation3 + $0x1a0] sm:$0xff] %vm5121, %v5078
      %5149 = vst.msk [vmem:[#allocation3 + $0x1b0] sm:$0xff] %vm5121, %v5080
      %5150 = vst.msk [vmem:[#allocation3 + $0x1c0] sm:$0xff] %vm5121, %v5082
      %5151 = vst.msk [vmem:[#allocation3 + $0x1d0] sm:$0xff] %vm5121, %v5084
      %5152 = vst.msk [vmem:[#allocation3 + $0x1e0] sm:$0xff] %vm5121, %v5086
      %5153 = vst.msk [vmem:[#allocation3 + $0x1f0] sm:$0xff] %vm5121, %v5088
      %v5154 = vld [vmem:[%s323 + $0x1] sm:$0xff]
      %v5155 = vld [vmem:[%s323 + $0x9] sm:$0xff]
      %v5156 = vld [vmem:[%s323 + $0x19] sm:$0xff]
      %v5157 = vld [vmem:[%s323 + $0x21] sm:$0xff]
      %v5158 = vld [vmem:[%s323 + $0x31] sm:$0xff]
      %v5159 = vld [vmem:[%s323 + $0x39] sm:$0xff]
      %v5160 = vld [vmem:[%s323 + $0x49] sm:$0xff]
      %v5161 = vld [vmem:[%s323 + $0x51] sm:$0xff]
      %v5162 = vld [vmem:[%s323 + $0x61] sm:$0xff]
      %v5163 = vld [vmem:[%s323 + $0x69] sm:$0xff]
      %v5164 = vld [vmem:[%s323 + $0x79] sm:$0xff]
      %v5165 = vld [vmem:[%s323 + $0x81] sm:$0xff]
      %v5166 = vld [vmem:[%s323 + $0x91] sm:$0xff]
      %v5167 = vld [vmem:[%s323 + $0x99] sm:$0xff]
      %v5168 = vld [vmem:[%s323 + $0xa9] sm:$0xff]
      %v5169 = vld [vmem:[%s323 + $0xb1] sm:$0xff]
      %v5170 = vld [vmem:[%s323 + $0xc1] sm:$0xff]
      %v5171 = vld [vmem:[%s323 + $0xc9] sm:$0xff]
      %v5172 = vld [vmem:[%s323 + $0xd9] sm:$0xff]
      %v5173 = vld [vmem:[%s323 + $0xe1] sm:$0xff]
      %v5174 = vld [vmem:[%s323 + $0xf1] sm:$0xff]
      %v5175 = vld [vmem:[%s323 + $0xf9] sm:$0xff]
      %v5176 = vld [vmem:[%s323 + $0x109] sm:$0xff]
      %v5177 = vld [vmem:[%s323 + $0x111] sm:$0xff]
      %v5178 = vld [vmem:[%s323 + $0x121] sm:$0xff]
      %v5179 = vld [vmem:[%s323 + $0x129] sm:$0xff]
      %v5180 = vld [vmem:[%s323 + $0x139] sm:$0xff]
      %v5181 = vld [vmem:[%s323 + $0x141] sm:$0xff]
      %v5182 = vld [vmem:[%s323 + $0x151] sm:$0xff]
      %v5183 = vld [vmem:[%s323 + $0x159] sm:$0xff]
      %v5184 = vld [vmem:[%s323 + $0x169] sm:$0xff]
      %v5185 = vld [vmem:[%s323 + $0x171] sm:$0xff]
      %5218 = vrot.lane.b32.xlu0 %v5154, 64
      %v5219 = vpop.permute.xlu0 %5218
      %5220 = vrot.lane.b32.xlu0 %v5155, 64
      %v5221 = vpop.permute.xlu0 %5220
      %5222 = vrot.lane.b32.xlu0 %v5156, 64
      %v5223 = vpop.permute.xlu0 %5222
      %5224 = vrot.lane.b32.xlu0 %v5157, 64
      %v5225 = vpop.permute.xlu0 %5224
      %5226 = vrot.lane.b32.xlu0 %v5158, 64
      %v5227 = vpop.permute.xlu0 %5226
      %5228 = vrot.lane.b32.xlu0 %v5159, 64
      %v5229 = vpop.permute.xlu0 %5228
      %5230 = vrot.lane.b32.xlu0 %v5160, 64
      %v5231 = vpop.permute.xlu0 %5230
      %5232 = vrot.lane.b32.xlu0 %v5161, 64
      %v5233 = vpop.permute.xlu0 %5232
      %5234 = vrot.lane.b32.xlu0 %v5162, 64
      %v5235 = vpop.permute.xlu0 %5234
      %5236 = vrot.lane.b32.xlu0 %v5163, 64
      %v5237 = vpop.permute.xlu0 %5236
      %5238 = vrot.lane.b32.xlu0 %v5164, 64
      %v5239 = vpop.permute.xlu0 %5238
      %5240 = vrot.lane.b32.xlu0 %v5165, 64
      %v5241 = vpop.permute.xlu0 %5240
      %5242 = vrot.lane.b32.xlu0 %v5166, 64
      %v5243 = vpop.permute.xlu0 %5242
      %5244 = vrot.lane.b32.xlu0 %v5167, 64
      %v5245 = vpop.permute.xlu0 %5244
      %5246 = vrot.lane.b32.xlu0 %v5168, 64
      %v5247 = vpop.permute.xlu0 %5246
      %5248 = vrot.lane.b32.xlu0 %v5169, 64
      %v5249 = vpop.permute.xlu0 %5248
      %5250 = vrot.lane.b32.xlu0 %v5170, 64
      %v5251 = vpop.permute.xlu0 %5250
      %5252 = vrot.lane.b32.xlu0 %v5171, 64
      %v5253 = vpop.permute.xlu0 %5252
      %5254 = vrot.lane.b32.xlu0 %v5172, 64
      %v5255 = vpop.permute.xlu0 %5254
      %5256 = vrot.lane.b32.xlu0 %v5173, 64
      %v5257 = vpop.permute.xlu0 %5256
      %5258 = vrot.lane.b32.xlu0 %v5174, 64
      %v5259 = vpop.permute.xlu0 %5258
      %5260 = vrot.lane.b32.xlu0 %v5175, 64
      %v5261 = vpop.permute.xlu0 %5260
      %5262 = vrot.lane.b32.xlu0 %v5176, 64
      %v5263 = vpop.permute.xlu0 %5262
      %5264 = vrot.lane.b32.xlu0 %v5177, 64
      %v5265 = vpop.permute.xlu0 %5264
      %5266 = vrot.lane.b32.xlu0 %v5178, 64
      %v5267 = vpop.permute.xlu0 %5266
      %5268 = vrot.lane.b32.xlu0 %v5179, 64
      %v5269 = vpop.permute.xlu0 %5268
      %5270 = vrot.lane.b32.xlu0 %v5180, 64
      %v5271 = vpop.permute.xlu0 %5270
      %5272 = vrot.lane.b32.xlu0 %v5181, 64
      %v5273 = vpop.permute.xlu0 %5272
      %5274 = vrot.lane.b32.xlu0 %v5182, 64
      %v5275 = vpop.permute.xlu0 %5274
      %5276 = vrot.lane.b32.xlu0 %v5183, 64
      %v5277 = vpop.permute.xlu0 %5276
      %5278 = vrot.lane.b32.xlu0 %v5184, 64
      %v5279 = vpop.permute.xlu0 %5278
      %5280 = vrot.lane.b32.xlu0 %v5185, 64
      %v5281 = vpop.permute.xlu0 %5280
      %vm5314 = vcmask 622144
      %5315 = vst.msk [vmem:[#allocation3] sm:$0xff] %vm5314, %v5219
      %5316 = vst.msk [vmem:[#allocation3 + $0x10] sm:$0xff] %vm5314, %v5221
      %5317 = vst.msk [vmem:[#allocation3 + $0x20] sm:$0xff] %vm5314, %v5223
      %5318 = vst.msk [vmem:[#allocation3 + $0x30] sm:$0xff] %vm5314, %v5225
      %5319 = vst.msk [vmem:[#allocation3 + $0x40] sm:$0xff] %vm5314, %v5227
      %5320 = vst.msk [vmem:[#allocation3 + $0x50] sm:$0xff] %vm5314, %v5229
      %5321 = vst.msk [vmem:[#allocation3 + $0x60] sm:$0xff] %vm5314, %v5231
      %5322 = vst.msk [vmem:[#allocation3 + $0x70] sm:$0xff] %vm5314, %v5233
      %5323 = vst.msk [vmem:[#allocation3 + $0x80] sm:$0xff] %vm5314, %v5235
      %5324 = vst.msk [vmem:[#allocation3 + $0x90] sm:$0xff] %vm5314, %v5237
      %5325 = vst.msk [vmem:[#allocation3 + $0xa0] sm:$0xff] %vm5314, %v5239
      %5326 = vst.msk [vmem:[#allocation3 + $0xb0] sm:$0xff] %vm5314, %v5241
      %5327 = vst.msk [vmem:[#allocation3 + $0xc0] sm:$0xff] %vm5314, %v5243
      %5328 = vst.msk [vmem:[#allocation3 + $0xd0] sm:$0xff] %vm5314, %v5245
      %5329 = vst.msk [vmem:[#allocation3 + $0xe0] sm:$0xff] %vm5314, %v5247
      %5330 = vst.msk [vmem:[#allocation3 + $0xf0] sm:$0xff] %vm5314, %v5249
      %5331 = vst.msk [vmem:[#allocation3 + $0x100] sm:$0xff] %vm5314, %v5251
      %5332 = vst.msk [vmem:[#allocation3 + $0x110] sm:$0xff] %vm5314, %v5253
      %5333 = vst.msk [vmem:[#allocation3 + $0x120] sm:$0xff] %vm5314, %v5255
      %5334 = vst.msk [vmem:[#allocation3 + $0x130] sm:$0xff] %vm5314, %v5257
      %5335 = vst.msk [vmem:[#allocation3 + $0x140] sm:$0xff] %vm5314, %v5259
      %5336 = vst.msk [vmem:[#allocation3 + $0x150] sm:$0xff] %vm5314, %v5261
      %5337 = vst.msk [vmem:[#allocation3 + $0x160] sm:$0xff] %vm5314, %v5263
      %5338 = vst.msk [vmem:[#allocation3 + $0x170] sm:$0xff] %vm5314, %v5265
      %5339 = vst.msk [vmem:[#allocation3 + $0x180] sm:$0xff] %vm5314, %v5267
      %5340 = vst.msk [vmem:[#allocation3 + $0x190] sm:$0xff] %vm5314, %v5269
      %5341 = vst.msk [vmem:[#allocation3 + $0x1a0] sm:$0xff] %vm5314, %v5271
      %5342 = vst.msk [vmem:[#allocation3 + $0x1b0] sm:$0xff] %vm5314, %v5273
      %5343 = vst.msk [vmem:[#allocation3 + $0x1c0] sm:$0xff] %vm5314, %v5275
      %5344 = vst.msk [vmem:[#allocation3 + $0x1d0] sm:$0xff] %vm5314, %v5277
      %5345 = vst.msk [vmem:[#allocation3 + $0x1e0] sm:$0xff] %vm5314, %v5279
      %5346 = vst.msk [vmem:[#allocation3 + $0x1f0] sm:$0xff] %vm5314, %v5281
      %v5347 = vld [vmem:[%s323 + $0x2] sm:$0xff]
      %v5348 = vld [vmem:[%s323 + $0xa] sm:$0xff]
      %v5349 = vld [vmem:[%s323 + $0x1a] sm:$0xff]
      %v5350 = vld [vmem:[%s323 + $0x22] sm:$0xff]
      %v5351 = vld [vmem:[%s323 + $0x32] sm:$0xff]
      %v5352 = vld [vmem:[%s323 + $0x3a] sm:$0xff]
      %v5353 = vld [vmem:[%s323 + $0x4a] sm:$0xff]
      %v5354 = vld [vmem:[%s323 + $0x52] sm:$0xff]
      %v5355 = vld [vmem:[%s323 + $0x62] sm:$0xff]
      %v5356 = vld [vmem:[%s323 + $0x6a] sm:$0xff]
      %v5357 = vld [vmem:[%s323 + $0x7a] sm:$0xff]
      %v5358 = vld [vmem:[%s323 + $0x82] sm:$0xff]
      %v5359 = vld [vmem:[%s323 + $0x92] sm:$0xff]
      %v5360 = vld [vmem:[%s323 + $0x9a] sm:$0xff]
      %v5361 = vld [vmem:[%s323 + $0xaa] sm:$0xff]
      %v5362 = vld [vmem:[%s323 + $0xb2] sm:$0xff]
      %v5363 = vld [vmem:[%s323 + $0xc2] sm:$0xff]
      %v5364 = vld [vmem:[%s323 + $0xca] sm:$0xff]
      %v5365 = vld [vmem:[%s323 + $0xda] sm:$0xff]
      %v5366 = vld [vmem:[%s323 + $0xe2] sm:$0xff]
      %v5367 = vld [vmem:[%s323 + $0xf2] sm:$0xff]
      %v5368 = vld [vmem:[%s323 + $0xfa] sm:$0xff]
      %v5369 = vld [vmem:[%s323 + $0x10a] sm:$0xff]
      %v5370 = vld [vmem:[%s323 + $0x112] sm:$0xff]
      %v5371 = vld [vmem:[%s323 + $0x122] sm:$0xff]
      %v5372 = vld [vmem:[%s323 + $0x12a] sm:$0xff]
      %v5373 = vld [vmem:[%s323 + $0x13a] sm:$0xff]
      %v5374 = vld [vmem:[%s323 + $0x142] sm:$0xff]
      %v5375 = vld [vmem:[%s323 + $0x152] sm:$0xff]
      %v5376 = vld [vmem:[%s323 + $0x15a] sm:$0xff]
      %v5377 = vld [vmem:[%s323 + $0x16a] sm:$0xff]
      %v5378 = vld [vmem:[%s323 + $0x172] sm:$0xff]
      %5411 = vrot.lane.b32.xlu0 %v5347, 80
      %v5412 = vpop.permute.xlu0 %5411
      %5413 = vrot.lane.b32.xlu0 %v5348, 80
      %v5414 = vpop.permute.xlu0 %5413
      %5415 = vrot.lane.b32.xlu0 %v5349, 80
      %v5416 = vpop.permute.xlu0 %5415
      %5417 = vrot.lane.b32.xlu0 %v5350, 80
      %v5418 = vpop.permute.xlu0 %5417
      %5419 = vrot.lane.b32.xlu0 %v5351, 80
      %v5420 = vpop.permute.xlu0 %5419
      %5421 = vrot.lane.b32.xlu0 %v5352, 80
      %v5422 = vpop.permute.xlu0 %5421
      %5423 = vrot.lane.b32.xlu0 %v5353, 80
      %v5424 = vpop.permute.xlu0 %5423
      %5425 = vrot.lane.b32.xlu0 %v5354, 80
      %v5426 = vpop.permute.xlu0 %5425
      %5427 = vrot.lane.b32.xlu0 %v5355, 80
      %v5428 = vpop.permute.xlu0 %5427
      %5429 = vrot.lane.b32.xlu0 %v5356, 80
      %v5430 = vpop.permute.xlu0 %5429
      %5431 = vrot.lane.b32.xlu0 %v5357, 80
      %v5432 = vpop.permute.xlu0 %5431
      %5433 = vrot.lane.b32.xlu0 %v5358, 80
      %v5434 = vpop.permute.xlu0 %5433
      %5435 = vrot.lane.b32.xlu0 %v5359, 80
      %v5436 = vpop.permute.xlu0 %5435
      %5437 = vrot.lane.b32.xlu0 %v5360, 80
      %v5438 = vpop.permute.xlu0 %5437
      %5439 = vrot.lane.b32.xlu0 %v5361, 80
      %v5440 = vpop.permute.xlu0 %5439
      %5441 = vrot.lane.b32.xlu0 %v5362, 80
      %v5442 = vpop.permute.xlu0 %5441
      %5443 = vrot.lane.b32.xlu0 %v5363, 80
      %v5444 = vpop.permute.xlu0 %5443
      %5445 = vrot.lane.b32.xlu0 %v5364, 80
      %v5446 = vpop.permute.xlu0 %5445
      %5447 = vrot.lane.b32.xlu0 %v5365, 80
      %v5448 = vpop.permute.xlu0 %5447
      %5449 = vrot.lane.b32.xlu0 %v5366, 80
      %v5450 = vpop.permute.xlu0 %5449
      %5451 = vrot.lane.b32.xlu0 %v5367, 80
      %v5452 = vpop.permute.xlu0 %5451
      %5453 = vrot.lane.b32.xlu0 %v5368, 80
      %v5454 = vpop.permute.xlu0 %5453
      %5455 = vrot.lane.b32.xlu0 %v5369, 80
      %v5456 = vpop.permute.xlu0 %5455
      %5457 = vrot.lane.b32.xlu0 %v5370, 80
      %v5458 = vpop.permute.xlu0 %5457
      %5459 = vrot.lane.b32.xlu0 %v5371, 80
      %v5460 = vpop.permute.xlu0 %5459
      %5461 = vrot.lane.b32.xlu0 %v5372, 80
      %v5462 = vpop.permute.xlu0 %5461
      %5463 = vrot.lane.b32.xlu0 %v5373, 80
      %v5464 = vpop.permute.xlu0 %5463
      %5465 = vrot.lane.b32.xlu0 %v5374, 80
      %v5466 = vpop.permute.xlu0 %5465
      %5467 = vrot.lane.b32.xlu0 %v5375, 80
      %v5468 = vpop.permute.xlu0 %5467
      %5469 = vrot.lane.b32.xlu0 %v5376, 80
      %v5470 = vpop.permute.xlu0 %5469
      %5471 = vrot.lane.b32.xlu0 %v5377, 80
      %v5472 = vpop.permute.xlu0 %5471
      %5473 = vrot.lane.b32.xlu0 %v5378, 80
      %v5474 = vpop.permute.xlu0 %5473
      %vm5507 = vcmask 753344
      %5508 = vst.msk [vmem:[#allocation3] sm:$0xff] %vm5507, %v5412
      %5509 = vst.msk [vmem:[#allocation3 + $0x10] sm:$0xff] %vm5507, %v5414
      %5510 = vst.msk [vmem:[#allocation3 + $0x20] sm:$0xff] %vm5507, %v5416
      %5511 = vst.msk [vmem:[#allocation3 + $0x30] sm:$0xff] %vm5507, %v5418
      %5512 = vst.msk [vmem:[#allocation3 + $0x40] sm:$0xff] %vm5507, %v5420
      %5513 = vst.msk [vmem:[#allocation3 + $0x50] sm:$0xff] %vm5507, %v5422
      %5514 = vst.msk [vmem:[#allocation3 + $0x60] sm:$0xff] %vm5507, %v5424
      %5515 = vst.msk [vmem:[#allocation3 + $0x70] sm:$0xff] %vm5507, %v5426
      %5516 = vst.msk [vmem:[#allocation3 + $0x80] sm:$0xff] %vm5507, %v5428
      %5517 = vst.msk [vmem:[#allocation3 + $0x90] sm:$0xff] %vm5507, %v5430
      %5518 = vst.msk [vmem:[#allocation3 + $0xa0] sm:$0xff] %vm5507, %v5432
      %5519 = vst.msk [vmem:[#allocation3 + $0xb0] sm:$0xff] %vm5507, %v5434
      %5520 = vst.msk [vmem:[#allocation3 + $0xc0] sm:$0xff] %vm5507, %v5436
      %5521 = vst.msk [vmem:[#allocation3 + $0xd0] sm:$0xff] %vm5507, %v5438
      %5522 = vst.msk [vmem:[#allocation3 + $0xe0] sm:$0xff] %vm5507, %v5440
      %5523 = vst.msk [vmem:[#allocation3 + $0xf0] sm:$0xff] %vm5507, %v5442
      %5524 = vst.msk [vmem:[#allocation3 + $0x100] sm:$0xff] %vm5507, %v5444
      %5525 = vst.msk [vmem:[#allocation3 + $0x110] sm:$0xff] %vm5507, %v5446
      %5526 = vst.msk [vmem:[#allocation3 + $0x120] sm:$0xff] %vm5507, %v5448
      %5527 = vst.msk [vmem:[#allocation3 + $0x130] sm:$0xff] %vm5507, %v5450
      %5528 = vst.msk [vmem:[#allocation3 + $0x140] sm:$0xff] %vm5507, %v5452
      %5529 = vst.msk [vmem:[#allocation3 + $0x150] sm:$0xff] %vm5507, %v5454
      %5530 = vst.msk [vmem:[#allocation3 + $0x160] sm:$0xff] %vm5507, %v5456
      %5531 = vst.msk [vmem:[#allocation3 + $0x170] sm:$0xff] %vm5507, %v5458
      %5532 = vst.msk [vmem:[#allocation3 + $0x180] sm:$0xff] %vm5507, %v5460
      %5533 = vst.msk [vmem:[#allocation3 + $0x190] sm:$0xff] %vm5507, %v5462
      %5534 = vst.msk [vmem:[#allocation3 + $0x1a0] sm:$0xff] %vm5507, %v5464
      %5535 = vst.msk [vmem:[#allocation3 + $0x1b0] sm:$0xff] %vm5507, %v5466
      %5536 = vst.msk [vmem:[#allocation3 + $0x1c0] sm:$0xff] %vm5507, %v5468
      %5537 = vst.msk [vmem:[#allocation3 + $0x1d0] sm:$0xff] %vm5507, %v5470
      %5538 = vst.msk [vmem:[#allocation3 + $0x1e0] sm:$0xff] %vm5507, %v5472
      %5539 = vst.msk [vmem:[#allocation3 + $0x1f0] sm:$0xff] %vm5507, %v5474
      %v5540 = vld [vmem:[%s1386] sm:$0xff]
      %v5541 = vld [vmem:[%s1386 + $0x8] sm:$0xff]
      %v5542 = vld [vmem:[%s1386 + $0x18] sm:$0xff]
      %v5543 = vld [vmem:[%s1386 + $0x20] sm:$0xff]
      %v5544 = vld [vmem:[%s1386 + $0x30] sm:$0xff]
      %v5545 = vld [vmem:[%s1386 + $0x38] sm:$0xff]
      %v5546 = vld [vmem:[%s1386 + $0x48] sm:$0xff]
      %v5547 = vld [vmem:[%s1386 + $0x50] sm:$0xff]
      %v5548 = vld [vmem:[%s1386 + $0x60] sm:$0xff]
      %v5549 = vld [vmem:[%s1386 + $0x68] sm:$0xff]
      %v5550 = vld [vmem:[%s1386 + $0x78] sm:$0xff]
      %v5551 = vld [vmem:[%s1386 + $0x80] sm:$0xff]
      %v5552 = vld [vmem:[%s1386 + $0x90] sm:$0xff]
      %v5553 = vld [vmem:[%s1386 + $0x98] sm:$0xff]
      %v5554 = vld [vmem:[%s1386 + $0xa8] sm:$0xff]
      %v5555 = vld [vmem:[%s1386 + $0xb0] sm:$0xff]
      %v5556 = vld [vmem:[%s1386 + $0xc0] sm:$0xff]
      %v5557 = vld [vmem:[%s1386 + $0xc8] sm:$0xff]
      %v5558 = vld [vmem:[%s1386 + $0xd8] sm:$0xff]
      %v5559 = vld [vmem:[%s1386 + $0xe0] sm:$0xff]
      %v5560 = vld [vmem:[%s1386 + $0xf0] sm:$0xff]
      %v5561 = vld [vmem:[%s1386 + $0xf8] sm:$0xff]
      %v5562 = vld [vmem:[%s1386 + $0x108] sm:$0xff]
      %v5563 = vld [vmem:[%s1386 + $0x110] sm:$0xff]
      %v5564 = vld [vmem:[%s1386 + $0x120] sm:$0xff]
      %v5565 = vld [vmem:[%s1386 + $0x128] sm:$0xff]
      %v5566 = vld [vmem:[%s1386 + $0x138] sm:$0xff]
      %v5567 = vld [vmem:[%s1386 + $0x140] sm:$0xff]
      %v5568 = vld [vmem:[%s1386 + $0x150] sm:$0xff]
      %v5569 = vld [vmem:[%s1386 + $0x158] sm:$0xff]
      %v5570 = vld [vmem:[%s1386 + $0x168] sm:$0xff]
      %v5571 = vld [vmem:[%s1386 + $0x170] sm:$0xff]
      %5604 = vrot.lane.b32.xlu0 %v5540, 96
      %v5605 = vpop.permute.xlu0 %5604
      %5606 = vrot.lane.b32.xlu0 %v5541, 96
      %v5607 = vpop.permute.xlu0 %5606
      %5608 = vrot.lane.b32.xlu0 %v5542, 96
      %v5609 = vpop.permute.xlu0 %5608
      %5610 = vrot.lane.b32.xlu0 %v5543, 96
      %v5611 = vpop.permute.xlu0 %5610
      %5612 = vrot.lane.b32.xlu0 %v5544, 96
      %v5613 = vpop.permute.xlu0 %5612
      %5614 = vrot.lane.b32.xlu0 %v5545, 96
      %v5615 = vpop.permute.xlu0 %5614
      %5616 = vrot.lane.b32.xlu0 %v5546, 96
      %v5617 = vpop.permute.xlu0 %5616
      %5618 = vrot.lane.b32.xlu0 %v5547, 96
      %v5619 = vpop.permute.xlu0 %5618
      %5620 = vrot.lane.b32.xlu0 %v5548, 96
      %v5621 = vpop.permute.xlu0 %5620
      %5622 = vrot.lane.b32.xlu0 %v5549, 96
      %v5623 = vpop.permute.xlu0 %5622
      %5624 = vrot.lane.b32.xlu0 %v5550, 96
      %v5625 = vpop.permute.xlu0 %5624
      %5626 = vrot.lane.b32.xlu0 %v5551, 96
      %v5627 = vpop.permute.xlu0 %5626
      %5628 = vrot.lane.b32.xlu0 %v5552, 96
      %v5629 = vpop.permute.xlu0 %5628
      %5630 = vrot.lane.b32.xlu0 %v5553, 96
      %v5631 = vpop.permute.xlu0 %5630
      %5632 = vrot.lane.b32.xlu0 %v5554, 96
      %v5633 = vpop.permute.xlu0 %5632
      %5634 = vrot.lane.b32.xlu0 %v5555, 96
      %v5635 = vpop.permute.xlu0 %5634
      %5636 = vrot.lane.b32.xlu0 %v5556, 96
      %v5637 = vpop.permute.xlu0 %5636
      %5638 = vrot.lane.b32.xlu0 %v5557, 96
      %v5639 = vpop.permute.xlu0 %5638
      %5640 = vrot.lane.b32.xlu0 %v5558, 96
      %v5641 = vpop.permute.xlu0 %5640
      %5642 = vrot.lane.b32.xlu0 %v5559, 96
      %v5643 = vpop.permute.xlu0 %5642
      %5644 = vrot.lane.b32.xlu0 %v5560, 96
      %v5645 = vpop.permute.xlu0 %5644
      %5646 = vrot.lane.b32.xlu0 %v5561, 96
      %v5647 = vpop.permute.xlu0 %5646
      %5648 = vrot.lane.b32.xlu0 %v5562, 96
      %v5649 = vpop.permute.xlu0 %5648
      %5650 = vrot.lane.b32.xlu0 %v5563, 96
      %v5651 = vpop.permute.xlu0 %5650
      %5652 = vrot.lane.b32.xlu0 %v5564, 96
      %v5653 = vpop.permute.xlu0 %5652
      %5654 = vrot.lane.b32.xlu0 %v5565, 96
      %v5655 = vpop.permute.xlu0 %5654
      %5656 = vrot.lane.b32.xlu0 %v5566, 96
      %v5657 = vpop.permute.xlu0 %5656
      %5658 = vrot.lane.b32.xlu0 %v5567, 96
      %v5659 = vpop.permute.xlu0 %5658
      %5660 = vrot.lane.b32.xlu0 %v5568, 96
      %v5661 = vpop.permute.xlu0 %5660
      %5662 = vrot.lane.b32.xlu0 %v5569, 96
      %v5663 = vpop.permute.xlu0 %5662
      %5664 = vrot.lane.b32.xlu0 %v5570, 96
      %v5665 = vpop.permute.xlu0 %5664
      %5666 = vrot.lane.b32.xlu0 %v5571, 96
      %v5667 = vpop.permute.xlu0 %5666
      %vm5700 = vcmask 884544
      %5701 = vst.msk [vmem:[#allocation3] sm:$0xff] %vm5700, %v5605
      %5702 = vst.msk [vmem:[#allocation3 + $0x10] sm:$0xff] %vm5700, %v5607
      %5703 = vst.msk [vmem:[#allocation3 + $0x20] sm:$0xff] %vm5700, %v5609
      %5704 = vst.msk [vmem:[#allocation3 + $0x30] sm:$0xff] %vm5700, %v5611
      %5705 = vst.msk [vmem:[#allocation3 + $0x40] sm:$0xff] %vm5700, %v5613
      %5706 = vst.msk [vmem:[#allocation3 + $0x50] sm:$0xff] %vm5700, %v5615
      %5707 = vst.msk [vmem:[#allocation3 + $0x60] sm:$0xff] %vm5700, %v5617
      %5708 = vst.msk [vmem:[#allocation3 + $0x70] sm:$0xff] %vm5700, %v5619
      %5709 = vst.msk [vmem:[#allocation3 + $0x80] sm:$0xff] %vm5700, %v5621
      %5710 = vst.msk [vmem:[#allocation3 + $0x90] sm:$0xff] %vm5700, %v5623
      %5711 = vst.msk [vmem:[#allocation3 + $0xa0] sm:$0xff] %vm5700, %v5625
      %5712 = vst.msk [vmem:[#allocation3 + $0xb0] sm:$0xff] %vm5700, %v5627
      %5713 = vst.msk [vmem:[#allocation3 + $0xc0] sm:$0xff] %vm5700, %v5629
      %5714 = vst.msk [vmem:[#allocation3 + $0xd0] sm:$0xff] %vm5700, %v5631
      %5715 = vst.msk [vmem:[#allocation3 + $0xe0] sm:$0xff] %vm5700, %v5633
      %5716 = vst.msk [vmem:[#allocation3 + $0xf0] sm:$0xff] %vm5700, %v5635
      %5717 = vst.msk [vmem:[#allocation3 + $0x100] sm:$0xff] %vm5700, %v5637
      %5718 = vst.msk [vmem:[#allocation3 + $0x110] sm:$0xff] %vm5700, %v5639
      %5719 = vst.msk [vmem:[#allocation3 + $0x120] sm:$0xff] %vm5700, %v5641
      %5720 = vst.msk [vmem:[#allocation3 + $0x130] sm:$0xff] %vm5700, %v5643
      %5721 = vst.msk [vmem:[#allocation3 + $0x140] sm:$0xff] %vm5700, %v5645
      %5722 = vst.msk [vmem:[#allocation3 + $0x150] sm:$0xff] %vm5700, %v5647
      %5723 = vst.msk [vmem:[#allocation3 + $0x160] sm:$0xff] %vm5700, %v5649
      %5724 = vst.msk [vmem:[#allocation3 + $0x170] sm:$0xff] %vm5700, %v5651
      %5725 = vst.msk [vmem:[#allocation3 + $0x180] sm:$0xff] %vm5700, %v5653
      %5726 = vst.msk [vmem:[#allocation3 + $0x190] sm:$0xff] %vm5700, %v5655
      %5727 = vst.msk [vmem:[#allocation3 + $0x1a0] sm:$0xff] %vm5700, %v5657
      %5728 = vst.msk [vmem:[#allocation3 + $0x1b0] sm:$0xff] %vm5700, %v5659
      %5729 = vst.msk [vmem:[#allocation3 + $0x1c0] sm:$0xff] %vm5700, %v5661
      %5730 = vst.msk [vmem:[#allocation3 + $0x1d0] sm:$0xff] %vm5700, %v5663
      %5731 = vst.msk [vmem:[#allocation3 + $0x1e0] sm:$0xff] %vm5700, %v5665
      %5732 = vst.msk [vmem:[#allocation3 + $0x1f0] sm:$0xff] %vm5700, %v5667
      %v5733 = vld [vmem:[%s1386 + $0x1] sm:$0xff]
      %v5734 = vld [vmem:[%s1386 + $0x9] sm:$0xff]
      %v5735 = vld [vmem:[%s1386 + $0x19] sm:$0xff]
      %v5736 = vld [vmem:[%s1386 + $0x21] sm:$0xff]
      %v5737 = vld [vmem:[%s1386 + $0x31] sm:$0xff]
      %v5738 = vld [vmem:[%s1386 + $0x39] sm:$0xff]
      %v5739 = vld [vmem:[%s1386 + $0x49] sm:$0xff]
      %v5740 = vld [vmem:[%s1386 + $0x51] sm:$0xff]
      %v5741 = vld [vmem:[%s1386 + $0x61] sm:$0xff]
      %v5742 = vld [vmem:[%s1386 + $0x69] sm:$0xff]
      %v5743 = vld [vmem:[%s1386 + $0x79] sm:$0xff]
      %v5744 = vld [vmem:[%s1386 + $0x81] sm:$0xff]
      %v5745 = vld [vmem:[%s1386 + $0x91] sm:$0xff]
      %v5746 = vld [vmem:[%s1386 + $0x99] sm:$0xff]
      %v5747 = vld [vmem:[%s1386 + $0xa9] sm:$0xff]
      %v5748 = vld [vmem:[%s1386 + $0xb1] sm:$0xff]
      %v5749 = vld [vmem:[%s1386 + $0xc1] sm:$0xff]
      %v5750 = vld [vmem:[%s1386 + $0xc9] sm:$0xff]
      %v5751 = vld [vmem:[%s1386 + $0xd9] sm:$0xff]
      %v5752 = vld [vmem:[%s1386 + $0xe1] sm:$0xff]
      %v5753 = vld [vmem:[%s1386 + $0xf1] sm:$0xff]
      %v5754 = vld [vmem:[%s1386 + $0xf9] sm:$0xff]
      %v5755 = vld [vmem:[%s1386 + $0x109] sm:$0xff]
      %v5756 = vld [vmem:[%s1386 + $0x111] sm:$0xff]
      %v5757 = vld [vmem:[%s1386 + $0x121] sm:$0xff]
      %v5758 = vld [vmem:[%s1386 + $0x129] sm:$0xff]
      %v5759 = vld [vmem:[%s1386 + $0x139] sm:$0xff]
      %v5760 = vld [vmem:[%s1386 + $0x141] sm:$0xff]
      %v5761 = vld [vmem:[%s1386 + $0x151] sm:$0xff]
      %v5762 = vld [vmem:[%s1386 + $0x159] sm:$0xff]
      %v5763 = vld [vmem:[%s1386 + $0x169] sm:$0xff]
      %v5764 = vld [vmem:[%s1386 + $0x171] sm:$0xff]
      %5797 = vrot.lane.b32.xlu0 %v5733, 112
      %v5798 = vpop.permute.xlu0 %5797
      %5799 = vrot.lane.b32.xlu0 %v5734, 112
      %v5800 = vpop.permute.xlu0 %5799
      %5801 = vrot.lane.b32.xlu0 %v5735, 112
      %v5802 = vpop.permute.xlu0 %5801
      %5803 = vrot.lane.b32.xlu0 %v5736, 112
      %v5804 = vpop.permute.xlu0 %5803
      %5805 = vrot.lane.b32.xlu0 %v5737, 112
      %v5806 = vpop.permute.xlu0 %5805
      %5807 = vrot.lane.b32.xlu0 %v5738, 112
      %v5808 = vpop.permute.xlu0 %5807
      %5809 = vrot.lane.b32.xlu0 %v5739, 112
      %v5810 = vpop.permute.xlu0 %5809
      %5811 = vrot.lane.b32.xlu0 %v5740, 112
      %v5812 = vpop.permute.xlu0 %5811
      %5813 = vrot.lane.b32.xlu0 %v5741, 112
      %v5814 = vpop.permute.xlu0 %5813
      %5815 = vrot.lane.b32.xlu0 %v5742, 112
      %v5816 = vpop.permute.xlu0 %5815
      %5817 = vrot.lane.b32.xlu0 %v5743, 112
      %v5818 = vpop.permute.xlu0 %5817
      %5819 = vrot.lane.b32.xlu0 %v5744, 112
      %v5820 = vpop.permute.xlu0 %5819
      %5821 = vrot.lane.b32.xlu0 %v5745, 112
      %v5822 = vpop.permute.xlu0 %5821
      %5823 = vrot.lane.b32.xlu0 %v5746, 112
      %v5824 = vpop.permute.xlu0 %5823
      %5825 = vrot.lane.b32.xlu0 %v5747, 112
      %v5826 = vpop.permute.xlu0 %5825
      %5827 = vrot.lane.b32.xlu0 %v5748, 112
      %v5828 = vpop.permute.xlu0 %5827
      %5829 = vrot.lane.b32.xlu0 %v5749, 112
      %v5830 = vpop.permute.xlu0 %5829
      %5831 = vrot.lane.b32.xlu0 %v5750, 112
      %v5832 = vpop.permute.xlu0 %5831
      %5833 = vrot.lane.b32.xlu0 %v5751, 112
      %v5834 = vpop.permute.xlu0 %5833
      %5835 = vrot.lane.b32.xlu0 %v5752, 112
      %v5836 = vpop.permute.xlu0 %5835
      %5837 = vrot.lane.b32.xlu0 %v5753, 112
      %v5838 = vpop.permute.xlu0 %5837
      %5839 = vrot.lane.b32.xlu0 %v5754, 112
      %v5840 = vpop.permute.xlu0 %5839
      %5841 = vrot.lane.b32.xlu0 %v5755, 112
      %v5842 = vpop.permute.xlu0 %5841
      %5843 = vrot.lane.b32.xlu0 %v5756, 112
      %v5844 = vpop.permute.xlu0 %5843
      %5845 = vrot.lane.b32.xlu0 %v5757, 112
      %v5846 = vpop.permute.xlu0 %5845
      %5847 = vrot.lane.b32.xlu0 %v5758, 112
      %v5848 = vpop.permute.xlu0 %5847
      %5849 = vrot.lane.b32.xlu0 %v5759, 112
      %v5850 = vpop.permute.xlu0 %5849
      %5851 = vrot.lane.b32.xlu0 %v5760, 112
      %v5852 = vpop.permute.xlu0 %5851
      %5853 = vrot.lane.b32.xlu0 %v5761, 112
      %v5854 = vpop.permute.xlu0 %5853
      %5855 = vrot.lane.b32.xlu0 %v5762, 112
      %v5856 = vpop.permute.xlu0 %5855
      %5857 = vrot.lane.b32.xlu0 %v5763, 112
      %v5858 = vpop.permute.xlu0 %5857
      %5859 = vrot.lane.b32.xlu0 %v5764, 112
      %v5860 = vpop.permute.xlu0 %5859
      %vm5893 = vcmask 1015744
      %5894 = vst.msk [vmem:[#allocation3] sm:$0xff] %vm5893, %v5798
      %5895 = vst.msk [vmem:[#allocation3 + $0x10] sm:$0xff] %vm5893, %v5800
      %5896 = vst.msk [vmem:[#allocation3 + $0x20] sm:$0xff] %vm5893, %v5802
      %5897 = vst.msk [vmem:[#allocation3 + $0x30] sm:$0xff] %vm5893, %v5804
      %5898 = vst.msk [vmem:[#allocation3 + $0x40] sm:$0xff] %vm5893, %v5806
      %5899 = vst.msk [vmem:[#allocation3 + $0x50] sm:$0xff] %vm5893, %v5808
      %5900 = vst.msk [vmem:[#allocation3 + $0x60] sm:$0xff] %vm5893, %v5810
      %5901 = vst.msk [vmem:[#allocation3 + $0x70] sm:$0xff] %vm5893, %v5812
      %5902 = vst.msk [vmem:[#allocation3 + $0x80] sm:$0xff] %vm5893, %v5814
      %5903 = vst.msk [vmem:[#allocation3 + $0x90] sm:$0xff] %vm5893, %v5816
      %5904 = vst.msk [vmem:[#allocation3 + $0xa0] sm:$0xff] %vm5893, %v5818
      %5905 = vst.msk [vmem:[#allocation3 + $0xb0] sm:$0xff] %vm5893, %v5820
      %5906 = vst.msk [vmem:[#allocation3 + $0xc0] sm:$0xff] %vm5893, %v5822
      %5907 = vst.msk [vmem:[#allocation3 + $0xd0] sm:$0xff] %vm5893, %v5824
      %5908 = vst.msk [vmem:[#allocation3 + $0xe0] sm:$0xff] %vm5893, %v5826
      %5909 = vst.msk [vmem:[#allocation3 + $0xf0] sm:$0xff] %vm5893, %v5828
      %5910 = vst.msk [vmem:[#allocation3 + $0x100] sm:$0xff] %vm5893, %v5830
      %5911 = vst.msk [vmem:[#allocation3 + $0x110] sm:$0xff] %vm5893, %v5832
      %5912 = vst.msk [vmem:[#allocation3 + $0x120] sm:$0xff] %vm5893, %v5834
      %5913 = vst.msk [vmem:[#allocation3 + $0x130] sm:$0xff] %vm5893, %v5836
      %5914 = vst.msk [vmem:[#allocation3 + $0x140] sm:$0xff] %vm5893, %v5838
      %5915 = vst.msk [vmem:[#allocation3 + $0x150] sm:$0xff] %vm5893, %v5840
      %5916 = vst.msk [vmem:[#allocation3 + $0x160] sm:$0xff] %vm5893, %v5842
      %5917 = vst.msk [vmem:[#allocation3 + $0x170] sm:$0xff] %vm5893, %v5844
      %5918 = vst.msk [vmem:[#allocation3 + $0x180] sm:$0xff] %vm5893, %v5846
      %5919 = vst.msk [vmem:[#allocation3 + $0x190] sm:$0xff] %vm5893, %v5848
      %5920 = vst.msk [vmem:[#allocation3 + $0x1a0] sm:$0xff] %vm5893, %v5850
      %5921 = vst.msk [vmem:[#allocation3 + $0x1b0] sm:$0xff] %vm5893, %v5852
      %5922 = vst.msk [vmem:[#allocation3 + $0x1c0] sm:$0xff] %vm5893, %v5854
      %5923 = vst.msk [vmem:[#allocation3 + $0x1d0] sm:$0xff] %vm5893, %v5856
      %5924 = vst.msk [vmem:[#allocation3 + $0x1e0] sm:$0xff] %vm5893, %v5858
      %5925 = vst.msk [vmem:[#allocation3 + $0x1f0] sm:$0xff] %vm5893, %v5860
      %v5926 = vld [vmem:[%s1386 + $0x2] sm:$0xff]
      %v5927 = vld [vmem:[%s1386 + $0xa] sm:$0xff]
      %v5928 = vld [vmem:[%s1386 + $0x1a] sm:$0xff]
      %v5929 = vld [vmem:[%s1386 + $0x22] sm:$0xff]
      %v5930 = vld [vmem:[%s1386 + $0x32] sm:$0xff]
      %v5931 = vld [vmem:[%s1386 + $0x3a] sm:$0xff]
      %v5932 = vld [vmem:[%s1386 + $0x4a] sm:$0xff]
      %v5933 = vld [vmem:[%s1386 + $0x52] sm:$0xff]
      %v5934 = vld [vmem:[%s1386 + $0x62] sm:$0xff]
      %v5935 = vld [vmem:[%s1386 + $0x6a] sm:$0xff]
      %v5936 = vld [vmem:[%s1386 + $0x7a] sm:$0xff]
      %v5937 = vld [vmem:[%s1386 + $0x82] sm:$0xff]
      %v5938 = vld [vmem:[%s1386 + $0x92] sm:$0xff]
      %v5939 = vld [vmem:[%s1386 + $0x9a] sm:$0xff]
      %v5940 = vld [vmem:[%s1386 + $0xaa] sm:$0xff]
      %v5941 = vld [vmem:[%s1386 + $0xb2] sm:$0xff]
      %v5942 = vld [vmem:[%s1386 + $0xc2] sm:$0xff]
      %v5943 = vld [vmem:[%s1386 + $0xca] sm:$0xff]
      %v5944 = vld [vmem:[%s1386 + $0xda] sm:$0xff]
      %v5945 = vld [vmem:[%s1386 + $0xe2] sm:$0xff]
      %v5946 = vld [vmem:[%s1386 + $0xf2] sm:$0xff]
      %v5947 = vld [vmem:[%s1386 + $0xfa] sm:$0xff]
      %v5948 = vld [vmem:[%s1386 + $0x10a] sm:$0xff]
      %v5949 = vld [vmem:[%s1386 + $0x112] sm:$0xff]
      %v5950 = vld [vmem:[%s1386 + $0x122] sm:$0xff]
      %v5951 = vld [vmem:[%s1386 + $0x12a] sm:$0xff]
      %v5952 = vld [vmem:[%s1386 + $0x13a] sm:$0xff]
      %v5953 = vld [vmem:[%s1386 + $0x142] sm:$0xff]
      %v5954 = vld [vmem:[%s1386 + $0x152] sm:$0xff]
      %v5955 = vld [vmem:[%s1386 + $0x15a] sm:$0xff]
      %v5956 = vld [vmem:[%s1386 + $0x16a] sm:$0xff]
      %v5957 = vld [vmem:[%s1386 + $0x172] sm:$0xff]
      %5958 = vst.msk [vmem:[#allocation3 + $0x8] sm:$0xff] %vm4478, %v5926
      %5959 = vst.msk [vmem:[#allocation3 + $0x18] sm:$0xff] %vm4478, %v5927
      %5960 = vst.msk [vmem:[#allocation3 + $0x28] sm:$0xff] %vm4478, %v5928
      %5961 = vst.msk [vmem:[#allocation3 + $0x38] sm:$0xff] %vm4478, %v5929
      %5962 = vst.msk [vmem:[#allocation3 + $0x48] sm:$0xff] %vm4478, %v5930
      %5963 = vst.msk [vmem:[#allocation3 + $0x58] sm:$0xff] %vm4478, %v5931
      %5964 = vst.msk [vmem:[#allocation3 + $0x68] sm:$0xff] %vm4478, %v5932
      %5965 = vst.msk [vmem:[#allocation3 + $0x78] sm:$0xff] %vm4478, %v5933
      %5966 = vst.msk [vmem:[#allocation3 + $0x88] sm:$0xff] %vm4478, %v5934
      %5967 = vst.msk [vmem:[#allocation3 + $0x98] sm:$0xff] %vm4478, %v5935
      %5968 = vst.msk [vmem:[#allocation3 + $0xa8] sm:$0xff] %vm4478, %v5936
      %5969 = vst.msk [vmem:[#allocation3 + $0xb8] sm:$0xff] %vm4478, %v5937
      %5970 = vst.msk [vmem:[#allocation3 + $0xc8] sm:$0xff] %vm4478, %v5938
      %5971 = vst.msk [vmem:[#allocation3 + $0xd8] sm:$0xff] %vm4478, %v5939
      %5972 = vst.msk [vmem:[#allocation3 + $0xe8] sm:$0xff] %vm4478, %v5940
      %5973 = vst.msk [vmem:[#allocation3 + $0xf8] sm:$0xff] %vm4478, %v5941
      %5974 = vst.msk [vmem:[#allocation3 + $0x108] sm:$0xff] %vm4478, %v5942
      %5975 = vst.msk [vmem:[#allocation3 + $0x118] sm:$0xff] %vm4478, %v5943
      %5976 = vst.msk [vmem:[#allocation3 + $0x128] sm:$0xff] %vm4478, %v5944
      %5977 = vst.msk [vmem:[#allocation3 + $0x138] sm:$0xff] %vm4478, %v5945
      %5978 = vst.msk [vmem:[#allocation3 + $0x148] sm:$0xff] %vm4478, %v5946
      %5979 = vst.msk [vmem:[#allocation3 + $0x158] sm:$0xff] %vm4478, %v5947
      %5980 = vst.msk [vmem:[#allocation3 + $0x168] sm:$0xff] %vm4478, %v5948
      %5981 = vst.msk [vmem:[#allocation3 + $0x178] sm:$0xff] %vm4478, %v5949
      %5982 = vst.msk [vmem:[#allocation3 + $0x188] sm:$0xff] %vm4478, %v5950
      %5983 = vst.msk [vmem:[#allocation3 + $0x198] sm:$0xff] %vm4478, %v5951
      %5984 = vst.msk [vmem:[#allocation3 + $0x1a8] sm:$0xff] %vm4478, %v5952
      %5985 = vst.msk [vmem:[#allocation3 + $0x1b8] sm:$0xff] %vm4478, %v5953
      %5986 = vst.msk [vmem:[#allocation3 + $0x1c8] sm:$0xff] %vm4478, %v5954
      %5987 = vst.msk [vmem:[#allocation3 + $0x1d8] sm:$0xff] %vm4478, %v5955
      %5988 = vst.msk [vmem:[#allocation3 + $0x1e8] sm:$0xff] %vm4478, %v5956
      %5989 = vst.msk [vmem:[#allocation3 + $0x1f8] sm:$0xff] %vm4478, %v5957
      %s5990 = scalar_lea.vmem %s1, 288
      %v5991 = vld [vmem:[%s5990] sm:$0xff]
      %v5992 = vld [vmem:[%s5990 + $0x8] sm:$0xff]
      %v5993 = vld [vmem:[%s5990 + $0x10] sm:$0xff]
      %v5994 = vld [vmem:[%s5990 + $0x18] sm:$0xff]
      %v5995 = vld [vmem:[%s5990 + $0x20] sm:$0xff]
      %v5996 = vld [vmem:[%s5990 + $0x28] sm:$0xff]
      %v5997 = vld [vmem:[%s5990 + $0x30] sm:$0xff]
      %v5998 = vld [vmem:[%s5990 + $0x38] sm:$0xff]
      %v5999 = vld [vmem:[%s5990 + $0x40] sm:$0xff]
      %v6000 = vld [vmem:[%s5990 + $0x48] sm:$0xff]
      %v6001 = vld [vmem:[%s5990 + $0x50] sm:$0xff]
      %v6002 = vld [vmem:[%s5990 + $0x58] sm:$0xff]
      %v6003 = vld [vmem:[%s5990 + $0x60] sm:$0xff]
      %v6004 = vld [vmem:[%s5990 + $0x68] sm:$0xff]
      %v6005 = vld [vmem:[%s5990 + $0x70] sm:$0xff]
      %v6006 = vld [vmem:[%s5990 + $0x78] sm:$0xff]
      %v6007 = vld [vmem:[%s5990 + $0x80] sm:$0xff]
      %v6008 = vld [vmem:[%s5990 + $0x88] sm:$0xff]
      %v6009 = vld [vmem:[#allocation3] sm:$0xff]
      %v6010 = vld [vmem:[#allocation3 + $0x8] sm:$0xff]
      %v6011 = vld [vmem:[#allocation3 + $0x10] sm:$0xff]
      %v6012 = vld [vmem:[#allocation3 + $0x18] sm:$0xff]
      %v6013 = vld [vmem:[#allocation3 + $0x20] sm:$0xff]
      %v6014 = vld [vmem:[#allocation3 + $0x28] sm:$0xff]
      %v6015 = vld [vmem:[#allocation3 + $0x30] sm:$0xff]
      %v6016 = vld [vmem:[#allocation3 + $0x38] sm:$0xff]
      %v6017 = vld [vmem:[#allocation3 + $0x40] sm:$0xff]
      %v6018 = vld [vmem:[#allocation3 + $0x48] sm:$0xff]
      %v6019 = vld [vmem:[#allocation3 + $0x50] sm:$0xff]
      %v6020 = vld [vmem:[#allocation3 + $0x58] sm:$0xff]
      %v6021 = vld [vmem:[#allocation3 + $0x60] sm:$0xff]
      %v6022 = vld [vmem:[#allocation3 + $0x68] sm:$0xff]
      %v6023 = vld [vmem:[#allocation3 + $0x70] sm:$0xff]
      %v6024 = vld [vmem:[#allocation3 + $0x78] sm:$0xff]
      %v6025 = vld [vmem:[#allocation3 + $0x80] sm:$0xff]
      %v6026 = vld [vmem:[#allocation3 + $0x88] sm:$0xff]
      %v6027 = vld [vmem:[#allocation3 + $0x90] sm:$0xff]
      %v6028 = vld [vmem:[#allocation3 + $0x98] sm:$0xff]
      %v6029 = vld [vmem:[#allocation3 + $0xa0] sm:$0xff]
      %v6030 = vld [vmem:[#allocation3 + $0xa8] sm:$0xff]
      %v6031 = vld [vmem:[#allocation3 + $0xb0] sm:$0xff]
      %v6032 = vld [vmem:[#allocation3 + $0xb8] sm:$0xff]
      %v6033 = vld [vmem:[#allocation3 + $0xc0] sm:$0xff]
      %v6034 = vld [vmem:[#allocation3 + $0xc8] sm:$0xff]
      %v6035 = vld [vmem:[#allocation3 + $0xd0] sm:$0xff]
      %v6036 = vld [vmem:[#allocation3 + $0xd8] sm:$0xff]
      %v6037 = vld [vmem:[#allocation3 + $0xe0] sm:$0xff]
      %v6038 = vld [vmem:[#allocation3 + $0xe8] sm:$0xff]
      %v6039 = vld [vmem:[#allocation3 + $0xf0] sm:$0xff]
      %v6040 = vld [vmem:[#allocation3 + $0xf8] sm:$0xff]
      %v6041 = vld [vmem:[#allocation3 + $0x100] sm:$0xff]
      %v6042 = vld [vmem:[#allocation3 + $0x108] sm:$0xff]
      %v6043 = vld [vmem:[#allocation3 + $0x110] sm:$0xff]
      %v6044 = vld [vmem:[#allocation3 + $0x118] sm:$0xff]
      %v6045 = vld [vmem:[#allocation3 + $0x120] sm:$0xff]
      %v6046 = vld [vmem:[#allocation3 + $0x128] sm:$0xff]
      %v6047 = vld [vmem:[#allocation3 + $0x130] sm:$0xff]
      %v6048 = vld [vmem:[#allocation3 + $0x138] sm:$0xff]
      %v6049 = vld [vmem:[#allocation3 + $0x140] sm:$0xff]
      %v6050 = vld [vmem:[#allocation3 + $0x148] sm:$0xff]
      %v6051 = vld [vmem:[#allocation3 + $0x150] sm:$0xff]
      %v6052 = vld [vmem:[#allocation3 + $0x158] sm:$0xff]
      %v6053 = vld [vmem:[#allocation3 + $0x160] sm:$0xff]
      %v6054 = vld [vmem:[#allocation3 + $0x168] sm:$0xff]
      %v6055 = vld [vmem:[#allocation3 + $0x170] sm:$0xff]
      %v6056 = vld [vmem:[#allocation3 + $0x178] sm:$0xff]
      %v6057 = vld [vmem:[#allocation3 + $0x180] sm:$0xff]
      %v6058 = vld [vmem:[#allocation3 + $0x188] sm:$0xff]
      %v6059 = vld [vmem:[#allocation3 + $0x190] sm:$0xff]
      %v6060 = vld [vmem:[#allocation3 + $0x198] sm:$0xff]
      %v6061 = vld [vmem:[#allocation3 + $0x1a0] sm:$0xff]
      %v6062 = vld [vmem:[#allocation3 + $0x1a8] sm:$0xff]
      %v6063 = vld [vmem:[#allocation3 + $0x1b0] sm:$0xff]
      %v6064 = vld [vmem:[#allocation3 + $0x1b8] sm:$0xff]
      %v6065 = vld [vmem:[#allocation3 + $0x1c0] sm:$0xff]
      %v6066 = vld [vmem:[#allocation3 + $0x1c8] sm:$0xff]
      %v6067 = vld [vmem:[#allocation3 + $0x1d0] sm:$0xff]
      %v6068 = vld [vmem:[#allocation3 + $0x1d8] sm:$0xff]
      %v6069 = vld [vmem:[#allocation3 + $0x1e0] sm:$0xff]
      %v6070 = vld [vmem:[#allocation3 + $0x1e8] sm:$0xff]
      %v6071 = vld [vmem:[#allocation3 + $0x1f0] sm:$0xff]
      %v6072 = vld [vmem:[#allocation3 + $0x1f8] sm:$0xff]
      %v6074 = vsel %vm171, %v6010, 0
      %v6077 = vsel %vm171, %v6012, 0
      %v6080 = vsel %vm171, %v6014, 0
      %v6083 = vsel %vm171, %v6016, 0
      %v6086 = vsel %vm171, %v6018, 0
      %v6089 = vsel %vm171, %v6020, 0
      %v6092 = vsel %vm171, %v6022, 0
      %v6095 = vsel %vm171, %v6024, 0
      %v6098 = vsel %vm171, %v6026, 0
      %v6101 = vsel %vm171, %v6028, 0
      %v6104 = vsel %vm171, %v6030, 0
      %v6107 = vsel %vm171, %v6032, 0
      %v6110 = vsel %vm171, %v6034, 0
      %v6113 = vsel %vm171, %v6036, 0
      %v6116 = vsel %vm171, %v6038, 0
      %v6119 = vsel %vm171, %v6040, 0
      %v6122 = vsel %vm171, %v6042, 0
      %v6125 = vsel %vm171, %v6044, 0
      %v6128 = vsel %vm171, %v6046, 0
      %v6131 = vsel %vm171, %v6048, 0
      %v6134 = vsel %vm171, %v6050, 0
      %v6137 = vsel %vm171, %v6052, 0
      %v6140 = vsel %vm171, %v6054, 0
      %v6143 = vsel %vm171, %v6056, 0
      %v6146 = vsel %vm171, %v6058, 0
      %v6149 = vsel %vm171, %v6060, 0
      %v6152 = vsel %vm171, %v6062, 0
      %v6155 = vsel %vm171, %v6064, 0
      %v6158 = vsel %vm171, %v6066, 0
      %v6161 = vsel %vm171, %v6068, 0
      %v6164 = vsel %vm171, %v6070, 0
      %v6167 = vsel %vm171, %v6072, 0
      %6169 = vmatpush.msra.mxu0 %v6006
      %6170 = vmatpush.msra.mxu0 %v6005
      %6171 = vmatpush.msra.mxu0 %v6004
      %6172 = vmatpush.msra.mxu0 %v6003
      %6173 = vmatpush.msra.mxu0 %v6002
      %6174 = vmatpush.msra.mxu0 %v6001
      %6175 = vmatpush.msra.mxu0 %v6000
      %6176 = vmatpush.msra.mxu0 %v5999
      %6177 = vmatpush.msra.mxu0 %v5998
      %6178 = vmatpush.msra.mxu0 %v5997
      %6179 = vmatpush.msra.mxu0 %v5996
      %6180 = vmatpush.msra.mxu0 %v5995
      %6181 = vmatpush.msra.mxu0 %v5994
      %6182 = vmatpush.msra.mxu0 %v5993
      %6183 = vmatpush.msra.mxu0 %v5992
      %6184 = vmatpush.msra.mxu0 %v5991
      %6185 = vmatmul.f32.gmra.mxu0 %v6009
      %v6186 = vpop.f32.mrf.mxu0
      %v6187 = vadd.f32 0.0, %v6186
      %6188 = vmatmul.f32.gmra.mxu0 %v6011
      %v6189 = vpop.f32.mrf.mxu0
      %v6190 = vadd.f32 0.0, %v6189
      %6191 = vmatmul.f32.gmra.mxu0 %v6013
      %v6192 = vpop.f32.mrf.mxu0
      %v6193 = vadd.f32 0.0, %v6192
      %6194 = vmatmul.f32.gmra.mxu0 %v6015
      %v6195 = vpop.f32.mrf.mxu0
      %v6196 = vadd.f32 0.0, %v6195
      %6197 = vmatmul.f32.gmra.mxu0 %v6017
      %v6198 = vpop.f32.mrf.mxu0
      %v6199 = vadd.f32 0.0, %v6198
      %6200 = vmatmul.f32.gmra.mxu0 %v6019
      %v6201 = vpop.f32.mrf.mxu0
      %v6202 = vadd.f32 0.0, %v6201
      %6203 = vmatmul.f32.gmra.mxu0 %v6021
      %v6204 = vpop.f32.mrf.mxu0
      %v6205 = vadd.f32 0.0, %v6204
      %6206 = vmatmul.f32.gmra.mxu0 %v6023
      %v6207 = vpop.f32.mrf.mxu0
      %v6208 = vadd.f32 0.0, %v6207
      %6209 = vmatmul.f32.gmra.mxu0 %v6025
      %v6210 = vpop.f32.mrf.mxu0
      %v6211 = vadd.f32 0.0, %v6210
      %6212 = vmatmul.f32.gmra.mxu0 %v6027
      %v6213 = vpop.f32.mrf.mxu0
      %v6214 = vadd.f32 0.0, %v6213
      %6215 = vmatmul.f32.gmra.mxu0 %v6029
      %v6216 = vpop.f32.mrf.mxu0
      %v6217 = vadd.f32 0.0, %v6216
      %6218 = vmatmul.f32.gmra.mxu0 %v6031
      %v6219 = vpop.f32.mrf.mxu0
      %v6220 = vadd.f32 0.0, %v6219
      %6221 = vmatmul.f32.gmra.mxu0 %v6033
      %v6222 = vpop.f32.mrf.mxu0
      %v6223 = vadd.f32 0.0, %v6222
      %6224 = vmatmul.f32.gmra.mxu0 %v6035
      %v6225 = vpop.f32.mrf.mxu0
      %v6226 = vadd.f32 0.0, %v6225
      %6227 = vmatmul.f32.gmra.mxu0 %v6037
      %v6228 = vpop.f32.mrf.mxu0
      %v6229 = vadd.f32 0.0, %v6228
      %6230 = vmatmul.f32.gmra.mxu0 %v6039
      %v6231 = vpop.f32.mrf.mxu0
      %v6232 = vadd.f32 0.0, %v6231
      %6233 = vmatmul.f32.gmra.mxu0 %v6041
      %v6234 = vpop.f32.mrf.mxu0
      %v6235 = vadd.f32 0.0, %v6234
      %6236 = vmatmul.f32.gmra.mxu0 %v6043
      %v6237 = vpop.f32.mrf.mxu0
      %v6238 = vadd.f32 0.0, %v6237
      %6239 = vmatmul.f32.gmra.mxu0 %v6045
      %v6240 = vpop.f32.mrf.mxu0
      %v6241 = vadd.f32 0.0, %v6240
      %6242 = vmatmul.f32.gmra.mxu0 %v6047
      %v6243 = vpop.f32.mrf.mxu0
      %v6244 = vadd.f32 0.0, %v6243
      %6245 = vmatmul.f32.gmra.mxu0 %v6049
      %v6246 = vpop.f32.mrf.mxu0
      %v6247 = vadd.f32 0.0, %v6246
      %6248 = vmatmul.f32.gmra.mxu0 %v6051
      %v6249 = vpop.f32.mrf.mxu0
      %v6250 = vadd.f32 0.0, %v6249
      %6251 = vmatmul.f32.gmra.mxu0 %v6053
      %v6252 = vpop.f32.mrf.mxu0
      %v6253 = vadd.f32 0.0, %v6252
      %6254 = vmatmul.f32.gmra.mxu0 %v6055
      %v6255 = vpop.f32.mrf.mxu0
      %v6256 = vadd.f32 0.0, %v6255
      %6257 = vmatmul.f32.gmra.mxu0 %v6057
      %v6258 = vpop.f32.mrf.mxu0
      %v6259 = vadd.f32 0.0, %v6258
      %6260 = vmatmul.f32.gmra.mxu0 %v6059
      %v6261 = vpop.f32.mrf.mxu0
      %v6262 = vadd.f32 0.0, %v6261
      %6263 = vmatmul.f32.gmra.mxu0 %v6061
      %v6264 = vpop.f32.mrf.mxu0
      %v6265 = vadd.f32 0.0, %v6264
      %6266 = vmatmul.f32.gmra.mxu0 %v6063
      %v6267 = vpop.f32.mrf.mxu0
      %v6268 = vadd.f32 0.0, %v6267
      %6269 = vmatmul.f32.gmra.mxu0 %v6065
      %v6270 = vpop.f32.mrf.mxu0
      %v6271 = vadd.f32 0.0, %v6270
      %6272 = vmatmul.f32.gmra.mxu0 %v6067
      %v6273 = vpop.f32.mrf.mxu0
      %v6274 = vadd.f32 0.0, %v6273
      %6275 = vmatmul.f32.gmra.mxu0 %v6069
      %v6276 = vpop.f32.mrf.mxu0
      %v6277 = vadd.f32 0.0, %v6276
      %6278 = vmatmul.f32.gmra.mxu0 %v6071
      %v6279 = vpop.f32.mrf.mxu0
      %v6280 = vadd.f32 0.0, %v6279
      %6281 = vdwg.mxu0
      %6282 = vmatpush.msra.mxu0 0.0
      %6283 = vmatpush.msra.mxu0 0.0
      %6284 = vmatpush.msra.mxu0 0.0
      %6285 = vmatpush.msra.mxu0 0.0
      %6286 = vmatpush.msra.mxu0 0.0
      %6287 = vmatpush.msra.mxu0 0.0
      %6288 = vmatpush.msra.mxu0 0.0
      %6289 = vmatpush.msra.mxu0 0.0
      %6290 = vmatpush.msra.mxu0 0.0
      %6291 = vmatpush.msra.mxu0 0.0
      %6292 = vmatpush.msra.mxu0 0.0
      %6293 = vmatpush.msra.mxu0 0.0
      %6294 = vmatpush.msra.mxu0 0.0
      %6295 = vmatpush.msra.mxu0 0.0
      %6296 = vmatpush.msra.mxu0 %v6008
      %6297 = vmatpush.msra.mxu0 %v6007
      %6298 = vmatmul.f32.gmra.mxu0 %v6074
      %v6299 = vpop.f32.mrf.mxu0
      %v6300 = vadd.f32 %v6187, %v6299
      %6301 = vmatmul.f32.gmra.mxu0 %v6077
      %v6302 = vpop.f32.mrf.mxu0
      %v6303 = vadd.f32 %v6190, %v6302
      %6304 = vmatmul.f32.gmra.mxu0 %v6080
      %v6305 = vpop.f32.mrf.mxu0
      %v6306 = vadd.f32 %v6193, %v6305
      %6307 = vmatmul.f32.gmra.mxu0 %v6083
      %v6308 = vpop.f32.mrf.mxu0
      %v6309 = vadd.f32 %v6196, %v6308
      %6310 = vmatmul.f32.gmra.mxu0 %v6086
      %v6311 = vpop.f32.mrf.mxu0
      %v6312 = vadd.f32 %v6199, %v6311
      %6313 = vmatmul.f32.gmra.mxu0 %v6089
      %v6314 = vpop.f32.mrf.mxu0
      %v6315 = vadd.f32 %v6202, %v6314
      %6316 = vmatmul.f32.gmra.mxu0 %v6092
      %v6317 = vpop.f32.mrf.mxu0
      %v6318 = vadd.f32 %v6205, %v6317
      %6319 = vmatmul.f32.gmra.mxu0 %v6095
      %v6320 = vpop.f32.mrf.mxu0
      %v6321 = vadd.f32 %v6208, %v6320
      %6322 = vmatmul.f32.gmra.mxu0 %v6098
      %v6323 = vpop.f32.mrf.mxu0
      %v6324 = vadd.f32 %v6211, %v6323
      %6325 = vmatmul.f32.gmra.mxu0 %v6101
      %v6326 = vpop.f32.mrf.mxu0
      %v6327 = vadd.f32 %v6214, %v6326
      %6328 = vmatmul.f32.gmra.mxu0 %v6104
      %v6329 = vpop.f32.mrf.mxu0
      %v6330 = vadd.f32 %v6217, %v6329
      %6331 = vmatmul.f32.gmra.mxu0 %v6107
      %v6332 = vpop.f32.mrf.mxu0
      %v6333 = vadd.f32 %v6220, %v6332
      %6334 = vmatmul.f32.gmra.mxu0 %v6110
      %v6335 = vpop.f32.mrf.mxu0
      %v6336 = vadd.f32 %v6223, %v6335
      %6337 = vmatmul.f32.gmra.mxu0 %v6113
      %v6338 = vpop.f32.mrf.mxu0
      %v6339 = vadd.f32 %v6226, %v6338
      %6340 = vmatmul.f32.gmra.mxu0 %v6116
      %v6341 = vpop.f32.mrf.mxu0
      %v6342 = vadd.f32 %v6229, %v6341
      %6343 = vmatmul.f32.gmra.mxu0 %v6119
      %v6344 = vpop.f32.mrf.mxu0
      %v6345 = vadd.f32 %v6232, %v6344
      %6346 = vmatmul.f32.gmra.mxu0 %v6122
      %v6347 = vpop.f32.mrf.mxu0
      %v6348 = vadd.f32 %v6235, %v6347
      %6349 = vmatmul.f32.gmra.mxu0 %v6125
      %v6350 = vpop.f32.mrf.mxu0
      %v6351 = vadd.f32 %v6238, %v6350
      %6352 = vmatmul.f32.gmra.mxu0 %v6128
      %v6353 = vpop.f32.mrf.mxu0
      %v6354 = vadd.f32 %v6241, %v6353
      %6355 = vmatmul.f32.gmra.mxu0 %v6131
      %v6356 = vpop.f32.mrf.mxu0
      %v6357 = vadd.f32 %v6244, %v6356
      %6358 = vmatmul.f32.gmra.mxu0 %v6134
      %v6359 = vpop.f32.mrf.mxu0
      %v6360 = vadd.f32 %v6247, %v6359
      %6361 = vmatmul.f32.gmra.mxu0 %v6137
      %v6362 = vpop.f32.mrf.mxu0
      %v6363 = vadd.f32 %v6250, %v6362
      %6364 = vmatmul.f32.gmra.mxu0 %v6140
      %v6365 = vpop.f32.mrf.mxu0
      %v6366 = vadd.f32 %v6253, %v6365
      %6367 = vmatmul.f32.gmra.mxu0 %v6143
      %v6368 = vpop.f32.mrf.mxu0
      %v6369 = vadd.f32 %v6256, %v6368
      %6370 = vmatmul.f32.gmra.mxu0 %v6146
      %v6371 = vpop.f32.mrf.mxu0
      %v6372 = vadd.f32 %v6259, %v6371
      %6373 = vmatmul.f32.gmra.mxu0 %v6149
      %v6374 = vpop.f32.mrf.mxu0
      %v6375 = vadd.f32 %v6262, %v6374
      %6376 = vmatmul.f32.gmra.mxu0 %v6152
      %v6377 = vpop.f32.mrf.mxu0
      %v6378 = vadd.f32 %v6265, %v6377
      %6379 = vmatmul.f32.gmra.mxu0 %v6155
      %v6380 = vpop.f32.mrf.mxu0
      %v6381 = vadd.f32 %v6268, %v6380
      %6382 = vmatmul.f32.gmra.mxu0 %v6158
      %v6383 = vpop.f32.mrf.mxu0
      %v6384 = vadd.f32 %v6271, %v6383
      %6385 = vmatmul.f32.gmra.mxu0 %v6161
      %v6386 = vpop.f32.mrf.mxu0
      %v6387 = vadd.f32 %v6274, %v6386
      %6388 = vmatmul.f32.gmra.mxu0 %v6164
      %v6389 = vpop.f32.mrf.mxu0
      %v6390 = vadd.f32 %v6277, %v6389
      %6391 = vmatmul.f32.gmra.mxu0 %v6167
      %v6392 = vpop.f32.mrf.mxu0
      %v6393 = vadd.f32 %v6280, %v6392
      %6394 = vdwg.mxu0
      %v6395 = vmax.f32 %v6300, 0.0
      %v6396 = vmax.f32 %v6303, 0.0
      %v6397 = vmax.f32 %v6306, 0.0
      %v6398 = vmax.f32 %v6309, 0.0
      %v6399 = vmax.f32 %v6312, 0.0
      %v6400 = vmax.f32 %v6315, 0.0
      %v6401 = vmax.f32 %v6318, 0.0
      %v6402 = vmax.f32 %v6321, 0.0
      %v6403 = vmax.f32 %v6324, 0.0
      %v6404 = vmax.f32 %v6327, 0.0
      %v6405 = vmax.f32 %v6330, 0.0
      %v6406 = vmax.f32 %v6333, 0.0
      %v6407 = vmax.f32 %v6336, 0.0
      %v6408 = vmax.f32 %v6339, 0.0
      %v6409 = vmax.f32 %v6342, 0.0
      %v6410 = vmax.f32 %v6345, 0.0
      %v6411 = vmax.f32 %v6348, 0.0
      %v6412 = vmax.f32 %v6351, 0.0
      %v6413 = vmax.f32 %v6354, 0.0
      %v6414 = vmax.f32 %v6357, 0.0
      %v6415 = vmax.f32 %v6360, 0.0
      %v6416 = vmax.f32 %v6363, 0.0
      %v6417 = vmax.f32 %v6366, 0.0
      %v6418 = vmax.f32 %v6369, 0.0
      %v6419 = vmax.f32 %v6372, 0.0
      %v6420 = vmax.f32 %v6375, 0.0
      %v6421 = vmax.f32 %v6378, 0.0
      %v6422 = vmax.f32 %v6381, 0.0
      %v6423 = vmax.f32 %v6384, 0.0
      %v6424 = vmax.f32 %v6387, 0.0
      %v6425 = vmax.f32 %v6390, 0.0
      %v6426 = vmax.f32 %v6393, 0.0
      %6459 = vrot.lane.b32.xlu0 %v6395, 12
      %v6460 = vpop.permute.xlu0 %6459
      %6461 = vrot.lane.b32.xlu0 %v6396, 12
      %v6462 = vpop.permute.xlu0 %6461
      %6463 = vrot.lane.b32.xlu0 %v6397, 12
      %v6464 = vpop.permute.xlu0 %6463
      %6465 = vrot.lane.b32.xlu0 %v6398, 12
      %v6466 = vpop.permute.xlu0 %6465
      %6467 = vrot.lane.b32.xlu0 %v6399, 12
      %v6468 = vpop.permute.xlu0 %6467
      %6469 = vrot.lane.b32.xlu0 %v6400, 12
      %v6470 = vpop.permute.xlu0 %6469
      %6471 = vrot.lane.b32.xlu0 %v6401, 12
      %v6472 = vpop.permute.xlu0 %6471
      %6473 = vrot.lane.b32.xlu0 %v6402, 12
      %v6474 = vpop.permute.xlu0 %6473
      %6475 = vrot.lane.b32.xlu0 %v6403, 12
      %v6476 = vpop.permute.xlu0 %6475
      %6477 = vrot.lane.b32.xlu0 %v6404, 12
      %v6478 = vpop.permute.xlu0 %6477
      %6479 = vrot.lane.b32.xlu0 %v6405, 12
      %v6480 = vpop.permute.xlu0 %6479
      %6481 = vrot.lane.b32.xlu0 %v6406, 12
      %v6482 = vpop.permute.xlu0 %6481
      %6483 = vrot.lane.b32.xlu0 %v6407, 12
      %v6484 = vpop.permute.xlu0 %6483
      %6485 = vrot.lane.b32.xlu0 %v6408, 12
      %v6486 = vpop.permute.xlu0 %6485
      %6487 = vrot.lane.b32.xlu0 %v6409, 12
      %v6488 = vpop.permute.xlu0 %6487
      %6489 = vrot.lane.b32.xlu0 %v6410, 12
      %v6490 = vpop.permute.xlu0 %6489
      %6491 = vrot.lane.b32.xlu0 %v6411, 12
      %v6492 = vpop.permute.xlu0 %6491
      %6493 = vrot.lane.b32.xlu0 %v6412, 12
      %v6494 = vpop.permute.xlu0 %6493
      %6495 = vrot.lane.b32.xlu0 %v6413, 12
      %v6496 = vpop.permute.xlu0 %6495
      %6497 = vrot.lane.b32.xlu0 %v6414, 12
      %v6498 = vpop.permute.xlu0 %6497
      %6499 = vrot.lane.b32.xlu0 %v6415, 12
      %v6500 = vpop.permute.xlu0 %6499
      %6501 = vrot.lane.b32.xlu0 %v6416, 12
      %v6502 = vpop.permute.xlu0 %6501
      %6503 = vrot.lane.b32.xlu0 %v6417, 12
      %v6504 = vpop.permute.xlu0 %6503
      %6505 = vrot.lane.b32.xlu0 %v6418, 12
      %v6506 = vpop.permute.xlu0 %6505
      %6507 = vrot.lane.b32.xlu0 %v6419, 12
      %v6508 = vpop.permute.xlu0 %6507
      %6509 = vrot.lane.b32.xlu0 %v6420, 12
      %v6510 = vpop.permute.xlu0 %6509
      %6511 = vrot.lane.b32.xlu0 %v6421, 12
      %v6512 = vpop.permute.xlu0 %6511
      %6513 = vrot.lane.b32.xlu0 %v6422, 12
      %v6514 = vpop.permute.xlu0 %6513
      %6515 = vrot.lane.b32.xlu0 %v6423, 12
      %v6516 = vpop.permute.xlu0 %6515
      %6517 = vrot.lane.b32.xlu0 %v6424, 12
      %v6518 = vpop.permute.xlu0 %6517
      %6519 = vrot.lane.b32.xlu0 %v6425, 12
      %v6520 = vpop.permute.xlu0 %6519
      %6521 = vrot.lane.b32.xlu0 %v6426, 12
      %v6522 = vpop.permute.xlu0 %6521
      %vm6555 = vcmask 130144
      %6556 = vst.msk [vmem:[%s323 + $0x1] sm:$0xff] %vm6555, %v6460
      %6557 = vst.msk [vmem:[%s323 + $0x9] sm:$0xff] %vm6555, %v6462
      %6558 = vst.msk [vmem:[%s323 + $0x19] sm:$0xff] %vm6555, %v6464
      %6559 = vst.msk [vmem:[%s323 + $0x21] sm:$0xff] %vm6555, %v6466
      %6560 = vst.msk [vmem:[%s323 + $0x31] sm:$0xff] %vm6555, %v6468
      %6561 = vst.msk [vmem:[%s323 + $0x39] sm:$0xff] %vm6555, %v6470
      %6562 = vst.msk [vmem:[%s323 + $0x49] sm:$0xff] %vm6555, %v6472
      %6563 = vst.msk [vmem:[%s323 + $0x51] sm:$0xff] %vm6555, %v6474
      %6564 = vst.msk [vmem:[%s323 + $0x61] sm:$0xff] %vm6555, %v6476
      %6565 = vst.msk [vmem:[%s323 + $0x69] sm:$0xff] %vm6555, %v6478
      %6566 = vst.msk [vmem:[%s323 + $0x79] sm:$0xff] %vm6555, %v6480
      %6567 = vst.msk [vmem:[%s323 + $0x81] sm:$0xff] %vm6555, %v6482
      %6568 = vst.msk [vmem:[%s323 + $0x91] sm:$0xff] %vm6555, %v6484
      %6569 = vst.msk [vmem:[%s323 + $0x99] sm:$0xff] %vm6555, %v6486
      %6570 = vst.msk [vmem:[%s323 + $0xa9] sm:$0xff] %vm6555, %v6488
      %6571 = vst.msk [vmem:[%s323 + $0xb1] sm:$0xff] %vm6555, %v6490
      %6572 = vst.msk [vmem:[%s323 + $0xc1] sm:$0xff] %vm6555, %v6492
      %6573 = vst.msk [vmem:[%s323 + $0xc9] sm:$0xff] %vm6555, %v6494
      %6574 = vst.msk [vmem:[%s323 + $0xd9] sm:$0xff] %vm6555, %v6496
      %6575 = vst.msk [vmem:[%s323 + $0xe1] sm:$0xff] %vm6555, %v6498
      %6576 = vst.msk [vmem:[%s323 + $0xf1] sm:$0xff] %vm6555, %v6500
      %6577 = vst.msk [vmem:[%s323 + $0xf9] sm:$0xff] %vm6555, %v6502
      %6578 = vst.msk [vmem:[%s323 + $0x109] sm:$0xff] %vm6555, %v6504
      %6579 = vst.msk [vmem:[%s323 + $0x111] sm:$0xff] %vm6555, %v6506
      %6580 = vst.msk [vmem:[%s323 + $0x121] sm:$0xff] %vm6555, %v6508
      %6581 = vst.msk [vmem:[%s323 + $0x129] sm:$0xff] %vm6555, %v6510
      %6582 = vst.msk [vmem:[%s323 + $0x139] sm:$0xff] %vm6555, %v6512
      %6583 = vst.msk [vmem:[%s323 + $0x141] sm:$0xff] %vm6555, %v6514
      %6584 = vst.msk [vmem:[%s323 + $0x151] sm:$0xff] %vm6555, %v6516
      %6585 = vst.msk [vmem:[%s323 + $0x159] sm:$0xff] %vm6555, %v6518
      %6586 = vst.msk [vmem:[%s323 + $0x169] sm:$0xff] %vm6555, %v6520
      %6587 = vst.msk [vmem:[%s323 + $0x171] sm:$0xff] %vm6555, %v6522
      %v6588 = vld [vmem:[%s323 + $0x1] sm:$0xff]
      %v6589 = vld [vmem:[%s323 + $0x9] sm:$0xff]
      %v6590 = vld [vmem:[%s323 + $0x19] sm:$0xff]
      %v6591 = vld [vmem:[%s323 + $0x21] sm:$0xff]
      %v6592 = vld [vmem:[%s323 + $0x31] sm:$0xff]
      %v6593 = vld [vmem:[%s323 + $0x39] sm:$0xff]
      %v6594 = vld [vmem:[%s323 + $0x49] sm:$0xff]
      %v6595 = vld [vmem:[%s323 + $0x51] sm:$0xff]
      %v6596 = vld [vmem:[%s323 + $0x61] sm:$0xff]
      %v6597 = vld [vmem:[%s323 + $0x69] sm:$0xff]
      %v6598 = vld [vmem:[%s323 + $0x79] sm:$0xff]
      %v6599 = vld [vmem:[%s323 + $0x81] sm:$0xff]
      %v6600 = vld [vmem:[%s323 + $0x91] sm:$0xff]
      %v6601 = vld [vmem:[%s323 + $0x99] sm:$0xff]
      %v6602 = vld [vmem:[%s323 + $0xa9] sm:$0xff]
      %v6603 = vld [vmem:[%s323 + $0xb1] sm:$0xff]
      %v6604 = vld [vmem:[%s323 + $0xc1] sm:$0xff]
      %v6605 = vld [vmem:[%s323 + $0xc9] sm:$0xff]
      %v6606 = vld [vmem:[%s323 + $0xd9] sm:$0xff]
      %v6607 = vld [vmem:[%s323 + $0xe1] sm:$0xff]
      %v6608 = vld [vmem:[%s323 + $0xf1] sm:$0xff]
      %v6609 = vld [vmem:[%s323 + $0xf9] sm:$0xff]
      %v6610 = vld [vmem:[%s323 + $0x109] sm:$0xff]
      %v6611 = vld [vmem:[%s323 + $0x111] sm:$0xff]
      %v6612 = vld [vmem:[%s323 + $0x121] sm:$0xff]
      %v6613 = vld [vmem:[%s323 + $0x129] sm:$0xff]
      %v6614 = vld [vmem:[%s323 + $0x139] sm:$0xff]
      %v6615 = vld [vmem:[%s323 + $0x141] sm:$0xff]
      %v6616 = vld [vmem:[%s323 + $0x151] sm:$0xff]
      %v6617 = vld [vmem:[%s323 + $0x159] sm:$0xff]
      %v6618 = vld [vmem:[%s323 + $0x169] sm:$0xff]
      %v6619 = vld [vmem:[%s323 + $0x171] sm:$0xff]
      %v6620 = vld [vmem:[%s2] sm:$0xff]
      %v6621 = vld [vmem:[%s2 + $0x8] sm:$0xff]
      %v6623 = vsel %vm171, %v6588, 0
      %v6626 = vsel %vm171, %v6589, 0
      %v6629 = vsel %vm171, %v6590, 0
      %v6632 = vsel %vm171, %v6591, 0
      %v6635 = vsel %vm171, %v6592, 0
      %v6638 = vsel %vm171, %v6593, 0
      %v6641 = vsel %vm171, %v6594, 0
      %v6644 = vsel %vm171, %v6595, 0
      %v6647 = vsel %vm171, %v6596, 0
      %v6650 = vsel %vm171, %v6597, 0
      %v6653 = vsel %vm171, %v6598, 0
      %v6656 = vsel %vm171, %v6599, 0
      %v6659 = vsel %vm171, %v6600, 0
      %v6662 = vsel %vm171, %v6601, 0
      %v6665 = vsel %vm171, %v6602, 0
      %v6668 = vsel %vm171, %v6603, 0
      %v6671 = vsel %vm171, %v6604, 0
      %v6674 = vsel %vm171, %v6605, 0
      %v6677 = vsel %vm171, %v6606, 0
      %v6680 = vsel %vm171, %v6607, 0
      %v6683 = vsel %vm171, %v6608, 0
      %v6686 = vsel %vm171, %v6609, 0
      %v6689 = vsel %vm171, %v6610, 0
      %v6692 = vsel %vm171, %v6611, 0
      %v6695 = vsel %vm171, %v6612, 0
      %v6698 = vsel %vm171, %v6613, 0
      %v6701 = vsel %vm171, %v6614, 0
      %v6704 = vsel %vm171, %v6615, 0
      %v6707 = vsel %vm171, %v6616, 0
      %v6710 = vsel %vm171, %v6617, 0
      %v6713 = vsel %vm171, %v6618, 0
      %v6716 = vsel %vm171, %v6619, 0
      %6718 = vmatpush.msra.mxu0 0.0
      %6719 = vmatpush.msra.mxu0 0.0
      %6720 = vmatpush.msra.mxu0 0.0
      %6721 = vmatpush.msra.mxu0 0.0
      %6722 = vmatpush.msra.mxu0 0.0
      %6723 = vmatpush.msra.mxu0 0.0
      %6724 = vmatpush.msra.mxu0 0.0
      %6725 = vmatpush.msra.mxu0 0.0
      %6726 = vmatpush.msra.mxu0 0.0
      %6727 = vmatpush.msra.mxu0 0.0
      %6728 = vmatpush.msra.mxu0 0.0
      %6729 = vmatpush.msra.mxu0 0.0
      %6730 = vmatpush.msra.mxu0 0.0
      %6731 = vmatpush.msra.mxu0 0.0
      %6732 = vmatpush.msra.mxu0 %v6621
      %6733 = vmatpush.msra.mxu0 %v6620
      %6734 = vmatmul.f32.gmra.mxu0 %v6623
      %v6735 = vpop.f32.mrf.mxu0
      %v6736 = vadd.f32 %v291, %v6735
      %6737 = vmatmul.f32.gmra.mxu0 %v6626
      %v6738 = vpop.f32.mrf.mxu0
      %v6739 = vadd.f32 %v292, %v6738
      %6740 = vmatmul.f32.gmra.mxu0 %v6629
      %v6741 = vpop.f32.mrf.mxu0
      %v6742 = vadd.f32 %v293, %v6741
      %6743 = vmatmul.f32.gmra.mxu0 %v6632
      %v6744 = vpop.f32.mrf.mxu0
      %v6745 = vadd.f32 %v294, %v6744
      %6746 = vmatmul.f32.gmra.mxu0 %v6635
      %v6747 = vpop.f32.mrf.mxu0
      %v6748 = vadd.f32 %v295, %v6747
      %6749 = vmatmul.f32.gmra.mxu0 %v6638
      %v6750 = vpop.f32.mrf.mxu0
      %v6751 = vadd.f32 %v296, %v6750
      %6752 = vmatmul.f32.gmra.mxu0 %v6641
      %v6753 = vpop.f32.mrf.mxu0
      %v6754 = vadd.f32 %v297, %v6753
      %6755 = vmatmul.f32.gmra.mxu0 %v6644
      %v6756 = vpop.f32.mrf.mxu0
      %v6757 = vadd.f32 %v298, %v6756
      %6758 = vmatmul.f32.gmra.mxu0 %v6647
      %v6759 = vpop.f32.mrf.mxu0
      %v6760 = vadd.f32 %v299, %v6759
      %6761 = vmatmul.f32.gmra.mxu0 %v6650
      %v6762 = vpop.f32.mrf.mxu0
      %v6763 = vadd.f32 %v300, %v6762
      %6764 = vmatmul.f32.gmra.mxu0 %v6653
      %v6765 = vpop.f32.mrf.mxu0
      %v6766 = vadd.f32 %v301, %v6765
      %6767 = vmatmul.f32.gmra.mxu0 %v6656
      %v6768 = vpop.f32.mrf.mxu0
      %v6769 = vadd.f32 %v302, %v6768
      %6770 = vmatmul.f32.gmra.mxu0 %v6659
      %v6771 = vpop.f32.mrf.mxu0
      %v6772 = vadd.f32 %v303, %v6771
      %6773 = vmatmul.f32.gmra.mxu0 %v6662
      %v6774 = vpop.f32.mrf.mxu0
      %v6775 = vadd.f32 %v304, %v6774
      %6776 = vmatmul.f32.gmra.mxu0 %v6665
      %v6777 = vpop.f32.mrf.mxu0
      %v6778 = vadd.f32 %v305, %v6777
      %6779 = vmatmul.f32.gmra.mxu0 %v6668
      %v6780 = vpop.f32.mrf.mxu0
      %v6781 = vadd.f32 %v306, %v6780
      %6782 = vmatmul.f32.gmra.mxu0 %v6671
      %v6783 = vpop.f32.mrf.mxu0
      %v6784 = vadd.f32 %v307, %v6783
      %6785 = vmatmul.f32.gmra.mxu0 %v6674
      %v6786 = vpop.f32.mrf.mxu0
      %v6787 = vadd.f32 %v308, %v6786
      %6788 = vmatmul.f32.gmra.mxu0 %v6677
      %v6789 = vpop.f32.mrf.mxu0
      %v6790 = vadd.f32 %v309, %v6789
      %6791 = vmatmul.f32.gmra.mxu0 %v6680
      %v6792 = vpop.f32.mrf.mxu0
      %v6793 = vadd.f32 %v310, %v6792
      %6794 = vmatmul.f32.gmra.mxu0 %v6683
      %v6795 = vpop.f32.mrf.mxu0
      %v6796 = vadd.f32 %v311, %v6795
      %6797 = vmatmul.f32.gmra.mxu0 %v6686
      %v6798 = vpop.f32.mrf.mxu0
      %v6799 = vadd.f32 %v312, %v6798
      %6800 = vmatmul.f32.gmra.mxu0 %v6689
      %v6801 = vpop.f32.mrf.mxu0
      %v6802 = vadd.f32 %v313, %v6801
      %6803 = vmatmul.f32.gmra.mxu0 %v6692
      %v6804 = vpop.f32.mrf.mxu0
      %v6805 = vadd.f32 %v314, %v6804
      %6806 = vmatmul.f32.gmra.mxu0 %v6695
      %v6807 = vpop.f32.mrf.mxu0
      %v6808 = vadd.f32 %v315, %v6807
      %6809 = vmatmul.f32.gmra.mxu0 %v6698
      %v6810 = vpop.f32.mrf.mxu0
      %v6811 = vadd.f32 %v316, %v6810
      %6812 = vmatmul.f32.gmra.mxu0 %v6701
      %v6813 = vpop.f32.mrf.mxu0
      %v6814 = vadd.f32 %v317, %v6813
      %6815 = vmatmul.f32.gmra.mxu0 %v6704
      %v6816 = vpop.f32.mrf.mxu0
      %v6817 = vadd.f32 %v318, %v6816
      %6818 = vmatmul.f32.gmra.mxu0 %v6707
      %v6819 = vpop.f32.mrf.mxu0
      %v6820 = vadd.f32 %v319, %v6819
      %6821 = vmatmul.f32.gmra.mxu0 %v6710
      %v6822 = vpop.f32.mrf.mxu0
      %v6823 = vadd.f32 %v320, %v6822
      %6824 = vmatmul.f32.gmra.mxu0 %v6713
      %v6825 = vpop.f32.mrf.mxu0
      %v6826 = vadd.f32 %v321, %v6825
      %6827 = vmatmul.f32.gmra.mxu0 %v6716
      %v6828 = vpop.f32.mrf.mxu0
      %v6829 = vadd.f32 %v322, %v6828
      %6830 = vdwg.mxu0
      %6831 = vst.msk [vmem:[%s170] sm:$0xff] %vm324, %v6736
      %6832 = vst.msk [vmem:[%s170 + $0x8] sm:$0xff] %vm324, %v6739
      %6833 = vst.msk [vmem:[%s170 + $0x10] sm:$0xff] %vm324, %v6742
      %6834 = vst.msk [vmem:[%s170 + $0x18] sm:$0xff] %vm324, %v6745
      %6835 = vst.msk [vmem:[%s170 + $0x20] sm:$0xff] %vm324, %v6748
      %6836 = vst.msk [vmem:[%s170 + $0x28] sm:$0xff] %vm324, %v6751
      %6837 = vst.msk [vmem:[%s170 + $0x30] sm:$0xff] %vm324, %v6754
      %6838 = vst.msk [vmem:[%s170 + $0x38] sm:$0xff] %vm324, %v6757
      %6839 = vst.msk [vmem:[%s170 + $0x40] sm:$0xff] %vm324, %v6760
      %6840 = vst.msk [vmem:[%s170 + $0x48] sm:$0xff] %vm324, %v6763
      %6841 = vst.msk [vmem:[%s170 + $0x50] sm:$0xff] %vm324, %v6766
      %6842 = vst.msk [vmem:[%s170 + $0x58] sm:$0xff] %vm324, %v6769
      %6843 = vst.msk [vmem:[%s170 + $0x60] sm:$0xff] %vm324, %v6772
      %6844 = vst.msk [vmem:[%s170 + $0x68] sm:$0xff] %vm324, %v6775
      %6845 = vst.msk [vmem:[%s170 + $0x70] sm:$0xff] %vm324, %v6778
      %6846 = vst.msk [vmem:[%s170 + $0x78] sm:$0xff] %vm324, %v6781
      %6847 = vst.msk [vmem:[%s170 + $0x80] sm:$0xff] %vm324, %v6784
      %6848 = vst.msk [vmem:[%s170 + $0x88] sm:$0xff] %vm324, %v6787
      %6849 = vst.msk [vmem:[%s170 + $0x90] sm:$0xff] %vm324, %v6790
      %6850 = vst.msk [vmem:[%s170 + $0x98] sm:$0xff] %vm324, %v6793
      %6851 = vst.msk [vmem:[%s170 + $0xa0] sm:$0xff] %vm324, %v6796
      %6852 = vst.msk [vmem:[%s170 + $0xa8] sm:$0xff] %vm324, %v6799
      %6853 = vst.msk [vmem:[%s170 + $0xb0] sm:$0xff] %vm324, %v6802
      %6854 = vst.msk [vmem:[%s170 + $0xb8] sm:$0xff] %vm324, %v6805
      %6855 = vst.msk [vmem:[%s170 + $0xc0] sm:$0xff] %vm324, %v6808
      %6856 = vst.msk [vmem:[%s170 + $0xc8] sm:$0xff] %vm324, %v6811
      %6857 = vst.msk [vmem:[%s170 + $0xd0] sm:$0xff] %vm324, %v6814
      %6858 = vst.msk [vmem:[%s170 + $0xd8] sm:$0xff] %vm324, %v6817
      %6859 = vst.msk [vmem:[%s170 + $0xe0] sm:$0xff] %vm324, %v6820
      %6860 = vst.msk [vmem:[%s170 + $0xe8] sm:$0xff] %vm324, %v6823
      %6861 = vst.msk [vmem:[%s170 + $0xf0] sm:$0xff] %vm324, %v6826
      %6862 = vst.msk [vmem:[%s170 + $0xf8] sm:$0xff] %vm324, %v6829
      %p6863 = scmp.lt.s32.totalorder %s14, 1
      %s6864 = scalar_select %p6863, %s14, 1
      %s6865 = smul.addr %s6864, 32
      %s6866 = smul.addr %s6865, 8
      %s6867 = scalar_lea.vmem %s3, %s6866
      // Predicated region
      $region33: #{tpu_custom_call.1} parent=31 // pred_check
        %p6868 = pneg %p100
      $region34: #{tpu_custom_call.1} parent=31 // pred_check_branch
        %6870 = sbr.rel (%p6868) target = $region36
      $region35: #{tpu_custom_call.1} parent=31 // pred_region
        _
      $region36: #{tpu_custom_call.1} parent=31 // pred_fallthru
        _
    $region32: #{tpu_custom_call.1} parent=5 // pred_fallthru
      _
    %p6871 = scmp.le.s32.totalorder 2, %s9
    // Predicated region
    $region37: #{tpu_custom_call.1} parent=5 // pred_check
      %p6872 = pneg %p6871
    $region38: #{tpu_custom_call.1} parent=5 // pred_check_branch
      %6874 = sbr.rel (%p6872) target = $region40
    $region39: #{tpu_custom_call.1} parent=5 // pred_region
      %s6875 = ssub.s32 %s9, 2
      // Predicated region
      $region41: #{tpu_custom_call.1} parent=39 // pred_check
        %p6876 = pneg %p106
      $region42: #{tpu_custom_call.1} parent=39 // pred_check_branch
        %6878 = sbr.rel (%p6876) target = $region44
      $region43: #{tpu_custom_call.1} parent=39 // pred_region
        %p6879 = scmp.lt.s32.totalorder %s15, 1
        %s6880 = scalar_select %p6879, %s15, 1
        %s6881 = smul.addr %s6880, 32
        %s6882 = smul.addr %s6881, 8
        %s6883 = scalar_lea.vmem %s3, %s6882
      $region44: #{tpu_custom_call.1} parent=39 // pred_fallthru
        _
    $region40: #{tpu_custom_call.1} parent=5 // pred_fallthru
      _
  $region6: #{tpu_custom_call.1} parent=0 // loop_footer
    %s13 = sadd.s32 1, %s9
  $region7: #{tpu_custom_call.1} parent=0 // loop_footer_branch
    %8 = sbr.rel target = $region3
  $region8: #{tpu_custom_call.1} parent=0 // loop_exit
    _

</llo_original>
